<compile_context>
chip_gen: v6e
topology: v6e:2x2x1
jax: 0.10.0
libtpu: 0.0.40
codegen_flags: <defaults>
</compile_context>

<pallas_src>
import functools

import jax
import jax.numpy as jnp
from jax.experimental import pallas as pl
from jax.experimental.pallas import tpu as pltpu


def encoder_kernel(xp_ref, w1_ref, w2_ref, w3_ref, b1_ref, b2_ref, b3_ref,
                   o_ref, pad_a, pad_b):
    # xp_ref : (H+2, Nb, W)      H-zero-padded single-channel frames (y-major rows)
    # w1_ref : (3, W,   W*C)     banded conv1 weights (one band per kernel row dy)
    # w2_ref : (3, W*C, W*C)     banded conv2 weights
    # w3_ref : (3, W*C, W*C)     banded conv3 weights
    # b*_ref : (1, W*C)          biases tiled across W (column index = x*C + c)
    # o_ref  : (H, Nb, W*C)      lane-dense output, row = (y, frame)
    # pad_a, pad_b : VMEM scratch (H+2, Nb, W*C)  H-halo buffers
    Hp2, Nb, W = xp_ref.shape
    H = Hp2 - 2
    WC = o_ref.shape[2]
    M = H * Nb

    zero_rows = jnp.zeros((1, Nb, WC), jnp.float32)

    # ---------------- conv1 + ReLU (single input channel, MXU) ----------------
    acc = jnp.dot(xp_ref[0:H, :, :].reshape(M, W), w1_ref[0],
                  preferred_element_type=jnp.float32)
    for dy in (1, 2):
        acc = acc + jnp.dot(xp_ref[dy:dy + H, :, :].reshape(M, W), w1_ref[dy],
                            preferred_element_type=jnp.float32)
    a1 = jnp.maximum(acc + b1_ref[...], 0.0)            # (M, W*C)

    # stash H-padded activation; zero only the two halo rows (interior overwritten)
    pad_a[0:1, :, :] = zero_rows
    pad_a[H + 1:H + 2, :, :] = zero_rows
    pad_a[1:H + 1, :, :] = a1.reshape(H, Nb, WC)

    # ---------------- conv2 + ReLU ----------------
    acc = jnp.dot(pad_a[0:H, :, :].reshape(M, WC), w2_ref[0],
                  preferred_element_type=jnp.float32)
    for dy in (1, 2):
        acc = acc + jnp.dot(pad_a[dy:dy + H, :, :].reshape(M, WC), w2_ref[dy],
                            preferred_element_type=jnp.float32)
    a2 = jnp.maximum(acc + b2_ref[...], 0.0)

    pad_b[0:1, :, :] = zero_rows
    pad_b[H + 1:H + 2, :, :] = zero_rows
    pad_b[1:H + 1, :, :] = a2.reshape(H, Nb, WC)

    # ---------------- conv3 + ReLU ----------------
    acc = jnp.dot(pad_b[0:H, :, :].reshape(M, WC), w3_ref[0],
                  preferred_element_type=jnp.float32)
    for dy in (1, 2):
        acc = acc + jnp.dot(pad_b[dy:dy + H, :, :].reshape(M, WC), w3_ref[dy],
                            preferred_element_type=jnp.float32)
    a3 = jnp.maximum(acc + b3_ref[...], 0.0)

    o_ref[...] = a3.reshape(H, Nb, WC)


# ---------------- host-side banded weight construction ----------------

def _band_conv1(w_hwio, W):
    """(3,3,1,C) HWIO -> (3, W, W*C): A[dy][w_in, x*C+c] = w[dy, w_in-x+1, 0, c]."""
    C = w_hwio.shape[-1]
    bands = []
    for dy in range(3):
        acc = jnp.zeros((W, W, C), jnp.float32)
        for dx in range(3):
            sel = jnp.eye(W, W, k=1 - dx, dtype=jnp.float32)  # sel[w_in, x]=1 iff w_in=x+dx-1
            acc = acc + sel[:, :, None] * w_hwio[dy, dx, 0][None, None, :]
        bands.append(acc.reshape(W, W * C))
    return jnp.stack(bands)


def _band_conv(w_hwio, W):
    """(3,3,C,C) HWIO -> (3, W*C, W*C):
    B[dy][w_in*C+ci, x*C+co] = w[dy, w_in-x+1, ci, co]  (zero outside the band)."""
    C = w_hwio.shape[-1]
    bands = []
    for dy in range(3):
        acc = jnp.zeros((W, C, W, C), jnp.float32)
        for dx in range(3):
            sel = jnp.eye(W, W, k=1 - dx, dtype=jnp.float32)
            acc = acc + sel[:, None, :, None] * w_hwio[dy, dx][None, :, None, :]
        bands.append(acc.reshape(W * C, W * C))
    return jnp.stack(bands)


def video_encoder_sliding(x, weights, frames_per_block=8):
    """x: (B, T, 1, H, W) f32 -> (B, T, C, H, W) f32 (matches the PyTorch module)."""
    B, T, Cin, H, W = x.shape
    assert Cin == 1
    N = B * T
    C = weights["w1"].shape[-1]
    WC = W * C

    Nb = min(frames_per_block, N)
    num_blocks = pl.cdiv(N, Nb)
    Npad = num_blocks * Nb

    # Banded weights + row-tiled biases (built once per call; cached under jit).
    w1b = _band_conv1(weights["w1"], W)
    w2b = _band_conv(weights["w2"], W)
    w3b = _band_conv(weights["w3"], W)
    b1r = jnp.tile(weights["b1"].reshape(-1), W).reshape(1, WC)
    b2r = jnp.tile(weights["b2"].reshape(-1), W).reshape(1, WC)
    b3r = jnp.tile(weights["b3"].reshape(-1), W).reshape(1, WC)

    # (B,T,1,H,W) -> (H+2, Npad, W): squeeze channel, zero-pad H (SAME),
    # move the frame axis onto sublanes (y-major row order), pad frame count.
    xh = x.reshape(N, H, W)
    xp = jnp.pad(xh, ((0, 0), (1, 1), (0, 0)))             # (N, H+2, W)
    xp = jnp.transpose(xp, (1, 0, 2))                      # (H+2, N, W)
    xp = jnp.pad(xp, ((0, 0), (0, Npad - N), (0, 0)))      # (H+2, Npad, W)

    out = pl.pallas_call(
        encoder_kernel,
        out_shape=jax.ShapeDtypeStruct((H, Npad, WC), jnp.float32),
        grid_spec=pltpu.PrefetchScalarGridSpec(
            num_scalar_prefetch=0,
            grid=(num_blocks,),
            in_specs=[
                pl.BlockSpec((H + 2, Nb, W), lambda n: (0, n, 0)),
                pl.BlockSpec((3, W, WC), lambda n: (0, 0, 0)),
                pl.BlockSpec((3, WC, WC), lambda n: (0, 0, 0)),
                pl.BlockSpec((3, WC, WC), lambda n: (0, 0, 0)),
                pl.BlockSpec((1, WC), lambda n: (0, 0)),
                pl.BlockSpec((1, WC), lambda n: (0, 0)),
                pl.BlockSpec((1, WC), lambda n: (0, 0)),
            ],
            out_specs=pl.BlockSpec((H, Nb, WC), lambda n: (0, n, 0)),
            scratch_shapes=[
                pltpu.VMEM((H + 2, Nb, WC), jnp.float32),
                pltpu.VMEM((H + 2, Nb, WC), jnp.float32),
            ],
        ),
        compiler_params=pltpu.CompilerParams(
            dimension_semantics=("parallel",),
            vmem_limit_bytes=32 * 1024 * 1024,
        ),
    )(xp, w1b, w2b, w3b, b1r, b2r, b3r)

    # (H, Npad, W*C) -> (B, T, C, H, W); rows are (y, frame), columns are x*C + c.
    out = out[:, :N].reshape(H, N, W, C)
    return jnp.transpose(out, (1, 3, 0, 2)).reshape(B, T, C, H, W)


# ---------------- reference + test harness ----------------

def make_weights(base_channels=32):
    key = jax.random.PRNGKey(0)
    k = jax.random.split(key, 6)
    C = base_channels
    return {
        "w1": jax.random.normal(k[0], (3, 3, 1, C), jnp.float32) * 0.20,
        "b1": jax.random.normal(k[1], (C,), jnp.float32) * 0.10,
        "w2": jax.random.normal(k[2], (3, 3, C, C), jnp.float32) * 0.05,
        "b2": jax.random.normal(k[3], (C,), jnp.float32) * 0.10,
        "w3": jax.random.normal(k[4], (3, 3, C, C), jnp.float32) * 0.05,
        "b3": jax.random.normal(k[5], (C,), jnp.float32) * 0.10,
    }


def ref_forward(x, weights):
    """Pure-JAX reference matching the PyTorch forward (NCHW conv, SAME pad, ReLU)."""
    B, T, Cin, H, W = x.shape
    y = x.reshape(B * T, Cin, H, W)
    for wn, bn in (("w1", "b1"), ("w2", "b2"), ("w3", "b3")):
        w_oihw = jnp.transpose(weights[wn], (3, 2, 0, 1))
        y = jax.lax.conv_general_dilated(
            y, w_oihw, window_strides=(1, 1), padding="SAME",
            dimension_numbers=("NCHW", "OIHW", "NCHW"),
            precision=jax.lax.Precision.HIGHEST)
        y = jnp.maximum(y + weights[bn].reshape(1, -1, 1, 1), 0.0)
    return y.reshape(B, T, -1, H, W)


if __name__ == "__main__":
    B, T, Cin, H, W = 2, 4, 1, 16, 16
    base_channels = 32

    weights = make_weights(base_channels)
    x = jax.random.normal(jax.random.fold_in(jax.random.PRNGKey(0), 7),
                          (B, T, Cin, H, W), jnp.float32)

    fwd = jax.jit(functools.partial(video_encoder_sliding, frames_per_block=8))
    out = jax.block_until_ready(fwd(x, weights))

    ref = jax.block_until_ready(ref_forward(x, weights))
    assert out.shape == (B, T, base_channels, H, W), out.shape
    max_err = float(jnp.max(jnp.abs(out - ref)))
    if max_err > 5e-3:
        raise AssertionError(f"mismatch vs reference: max abs err = {max_err}")

    print("KERNEL_OK")
</pallas_src>

<mosaic_0001>
module attributes {stable_mosaic.version = 11 : i64} {
  func.func @encoder_kernel(%arg0: i32, %arg1: memref<18x8x16xf32, #tpu.memory_space<vmem>>, %arg2: memref<3x16x512xf32, #tpu.memory_space<vmem>>, %arg3: memref<3x512x512xf32, #tpu.memory_space<vmem>>, %arg4: memref<3x512x512xf32, #tpu.memory_space<vmem>>, %arg5: memref<1x512xf32, #tpu.memory_space<vmem>>, %arg6: memref<1x512xf32, #tpu.memory_space<vmem>>, %arg7: memref<1x512xf32, #tpu.memory_space<vmem>>, %arg8: memref<16x8x512xf32, #tpu.memory_space<vmem>>, %arg9: memref<18x8x512xf32, #tpu.memory_space<vmem>>, %arg10: memref<18x8x512xf32, #tpu.memory_space<vmem>>) attributes {dimension_semantics = [#tpu.dimension_semantics<parallel>], iteration_bounds = array<i64: 1>, scalar_prefetch = 0 : i64, scratch_operands = 2 : i64, tpu.core_type = #tpu.core_type<tc>, window_params = [{transform_indices = @transform_0, window_bounds = array<i64: 18, 8, 16>}, {pipeline_mode = #tpu.pipeline_mode<synchronous>, transform_indices = @transform_1, window_bounds = array<i64: 3, 16, 512>}, {pipeline_mode = #tpu.pipeline_mode<synchronous>, transform_indices = @transform_2, window_bounds = array<i64: 3, 512, 512>}, {pipeline_mode = #tpu.pipeline_mode<synchronous>, transform_indices = @transform_3, window_bounds = array<i64: 3, 512, 512>}, {pipeline_mode = #tpu.pipeline_mode<synchronous>, transform_indices = @transform_4, window_bounds = array<i64: 1, 512>}, {pipeline_mode = #tpu.pipeline_mode<synchronous>, transform_indices = @transform_5, window_bounds = array<i64: 1, 512>}, {pipeline_mode = #tpu.pipeline_mode<synchronous>, transform_indices = @transform_6, window_bounds = array<i64: 1, 512>}, {transform_indices = @transform_7, window_bounds = array<i64: 16, 8, 512>}]} {
    %cst = arith.constant 0.000000e+00 : f32
    %0 = vector.broadcast %cst : f32 to vector<1x8x512xf32>
    %c0 = arith.constant 0 : index
    %c0_0 = arith.constant 0 : index
    %c0_1 = arith.constant 0 : index
    %1 = vector.load %arg1[%c0, %c0_0, %c0_1] : memref<18x8x16xf32, #tpu.memory_space<vmem>>, vector<16x8x16xf32>
    %2 = vector.shape_cast %1 : vector<16x8x16xf32> to vector<128x16xf32>
    %c0_2 = arith.constant 0 : index
    %c0_3 = arith.constant 0 : index
    %c0_4 = arith.constant 0 : index
    %3 = vector.load %arg2[%c0_2, %c0_3, %c0_4] : memref<3x16x512xf32, #tpu.memory_space<vmem>>, vector<1x16x512xf32>
    %4 = vector.shape_cast %3 : vector<1x16x512xf32> to vector<16x512xf32>
    %cst_5 = arith.constant dense<0.000000e+00> : vector<128x512xf32>
    %5 = tpu.matmul %2, %4, %cst_5 {dimension_numbers = #tpu.dot_dimension_numbers<[1], [0], [0], [1], [0, 0, 1, 1], [], []>} : vector<128x16xf32>, vector<16x512xf32>, vector<128x512xf32> -> vector<128x512xf32>
    %c1 = arith.constant 1 : index
    %c0_6 = arith.constant 0 : index
    %c0_7 = arith.constant 0 : index
    %6 = vector.load %arg1[%c1, %c0_6, %c0_7] : memref<18x8x16xf32, #tpu.memory_space<vmem>>, vector<16x8x16xf32>
    %7 = vector.shape_cast %6 : vector<16x8x16xf32> to vector<128x16xf32>
    %c1_8 = arith.constant 1 : index
    %c0_9 = arith.constant 0 : index
    %c0_10 = arith.constant 0 : index
    %8 = vector.load %arg2[%c1_8, %c0_9, %c0_10] : memref<3x16x512xf32, #tpu.memory_space<vmem>>, vector<1x16x512xf32>
    %9 = vector.shape_cast %8 : vector<1x16x512xf32> to vector<16x512xf32>
    %cst_11 = arith.constant dense<0.000000e+00> : vector<128x512xf32>
    %10 = tpu.matmul %7, %9, %cst_11 {dimension_numbers = #tpu.dot_dimension_numbers<[1], [0], [0], [1], [0, 0, 1, 1], [], []>} : vector<128x16xf32>, vector<16x512xf32>, vector<128x512xf32> -> vector<128x512xf32>
    %11 = arith.addf %5, %10 : vector<128x512xf32>
    %c2 = arith.constant 2 : index
    %c0_12 = arith.constant 0 : index
    %c0_13 = arith.constant 0 : index
    %12 = vector.load %arg1[%c2, %c0_12, %c0_13] : memref<18x8x16xf32, #tpu.memory_space<vmem>>, vector<16x8x16xf32>
    %13 = vector.shape_cast %12 : vector<16x8x16xf32> to vector<128x16xf32>
    %c2_14 = arith.constant 2 : index
    %c0_15 = arith.constant 0 : index
    %c0_16 = arith.constant 0 : index
    %14 = vector.load %arg2[%c2_14, %c0_15, %c0_16] : memref<3x16x512xf32, #tpu.memory_space<vmem>>, vector<1x16x512xf32>
    %15 = vector.shape_cast %14 : vector<1x16x512xf32> to vector<16x512xf32>
    %cst_17 = arith.constant dense<0.000000e+00> : vector<128x512xf32>
    %16 = tpu.matmul %13, %15, %cst_17 {dimension_numbers = #tpu.dot_dimension_numbers<[1], [0], [0], [1], [0, 0, 1, 1], [], []>} : vector<128x16xf32>, vector<16x512xf32>, vector<128x512xf32> -> vector<128x512xf32>
    %17 = arith.addf %11, %16 : vector<128x512xf32>
    %c0_18 = arith.constant 0 : index
    %c0_19 = arith.constant 0 : index
    %18 = vector.load %arg5[%c0_18, %c0_19] : memref<1x512xf32, #tpu.memory_space<vmem>>, vector<1x512xf32>
    %19 = vector.broadcast %18 : vector<1x512xf32> to vector<128x512xf32>
    %20 = arith.addf %17, %19 : vector<128x512xf32>
    %cst_20 = arith.constant 0.000000e+00 : f32
    %21 = vector.broadcast %cst_20 : f32 to vector<128x512xf32>
    %22 = arith.maximumf %20, %21 : vector<128x512xf32>
    %c0_21 = arith.constant 0 : index
    %c0_22 = arith.constant 0 : index
    %c0_23 = arith.constant 0 : index
    %23 = vector.load %arg9[%c0_21, %c0_22, %c0_23] : memref<18x8x512xf32, #tpu.memory_space<vmem>>, vector<1x8x512xf32>
    tpu.vector_store %arg9[%c0_21, %c0_22, %c0_23], %0 {strides = array<i32>} : memref<18x8x512xf32, #tpu.memory_space<vmem>>, vector<1x8x512xf32>,
    %c17 = arith.constant 17 : index
    %c0_24 = arith.constant 0 : index
    %c0_25 = arith.constant 0 : index
    %24 = vector.load %arg9[%c17, %c0_24, %c0_25] : memref<18x8x512xf32, #tpu.memory_space<vmem>>, vector<1x8x512xf32>
    tpu.vector_store %arg9[%c17, %c0_24, %c0_25], %0 {strides = array<i32>} : memref<18x8x512xf32, #tpu.memory_space<vmem>>, vector<1x8x512xf32>,
    %25 = vector.shape_cast %22 : vector<128x512xf32> to vector<16x8x512xf32>
    %c1_26 = arith.constant 1 : index
    %c0_27 = arith.constant 0 : index
    %c0_28 = arith.constant 0 : index
    %26 = vector.load %arg9[%c1_26, %c0_27, %c0_28] : memref<18x8x512xf32, #tpu.memory_space<vmem>>, vector<16x8x512xf32>
    tpu.vector_store %arg9[%c1_26, %c0_27, %c0_28], %25 {strides = array<i32>} : memref<18x8x512xf32, #tpu.memory_space<vmem>>, vector<16x8x512xf32>,
    %c0_29 = arith.constant 0 : index
    %c0_30 = arith.constant 0 : index
    %c0_31 = arith.constant 0 : index
    %27 = vector.load %arg9[%c0_29, %c0_30, %c0_31] : memref<18x8x512xf32, #tpu.memory_space<vmem>>, vector<16x8x512xf32>
    %28 = vector.shape_cast %27 : vector<16x8x512xf32> to vector<128x512xf32>
    %c0_32 = arith.constant 0 : index
    %c0_33 = arith.constant 0 : index
    %c0_34 = arith.constant 0 : index
    %29 = vector.load %arg3[%c0_32, %c0_33, %c0_34] : memref<3x512x512xf32, #tpu.memory_space<vmem>>, vector<1x512x512xf32>
    %30 = vector.shape_cast %29 : vector<1x512x512xf32> to vector<512x512xf32>
    %cst_35 = arith.constant dense<0.000000e+00> : vector<128x512xf32>
    %31 = tpu.matmul %28, %30, %cst_35 {dimension_numbers = #tpu.dot_dimension_numbers<[1], [0], [0], [1], [0, 0, 1, 1], [], []>} : vector<128x512xf32>, vector<512x512xf32>, vector<128x512xf32> -> vector<128x512xf32>
    %c1_36 = arith.constant 1 : index
    %c0_37 = arith.constant 0 : index
    %c0_38 = arith.constant 0 : index
    %32 = vector.load %arg9[%c1_36, %c0_37, %c0_38] : memref<18x8x512xf32, #tpu.memory_space<vmem>>, vector<16x8x512xf32>
    %33 = vector.shape_cast %32 : vector<16x8x512xf32> to vector<128x512xf32>
    %c1_39 = arith.constant 1 : index
    %c0_40 = arith.constant 0 : index
    %c0_41 = arith.constant 0 : index
    %34 = vector.load %arg3[%c1_39, %c0_40, %c0_41] : memref<3x512x512xf32, #tpu.memory_space<vmem>>, vector<1x512x512xf32>
    %35 = vector.shape_cast %34 : vector<1x512x512xf32> to vector<512x512xf32>
    %cst_42 = arith.constant dense<0.000000e+00> : vector<128x512xf32>
    %36 = tpu.matmul %33, %35, %cst_42 {dimension_numbers = #tpu.dot_dimension_numbers<[1], [0], [0], [1], [0, 0, 1, 1], [], []>} : vector<128x512xf32>, vector<512x512xf32>, vector<128x512xf32> -> vector<128x512xf32>
    %37 = arith.addf %31, %36 : vector<128x512xf32>
    %c2_43 = arith.constant 2 : index
    %c0_44 = arith.constant 0 : index
    %c0_45 = arith.constant 0 : index
    %38 = vector.load %arg9[%c2_43, %c0_44, %c0_45] : memref<18x8x512xf32, #tpu.memory_space<vmem>>, vector<16x8x512xf32>
    %39 = vector.shape_cast %38 : vector<16x8x512xf32> to vector<128x512xf32>
    %c2_46 = arith.constant 2 : index
    %c0_47 = arith.constant 0 : index
    %c0_48 = arith.constant 0 : index
    %40 = vector.load %arg3[%c2_46, %c0_47, %c0_48] : memref<3x512x512xf32, #tpu.memory_space<vmem>>, vector<1x512x512xf32>
    %41 = vector.shape_cast %40 : vector<1x512x512xf32> to vector<512x512xf32>
    %cst_49 = arith.constant dense<0.000000e+00> : vector<128x512xf32>
    %42 = tpu.matmul %39, %41, %cst_49 {dimension_numbers = #tpu.dot_dimension_numbers<[1], [0], [0], [1], [0, 0, 1, 1], [], []>} : vector<128x512xf32>, vector<512x512xf32>, vector<128x512xf32> -> vector<128x512xf32>
    %43 = arith.addf %37, %42 : vector<128x512xf32>
    %c0_50 = arith.constant 0 : index
    %c0_51 = arith.constant 0 : index
    %44 = vector.load %arg6[%c0_50, %c0_51] : memref<1x512xf32, #tpu.memory_space<vmem>>, vector<1x512xf32>
    %45 = vector.broadcast %44 : vector<1x512xf32> to vector<128x512xf32>
    %46 = arith.addf %43, %45 : vector<128x512xf32>
    %cst_52 = arith.constant 0.000000e+00 : f32
    %47 = vector.broadcast %cst_52 : f32 to vector<128x512xf32>
    %48 = arith.maximumf %46, %47 : vector<128x512xf32>
    %c0_53 = arith.constant 0 : index
    %c0_54 = arith.constant 0 : index
    %c0_55 = arith.constant 0 : index
    %49 = vector.load %arg10[%c0_53, %c0_54, %c0_55] : memref<18x8x512xf32, #tpu.memory_space<vmem>>, vector<1x8x512xf32>
    tpu.vector_store %arg10[%c0_53, %c0_54, %c0_55], %0 {strides = array<i32>} : memref<18x8x512xf32, #tpu.memory_space<vmem>>, vector<1x8x512xf32>,
    %c17_56 = arith.constant 17 : index
    %c0_57 = arith.constant 0 : index
    %c0_58 = arith.constant 0 : index
    %50 = vector.load %arg10[%c17_56, %c0_57, %c0_58] : memref<18x8x512xf32, #tpu.memory_space<vmem>>, vector<1x8x512xf32>
    tpu.vector_store %arg10[%c17_56, %c0_57, %c0_58], %0 {strides = array<i32>} : memref<18x8x512xf32, #tpu.memory_space<vmem>>, vector<1x8x512xf32>,
    %51 = vector.shape_cast %48 : vector<128x512xf32> to vector<16x8x512xf32>
    %c1_59 = arith.constant 1 : index
    %c0_60 = arith.constant 0 : index
    %c0_61 = arith.constant 0 : index
    %52 = vector.load %arg10[%c1_59, %c0_60, %c0_61] : memref<18x8x512xf32, #tpu.memory_space<vmem>>, vector<16x8x512xf32>
    tpu.vector_store %arg10[%c1_59, %c0_60, %c0_61], %51 {strides = array<i32>} : memref<18x8x512xf32, #tpu.memory_space<vmem>>, vector<16x8x512xf32>,
    %c0_62 = arith.constant 0 : index
    %c0_63 = arith.constant 0 : index
    %c0_64 = arith.constant 0 : index
    %53 = vector.load %arg10[%c0_62, %c0_63, %c0_64] : memref<18x8x512xf32, #tpu.memory_space<vmem>>, vector<16x8x512xf32>
    %54 = vector.shape_cast %53 : vector<16x8x512xf32> to vector<128x512xf32>
    %c0_65 = arith.constant 0 : index
    %c0_66 = arith.constant 0 : index
    %c0_67 = arith.constant 0 : index
    %55 = vector.load %arg4[%c0_65, %c0_66, %c0_67] : memref<3x512x512xf32, #tpu.memory_space<vmem>>, vector<1x512x512xf32>
    %56 = vector.shape_cast %55 : vector<1x512x512xf32> to vector<512x512xf32>
    %cst_68 = arith.constant dense<0.000000e+00> : vector<128x512xf32>
    %57 = tpu.matmul %54, %56, %cst_68 {dimension_numbers = #tpu.dot_dimension_numbers<[1], [0], [0], [1], [0, 0, 1, 1], [], []>} : vector<128x512xf32>, vector<512x512xf32>, vector<128x512xf32> -> vector<128x512xf32>
    %c1_69 = arith.constant 1 : index
    %c0_70 = arith.constant 0 : index
    %c0_71 = arith.constant 0 : index
    %58 = vector.load %arg10[%c1_69, %c0_70, %c0_71] : memref<18x8x512xf32, #tpu.memory_space<vmem>>, vector<16x8x512xf32>
    %59 = vector.shape_cast %58 : vector<16x8x512xf32> to vector<128x512xf32>
    %c1_72 = arith.constant 1 : index
    %c0_73 = arith.constant 0 : index
    %c0_74 = arith.constant 0 : index
    %60 = vector.load %arg4[%c1_72, %c0_73, %c0_74] : memref<3x512x512xf32, #tpu.memory_space<vmem>>, vector<1x512x512xf32>
    %61 = vector.shape_cast %60 : vector<1x512x512xf32> to vector<512x512xf32>
    %cst_75 = arith.constant dense<0.000000e+00> : vector<128x512xf32>
    %62 = tpu.matmul %59, %61, %cst_75 {dimension_numbers = #tpu.dot_dimension_numbers<[1], [0], [0], [1], [0, 0, 1, 1], [], []>} : vector<128x512xf32>, vector<512x512xf32>, vector<128x512xf32> -> vector<128x512xf32>
    %63 = arith.addf %57, %62 : vector<128x512xf32>
    %c2_76 = arith.constant 2 : index
    %c0_77 = arith.constant 0 : index
    %c0_78 = arith.constant 0 : index
    %64 = vector.load %arg10[%c2_76, %c0_77, %c0_78] : memref<18x8x512xf32, #tpu.memory_space<vmem>>, vector<16x8x512xf32>
    %65 = vector.shape_cast %64 : vector<16x8x512xf32> to vector<128x512xf32>
    %c2_79 = arith.constant 2 : index
    %c0_80 = arith.constant 0 : index
    %c0_81 = arith.constant 0 : index
    %66 = vector.load %arg4[%c2_79, %c0_80, %c0_81] : memref<3x512x512xf32, #tpu.memory_space<vmem>>, vector<1x512x512xf32>
    %67 = vector.shape_cast %66 : vector<1x512x512xf32> to vector<512x512xf32>
    %cst_82 = arith.constant dense<0.000000e+00> : vector<128x512xf32>
    %68 = tpu.matmul %65, %67, %cst_82 {dimension_numbers = #tpu.dot_dimension_numbers<[1], [0], [0], [1], [0, 0, 1, 1], [], []>} : vector<128x512xf32>, vector<512x512xf32>, vector<128x512xf32> -> vector<128x512xf32>
    %69 = arith.addf %63, %68 : vector<128x512xf32>
    %c0_83 = arith.constant 0 : index
    %c0_84 = arith.constant 0 : index
    %70 = vector.load %arg7[%c0_83, %c0_84] : memref<1x512xf32, #tpu.memory_space<vmem>>, vector<1x512xf32>
    %71 = vector.broadcast %70 : vector<1x512xf32> to vector<128x512xf32>
    %72 = arith.addf %69, %71 : vector<128x512xf32>
    %cst_85 = arith.constant 0.000000e+00 : f32
    %73 = vector.broadcast %cst_85 : f32 to vector<128x512xf32>
    %74 = arith.maximumf %72, %73 : vector<128x512xf32>
    %75 = vector.shape_cast %74 : vector<128x512xf32> to vector<16x8x512xf32>
    %c0_86 = arith.constant 0 : index
    %c0_87 = arith.constant 0 : index
    %c0_88 = arith.constant 0 : index
    %76 = vector.load %arg8[%c0_86, %c0_87, %c0_88] : memref<16x8x512xf32, #tpu.memory_space<vmem>>, vector<16x8x512xf32>
    tpu.vector_store %arg8[%c0_86, %c0_87, %c0_88], %75 {strides = array<i32>} : memref<16x8x512xf32, #tpu.memory_space<vmem>>, vector<16x8x512xf32>,
    return
  }
  func.func @transform_0(%arg0: i32) -> (i32, i32, i32) {
    %c0_i32 = arith.constant 0 : i32
    %c0_i32_0 = arith.constant 0 : i32
    %c0_i32_1 = arith.constant 0 : i32
    return %c0_i32, %arg0, %c0_i32_0 : i32, i32, i32
  }
  func.func @transform_1(%arg0: i32) -> (i32, i32, i32) {
    %c0_i32 = arith.constant 0 : i32
    %c0_i32_0 = arith.constant 0 : i32
    %c0_i32_1 = arith.constant 0 : i32
    %c0_i32_2 = arith.constant 0 : i32
    return %c0_i32, %c0_i32_0, %c0_i32_1 : i32, i32, i32
  }
  func.func @transform_2(%arg0: i32) -> (i32, i32, i32) {
    %c0_i32 = arith.constant 0 : i32
    %c0_i32_0 = arith.constant 0 : i32
    %c0_i32_1 = arith.constant 0 : i32
    %c0_i32_2 = arith.constant 0 : i32
    return %c0_i32, %c0_i32_0, %c0_i32_1 : i32, i32, i32
  }
  func.func @transform_3(%arg0: i32) -> (i32, i32, i32) {
    %c0_i32 = arith.constant 0 : i32
    %c0_i32_0 = arith.constant 0 : i32
    %c0_i32_1 = arith.constant 0 : i32
    %c0_i32_2 = arith.constant 0 : i32
    return %c0_i32, %c0_i32_0, %c0_i32_1 : i32, i32, i32
  }
  func.func @transform_4(%arg0: i32) -> (i32, i32) {
    %c0_i32 = arith.constant 0 : i32
    %c0_i32_0 = arith.constant 0 : i32
    %c0_i32_1 = arith.constant 0 : i32
    return %c0_i32, %c0_i32_0 : i32, i32
  }
  func.func @transform_5(%arg0: i32) -> (i32, i32) {
    %c0_i32 = arith.constant 0 : i32
    %c0_i32_0 = arith.constant 0 : i32
    %c0_i32_1 = arith.constant 0 : i32
    return %c0_i32, %c0_i32_0 : i32, i32
  }
  func.func @transform_6(%arg0: i32) -> (i32, i32) {
    %c0_i32 = arith.constant 0 : i32
    %c0_i32_0 = arith.constant 0 : i32
    %c0_i32_1 = arith.constant 0 : i32
    return %c0_i32, %c0_i32_0 : i32, i32
  }
  func.func @transform_7(%arg0: i32) -> (i32, i32, i32) {
    %c0_i32 = arith.constant 0 : i32
    %c0_i32_0 = arith.constant 0 : i32
    %c0_i32_1 = arith.constant 0 : i32
    return %c0_i32, %arg0, %c0_i32_0 : i32, i32, i32
  }
}

</mosaic_0001>

<llo_original>
// kernel: tile.19
$region0: #{tile.19}
  %s0 = inlined_call_operand.vmem [shape: f32[16,32], index: 0, kind: input, shape index: {}]
  %s1 = inlined_call_operand.vmem [shape: f32[1,512], index: 1, kind: output, shape index: {}]
  $region1: #{tile.19} parent=0
    #allocation0 [shape = 'u8[16384]{0}', space=vmem, size = 0x4000, scoped, tag = 'scoped mem for output reshape']
    %v2 = vld [vmem:[%s0] ss:$4 sm:$0xf]
    %vm3 = vcmask 261120
    %4 = vst.msk [vmem:[#allocation0] ss:$8 sm:$0xf] %vm3, %v2
    %s5 = scalar_lea.vmem %s0, 3
    %v6 = vld [vmem:[%s5] ss:$4 sm:$0xf]
    %7 = vrot.lane.b32.xlu0 %v6, 96
    %v8 = vpop.permute.xlu0 %7
    %vm9 = vcmask 1048320
    %10 = vst.msk [vmem:[#allocation0] ss:$8 sm:$0xf] %vm9, %v8
    %s11 = scalar_lea.vmem %s0, 2
    %v12 = vld [vmem:[%s11] ss:$4 sm:$0xf]
    %13 = vrot.lane.b32.xlu0 %v12, 64
    %v14 = vpop.permute.xlu0 %13
    %vm15 = vcmask 785920
    %16 = vst.msk [vmem:[#allocation0] ss:$8 sm:$0xf] %vm15, %v14
    %s17 = scalar_lea.vmem %s0, 1
    %v18 = vld [vmem:[%s17] ss:$4 sm:$0xf]
    %19 = vrot.lane.b32.xlu0 %v18, 32
    %v20 = vpop.permute.xlu0 %19
    %vm21 = vcmask 523520
    %22 = vst.msk [vmem:[#allocation0] ss:$8 sm:$0xf] %vm21, %v20
    %s24 = sshll.u32 1, 1
    %s25 = ssub.s32 %s24, 1
    %v27 = vld [vmem:[#allocation0] sm:%s25]
    %s28 = sshll.u32 1, 1
    %s29 = ssub.s32 %s28, 1
    %30 = vst [vmem:[%s1] sm:%s29] %v27
    %s31 = scalar_lea.vmem [#allocation0], 8
    %v32 = vld [vmem:[%s31] sm:%s25]
    %s33 = sshll.u32 1, 1
    %s34 = ssub.s32 %s33, 1
    %s35 = scalar_lea.vmem %s1, 1
    %36 = vst [vmem:[%s35] sm:%s34] %v32
    %s37 = scalar_lea.vmem [#allocation0], 16
    %v38 = vld [vmem:[%s37] sm:%s25]
    %s39 = sshll.u32 1, 1
    %s40 = ssub.s32 %s39, 1
    %s41 = smul.addr 1, 2
    %s42 = scalar_lea.vmem %s1, %s41
    %43 = vst [vmem:[%s42] sm:%s40] %v38
    %s44 = scalar_lea.vmem [#allocation0], 24
    %v45 = vld [vmem:[%s44] sm:%s25]
    %s46 = sshll.u32 1, 1
    %s47 = ssub.s32 %s46, 1
    %s48 = smul.addr 1, 3
    %s49 = scalar_lea.vmem %s1, %s48
    %50 = vst [vmem:[%s49] sm:%s47] %v45

// kernel: video_encoder_sliding.1
$region0: #{video_encoder_sliding.1}
  #allocation0 [shape = 'u32[]', space=smem, size = 0x4, offset = 0x4, fixed_abs, tag = 'smem constant byte address 0x4 - core index']
  #allocation1 [shape = 'u32[144,128]{1,0:T(1,128)}', space=vmem, size = 0x12000, scoped, tag = 'internal scratch']
  #allocation2 [shape = 'f32[18,8,512]{2,1,0:T(8,128)}', space=vmem, size = 0x48000, scoped, tag = 'scratch operand']
  #allocation3 [shape = 'f32[18,8,512]{2,1,0:T(8,128)}', space=vmem, size = 0x48000, scoped, tag = 'scratch operand']
  %s0 = inlined_call_operand.vmem [shape: f32[18,8,16], index: 0, kind: input, shape index: {}]
  %s1 = inlined_call_operand.vmem [shape: f32[3,16,512], index: 1, kind: input, shape index: {}]
  %s2 = inlined_call_operand.vmem [shape: f32[3,512,512], index: 2, kind: input, shape index: {}]
  %s3 = inlined_call_operand.vmem [shape: f32[3,512,512], index: 3, kind: input, shape index: {}]
  %s4 = inlined_call_operand.vmem [shape: f32[1,512], index: 4, kind: input, shape index: {}]
  %s5 = inlined_call_operand.vmem [shape: f32[1,512], index: 5, kind: input, shape index: {}]
  %s6 = inlined_call_operand.vmem [shape: f32[1,512], index: 6, kind: input, shape index: {}]
  %s7 = inlined_call_operand.vmem [shape: f32[16,8,512], index: 7, kind: output, shape index: {}]
  %s8 = sld [smem:[#allocation0]]
  $region38: #{video_encoder_sliding.1} parent=0
    _
  %s10 = ssub.s32 1, %s8
  %s11 = scalar_select 0, %s10, %s8
  // Predicated region
  $region2: #{video_encoder_sliding.1} parent=0 // pred_check
    _
  $region3: #{video_encoder_sliding.1} parent=0 // pred_check_branch
    %13 = sbr.rel (0) target = $region5
  $region4: #{video_encoder_sliding.1} parent=0 // pred_region
    _
  $region5: #{video_encoder_sliding.1} parent=0 // pred_fallthru
    _
  // Predicated region
  $region6: #{video_encoder_sliding.1} parent=0 // pred_check
    _
  $region7: #{video_encoder_sliding.1} parent=0 // pred_check_branch
    %15 = sbr.rel (0) target = $region9
  $region8: #{video_encoder_sliding.1} parent=0 // pred_region
    _
  $region9: #{video_encoder_sliding.1} parent=0 // pred_fallthru
    _
  // Predicated region
  $region10: #{video_encoder_sliding.1} parent=0 // pred_check
    _
  $region11: #{video_encoder_sliding.1} parent=0 // pred_check_branch
    %17 = sbr.rel (0) target = $region13
  $region12: #{video_encoder_sliding.1} parent=0 // pred_region
    _
  $region13: #{video_encoder_sliding.1} parent=0 // pred_fallthru
    _
  // Predicated region
  $region14: #{video_encoder_sliding.1} parent=0 // pred_check
    _
  $region15: #{video_encoder_sliding.1} parent=0 // pred_check_branch
    %19 = sbr.rel (0) target = $region17
  $region16: #{video_encoder_sliding.1} parent=0 // pred_region
    _
  $region17: #{video_encoder_sliding.1} parent=0 // pred_fallthru
    _
  // Predicated region
  $region18: #{video_encoder_sliding.1} parent=0 // pred_check
    _
  $region19: #{video_encoder_sliding.1} parent=0 // pred_check_branch
    %21 = sbr.rel (0) target = $region21
  $region20: #{video_encoder_sliding.1} parent=0 // pred_region
    _
  $region21: #{video_encoder_sliding.1} parent=0 // pred_fallthru
    _
  // Predicated region
  $region22: #{video_encoder_sliding.1} parent=0 // pred_check
    _
  $region23: #{video_encoder_sliding.1} parent=0 // pred_check_branch
    %23 = sbr.rel (0) target = $region25
  $region24: #{video_encoder_sliding.1} parent=0 // pred_region
    _
  $region25: #{video_encoder_sliding.1} parent=0 // pred_fallthru
    _
  // Predicated region
  $region26: #{video_encoder_sliding.1} parent=0 // pred_check
    _
  $region27: #{video_encoder_sliding.1} parent=0 // pred_check_branch
    %25 = sbr.rel (0) target = $region29
  $region28: #{video_encoder_sliding.1} parent=0 // pred_region
    _
  $region29: #{video_encoder_sliding.1} parent=0 // pred_fallthru
    _
  %v26 = vld [vmem:[%s0] sm:$0xff]
  %v27 = vld [vmem:[%s0 + $0x8] sm:$0xff]
  %v28 = vld [vmem:[%s0 + $0x10] sm:$0xff]
  %v29 = vld [vmem:[%s0 + $0x18] sm:$0xff]
  %v30 = vld [vmem:[%s0 + $0x20] sm:$0xff]
  %v31 = vld [vmem:[%s0 + $0x28] sm:$0xff]
  %v32 = vld [vmem:[%s0 + $0x30] sm:$0xff]
  %v33 = vld [vmem:[%s0 + $0x38] sm:$0xff]
  %v34 = vld [vmem:[%s0 + $0x40] sm:$0xff]
  %v35 = vld [vmem:[%s0 + $0x48] sm:$0xff]
  %v36 = vld [vmem:[%s0 + $0x50] sm:$0xff]
  %v37 = vld [vmem:[%s0 + $0x58] sm:$0xff]
  %v38 = vld [vmem:[%s0 + $0x60] sm:$0xff]
  %v39 = vld [vmem:[%s0 + $0x68] sm:$0xff]
  %v40 = vld [vmem:[%s0 + $0x70] sm:$0xff]
  %v41 = vld [vmem:[%s0 + $0x78] sm:$0xff]
  %v42 = vld [vmem:[%s1] sm:$0xff]
  %v43 = vld [vmem:[%s1 + $0x8] sm:$0xff]
  %v44 = vld [vmem:[%s1 + $0x10] sm:$0xff]
  %v45 = vld [vmem:[%s1 + $0x18] sm:$0xff]
  %v46 = vld [vmem:[%s1 + $0x20] sm:$0xff]
  %v47 = vld [vmem:[%s1 + $0x28] sm:$0xff]
  %v48 = vld [vmem:[%s1 + $0x30] sm:$0xff]
  %v49 = vld [vmem:[%s1 + $0x38] sm:$0xff]
  %s50 = scalar_lea.vmem %s0, 8
  %v51 = vld [vmem:[%s50] sm:$0xff]
  %v52 = vld [vmem:[%s50 + $0x8] sm:$0xff]
  %v53 = vld [vmem:[%s50 + $0x10] sm:$0xff]
  %v54 = vld [vmem:[%s50 + $0x18] sm:$0xff]
  %v55 = vld [vmem:[%s50 + $0x20] sm:$0xff]
  %v56 = vld [vmem:[%s50 + $0x28] sm:$0xff]
  %v57 = vld [vmem:[%s50 + $0x30] sm:$0xff]
  %v58 = vld [vmem:[%s50 + $0x38] sm:$0xff]
  %v59 = vld [vmem:[%s50 + $0x40] sm:$0xff]
  %v60 = vld [vmem:[%s50 + $0x48] sm:$0xff]
  %v61 = vld [vmem:[%s50 + $0x50] sm:$0xff]
  %v62 = vld [vmem:[%s50 + $0x58] sm:$0xff]
  %v63 = vld [vmem:[%s50 + $0x60] sm:$0xff]
  %v64 = vld [vmem:[%s50 + $0x68] sm:$0xff]
  %v65 = vld [vmem:[%s50 + $0x70] sm:$0xff]
  %v66 = vld [vmem:[%s50 + $0x78] sm:$0xff]
  %s67 = scalar_lea.vmem %s1, 64
  %v68 = vld [vmem:[%s67] sm:$0xff]
  %v69 = vld [vmem:[%s67 + $0x8] sm:$0xff]
  %v70 = vld [vmem:[%s67 + $0x10] sm:$0xff]
  %v71 = vld [vmem:[%s67 + $0x18] sm:$0xff]
  %v72 = vld [vmem:[%s67 + $0x20] sm:$0xff]
  %v73 = vld [vmem:[%s67 + $0x28] sm:$0xff]
  %v74 = vld [vmem:[%s67 + $0x30] sm:$0xff]
  %v75 = vld [vmem:[%s67 + $0x38] sm:$0xff]
  %vm76 = vcmask 130048
  %v78 = vsel %vm76, %v51, 0
  %v81 = vsel %vm76, %v52, 0
  %v84 = vsel %vm76, %v53, 0
  %v87 = vsel %vm76, %v54, 0
  %v90 = vsel %vm76, %v55, 0
  %v93 = vsel %vm76, %v56, 0
  %v96 = vsel %vm76, %v57, 0
  %v99 = vsel %vm76, %v58, 0
  %v102 = vsel %vm76, %v59, 0
  %v105 = vsel %vm76, %v60, 0
  %v108 = vsel %vm76, %v61, 0
  %v111 = vsel %vm76, %v62, 0
  %v114 = vsel %vm76, %v63, 0
  %v117 = vsel %vm76, %v64, 0
  %v120 = vsel %vm76, %v65, 0
  %v123 = vsel %vm76, %v66, 0
  %125 = vmatprep.subr.mxu0 0.0
  %126 = vmatpush1.msra.mxu0 0.0
  %127 = vmatprep.subr.mxu0 0.0
  %128 = vmatpush1.msra.mxu0 0.0
  %129 = vmatprep.subr.mxu0 0.0
  %130 = vmatpush1.msra.mxu0 0.0
  %131 = vmatprep.subr.mxu0 0.0
  %132 = vmatpush1.msra.mxu0 0.0
  %133 = vmatprep.subr.mxu0 0.0
  %134 = vmatpush1.msra.mxu0 0.0
  %135 = vmatprep.subr.mxu0 0.0
  %136 = vmatpush1.msra.mxu0 0.0
  %137 = vmatprep.subr.mxu0 0.0
  %138 = vmatpush1.msra.mxu0 0.0
  %139 = vmatprep.subr.mxu0 0.0
  %140 = vmatpush1.msra.mxu0 0.0
  %141 = vmatprep.subr.mxu0 0.0
  %142 = vmatpush1.msra.mxu0 0.0
  %143 = vmatprep.subr.mxu0 0.0
  %144 = vmatpush1.msra.mxu0 0.0
  %145 = vmatprep.subr.mxu0 0.0
  %146 = vmatpush1.msra.mxu0 0.0
  %147 = vmatprep.subr.mxu0 0.0
  %148 = vmatpush1.msra.mxu0 0.0
  %149 = vmatprep.subr.mxu0 0.0
  %150 = vmatpush1.msra.mxu0 0.0
  %151 = vmatprep.subr.mxu0 0.0
  %152 = vmatpush1.msra.mxu0 0.0
  %153 = vmatprep.subr.mxu0 %v73
  %154 = vmatpush1.msra.mxu0 %v72
  %155 = vmatprep.subr.mxu0 %v69
  %156 = vmatpush1.msra.mxu0 %v68
  %157 = vmatprep.subr.mxu0 0.0
  %158 = vmatpush2.msra.mxu0 0.0
  %159 = vmatprep.subr.mxu0 0.0
  %160 = vmatpush2.msra.mxu0 0.0
  %161 = vmatprep.subr.mxu0 0.0
  %162 = vmatpush2.msra.mxu0 0.0
  %163 = vmatprep.subr.mxu0 0.0
  %164 = vmatpush2.msra.mxu0 0.0
  %165 = vmatprep.subr.mxu0 0.0
  %166 = vmatpush2.msra.mxu0 0.0
  %167 = vmatprep.subr.mxu0 0.0
  %168 = vmatpush2.msra.mxu0 0.0
  %169 = vmatprep.subr.mxu0 0.0
  %170 = vmatpush2.msra.mxu0 0.0
  %171 = vmatprep.subr.mxu0 0.0
  %172 = vmatpush2.msra.mxu0 0.0
  %173 = vmatprep.subr.mxu0 0.0
  %174 = vmatpush2.msra.mxu0 0.0
  %175 = vmatprep.subr.mxu0 0.0
  %176 = vmatpush2.msra.mxu0 0.0
  %177 = vmatprep.subr.mxu0 0.0
  %178 = vmatpush2.msra.mxu0 0.0
  %179 = vmatprep.subr.mxu0 0.0
  %180 = vmatpush2.msra.mxu0 0.0
  %181 = vmatprep.subr.mxu0 0.0
  %182 = vmatpush2.msra.mxu0 0.0
  %183 = vmatprep.subr.mxu0 0.0
  %184 = vmatpush2.msra.mxu0 0.0
  %185 = vmatprep.subr.mxu0 0.0
  %186 = vmatpush2.msra.mxu0 0.0
  %187 = vmatprep.subr.mxu0 0.0
  %188 = vmatpush2.msra.mxu0 0.0
  %189 = vmatprep.mubr.f32.mxu0 0.0
  %190 = vmatmul.mubr.f32.gmra.mxu0 %v78
  %v191 = vpop.f32.mrf.mxu0
  %v192 = vadd.f32 0.0, %v191
  %v193 = vpop.f32.mrf.mxu0
  %v194 = vadd.f32 0.0, %v193
  %195 = vmatprep.mubr.f32.mxu0 0.0
  %196 = vmatmul.mubr.f32.gmra.mxu0 %v81
  %v197 = vpop.f32.mrf.mxu0
  %v198 = vadd.f32 0.0, %v197
  %v199 = vpop.f32.mrf.mxu0
  %v200 = vadd.f32 0.0, %v199
  %201 = vmatprep.mubr.f32.mxu0 0.0
  %202 = vmatmul.mubr.f32.gmra.mxu0 %v84
  %v203 = vpop.f32.mrf.mxu0
  %v204 = vadd.f32 0.0, %v203
  %v205 = vpop.f32.mrf.mxu0
  %v206 = vadd.f32 0.0, %v205
  %207 = vmatprep.mubr.f32.mxu0 0.0
  %208 = vmatmul.mubr.f32.gmra.mxu0 %v87
  %v209 = vpop.f32.mrf.mxu0
  %v210 = vadd.f32 0.0, %v209
  %v211 = vpop.f32.mrf.mxu0
  %v212 = vadd.f32 0.0, %v211
  %213 = vmatprep.mubr.f32.mxu0 0.0
  %214 = vmatmul.mubr.f32.gmra.mxu0 %v90
  %v215 = vpop.f32.mrf.mxu0
  %v216 = vadd.f32 0.0, %v215
  %v217 = vpop.f32.mrf.mxu0
  %v218 = vadd.f32 0.0, %v217
  %219 = vmatprep.mubr.f32.mxu0 0.0
  %220 = vmatmul.mubr.f32.gmra.mxu0 %v93
  %v221 = vpop.f32.mrf.mxu0
  %v222 = vadd.f32 0.0, %v221
  %v223 = vpop.f32.mrf.mxu0
  %v224 = vadd.f32 0.0, %v223
  %225 = vmatprep.mubr.f32.mxu0 0.0
  %226 = vmatmul.mubr.f32.gmra.mxu0 %v96
  %v227 = vpop.f32.mrf.mxu0
  %v228 = vadd.f32 0.0, %v227
  %v229 = vpop.f32.mrf.mxu0
  %v230 = vadd.f32 0.0, %v229
  %231 = vmatprep.mubr.f32.mxu0 0.0
  %232 = vmatmul.mubr.f32.gmra.mxu0 %v99
  %v233 = vpop.f32.mrf.mxu0
  %v234 = vadd.f32 0.0, %v233
  %v235 = vpop.f32.mrf.mxu0
  %v236 = vadd.f32 0.0, %v235
  %237 = vmatprep.mubr.f32.mxu0 0.0
  %238 = vmatmul.mubr.f32.gmra.mxu0 %v102
  %v239 = vpop.f32.mrf.mxu0
  %v240 = vadd.f32 0.0, %v239
  %v241 = vpop.f32.mrf.mxu0
  %v242 = vadd.f32 0.0, %v241
  %243 = vmatprep.mubr.f32.mxu0 0.0
  %244 = vmatmul.mubr.f32.gmra.mxu0 %v105
  %v245 = vpop.f32.mrf.mxu0
  %v246 = vadd.f32 0.0, %v245
  %v247 = vpop.f32.mrf.mxu0
  %v248 = vadd.f32 0.0, %v247
  %249 = vmatprep.mubr.f32.mxu0 0.0
  %250 = vmatmul.mubr.f32.gmra.mxu0 %v108
  %v251 = vpop.f32.mrf.mxu0
  %v252 = vadd.f32 0.0, %v251
  %v253 = vpop.f32.mrf.mxu0
  %v254 = vadd.f32 0.0, %v253
  %255 = vmatprep.mubr.f32.mxu0 0.0
  %256 = vmatmul.mubr.f32.gmra.mxu0 %v111
  %v257 = vpop.f32.mrf.mxu0
  %v258 = vadd.f32 0.0, %v257
  %v259 = vpop.f32.mrf.mxu0
  %v260 = vadd.f32 0.0, %v259
  %261 = vmatprep.mubr.f32.mxu0 0.0
  %262 = vmatmul.mubr.f32.gmra.mxu0 %v114
  %v263 = vpop.f32.mrf.mxu0
  %v264 = vadd.f32 0.0, %v263
  %v265 = vpop.f32.mrf.mxu0
  %v266 = vadd.f32 0.0, %v265
  %267 = vmatprep.mubr.f32.mxu0 0.0
  %268 = vmatmul.mubr.f32.gmra.mxu0 %v117
  %v269 = vpop.f32.mrf.mxu0
  %v270 = vadd.f32 0.0, %v269
  %v271 = vpop.f32.mrf.mxu0
  %v272 = vadd.f32 0.0, %v271
  %273 = vmatprep.mubr.f32.mxu0 0.0
  %274 = vmatmul.mubr.f32.gmra.mxu0 %v120
  %v275 = vpop.f32.mrf.mxu0
  %v276 = vadd.f32 0.0, %v275
  %v277 = vpop.f32.mrf.mxu0
  %v278 = vadd.f32 0.0, %v277
  %279 = vmatprep.mubr.f32.mxu0 0.0
  %280 = vmatmul.mubr.f32.gmra.mxu0 %v123
  %v281 = vpop.f32.mrf.mxu0
  %v282 = vadd.f32 0.0, %v281
  %v283 = vpop.f32.mrf.mxu0
  %v284 = vadd.f32 0.0, %v283
  %285 = vdwg.mxu0
  %286 = vmatprep.subr.mxu0 0.0
  %287 = vmatpush1.msra.mxu0 0.0
  %288 = vmatprep.subr.mxu0 0.0
  %289 = vmatpush1.msra.mxu0 0.0
  %290 = vmatprep.subr.mxu0 0.0
  %291 = vmatpush1.msra.mxu0 0.0
  %292 = vmatprep.subr.mxu0 0.0
  %293 = vmatpush1.msra.mxu0 0.0
  %294 = vmatprep.subr.mxu0 0.0
  %295 = vmatpush1.msra.mxu0 0.0
  %296 = vmatprep.subr.mxu0 0.0
  %297 = vmatpush1.msra.mxu0 0.0
  %298 = vmatprep.subr.mxu0 0.0
  %299 = vmatpush1.msra.mxu0 0.0
  %300 = vmatprep.subr.mxu0 0.0
  %301 = vmatpush1.msra.mxu0 0.0
  %302 = vmatprep.subr.mxu0 0.0
  %303 = vmatpush1.msra.mxu0 0.0
  %304 = vmatprep.subr.mxu0 0.0
  %305 = vmatpush1.msra.mxu0 0.0
  %306 = vmatprep.subr.mxu0 0.0
  %307 = vmatpush1.msra.mxu0 0.0
  %308 = vmatprep.subr.mxu0 0.0
  %309 = vmatpush1.msra.mxu0 0.0
  %310 = vmatprep.subr.mxu0 0.0
  %311 = vmatpush1.msra.mxu0 0.0
  %312 = vmatprep.subr.mxu0 0.0
  %313 = vmatpush1.msra.mxu0 0.0
  %314 = vmatprep.subr.mxu0 %v75
  %315 = vmatpush1.msra.mxu0 %v74
  %316 = vmatprep.subr.mxu0 %v71
  %317 = vmatpush1.msra.mxu0 %v70
  %318 = vmatprep.subr.mxu0 0.0
  %319 = vmatpush2.msra.mxu0 0.0
  %320 = vmatprep.subr.mxu0 0.0
  %321 = vmatpush2.msra.mxu0 0.0
  %322 = vmatprep.subr.mxu0 0.0
  %323 = vmatpush2.msra.mxu0 0.0
  %324 = vmatprep.subr.mxu0 0.0
  %325 = vmatpush2.msra.mxu0 0.0
  %326 = vmatprep.subr.mxu0 0.0
  %327 = vmatpush2.msra.mxu0 0.0
  %328 = vmatprep.subr.mxu0 0.0
  %329 = vmatpush2.msra.mxu0 0.0
  %330 = vmatprep.subr.mxu0 0.0
  %331 = vmatpush2.msra.mxu0 0.0
  %332 = vmatprep.subr.mxu0 0.0
  %333 = vmatpush2.msra.mxu0 0.0
  %334 = vmatprep.subr.mxu0 0.0
  %335 = vmatpush2.msra.mxu0 0.0
  %336 = vmatprep.subr.mxu0 0.0
  %337 = vmatpush2.msra.mxu0 0.0
  %338 = vmatprep.subr.mxu0 0.0
  %339 = vmatpush2.msra.mxu0 0.0
  %340 = vmatprep.subr.mxu0 0.0
  %341 = vmatpush2.msra.mxu0 0.0
  %342 = vmatprep.subr.mxu0 0.0
  %343 = vmatpush2.msra.mxu0 0.0
  %344 = vmatprep.subr.mxu0 0.0
  %345 = vmatpush2.msra.mxu0 0.0
  %346 = vmatprep.subr.mxu0 0.0
  %347 = vmatpush2.msra.mxu0 0.0
  %348 = vmatprep.subr.mxu0 0.0
  %349 = vmatpush2.msra.mxu0 0.0
  %350 = vmatprep.mubr.f32.mxu0 0.0
  %351 = vmatmul.mubr.f32.gmra.mxu0 %v78
  %v352 = vpop.f32.mrf.mxu0
  %v353 = vadd.f32 0.0, %v352
  %v354 = vpop.f32.mrf.mxu0
  %v355 = vadd.f32 0.0, %v354
  %356 = vmatprep.mubr.f32.mxu0 0.0
  %357 = vmatmul.mubr.f32.gmra.mxu0 %v81
  %v358 = vpop.f32.mrf.mxu0
  %v359 = vadd.f32 0.0, %v358
  %v360 = vpop.f32.mrf.mxu0
  %v361 = vadd.f32 0.0, %v360
  %362 = vmatprep.mubr.f32.mxu0 0.0
  %363 = vmatmul.mubr.f32.gmra.mxu0 %v84
  %v364 = vpop.f32.mrf.mxu0
  %v365 = vadd.f32 0.0, %v364
  %v366 = vpop.f32.mrf.mxu0
  %v367 = vadd.f32 0.0, %v366
  %368 = vmatprep.mubr.f32.mxu0 0.0
  %369 = vmatmul.mubr.f32.gmra.mxu0 %v87
  %v370 = vpop.f32.mrf.mxu0
  %v371 = vadd.f32 0.0, %v370
  %v372 = vpop.f32.mrf.mxu0
  %v373 = vadd.f32 0.0, %v372
  %374 = vmatprep.mubr.f32.mxu0 0.0
  %375 = vmatmul.mubr.f32.gmra.mxu0 %v90
  %v376 = vpop.f32.mrf.mxu0
  %v377 = vadd.f32 0.0, %v376
  %v378 = vpop.f32.mrf.mxu0
  %v379 = vadd.f32 0.0, %v378
  %380 = vmatprep.mubr.f32.mxu0 0.0
  %381 = vmatmul.mubr.f32.gmra.mxu0 %v93
  %v382 = vpop.f32.mrf.mxu0
  %v383 = vadd.f32 0.0, %v382
  %v384 = vpop.f32.mrf.mxu0
  %v385 = vadd.f32 0.0, %v384
  %386 = vmatprep.mubr.f32.mxu0 0.0
  %387 = vmatmul.mubr.f32.gmra.mxu0 %v96
  %v388 = vpop.f32.mrf.mxu0
  %v389 = vadd.f32 0.0, %v388
  %v390 = vpop.f32.mrf.mxu0
  %v391 = vadd.f32 0.0, %v390
  %392 = vmatprep.mubr.f32.mxu0 0.0
  %393 = vmatmul.mubr.f32.gmra.mxu0 %v99
  %v394 = vpop.f32.mrf.mxu0
  %v395 = vadd.f32 0.0, %v394
  %v396 = vpop.f32.mrf.mxu0
  %v397 = vadd.f32 0.0, %v396
  %398 = vmatprep.mubr.f32.mxu0 0.0
  %399 = vmatmul.mubr.f32.gmra.mxu0 %v102
  %v400 = vpop.f32.mrf.mxu0
  %v401 = vadd.f32 0.0, %v400
  %v402 = vpop.f32.mrf.mxu0
  %v403 = vadd.f32 0.0, %v402
  %404 = vmatprep.mubr.f32.mxu0 0.0
  %405 = vmatmul.mubr.f32.gmra.mxu0 %v105
  %v406 = vpop.f32.mrf.mxu0
  %v407 = vadd.f32 0.0, %v406
  %v408 = vpop.f32.mrf.mxu0
  %v409 = vadd.f32 0.0, %v408
  %410 = vmatprep.mubr.f32.mxu0 0.0
  %411 = vmatmul.mubr.f32.gmra.mxu0 %v108
  %v412 = vpop.f32.mrf.mxu0
  %v413 = vadd.f32 0.0, %v412
  %v414 = vpop.f32.mrf.mxu0
  %v415 = vadd.f32 0.0, %v414
  %416 = vmatprep.mubr.f32.mxu0 0.0
  %417 = vmatmul.mubr.f32.gmra.mxu0 %v111
  %v418 = vpop.f32.mrf.mxu0
  %v419 = vadd.f32 0.0, %v418
  %v420 = vpop.f32.mrf.mxu0
  %v421 = vadd.f32 0.0, %v420
  %422 = vmatprep.mubr.f32.mxu0 0.0
  %423 = vmatmul.mubr.f32.gmra.mxu0 %v114
  %v424 = vpop.f32.mrf.mxu0
  %v425 = vadd.f32 0.0, %v424
  %v426 = vpop.f32.mrf.mxu0
  %v427 = vadd.f32 0.0, %v426
  %428 = vmatprep.mubr.f32.mxu0 0.0
  %429 = vmatmul.mubr.f32.gmra.mxu0 %v117
  %v430 = vpop.f32.mrf.mxu0
  %v431 = vadd.f32 0.0, %v430
  %v432 = vpop.f32.mrf.mxu0
  %v433 = vadd.f32 0.0, %v432
  %434 = vmatprep.mubr.f32.mxu0 0.0
  %435 = vmatmul.mubr.f32.gmra.mxu0 %v120
  %v436 = vpop.f32.mrf.mxu0
  %v437 = vadd.f32 0.0, %v436
  %v438 = vpop.f32.mrf.mxu0
  %v439 = vadd.f32 0.0, %v438
  %440 = vmatprep.mubr.f32.mxu0 0.0
  %441 = vmatmul.mubr.f32.gmra.mxu0 %v123
  %v442 = vpop.f32.mrf.mxu0
  %v443 = vadd.f32 0.0, %v442
  %v444 = vpop.f32.mrf.mxu0
  %v445 = vadd.f32 0.0, %v444
  %446 = vdwg.mxu0
  %v448 = vsel %vm76, %v26, 0
  %v451 = vsel %vm76, %v27, 0
  %v454 = vsel %vm76, %v28, 0
  %v457 = vsel %vm76, %v29, 0
  %v460 = vsel %vm76, %v30, 0
  %v463 = vsel %vm76, %v31, 0
  %v466 = vsel %vm76, %v32, 0
  %v469 = vsel %vm76, %v33, 0
  %v472 = vsel %vm76, %v34, 0
  %v475 = vsel %vm76, %v35, 0
  %v478 = vsel %vm76, %v36, 0
  %v481 = vsel %vm76, %v37, 0
  %v484 = vsel %vm76, %v38, 0
  %v487 = vsel %vm76, %v39, 0
  %v490 = vsel %vm76, %v40, 0
  %v493 = vsel %vm76, %v41, 0
  %495 = vmatprep.subr.mxu0 0.0
  %496 = vmatpush1.msra.mxu0 0.0
  %497 = vmatprep.subr.mxu0 0.0
  %498 = vmatpush1.msra.mxu0 0.0
  %499 = vmatprep.subr.mxu0 0.0
  %500 = vmatpush1.msra.mxu0 0.0
  %501 = vmatprep.subr.mxu0 0.0
  %502 = vmatpush1.msra.mxu0 0.0
  %503 = vmatprep.subr.mxu0 0.0
  %504 = vmatpush1.msra.mxu0 0.0
  %505 = vmatprep.subr.mxu0 0.0
  %506 = vmatpush1.msra.mxu0 0.0
  %507 = vmatprep.subr.mxu0 0.0
  %508 = vmatpush1.msra.mxu0 0.0
  %509 = vmatprep.subr.mxu0 0.0
  %510 = vmatpush1.msra.mxu0 0.0
  %511 = vmatprep.subr.mxu0 0.0
  %512 = vmatpush1.msra.mxu0 0.0
  %513 = vmatprep.subr.mxu0 0.0
  %514 = vmatpush1.msra.mxu0 0.0
  %515 = vmatprep.subr.mxu0 0.0
  %516 = vmatpush1.msra.mxu0 0.0
  %517 = vmatprep.subr.mxu0 0.0
  %518 = vmatpush1.msra.mxu0 0.0
  %519 = vmatprep.subr.mxu0 0.0
  %520 = vmatpush1.msra.mxu0 0.0
  %521 = vmatprep.subr.mxu0 0.0
  %522 = vmatpush1.msra.mxu0 0.0
  %523 = vmatprep.subr.mxu0 %v47
  %524 = vmatpush1.msra.mxu0 %v46
  %525 = vmatprep.subr.mxu0 %v43
  %526 = vmatpush1.msra.mxu0 %v42
  %527 = vmatprep.subr.mxu0 0.0
  %528 = vmatpush2.msra.mxu0 0.0
  %529 = vmatprep.subr.mxu0 0.0
  %530 = vmatpush2.msra.mxu0 0.0
  %531 = vmatprep.subr.mxu0 0.0
  %532 = vmatpush2.msra.mxu0 0.0
  %533 = vmatprep.subr.mxu0 0.0
  %534 = vmatpush2.msra.mxu0 0.0
  %535 = vmatprep.subr.mxu0 0.0
  %536 = vmatpush2.msra.mxu0 0.0
  %537 = vmatprep.subr.mxu0 0.0
  %538 = vmatpush2.msra.mxu0 0.0
  %539 = vmatprep.subr.mxu0 0.0
  %540 = vmatpush2.msra.mxu0 0.0
  %541 = vmatprep.subr.mxu0 0.0
  %542 = vmatpush2.msra.mxu0 0.0
  %543 = vmatprep.subr.mxu0 0.0
  %544 = vmatpush2.msra.mxu0 0.0
  %545 = vmatprep.subr.mxu0 0.0
  %546 = vmatpush2.msra.mxu0 0.0
  %547 = vmatprep.subr.mxu0 0.0
  %548 = vmatpush2.msra.mxu0 0.0
  %549 = vmatprep.subr.mxu0 0.0
  %550 = vmatpush2.msra.mxu0 0.0
  %551 = vmatprep.subr.mxu0 0.0
  %552 = vmatpush2.msra.mxu0 0.0
  %553 = vmatprep.subr.mxu0 0.0
  %554 = vmatpush2.msra.mxu0 0.0
  %555 = vmatprep.subr.mxu0 0.0
  %556 = vmatpush2.msra.mxu0 0.0
  %557 = vmatprep.subr.mxu0 0.0
  %558 = vmatpush2.msra.mxu0 0.0
  %559 = vmatprep.mubr.f32.mxu0 0.0
  %560 = vmatmul.mubr.f32.gmra.mxu0 %v448
  %v561 = vpop.f32.mrf.mxu0
  %v562 = vadd.f32 %v192, %v561
  %v563 = vpop.f32.mrf.mxu0
  %v564 = vadd.f32 %v194, %v563
  %565 = vmatprep.mubr.f32.mxu0 0.0
  %566 = vmatmul.mubr.f32.gmra.mxu0 %v451
  %v567 = vpop.f32.mrf.mxu0
  %v568 = vadd.f32 %v198, %v567
  %v569 = vpop.f32.mrf.mxu0
  %v570 = vadd.f32 %v200, %v569
  %571 = vmatprep.mubr.f32.mxu0 0.0
  %572 = vmatmul.mubr.f32.gmra.mxu0 %v454
  %v573 = vpop.f32.mrf.mxu0
  %v574 = vadd.f32 %v204, %v573
  %v575 = vpop.f32.mrf.mxu0
  %v576 = vadd.f32 %v206, %v575
  %577 = vmatprep.mubr.f32.mxu0 0.0
  %578 = vmatmul.mubr.f32.gmra.mxu0 %v457
  %v579 = vpop.f32.mrf.mxu0
  %v580 = vadd.f32 %v210, %v579
  %v581 = vpop.f32.mrf.mxu0
  %v582 = vadd.f32 %v212, %v581
  %583 = vmatprep.mubr.f32.mxu0 0.0
  %584 = vmatmul.mubr.f32.gmra.mxu0 %v460
  %v585 = vpop.f32.mrf.mxu0
  %v586 = vadd.f32 %v216, %v585
  %v587 = vpop.f32.mrf.mxu0
  %v588 = vadd.f32 %v218, %v587
  %589 = vmatprep.mubr.f32.mxu0 0.0
  %590 = vmatmul.mubr.f32.gmra.mxu0 %v463
  %v591 = vpop.f32.mrf.mxu0
  %v592 = vadd.f32 %v222, %v591
  %v593 = vpop.f32.mrf.mxu0
  %v594 = vadd.f32 %v224, %v593
  %595 = vmatprep.mubr.f32.mxu0 0.0
  %596 = vmatmul.mubr.f32.gmra.mxu0 %v466
  %v597 = vpop.f32.mrf.mxu0
  %v598 = vadd.f32 %v228, %v597
  %v599 = vpop.f32.mrf.mxu0
  %v600 = vadd.f32 %v230, %v599
  %601 = vmatprep.mubr.f32.mxu0 0.0
  %602 = vmatmul.mubr.f32.gmra.mxu0 %v469
  %v603 = vpop.f32.mrf.mxu0
  %v604 = vadd.f32 %v234, %v603
  %v605 = vpop.f32.mrf.mxu0
  %v606 = vadd.f32 %v236, %v605
  %607 = vmatprep.mubr.f32.mxu0 0.0
  %608 = vmatmul.mubr.f32.gmra.mxu0 %v472
  %v609 = vpop.f32.mrf.mxu0
  %v610 = vadd.f32 %v240, %v609
  %v611 = vpop.f32.mrf.mxu0
  %v612 = vadd.f32 %v242, %v611
  %613 = vmatprep.mubr.f32.mxu0 0.0
  %614 = vmatmul.mubr.f32.gmra.mxu0 %v475
  %v615 = vpop.f32.mrf.mxu0
  %v616 = vadd.f32 %v246, %v615
  %v617 = vpop.f32.mrf.mxu0
  %v618 = vadd.f32 %v248, %v617
  %619 = vmatprep.mubr.f32.mxu0 0.0
  %620 = vmatmul.mubr.f32.gmra.mxu0 %v478
  %v621 = vpop.f32.mrf.mxu0
  %v622 = vadd.f32 %v252, %v621
  %v623 = vpop.f32.mrf.mxu0
  %v624 = vadd.f32 %v254, %v623
  %625 = vmatprep.mubr.f32.mxu0 0.0
  %626 = vmatmul.mubr.f32.gmra.mxu0 %v481
  %v627 = vpop.f32.mrf.mxu0
  %v628 = vadd.f32 %v258, %v627
  %v629 = vpop.f32.mrf.mxu0
  %v630 = vadd.f32 %v260, %v629
  %631 = vmatprep.mubr.f32.mxu0 0.0
  %632 = vmatmul.mubr.f32.gmra.mxu0 %v484
  %v633 = vpop.f32.mrf.mxu0
  %v634 = vadd.f32 %v264, %v633
  %v635 = vpop.f32.mrf.mxu0
  %v636 = vadd.f32 %v266, %v635
  %637 = vmatprep.mubr.f32.mxu0 0.0
  %638 = vmatmul.mubr.f32.gmra.mxu0 %v487
  %v639 = vpop.f32.mrf.mxu0
  %v640 = vadd.f32 %v270, %v639
  %v641 = vpop.f32.mrf.mxu0
  %v642 = vadd.f32 %v272, %v641
  %643 = vmatprep.mubr.f32.mxu0 0.0
  %644 = vmatmul.mubr.f32.gmra.mxu0 %v490
  %v645 = vpop.f32.mrf.mxu0
  %v646 = vadd.f32 %v276, %v645
  %v647 = vpop.f32.mrf.mxu0
  %v648 = vadd.f32 %v278, %v647
  %649 = vmatprep.mubr.f32.mxu0 0.0
  %650 = vmatmul.mubr.f32.gmra.mxu0 %v493
  %v651 = vpop.f32.mrf.mxu0
  %v652 = vadd.f32 %v282, %v651
  %v653 = vpop.f32.mrf.mxu0
  %v654 = vadd.f32 %v284, %v653
  %655 = vdwg.mxu0
  %656 = vmatprep.subr.mxu0 0.0
  %657 = vmatpush1.msra.mxu0 0.0
  %658 = vmatprep.subr.mxu0 0.0
  %659 = vmatpush1.msra.mxu0 0.0
  %660 = vmatprep.subr.mxu0 0.0
  %661 = vmatpush1.msra.mxu0 0.0
  %662 = vmatprep.subr.mxu0 0.0
  %663 = vmatpush1.msra.mxu0 0.0
  %664 = vmatprep.subr.mxu0 0.0
  %665 = vmatpush1.msra.mxu0 0.0
  %666 = vmatprep.subr.mxu0 0.0
  %667 = vmatpush1.msra.mxu0 0.0
  %668 = vmatprep.subr.mxu0 0.0
  %669 = vmatpush1.msra.mxu0 0.0
  %670 = vmatprep.subr.mxu0 0.0
  %671 = vmatpush1.msra.mxu0 0.0
  %672 = vmatprep.subr.mxu0 0.0
  %673 = vmatpush1.msra.mxu0 0.0
  %674 = vmatprep.subr.mxu0 0.0
  %675 = vmatpush1.msra.mxu0 0.0
  %676 = vmatprep.subr.mxu0 0.0
  %677 = vmatpush1.msra.mxu0 0.0
  %678 = vmatprep.subr.mxu0 0.0
  %679 = vmatpush1.msra.mxu0 0.0
  %680 = vmatprep.subr.mxu0 0.0
  %681 = vmatpush1.msra.mxu0 0.0
  %682 = vmatprep.subr.mxu0 0.0
  %683 = vmatpush1.msra.mxu0 0.0
  %684 = vmatprep.subr.mxu0 %v49
  %685 = vmatpush1.msra.mxu0 %v48
  %686 = vmatprep.subr.mxu0 %v45
  %687 = vmatpush1.msra.mxu0 %v44
  %688 = vmatprep.subr.mxu0 0.0
  %689 = vmatpush2.msra.mxu0 0.0
  %690 = vmatprep.subr.mxu0 0.0
  %691 = vmatpush2.msra.mxu0 0.0
  %692 = vmatprep.subr.mxu0 0.0
  %693 = vmatpush2.msra.mxu0 0.0
  %694 = vmatprep.subr.mxu0 0.0
  %695 = vmatpush2.msra.mxu0 0.0
  %696 = vmatprep.subr.mxu0 0.0
  %697 = vmatpush2.msra.mxu0 0.0
  %698 = vmatprep.subr.mxu0 0.0
  %699 = vmatpush2.msra.mxu0 0.0
  %700 = vmatprep.subr.mxu0 0.0
  %701 = vmatpush2.msra.mxu0 0.0
  %702 = vmatprep.subr.mxu0 0.0
  %703 = vmatpush2.msra.mxu0 0.0
  %704 = vmatprep.subr.mxu0 0.0
  %705 = vmatpush2.msra.mxu0 0.0
  %706 = vmatprep.subr.mxu0 0.0
  %707 = vmatpush2.msra.mxu0 0.0
  %708 = vmatprep.subr.mxu0 0.0
  %709 = vmatpush2.msra.mxu0 0.0
  %710 = vmatprep.subr.mxu0 0.0
  %711 = vmatpush2.msra.mxu0 0.0
  %712 = vmatprep.subr.mxu0 0.0
  %713 = vmatpush2.msra.mxu0 0.0
  %714 = vmatprep.subr.mxu0 0.0
  %715 = vmatpush2.msra.mxu0 0.0
  %716 = vmatprep.subr.mxu0 0.0
  %717 = vmatpush2.msra.mxu0 0.0
  %718 = vmatprep.subr.mxu0 0.0
  %719 = vmatpush2.msra.mxu0 0.0
  %720 = vmatprep.mubr.f32.mxu0 0.0
  %721 = vmatmul.mubr.f32.gmra.mxu0 %v448
  %v722 = vpop.f32.mrf.mxu0
  %v723 = vadd.f32 %v353, %v722
  %v724 = vpop.f32.mrf.mxu0
  %v725 = vadd.f32 %v355, %v724
  %726 = vmatprep.mubr.f32.mxu0 0.0
  %727 = vmatmul.mubr.f32.gmra.mxu0 %v451
  %v728 = vpop.f32.mrf.mxu0
  %v729 = vadd.f32 %v359, %v728
  %v730 = vpop.f32.mrf.mxu0
  %v731 = vadd.f32 %v361, %v730
  %732 = vmatprep.mubr.f32.mxu0 0.0
  %733 = vmatmul.mubr.f32.gmra.mxu0 %v454
  %v734 = vpop.f32.mrf.mxu0
  %v735 = vadd.f32 %v365, %v734
  %v736 = vpop.f32.mrf.mxu0
  %v737 = vadd.f32 %v367, %v736
  %738 = vmatprep.mubr.f32.mxu0 0.0
  %739 = vmatmul.mubr.f32.gmra.mxu0 %v457
  %v740 = vpop.f32.mrf.mxu0
  %v741 = vadd.f32 %v371, %v740
  %v742 = vpop.f32.mrf.mxu0
  %v743 = vadd.f32 %v373, %v742
  %744 = vmatprep.mubr.f32.mxu0 0.0
  %745 = vmatmul.mubr.f32.gmra.mxu0 %v460
  %v746 = vpop.f32.mrf.mxu0
  %v747 = vadd.f32 %v377, %v746
  %v748 = vpop.f32.mrf.mxu0
  %v749 = vadd.f32 %v379, %v748
  %750 = vmatprep.mubr.f32.mxu0 0.0
  %751 = vmatmul.mubr.f32.gmra.mxu0 %v463
  %v752 = vpop.f32.mrf.mxu0
  %v753 = vadd.f32 %v383, %v752
  %v754 = vpop.f32.mrf.mxu0
  %v755 = vadd.f32 %v385, %v754
  %756 = vmatprep.mubr.f32.mxu0 0.0
  %757 = vmatmul.mubr.f32.gmra.mxu0 %v466
  %v758 = vpop.f32.mrf.mxu0
  %v759 = vadd.f32 %v389, %v758
  %v760 = vpop.f32.mrf.mxu0
  %v761 = vadd.f32 %v391, %v760
  %762 = vmatprep.mubr.f32.mxu0 0.0
  %763 = vmatmul.mubr.f32.gmra.mxu0 %v469
  %v764 = vpop.f32.mrf.mxu0
  %v765 = vadd.f32 %v395, %v764
  %v766 = vpop.f32.mrf.mxu0
  %v767 = vadd.f32 %v397, %v766
  %768 = vmatprep.mubr.f32.mxu0 0.0
  %769 = vmatmul.mubr.f32.gmra.mxu0 %v472
  %v770 = vpop.f32.mrf.mxu0
  %v771 = vadd.f32 %v401, %v770
  %v772 = vpop.f32.mrf.mxu0
  %v773 = vadd.f32 %v403, %v772
  %774 = vmatprep.mubr.f32.mxu0 0.0
  %775 = vmatmul.mubr.f32.gmra.mxu0 %v475
  %v776 = vpop.f32.mrf.mxu0
  %v777 = vadd.f32 %v407, %v776
  %v778 = vpop.f32.mrf.mxu0
  %v779 = vadd.f32 %v409, %v778
  %780 = vmatprep.mubr.f32.mxu0 0.0
  %781 = vmatmul.mubr.f32.gmra.mxu0 %v478
  %v782 = vpop.f32.mrf.mxu0
  %v783 = vadd.f32 %v413, %v782
  %v784 = vpop.f32.mrf.mxu0
  %v785 = vadd.f32 %v415, %v784
  %786 = vmatprep.mubr.f32.mxu0 0.0
  %787 = vmatmul.mubr.f32.gmra.mxu0 %v481
  %v788 = vpop.f32.mrf.mxu0
  %v789 = vadd.f32 %v419, %v788
  %v790 = vpop.f32.mrf.mxu0
  %v791 = vadd.f32 %v421, %v790
  %792 = vmatprep.mubr.f32.mxu0 0.0
  %793 = vmatmul.mubr.f32.gmra.mxu0 %v484
  %v794 = vpop.f32.mrf.mxu0
  %v795 = vadd.f32 %v425, %v794
  %v796 = vpop.f32.mrf.mxu0
  %v797 = vadd.f32 %v427, %v796
  %798 = vmatprep.mubr.f32.mxu0 0.0
  %799 = vmatmul.mubr.f32.gmra.mxu0 %v487
  %v800 = vpop.f32.mrf.mxu0
  %v801 = vadd.f32 %v431, %v800
  %v802 = vpop.f32.mrf.mxu0
  %v803 = vadd.f32 %v433, %v802
  %804 = vmatprep.mubr.f32.mxu0 0.0
  %805 = vmatmul.mubr.f32.gmra.mxu0 %v490
  %v806 = vpop.f32.mrf.mxu0
  %v807 = vadd.f32 %v437, %v806
  %v808 = vpop.f32.mrf.mxu0
  %v809 = vadd.f32 %v439, %v808
  %810 = vmatprep.mubr.f32.mxu0 0.0
  %811 = vmatmul.mubr.f32.gmra.mxu0 %v493
  %v812 = vpop.f32.mrf.mxu0
  %v813 = vadd.f32 %v443, %v812
  %v814 = vpop.f32.mrf.mxu0
  %v815 = vadd.f32 %v445, %v814
  %816 = vdwg.mxu0
  %s817 = scalar_lea.vmem %s0, 16
  %v818 = vld [vmem:[%s817] sm:$0xff]
  %v819 = vld [vmem:[%s817 + $0x8] sm:$0xff]
  %v820 = vld [vmem:[%s817 + $0x10] sm:$0xff]
  %v821 = vld [vmem:[%s817 + $0x18] sm:$0xff]
  %v822 = vld [vmem:[%s817 + $0x20] sm:$0xff]
  %v823 = vld [vmem:[%s817 + $0x28] sm:$0xff]
  %v824 = vld [vmem:[%s817 + $0x30] sm:$0xff]
  %v825 = vld [vmem:[%s817 + $0x38] sm:$0xff]
  %v826 = vld [vmem:[%s817 + $0x40] sm:$0xff]
  %v827 = vld [vmem:[%s817 + $0x48] sm:$0xff]
  %v828 = vld [vmem:[%s817 + $0x50] sm:$0xff]
  %v829 = vld [vmem:[%s817 + $0x58] sm:$0xff]
  %v830 = vld [vmem:[%s817 + $0x60] sm:$0xff]
  %v831 = vld [vmem:[%s817 + $0x68] sm:$0xff]
  %v832 = vld [vmem:[%s817 + $0x70] sm:$0xff]
  %v833 = vld [vmem:[%s817 + $0x78] sm:$0xff]
  %s834 = scalar_lea.vmem %s1, 128
  %v835 = vld [vmem:[%s834] sm:$0xff]
  %v836 = vld [vmem:[%s834 + $0x8] sm:$0xff]
  %v837 = vld [vmem:[%s834 + $0x10] sm:$0xff]
  %v838 = vld [vmem:[%s834 + $0x18] sm:$0xff]
  %v839 = vld [vmem:[%s834 + $0x20] sm:$0xff]
  %v840 = vld [vmem:[%s834 + $0x28] sm:$0xff]
  %v841 = vld [vmem:[%s834 + $0x30] sm:$0xff]
  %v842 = vld [vmem:[%s834 + $0x38] sm:$0xff]
  %v844 = vsel %vm76, %v818, 0
  %v847 = vsel %vm76, %v819, 0
  %v850 = vsel %vm76, %v820, 0
  %v853 = vsel %vm76, %v821, 0
  %v856 = vsel %vm76, %v822, 0
  %v859 = vsel %vm76, %v823, 0
  %v862 = vsel %vm76, %v824, 0
  %v865 = vsel %vm76, %v825, 0
  %v868 = vsel %vm76, %v826, 0
  %v871 = vsel %vm76, %v827, 0
  %v874 = vsel %vm76, %v828, 0
  %v877 = vsel %vm76, %v829, 0
  %v880 = vsel %vm76, %v830, 0
  %v883 = vsel %vm76, %v831, 0
  %v886 = vsel %vm76, %v832, 0
  %v889 = vsel %vm76, %v833, 0
  %891 = vmatprep.subr.mxu0 0.0
  %892 = vmatpush1.msra.mxu0 0.0
  %893 = vmatprep.subr.mxu0 0.0
  %894 = vmatpush1.msra.mxu0 0.0
  %895 = vmatprep.subr.mxu0 0.0
  %896 = vmatpush1.msra.mxu0 0.0
  %897 = vmatprep.subr.mxu0 0.0
  %898 = vmatpush1.msra.mxu0 0.0
  %899 = vmatprep.subr.mxu0 0.0
  %900 = vmatpush1.msra.mxu0 0.0
  %901 = vmatprep.subr.mxu0 0.0
  %902 = vmatpush1.msra.mxu0 0.0
  %903 = vmatprep.subr.mxu0 0.0
  %904 = vmatpush1.msra.mxu0 0.0
  %905 = vmatprep.subr.mxu0 0.0
  %906 = vmatpush1.msra.mxu0 0.0
  %907 = vmatprep.subr.mxu0 0.0
  %908 = vmatpush1.msra.mxu0 0.0
  %909 = vmatprep.subr.mxu0 0.0
  %910 = vmatpush1.msra.mxu0 0.0
  %911 = vmatprep.subr.mxu0 0.0
  %912 = vmatpush1.msra.mxu0 0.0
  %913 = vmatprep.subr.mxu0 0.0
  %914 = vmatpush1.msra.mxu0 0.0
  %915 = vmatprep.subr.mxu0 0.0
  %916 = vmatpush1.msra.mxu0 0.0
  %917 = vmatprep.subr.mxu0 0.0
  %918 = vmatpush1.msra.mxu0 0.0
  %919 = vmatprep.subr.mxu0 %v840
  %920 = vmatpush1.msra.mxu0 %v839
  %921 = vmatprep.subr.mxu0 %v836
  %922 = vmatpush1.msra.mxu0 %v835
  %923 = vmatprep.subr.mxu0 0.0
  %924 = vmatpush2.msra.mxu0 0.0
  %925 = vmatprep.subr.mxu0 0.0
  %926 = vmatpush2.msra.mxu0 0.0
  %927 = vmatprep.subr.mxu0 0.0
  %928 = vmatpush2.msra.mxu0 0.0
  %929 = vmatprep.subr.mxu0 0.0
  %930 = vmatpush2.msra.mxu0 0.0
  %931 = vmatprep.subr.mxu0 0.0
  %932 = vmatpush2.msra.mxu0 0.0
  %933 = vmatprep.subr.mxu0 0.0
  %934 = vmatpush2.msra.mxu0 0.0
  %935 = vmatprep.subr.mxu0 0.0
  %936 = vmatpush2.msra.mxu0 0.0
  %937 = vmatprep.subr.mxu0 0.0
  %938 = vmatpush2.msra.mxu0 0.0
  %939 = vmatprep.subr.mxu0 0.0
  %940 = vmatpush2.msra.mxu0 0.0
  %941 = vmatprep.subr.mxu0 0.0
  %942 = vmatpush2.msra.mxu0 0.0
  %943 = vmatprep.subr.mxu0 0.0
  %944 = vmatpush2.msra.mxu0 0.0
  %945 = vmatprep.subr.mxu0 0.0
  %946 = vmatpush2.msra.mxu0 0.0
  %947 = vmatprep.subr.mxu0 0.0
  %948 = vmatpush2.msra.mxu0 0.0
  %949 = vmatprep.subr.mxu0 0.0
  %950 = vmatpush2.msra.mxu0 0.0
  %951 = vmatprep.subr.mxu0 0.0
  %952 = vmatpush2.msra.mxu0 0.0
  %953 = vmatprep.subr.mxu0 0.0
  %954 = vmatpush2.msra.mxu0 0.0
  %955 = vmatprep.mubr.f32.mxu0 0.0
  %956 = vmatmul.mubr.f32.gmra.mxu0 %v844
  %v957 = vpop.f32.mrf.mxu0
  %v958 = vadd.f32 0.0, %v957
  %v959 = vpop.f32.mrf.mxu0
  %v960 = vadd.f32 0.0, %v959
  %961 = vmatprep.mubr.f32.mxu0 0.0
  %962 = vmatmul.mubr.f32.gmra.mxu0 %v847
  %v963 = vpop.f32.mrf.mxu0
  %v964 = vadd.f32 0.0, %v963
  %v965 = vpop.f32.mrf.mxu0
  %v966 = vadd.f32 0.0, %v965
  %967 = vmatprep.mubr.f32.mxu0 0.0
  %968 = vmatmul.mubr.f32.gmra.mxu0 %v850
  %v969 = vpop.f32.mrf.mxu0
  %v970 = vadd.f32 0.0, %v969
  %v971 = vpop.f32.mrf.mxu0
  %v972 = vadd.f32 0.0, %v971
  %973 = vmatprep.mubr.f32.mxu0 0.0
  %974 = vmatmul.mubr.f32.gmra.mxu0 %v853
  %v975 = vpop.f32.mrf.mxu0
  %v976 = vadd.f32 0.0, %v975
  %v977 = vpop.f32.mrf.mxu0
  %v978 = vadd.f32 0.0, %v977
  %979 = vmatprep.mubr.f32.mxu0 0.0
  %980 = vmatmul.mubr.f32.gmra.mxu0 %v856
  %v981 = vpop.f32.mrf.mxu0
  %v982 = vadd.f32 0.0, %v981
  %v983 = vpop.f32.mrf.mxu0
  %v984 = vadd.f32 0.0, %v983
  %985 = vmatprep.mubr.f32.mxu0 0.0
  %986 = vmatmul.mubr.f32.gmra.mxu0 %v859
  %v987 = vpop.f32.mrf.mxu0
  %v988 = vadd.f32 0.0, %v987
  %v989 = vpop.f32.mrf.mxu0
  %v990 = vadd.f32 0.0, %v989
  %991 = vmatprep.mubr.f32.mxu0 0.0
  %992 = vmatmul.mubr.f32.gmra.mxu0 %v862
  %v993 = vpop.f32.mrf.mxu0
  %v994 = vadd.f32 0.0, %v993
  %v995 = vpop.f32.mrf.mxu0
  %v996 = vadd.f32 0.0, %v995
  %997 = vmatprep.mubr.f32.mxu0 0.0
  %998 = vmatmul.mubr.f32.gmra.mxu0 %v865
  %v999 = vpop.f32.mrf.mxu0
  %v1000 = vadd.f32 0.0, %v999
  %v1001 = vpop.f32.mrf.mxu0
  %v1002 = vadd.f32 0.0, %v1001
  %1003 = vmatprep.mubr.f32.mxu0 0.0
  %1004 = vmatmul.mubr.f32.gmra.mxu0 %v868
  %v1005 = vpop.f32.mrf.mxu0
  %v1006 = vadd.f32 0.0, %v1005
  %v1007 = vpop.f32.mrf.mxu0
  %v1008 = vadd.f32 0.0, %v1007
  %1009 = vmatprep.mubr.f32.mxu0 0.0
  %1010 = vmatmul.mubr.f32.gmra.mxu0 %v871
  %v1011 = vpop.f32.mrf.mxu0
  %v1012 = vadd.f32 0.0, %v1011
  %v1013 = vpop.f32.mrf.mxu0
  %v1014 = vadd.f32 0.0, %v1013
  %1015 = vmatprep.mubr.f32.mxu0 0.0
  %1016 = vmatmul.mubr.f32.gmra.mxu0 %v874
  %v1017 = vpop.f32.mrf.mxu0
  %v1018 = vadd.f32 0.0, %v1017
  %v1019 = vpop.f32.mrf.mxu0
  %v1020 = vadd.f32 0.0, %v1019
  %1021 = vmatprep.mubr.f32.mxu0 0.0
  %1022 = vmatmul.mubr.f32.gmra.mxu0 %v877
  %v1023 = vpop.f32.mrf.mxu0
  %v1024 = vadd.f32 0.0, %v1023
  %v1025 = vpop.f32.mrf.mxu0
  %v1026 = vadd.f32 0.0, %v1025
  %1027 = vmatprep.mubr.f32.mxu0 0.0
  %1028 = vmatmul.mubr.f32.gmra.mxu0 %v880
  %v1029 = vpop.f32.mrf.mxu0
  %v1030 = vadd.f32 0.0, %v1029
  %v1031 = vpop.f32.mrf.mxu0
  %v1032 = vadd.f32 0.0, %v1031
  %1033 = vmatprep.mubr.f32.mxu0 0.0
  %1034 = vmatmul.mubr.f32.gmra.mxu0 %v883
  %v1035 = vpop.f32.mrf.mxu0
  %v1036 = vadd.f32 0.0, %v1035
  %v1037 = vpop.f32.mrf.mxu0
  %v1038 = vadd.f32 0.0, %v1037
  %1039 = vmatprep.mubr.f32.mxu0 0.0
  %1040 = vmatmul.mubr.f32.gmra.mxu0 %v886
  %v1041 = vpop.f32.mrf.mxu0
  %v1042 = vadd.f32 0.0, %v1041
  %v1043 = vpop.f32.mrf.mxu0
  %v1044 = vadd.f32 0.0, %v1043
  %1045 = vmatprep.mubr.f32.mxu0 0.0
  %1046 = vmatmul.mubr.f32.gmra.mxu0 %v889
  %v1047 = vpop.f32.mrf.mxu0
  %v1048 = vadd.f32 0.0, %v1047
  %v1049 = vpop.f32.mrf.mxu0
  %v1050 = vadd.f32 0.0, %v1049
  %1051 = vdwg.mxu0
  %1052 = vmatprep.subr.mxu0 0.0
  %1053 = vmatpush1.msra.mxu0 0.0
  %1054 = vmatprep.subr.mxu0 0.0
  %1055 = vmatpush1.msra.mxu0 0.0
  %1056 = vmatprep.subr.mxu0 0.0
  %1057 = vmatpush1.msra.mxu0 0.0
  %1058 = vmatprep.subr.mxu0 0.0
  %1059 = vmatpush1.msra.mxu0 0.0
  %1060 = vmatprep.subr.mxu0 0.0
  %1061 = vmatpush1.msra.mxu0 0.0
  %1062 = vmatprep.subr.mxu0 0.0
  %1063 = vmatpush1.msra.mxu0 0.0
  %1064 = vmatprep.subr.mxu0 0.0
  %1065 = vmatpush1.msra.mxu0 0.0
  %1066 = vmatprep.subr.mxu0 0.0
  %1067 = vmatpush1.msra.mxu0 0.0
  %1068 = vmatprep.subr.mxu0 0.0
  %1069 = vmatpush1.msra.mxu0 0.0
  %1070 = vmatprep.subr.mxu0 0.0
  %1071 = vmatpush1.msra.mxu0 0.0
  %1072 = vmatprep.subr.mxu0 0.0
  %1073 = vmatpush1.msra.mxu0 0.0
  %1074 = vmatprep.subr.mxu0 0.0
  %1075 = vmatpush1.msra.mxu0 0.0
  %1076 = vmatprep.subr.mxu0 0.0
  %1077 = vmatpush1.msra.mxu0 0.0
  %1078 = vmatprep.subr.mxu0 0.0
  %1079 = vmatpush1.msra.mxu0 0.0
  %1080 = vmatprep.subr.mxu0 %v842
  %1081 = vmatpush1.msra.mxu0 %v841
  %1082 = vmatprep.subr.mxu0 %v838
  %1083 = vmatpush1.msra.mxu0 %v837
  %1084 = vmatprep.subr.mxu0 0.0
  %1085 = vmatpush2.msra.mxu0 0.0
  %1086 = vmatprep.subr.mxu0 0.0
  %1087 = vmatpush2.msra.mxu0 0.0
  %1088 = vmatprep.subr.mxu0 0.0
  %1089 = vmatpush2.msra.mxu0 0.0
  %1090 = vmatprep.subr.mxu0 0.0
  %1091 = vmatpush2.msra.mxu0 0.0
  %1092 = vmatprep.subr.mxu0 0.0
  %1093 = vmatpush2.msra.mxu0 0.0
  %1094 = vmatprep.subr.mxu0 0.0
  %1095 = vmatpush2.msra.mxu0 0.0
  %1096 = vmatprep.subr.mxu0 0.0
  %1097 = vmatpush2.msra.mxu0 0.0
  %1098 = vmatprep.subr.mxu0 0.0
  %1099 = vmatpush2.msra.mxu0 0.0
  %1100 = vmatprep.subr.mxu0 0.0
  %1101 = vmatpush2.msra.mxu0 0.0
  %1102 = vmatprep.subr.mxu0 0.0
  %1103 = vmatpush2.msra.mxu0 0.0
  %1104 = vmatprep.subr.mxu0 0.0
  %1105 = vmatpush2.msra.mxu0 0.0
  %1106 = vmatprep.subr.mxu0 0.0
  %1107 = vmatpush2.msra.mxu0 0.0
  %1108 = vmatprep.subr.mxu0 0.0
  %1109 = vmatpush2.msra.mxu0 0.0
  %1110 = vmatprep.subr.mxu0 0.0
  %1111 = vmatpush2.msra.mxu0 0.0
  %1112 = vmatprep.subr.mxu0 0.0
  %1113 = vmatpush2.msra.mxu0 0.0
  %1114 = vmatprep.subr.mxu0 0.0
  %1115 = vmatpush2.msra.mxu0 0.0
  %1116 = vmatprep.mubr.f32.mxu0 0.0
  %1117 = vmatmul.mubr.f32.gmra.mxu0 %v844
  %v1118 = vpop.f32.mrf.mxu0
  %v1119 = vadd.f32 0.0, %v1118
  %v1120 = vpop.f32.mrf.mxu0
  %v1121 = vadd.f32 0.0, %v1120
  %1122 = vmatprep.mubr.f32.mxu0 0.0
  %1123 = vmatmul.mubr.f32.gmra.mxu0 %v847
  %v1124 = vpop.f32.mrf.mxu0
  %v1125 = vadd.f32 0.0, %v1124
  %v1126 = vpop.f32.mrf.mxu0
  %v1127 = vadd.f32 0.0, %v1126
  %1128 = vmatprep.mubr.f32.mxu0 0.0
  %1129 = vmatmul.mubr.f32.gmra.mxu0 %v850
  %v1130 = vpop.f32.mrf.mxu0
  %v1131 = vadd.f32 0.0, %v1130
  %v1132 = vpop.f32.mrf.mxu0
  %v1133 = vadd.f32 0.0, %v1132
  %1134 = vmatprep.mubr.f32.mxu0 0.0
  %1135 = vmatmul.mubr.f32.gmra.mxu0 %v853
  %v1136 = vpop.f32.mrf.mxu0
  %v1137 = vadd.f32 0.0, %v1136
  %v1138 = vpop.f32.mrf.mxu0
  %v1139 = vadd.f32 0.0, %v1138
  %1140 = vmatprep.mubr.f32.mxu0 0.0
  %1141 = vmatmul.mubr.f32.gmra.mxu0 %v856
  %v1142 = vpop.f32.mrf.mxu0
  %v1143 = vadd.f32 0.0, %v1142
  %v1144 = vpop.f32.mrf.mxu0
  %v1145 = vadd.f32 0.0, %v1144
  %1146 = vmatprep.mubr.f32.mxu0 0.0
  %1147 = vmatmul.mubr.f32.gmra.mxu0 %v859
  %v1148 = vpop.f32.mrf.mxu0
  %v1149 = vadd.f32 0.0, %v1148
  %v1150 = vpop.f32.mrf.mxu0
  %v1151 = vadd.f32 0.0, %v1150
  %1152 = vmatprep.mubr.f32.mxu0 0.0
  %1153 = vmatmul.mubr.f32.gmra.mxu0 %v862
  %v1154 = vpop.f32.mrf.mxu0
  %v1155 = vadd.f32 0.0, %v1154
  %v1156 = vpop.f32.mrf.mxu0
  %v1157 = vadd.f32 0.0, %v1156
  %1158 = vmatprep.mubr.f32.mxu0 0.0
  %1159 = vmatmul.mubr.f32.gmra.mxu0 %v865
  %v1160 = vpop.f32.mrf.mxu0
  %v1161 = vadd.f32 0.0, %v1160
  %v1162 = vpop.f32.mrf.mxu0
  %v1163 = vadd.f32 0.0, %v1162
  %1164 = vmatprep.mubr.f32.mxu0 0.0
  %1165 = vmatmul.mubr.f32.gmra.mxu0 %v868
  %v1166 = vpop.f32.mrf.mxu0
  %v1167 = vadd.f32 0.0, %v1166
  %v1168 = vpop.f32.mrf.mxu0
  %v1169 = vadd.f32 0.0, %v1168
  %1170 = vmatprep.mubr.f32.mxu0 0.0
  %1171 = vmatmul.mubr.f32.gmra.mxu0 %v871
  %v1172 = vpop.f32.mrf.mxu0
  %v1173 = vadd.f32 0.0, %v1172
  %v1174 = vpop.f32.mrf.mxu0
  %v1175 = vadd.f32 0.0, %v1174
  %1176 = vmatprep.mubr.f32.mxu0 0.0
  %1177 = vmatmul.mubr.f32.gmra.mxu0 %v874
  %v1178 = vpop.f32.mrf.mxu0
  %v1179 = vadd.f32 0.0, %v1178
  %v1180 = vpop.f32.mrf.mxu0
  %v1181 = vadd.f32 0.0, %v1180
  %1182 = vmatprep.mubr.f32.mxu0 0.0
  %1183 = vmatmul.mubr.f32.gmra.mxu0 %v877
  %v1184 = vpop.f32.mrf.mxu0
  %v1185 = vadd.f32 0.0, %v1184
  %v1186 = vpop.f32.mrf.mxu0
  %v1187 = vadd.f32 0.0, %v1186
  %1188 = vmatprep.mubr.f32.mxu0 0.0
  %1189 = vmatmul.mubr.f32.gmra.mxu0 %v880
  %v1190 = vpop.f32.mrf.mxu0
  %v1191 = vadd.f32 0.0, %v1190
  %v1192 = vpop.f32.mrf.mxu0
  %v1193 = vadd.f32 0.0, %v1192
  %1194 = vmatprep.mubr.f32.mxu0 0.0
  %1195 = vmatmul.mubr.f32.gmra.mxu0 %v883
  %v1196 = vpop.f32.mrf.mxu0
  %v1197 = vadd.f32 0.0, %v1196
  %v1198 = vpop.f32.mrf.mxu0
  %v1199 = vadd.f32 0.0, %v1198
  %1200 = vmatprep.mubr.f32.mxu0 0.0
  %1201 = vmatmul.mubr.f32.gmra.mxu0 %v886
  %v1202 = vpop.f32.mrf.mxu0
  %v1203 = vadd.f32 0.0, %v1202
  %v1204 = vpop.f32.mrf.mxu0
  %v1205 = vadd.f32 0.0, %v1204
  %1206 = vmatprep.mubr.f32.mxu0 0.0
  %1207 = vmatmul.mubr.f32.gmra.mxu0 %v889
  %v1208 = vpop.f32.mrf.mxu0
  %v1209 = vadd.f32 0.0, %v1208
  %v1210 = vpop.f32.mrf.mxu0
  %v1211 = vadd.f32 0.0, %v1210
  %1212 = vdwg.mxu0
  %v1213 = vadd.f32 %v562, %v958
  %v1214 = vadd.f32 %v564, %v960
  %v1215 = vadd.f32 %v723, %v1119
  %v1216 = vadd.f32 %v725, %v1121
  %v1217 = vadd.f32 %v568, %v964
  %v1218 = vadd.f32 %v570, %v966
  %v1219 = vadd.f32 %v729, %v1125
  %v1220 = vadd.f32 %v731, %v1127
  %v1221 = vadd.f32 %v574, %v970
  %v1222 = vadd.f32 %v576, %v972
  %v1223 = vadd.f32 %v735, %v1131
  %v1224 = vadd.f32 %v737, %v1133
  %v1225 = vadd.f32 %v580, %v976
  %v1226 = vadd.f32 %v582, %v978
  %v1227 = vadd.f32 %v741, %v1137
  %v1228 = vadd.f32 %v743, %v1139
  %v1229 = vadd.f32 %v586, %v982
  %v1230 = vadd.f32 %v588, %v984
  %v1231 = vadd.f32 %v747, %v1143
  %v1232 = vadd.f32 %v749, %v1145
  %v1233 = vadd.f32 %v592, %v988
  %v1234 = vadd.f32 %v594, %v990
  %v1235 = vadd.f32 %v753, %v1149
  %v1236 = vadd.f32 %v755, %v1151
  %v1237 = vadd.f32 %v598, %v994
  %v1238 = vadd.f32 %v600, %v996
  %v1239 = vadd.f32 %v759, %v1155
  %v1240 = vadd.f32 %v761, %v1157
  %v1241 = vadd.f32 %v604, %v1000
  %v1242 = vadd.f32 %v606, %v1002
  %v1243 = vadd.f32 %v765, %v1161
  %v1244 = vadd.f32 %v767, %v1163
  %v1245 = vadd.f32 %v610, %v1006
  %v1246 = vadd.f32 %v612, %v1008
  %v1247 = vadd.f32 %v771, %v1167
  %v1248 = vadd.f32 %v773, %v1169
  %v1249 = vadd.f32 %v616, %v1012
  %v1250 = vadd.f32 %v618, %v1014
  %v1251 = vadd.f32 %v777, %v1173
  %v1252 = vadd.f32 %v779, %v1175
  %v1253 = vadd.f32 %v622, %v1018
  %v1254 = vadd.f32 %v624, %v1020
  %v1255 = vadd.f32 %v783, %v1179
  %v1256 = vadd.f32 %v785, %v1181
  %v1257 = vadd.f32 %v628, %v1024
  %v1258 = vadd.f32 %v630, %v1026
  %v1259 = vadd.f32 %v789, %v1185
  %v1260 = vadd.f32 %v791, %v1187
  %v1261 = vadd.f32 %v634, %v1030
  %v1262 = vadd.f32 %v636, %v1032
  %v1263 = vadd.f32 %v795, %v1191
  %v1264 = vadd.f32 %v797, %v1193
  %v1265 = vadd.f32 %v640, %v1036
  %v1266 = vadd.f32 %v642, %v1038
  %v1267 = vadd.f32 %v801, %v1197
  %v1268 = vadd.f32 %v803, %v1199
  %v1269 = vadd.f32 %v646, %v1042
  %v1270 = vadd.f32 %v648, %v1044
  %v1271 = vadd.f32 %v807, %v1203
  %v1272 = vadd.f32 %v809, %v1205
  %v1273 = vadd.f32 %v652, %v1048
  %v1274 = vadd.f32 %v654, %v1050
  %v1275 = vadd.f32 %v813, %v1209
  %v1276 = vadd.f32 %v815, %v1211
  %v1277 = vld [vmem:[%s4] sm:$0xf]
  %v1279 = vlaneseq
  %v1280 = vshrl.u32 %v1279, 7
  %v1281 = vsub.s32 0, %v1280
  %v1282 = vrot.slane %v1277, %v1281
  %v1283 = vlaneseq
  %v1284 = vshrl.u32 %v1283, 7
  %v1285 = vsub.s32 1, %v1284
  %v1286 = vrot.slane %v1277, %v1285
  %v1287 = vlaneseq
  %v1288 = vshrl.u32 %v1287, 7
  %v1289 = vsub.s32 2, %v1288
  %v1290 = vrot.slane %v1277, %v1289
  %v1291 = vlaneseq
  %v1292 = vshrl.u32 %v1291, 7
  %v1293 = vsub.s32 3, %v1292
  %v1294 = vrot.slane %v1277, %v1293
  %v1299 = vadd.f32 %v1213, %v1282
  %v1300 = vadd.f32 %v1214, %v1286
  %v1301 = vadd.f32 %v1215, %v1290
  %v1302 = vadd.f32 %v1216, %v1294
  %v1303 = vadd.f32 %v1217, %v1282
  %v1304 = vadd.f32 %v1218, %v1286
  %v1305 = vadd.f32 %v1219, %v1290
  %v1306 = vadd.f32 %v1220, %v1294
  %v1307 = vadd.f32 %v1221, %v1282
  %v1308 = vadd.f32 %v1222, %v1286
  %v1309 = vadd.f32 %v1223, %v1290
  %v1310 = vadd.f32 %v1224, %v1294
  %v1311 = vadd.f32 %v1225, %v1282
  %v1312 = vadd.f32 %v1226, %v1286
  %v1313 = vadd.f32 %v1227, %v1290
  %v1314 = vadd.f32 %v1228, %v1294
  %v1315 = vadd.f32 %v1229, %v1282
  %v1316 = vadd.f32 %v1230, %v1286
  %v1317 = vadd.f32 %v1231, %v1290
  %v1318 = vadd.f32 %v1232, %v1294
  %v1319 = vadd.f32 %v1233, %v1282
  %v1320 = vadd.f32 %v1234, %v1286
  %v1321 = vadd.f32 %v1235, %v1290
  %v1322 = vadd.f32 %v1236, %v1294
  %v1323 = vadd.f32 %v1237, %v1282
  %v1324 = vadd.f32 %v1238, %v1286
  %v1325 = vadd.f32 %v1239, %v1290
  %v1326 = vadd.f32 %v1240, %v1294
  %v1327 = vadd.f32 %v1241, %v1282
  %v1328 = vadd.f32 %v1242, %v1286
  %v1329 = vadd.f32 %v1243, %v1290
  %v1330 = vadd.f32 %v1244, %v1294
  %v1331 = vadd.f32 %v1245, %v1282
  %v1332 = vadd.f32 %v1246, %v1286
  %v1333 = vadd.f32 %v1247, %v1290
  %v1334 = vadd.f32 %v1248, %v1294
  %v1335 = vadd.f32 %v1249, %v1282
  %v1336 = vadd.f32 %v1250, %v1286
  %v1337 = vadd.f32 %v1251, %v1290
  %v1338 = vadd.f32 %v1252, %v1294
  %v1339 = vadd.f32 %v1253, %v1282
  %v1340 = vadd.f32 %v1254, %v1286
  %v1341 = vadd.f32 %v1255, %v1290
  %v1342 = vadd.f32 %v1256, %v1294
  %v1343 = vadd.f32 %v1257, %v1282
  %v1344 = vadd.f32 %v1258, %v1286
  %v1345 = vadd.f32 %v1259, %v1290
  %v1346 = vadd.f32 %v1260, %v1294
  %v1347 = vadd.f32 %v1261, %v1282
  %v1348 = vadd.f32 %v1262, %v1286
  %v1349 = vadd.f32 %v1263, %v1290
  %v1350 = vadd.f32 %v1264, %v1294
  %v1351 = vadd.f32 %v1265, %v1282
  %v1352 = vadd.f32 %v1266, %v1286
  %v1353 = vadd.f32 %v1267, %v1290
  %v1354 = vadd.f32 %v1268, %v1294
  %v1355 = vadd.f32 %v1269, %v1282
  %v1356 = vadd.f32 %v1270, %v1286
  %v1357 = vadd.f32 %v1271, %v1290
  %v1358 = vadd.f32 %v1272, %v1294
  %v1359 = vadd.f32 %v1273, %v1282
  %v1360 = vadd.f32 %v1274, %v1286
  %v1361 = vadd.f32 %v1275, %v1290
  %v1362 = vadd.f32 %v1276, %v1294
  %v1363 = vmax.f32 %v1299, 0.0
  %v1364 = vmax.f32 %v1300, 0.0
  %v1365 = vmax.f32 %v1301, 0.0
  %v1366 = vmax.f32 %v1302, 0.0
  %v1367 = vmax.f32 %v1303, 0.0
  %v1368 = vmax.f32 %v1304, 0.0
  %v1369 = vmax.f32 %v1305, 0.0
  %v1370 = vmax.f32 %v1306, 0.0
  %v1371 = vmax.f32 %v1307, 0.0
  %v1372 = vmax.f32 %v1308, 0.0
  %v1373 = vmax.f32 %v1309, 0.0
  %v1374 = vmax.f32 %v1310, 0.0
  %v1375 = vmax.f32 %v1311, 0.0
  %v1376 = vmax.f32 %v1312, 0.0
  %v1377 = vmax.f32 %v1313, 0.0
  %v1378 = vmax.f32 %v1314, 0.0
  %v1379 = vmax.f32 %v1315, 0.0
  %v1380 = vmax.f32 %v1316, 0.0
  %v1381 = vmax.f32 %v1317, 0.0
  %v1382 = vmax.f32 %v1318, 0.0
  %v1383 = vmax.f32 %v1319, 0.0
  %v1384 = vmax.f32 %v1320, 0.0
  %v1385 = vmax.f32 %v1321, 0.0
  %v1386 = vmax.f32 %v1322, 0.0
  %v1387 = vmax.f32 %v1323, 0.0
  %v1388 = vmax.f32 %v1324, 0.0
  %v1389 = vmax.f32 %v1325, 0.0
  %v1390 = vmax.f32 %v1326, 0.0
  %v1391 = vmax.f32 %v1327, 0.0
  %v1392 = vmax.f32 %v1328, 0.0
  %v1393 = vmax.f32 %v1329, 0.0
  %v1394 = vmax.f32 %v1330, 0.0
  %v1395 = vmax.f32 %v1331, 0.0
  %v1396 = vmax.f32 %v1332, 0.0
  %v1397 = vmax.f32 %v1333, 0.0
  %v1398 = vmax.f32 %v1334, 0.0
  %v1399 = vmax.f32 %v1335, 0.0
  %v1400 = vmax.f32 %v1336, 0.0
  %v1401 = vmax.f32 %v1337, 0.0
  %v1402 = vmax.f32 %v1338, 0.0
  %v1403 = vmax.f32 %v1339, 0.0
  %v1404 = vmax.f32 %v1340, 0.0
  %v1405 = vmax.f32 %v1341, 0.0
  %v1406 = vmax.f32 %v1342, 0.0
  %v1407 = vmax.f32 %v1343, 0.0
  %v1408 = vmax.f32 %v1344, 0.0
  %v1409 = vmax.f32 %v1345, 0.0
  %v1410 = vmax.f32 %v1346, 0.0
  %v1411 = vmax.f32 %v1347, 0.0
  %v1412 = vmax.f32 %v1348, 0.0
  %v1413 = vmax.f32 %v1349, 0.0
  %v1414 = vmax.f32 %v1350, 0.0
  %v1415 = vmax.f32 %v1351, 0.0
  %v1416 = vmax.f32 %v1352, 0.0
  %v1417 = vmax.f32 %v1353, 0.0
  %v1418 = vmax.f32 %v1354, 0.0
  %v1419 = vmax.f32 %v1355, 0.0
  %v1420 = vmax.f32 %v1356, 0.0
  %v1421 = vmax.f32 %v1357, 0.0
  %v1422 = vmax.f32 %v1358, 0.0
  %v1423 = vmax.f32 %v1359, 0.0
  %v1424 = vmax.f32 %v1360, 0.0
  %v1425 = vmax.f32 %v1361, 0.0
  %v1426 = vmax.f32 %v1362, 0.0
  %1427 = vst [vmem:[#allocation2] sm:$0xff] 0.0
  %1428 = vst [vmem:[#allocation2 + $0x8] sm:$0xff] 0.0
  %1429 = vst [vmem:[#allocation2 + $0x10] sm:$0xff] 0.0
  %1430 = vst [vmem:[#allocation2 + $0x18] sm:$0xff] 0.0
  %s1431 = scalar_lea.vmem [#allocation2], 544
  %1432 = vst [vmem:[%s1431] sm:$0xff] 0.0
  %1433 = vst [vmem:[%s1431 + $0x8] sm:$0xff] 0.0
  %1434 = vst [vmem:[%s1431 + $0x10] sm:$0xff] 0.0
  %1435 = vst [vmem:[%s1431 + $0x18] sm:$0xff] 0.0
  %s1436 = scalar_lea.vmem [#allocation2], 32
  %1437 = vst [vmem:[%s1436] sm:$0xff] %v1363
  %1438 = vst [vmem:[%s1436 + $0x8] sm:$0xff] %v1364
  %1439 = vst [vmem:[%s1436 + $0x10] sm:$0xff] %v1365
  %1440 = vst [vmem:[%s1436 + $0x18] sm:$0xff] %v1366
  %1441 = vst [vmem:[%s1436 + $0x20] sm:$0xff] %v1367
  %1442 = vst [vmem:[%s1436 + $0x28] sm:$0xff] %v1368
  %1443 = vst [vmem:[%s1436 + $0x30] sm:$0xff] %v1369
  %1444 = vst [vmem:[%s1436 + $0x38] sm:$0xff] %v1370
  %1445 = vst [vmem:[%s1436 + $0x40] sm:$0xff] %v1371
  %1446 = vst [vmem:[%s1436 + $0x48] sm:$0xff] %v1372
  %1447 = vst [vmem:[%s1436 + $0x50] sm:$0xff] %v1373
  %1448 = vst [vmem:[%s1436 + $0x58] sm:$0xff] %v1374
  %1449 = vst [vmem:[%s1436 + $0x60] sm:$0xff] %v1375
  %1450 = vst [vmem:[%s1436 + $0x68] sm:$0xff] %v1376
  %1451 = vst [vmem:[%s1436 + $0x70] sm:$0xff] %v1377
  %1452 = vst [vmem:[%s1436 + $0x78] sm:$0xff] %v1378
  %1453 = vst [vmem:[%s1436 + $0x80] sm:$0xff] %v1379
  %1454 = vst [vmem:[%s1436 + $0x88] sm:$0xff] %v1380
  %1455 = vst [vmem:[%s1436 + $0x90] sm:$0xff] %v1381
  %1456 = vst [vmem:[%s1436 + $0x98] sm:$0xff] %v1382
  %1457 = vst [vmem:[%s1436 + $0xa0] sm:$0xff] %v1383
  %1458 = vst [vmem:[%s1436 + $0xa8] sm:$0xff] %v1384
  %1459 = vst [vmem:[%s1436 + $0xb0] sm:$0xff] %v1385
  %1460 = vst [vmem:[%s1436 + $0xb8] sm:$0xff] %v1386
  %1461 = vst [vmem:[%s1436 + $0xc0] sm:$0xff] %v1387
  %1462 = vst [vmem:[%s1436 + $0xc8] sm:$0xff] %v1388
  %1463 = vst [vmem:[%s1436 + $0xd0] sm:$0xff] %v1389
  %1464 = vst [vmem:[%s1436 + $0xd8] sm:$0xff] %v1390
  %1465 = vst [vmem:[%s1436 + $0xe0] sm:$0xff] %v1391
  %1466 = vst [vmem:[%s1436 + $0xe8] sm:$0xff] %v1392
  %1467 = vst [vmem:[%s1436 + $0xf0] sm:$0xff] %v1393
  %1468 = vst [vmem:[%s1436 + $0xf8] sm:$0xff] %v1394
  %1469 = vst [vmem:[%s1436 + $0x100] sm:$0xff] %v1395
  %1470 = vst [vmem:[%s1436 + $0x108] sm:$0xff] %v1396
  %1471 = vst [vmem:[%s1436 + $0x110] sm:$0xff] %v1397
  %1472 = vst [vmem:[%s1436 + $0x118] sm:$0xff] %v1398
  %1473 = vst [vmem:[%s1436 + $0x120] sm:$0xff] %v1399
  %1474 = vst [vmem:[%s1436 + $0x128] sm:$0xff] %v1400
  %1475 = vst [vmem:[%s1436 + $0x130] sm:$0xff] %v1401
  %1476 = vst [vmem:[%s1436 + $0x138] sm:$0xff] %v1402
  %1477 = vst [vmem:[%s1436 + $0x140] sm:$0xff] %v1403
  %1478 = vst [vmem:[%s1436 + $0x148] sm:$0xff] %v1404
  %1479 = vst [vmem:[%s1436 + $0x150] sm:$0xff] %v1405
  %1480 = vst [vmem:[%s1436 + $0x158] sm:$0xff] %v1406
  %1481 = vst [vmem:[%s1436 + $0x160] sm:$0xff] %v1407
  %1482 = vst [vmem:[%s1436 + $0x168] sm:$0xff] %v1408
  %1483 = vst [vmem:[%s1436 + $0x170] sm:$0xff] %v1409
  %1484 = vst [vmem:[%s1436 + $0x178] sm:$0xff] %v1410
  %1485 = vst [vmem:[%s1436 + $0x180] sm:$0xff] %v1411
  %1486 = vst [vmem:[%s1436 + $0x188] sm:$0xff] %v1412
  %1487 = vst [vmem:[%s1436 + $0x190] sm:$0xff] %v1413
  %1488 = vst [vmem:[%s1436 + $0x198] sm:$0xff] %v1414
  %1489 = vst [vmem:[%s1436 + $0x1a0] sm:$0xff] %v1415
  %1490 = vst [vmem:[%s1436 + $0x1a8] sm:$0xff] %v1416
  %1491 = vst [vmem:[%s1436 + $0x1b0] sm:$0xff] %v1417
  %1492 = vst [vmem:[%s1436 + $0x1b8] sm:$0xff] %v1418
  %1493 = vst [vmem:[%s1436 + $0x1c0] sm:$0xff] %v1419
  %1494 = vst [vmem:[%s1436 + $0x1c8] sm:$0xff] %v1420
  %1495 = vst [vmem:[%s1436 + $0x1d0] sm:$0xff] %v1421
  %1496 = vst [vmem:[%s1436 + $0x1d8] sm:$0xff] %v1422
  %1497 = vst [vmem:[%s1436 + $0x1e0] sm:$0xff] %v1423
  %1498 = vst [vmem:[%s1436 + $0x1e8] sm:$0xff] %v1424
  %1499 = vst [vmem:[%s1436 + $0x1f0] sm:$0xff] %v1425
  %1500 = vst [vmem:[%s1436 + $0x1f8] sm:$0xff] %v1426
  %v1501 = vld [vmem:[#allocation2] sm:$0xff]
  %v1502 = vld [vmem:[#allocation2 + $0x8] sm:$0xff]
  %v1503 = vld [vmem:[#allocation2 + $0x10] sm:$0xff]
  %v1504 = vld [vmem:[#allocation2 + $0x18] sm:$0xff]
  %v1505 = vld [vmem:[#allocation2 + $0x20] sm:$0xff]
  %v1506 = vld [vmem:[#allocation2 + $0x28] sm:$0xff]
  %v1507 = vld [vmem:[#allocation2 + $0x30] sm:$0xff]
  %v1508 = vld [vmem:[#allocation2 + $0x38] sm:$0xff]
  %v1509 = vld [vmem:[#allocation2 + $0x40] sm:$0xff]
  %v1510 = vld [vmem:[#allocation2 + $0x48] sm:$0xff]
  %v1511 = vld [vmem:[#allocation2 + $0x50] sm:$0xff]
  %v1512 = vld [vmem:[#allocation2 + $0x58] sm:$0xff]
  %v1513 = vld [vmem:[#allocation2 + $0x60] sm:$0xff]
  %v1514 = vld [vmem:[#allocation2 + $0x68] sm:$0xff]
  %v1515 = vld [vmem:[#allocation2 + $0x70] sm:$0xff]
  %v1516 = vld [vmem:[#allocation2 + $0x78] sm:$0xff]
  %v1517 = vld [vmem:[#allocation2 + $0x80] sm:$0xff]
  %v1518 = vld [vmem:[#allocation2 + $0x88] sm:$0xff]
  %v1519 = vld [vmem:[#allocation2 + $0x90] sm:$0xff]
  %v1520 = vld [vmem:[#allocation2 + $0x98] sm:$0xff]
  %v1521 = vld [vmem:[#allocation2 + $0xa0] sm:$0xff]
  %v1522 = vld [vmem:[#allocation2 + $0xa8] sm:$0xff]
  %v1523 = vld [vmem:[#allocation2 + $0xb0] sm:$0xff]
  %v1524 = vld [vmem:[#allocation2 + $0xb8] sm:$0xff]
  %v1525 = vld [vmem:[#allocation2 + $0xc0] sm:$0xff]
  %v1526 = vld [vmem:[#allocation2 + $0xc8] sm:$0xff]
  %v1527 = vld [vmem:[#allocation2 + $0xd0] sm:$0xff]
  %v1528 = vld [vmem:[#allocation2 + $0xd8] sm:$0xff]
  %v1529 = vld [vmem:[#allocation2 + $0xe0] sm:$0xff]
  %v1530 = vld [vmem:[#allocation2 + $0xe8] sm:$0xff]
  %v1531 = vld [vmem:[#allocation2 + $0xf0] sm:$0xff]
  %v1532 = vld [vmem:[#allocation2 + $0xf8] sm:$0xff]
  %v1533 = vld [vmem:[#allocation2 + $0x100] sm:$0xff]
  %v1534 = vld [vmem:[#allocation2 + $0x108] sm:$0xff]
  %v1535 = vld [vmem:[#allocation2 + $0x110] sm:$0xff]
  %v1536 = vld [vmem:[#allocation2 + $0x118] sm:$0xff]
  %v1537 = vld [vmem:[#allocation2 + $0x120] sm:$0xff]
  %v1538 = vld [vmem:[#allocation2 + $0x128] sm:$0xff]
  %v1539 = vld [vmem:[#allocation2 + $0x130] sm:$0xff]
  %v1540 = vld [vmem:[#allocation2 + $0x138] sm:$0xff]
  %v1541 = vld [vmem:[#allocation2 + $0x140] sm:$0xff]
  %v1542 = vld [vmem:[#allocation2 + $0x148] sm:$0xff]
  %v1543 = vld [vmem:[#allocation2 + $0x150] sm:$0xff]
  %v1544 = vld [vmem:[#allocation2 + $0x158] sm:$0xff]
  %v1545 = vld [vmem:[#allocation2 + $0x160] sm:$0xff]
  %v1546 = vld [vmem:[#allocation2 + $0x168] sm:$0xff]
  %v1547 = vld [vmem:[#allocation2 + $0x170] sm:$0xff]
  %v1548 = vld [vmem:[#allocation2 + $0x178] sm:$0xff]
  %v1549 = vld [vmem:[#allocation2 + $0x180] sm:$0xff]
  %v1550 = vld [vmem:[#allocation2 + $0x188] sm:$0xff]
  %v1551 = vld [vmem:[#allocation2 + $0x190] sm:$0xff]
  %v1552 = vld [vmem:[#allocation2 + $0x198] sm:$0xff]
  %v1553 = vld [vmem:[#allocation2 + $0x1a0] sm:$0xff]
  %v1554 = vld [vmem:[#allocation2 + $0x1a8] sm:$0xff]
  %v1555 = vld [vmem:[#allocation2 + $0x1b0] sm:$0xff]
  %v1556 = vld [vmem:[#allocation2 + $0x1b8] sm:$0xff]
  %v1557 = vld [vmem:[#allocation2 + $0x1c0] sm:$0xff]
  %v1558 = vld [vmem:[#allocation2 + $0x1c8] sm:$0xff]
  %v1559 = vld [vmem:[#allocation2 + $0x1d0] sm:$0xff]
  %v1560 = vld [vmem:[#allocation2 + $0x1d8] sm:$0xff]
  %v1561 = vld [vmem:[#allocation2 + $0x1e0] sm:$0xff]
  %v1562 = vld [vmem:[#allocation2 + $0x1e8] sm:$0xff]
  %v1563 = vld [vmem:[#allocation2 + $0x1f0] sm:$0xff]
  %v1564 = vld [vmem:[#allocation2 + $0x1f8] sm:$0xff]
  %v1565 = vld [vmem:[%s2] sm:$0xff]
  %v1566 = vld [vmem:[%s2 + $0x8] sm:$0xff]
  %v1567 = vld [vmem:[%s2 + $0x10] sm:$0xff]
  %v1568 = vld [vmem:[%s2 + $0x18] sm:$0xff]
  %v1569 = vld [vmem:[%s2 + $0x20] sm:$0xff]
  %v1570 = vld [vmem:[%s2 + $0x28] sm:$0xff]
  %v1571 = vld [vmem:[%s2 + $0x30] sm:$0xff]
  %v1572 = vld [vmem:[%s2 + $0x38] sm:$0xff]
  %v1573 = vld [vmem:[%s2 + $0x40] sm:$0xff]
  %v1574 = vld [vmem:[%s2 + $0x48] sm:$0xff]
  %v1575 = vld [vmem:[%s2 + $0x50] sm:$0xff]
  %v1576 = vld [vmem:[%s2 + $0x58] sm:$0xff]
  %v1577 = vld [vmem:[%s2 + $0x60] sm:$0xff]
  %v1578 = vld [vmem:[%s2 + $0x68] sm:$0xff]
  %v1579 = vld [vmem:[%s2 + $0x70] sm:$0xff]
  %v1580 = vld [vmem:[%s2 + $0x78] sm:$0xff]
  %v1581 = vld [vmem:[%s2 + $0x80] sm:$0xff]
  %v1582 = vld [vmem:[%s2 + $0x88] sm:$0xff]
  %v1583 = vld [vmem:[%s2 + $0x90] sm:$0xff]
  %v1584 = vld [vmem:[%s2 + $0x98] sm:$0xff]
  %v1585 = vld [vmem:[%s2 + $0xa0] sm:$0xff]
  %v1586 = vld [vmem:[%s2 + $0xa8] sm:$0xff]
  %v1587 = vld [vmem:[%s2 + $0xb0] sm:$0xff]
  %v1588 = vld [vmem:[%s2 + $0xb8] sm:$0xff]
  %v1589 = vld [vmem:[%s2 + $0xc0] sm:$0xff]
  %v1590 = vld [vmem:[%s2 + $0xc8] sm:$0xff]
  %v1591 = vld [vmem:[%s2 + $0xd0] sm:$0xff]
  %v1592 = vld [vmem:[%s2 + $0xd8] sm:$0xff]
  %v1593 = vld [vmem:[%s2 + $0xe0] sm:$0xff]
  %v1594 = vld [vmem:[%s2 + $0xe8] sm:$0xff]
  %v1595 = vld [vmem:[%s2 + $0xf0] sm:$0xff]
  %v1596 = vld [vmem:[%s2 + $0xf8] sm:$0xff]
  %v1597 = vld [vmem:[%s2 + $0x100] sm:$0xff]
  %v1598 = vld [vmem:[%s2 + $0x108] sm:$0xff]
  %v1599 = vld [vmem:[%s2 + $0x110] sm:$0xff]
  %v1600 = vld [vmem:[%s2 + $0x118] sm:$0xff]
  %v1601 = vld [vmem:[%s2 + $0x120] sm:$0xff]
  %v1602 = vld [vmem:[%s2 + $0x128] sm:$0xff]
  %v1603 = vld [vmem:[%s2 + $0x130] sm:$0xff]
  %v1604 = vld [vmem:[%s2 + $0x138] sm:$0xff]
  %v1605 = vld [vmem:[%s2 + $0x140] sm:$0xff]
  %v1606 = vld [vmem:[%s2 + $0x148] sm:$0xff]
  %v1607 = vld [vmem:[%s2 + $0x150] sm:$0xff]
  %v1608 = vld [vmem:[%s2 + $0x158] sm:$0xff]
  %v1609 = vld [vmem:[%s2 + $0x160] sm:$0xff]
  %v1610 = vld [vmem:[%s2 + $0x168] sm:$0xff]
  %v1611 = vld [vmem:[%s2 + $0x170] sm:$0xff]
  %v1612 = vld [vmem:[%s2 + $0x178] sm:$0xff]
  %v1613 = vld [vmem:[%s2 + $0x180] sm:$0xff]
  %v1614 = vld [vmem:[%s2 + $0x188] sm:$0xff]
  %v1615 = vld [vmem:[%s2 + $0x190] sm:$0xff]
  %v1616 = vld [vmem:[%s2 + $0x198] sm:$0xff]
  %v1617 = vld [vmem:[%s2 + $0x1a0] sm:$0xff]
  %v1618 = vld [vmem:[%s2 + $0x1a8] sm:$0xff]
  %v1619 = vld [vmem:[%s2 + $0x1b0] sm:$0xff]
  %v1620 = vld [vmem:[%s2 + $0x1b8] sm:$0xff]
  %v1621 = vld [vmem:[%s2 + $0x1c0] sm:$0xff]
  %v1622 = vld [vmem:[%s2 + $0x1c8] sm:$0xff]
  %v1623 = vld [vmem:[%s2 + $0x1d0] sm:$0xff]
  %v1624 = vld [vmem:[%s2 + $0x1d8] sm:$0xff]
  %v1625 = vld [vmem:[%s2 + $0x1e0] sm:$0xff]
  %v1626 = vld [vmem:[%s2 + $0x1e8] sm:$0xff]
  %v1627 = vld [vmem:[%s2 + $0x1f0] sm:$0xff]
  %v1628 = vld [vmem:[%s2 + $0x1f8] sm:$0xff]
  %v1629 = vld [vmem:[%s2 + $0x200] sm:$0xff]
  %v1630 = vld [vmem:[%s2 + $0x208] sm:$0xff]
  %v1631 = vld [vmem:[%s2 + $0x210] sm:$0xff]
  %v1632 = vld [vmem:[%s2 + $0x218] sm:$0xff]
  %v1633 = vld [vmem:[%s2 + $0x220] sm:$0xff]
  %v1634 = vld [vmem:[%s2 + $0x228] sm:$0xff]
  %v1635 = vld [vmem:[%s2 + $0x230] sm:$0xff]
  %v1636 = vld [vmem:[%s2 + $0x238] sm:$0xff]
  %v1637 = vld [vmem:[%s2 + $0x240] sm:$0xff]
  %v1638 = vld [vmem:[%s2 + $0x248] sm:$0xff]
  %v1639 = vld [vmem:[%s2 + $0x250] sm:$0xff]
  %v1640 = vld [vmem:[%s2 + $0x258] sm:$0xff]
  %v1641 = vld [vmem:[%s2 + $0x260] sm:$0xff]
  %v1642 = vld [vmem:[%s2 + $0x268] sm:$0xff]
  %v1643 = vld [vmem:[%s2 + $0x270] sm:$0xff]
  %v1644 = vld [vmem:[%s2 + $0x278] sm:$0xff]
  %v1645 = vld [vmem:[%s2 + $0x280] sm:$0xff]
  %v1646 = vld [vmem:[%s2 + $0x288] sm:$0xff]
  %v1647 = vld [vmem:[%s2 + $0x290] sm:$0xff]
  %v1648 = vld [vmem:[%s2 + $0x298] sm:$0xff]
  %v1649 = vld [vmem:[%s2 + $0x2a0] sm:$0xff]
  %v1650 = vld [vmem:[%s2 + $0x2a8] sm:$0xff]
  %v1651 = vld [vmem:[%s2 + $0x2b0] sm:$0xff]
  %v1652 = vld [vmem:[%s2 + $0x2b8] sm:$0xff]
  %v1653 = vld [vmem:[%s2 + $0x2c0] sm:$0xff]
  %v1654 = vld [vmem:[%s2 + $0x2c8] sm:$0xff]
  %v1655 = vld [vmem:[%s2 + $0x2d0] sm:$0xff]
  %v1656 = vld [vmem:[%s2 + $0x2d8] sm:$0xff]
  %v1657 = vld [vmem:[%s2 + $0x2e0] sm:$0xff]
  %v1658 = vld [vmem:[%s2 + $0x2e8] sm:$0xff]
  %v1659 = vld [vmem:[%s2 + $0x2f0] sm:$0xff]
  %v1660 = vld [vmem:[%s2 + $0x2f8] sm:$0xff]
  %v1661 = vld [vmem:[%s2 + $0x300] sm:$0xff]
  %v1662 = vld [vmem:[%s2 + $0x308] sm:$0xff]
  %v1663 = vld [vmem:[%s2 + $0x310] sm:$0xff]
  %v1664 = vld [vmem:[%s2 + $0x318] sm:$0xff]
  %v1665 = vld [vmem:[%s2 + $0x320] sm:$0xff]
  %v1666 = vld [vmem:[%s2 + $0x328] sm:$0xff]
  %v1667 = vld [vmem:[%s2 + $0x330] sm:$0xff]
  %v1668 = vld [vmem:[%s2 + $0x338] sm:$0xff]
  %v1669 = vld [vmem:[%s2 + $0x340] sm:$0xff]
  %v1670 = vld [vmem:[%s2 + $0x348] sm:$0xff]
  %v1671 = vld [vmem:[%s2 + $0x350] sm:$0xff]
  %v1672 = vld [vmem:[%s2 + $0x358] sm:$0xff]
  %v1673 = vld [vmem:[%s2 + $0x360] sm:$0xff]
  %v1674 = vld [vmem:[%s2 + $0x368] sm:$0xff]
  %v1675 = vld [vmem:[%s2 + $0x370] sm:$0xff]
  %v1676 = vld [vmem:[%s2 + $0x378] sm:$0xff]
  %v1677 = vld [vmem:[%s2 + $0x380] sm:$0xff]
  %v1678 = vld [vmem:[%s2 + $0x388] sm:$0xff]
  %v1679 = vld [vmem:[%s2 + $0x390] sm:$0xff]
  %v1680 = vld [vmem:[%s2 + $0x398] sm:$0xff]
  %v1681 = vld [vmem:[%s2 + $0x3a0] sm:$0xff]
  %v1682 = vld [vmem:[%s2 + $0x3a8] sm:$0xff]
  %v1683 = vld [vmem:[%s2 + $0x3b0] sm:$0xff]
  %v1684 = vld [vmem:[%s2 + $0x3b8] sm:$0xff]
  %v1685 = vld [vmem:[%s2 + $0x3c0] sm:$0xff]
  %v1686 = vld [vmem:[%s2 + $0x3c8] sm:$0xff]
  %v1687 = vld [vmem:[%s2 + $0x3d0] sm:$0xff]
  %v1688 = vld [vmem:[%s2 + $0x3d8] sm:$0xff]
  %v1689 = vld [vmem:[%s2 + $0x3e0] sm:$0xff]
  %v1690 = vld [vmem:[%s2 + $0x3e8] sm:$0xff]
  %v1691 = vld [vmem:[%s2 + $0x3f0] sm:$0xff]
  %v1692 = vld [vmem:[%s2 + $0x3f8] sm:$0xff]
  %v1693 = vld [vmem:[%s2 + $0x400] sm:$0xff]
  %v1694 = vld [vmem:[%s2 + $0x408] sm:$0xff]
  %v1695 = vld [vmem:[%s2 + $0x410] sm:$0xff]
  %v1696 = vld [vmem:[%s2 + $0x418] sm:$0xff]
  %v1697 = vld [vmem:[%s2 + $0x420] sm:$0xff]
  %v1698 = vld [vmem:[%s2 + $0x428] sm:$0xff]
  %v1699 = vld [vmem:[%s2 + $0x430] sm:$0xff]
  %v1700 = vld [vmem:[%s2 + $0x438] sm:$0xff]
  %v1701 = vld [vmem:[%s2 + $0x440] sm:$0xff]
  %v1702 = vld [vmem:[%s2 + $0x448] sm:$0xff]
  %v1703 = vld [vmem:[%s2 + $0x450] sm:$0xff]
  %v1704 = vld [vmem:[%s2 + $0x458] sm:$0xff]
  %v1705 = vld [vmem:[%s2 + $0x460] sm:$0xff]
  %v1706 = vld [vmem:[%s2 + $0x468] sm:$0xff]
  %v1707 = vld [vmem:[%s2 + $0x470] sm:$0xff]
  %v1708 = vld [vmem:[%s2 + $0x478] sm:$0xff]
  %v1709 = vld [vmem:[%s2 + $0x480] sm:$0xff]
  %v1710 = vld [vmem:[%s2 + $0x488] sm:$0xff]
  %v1711 = vld [vmem:[%s2 + $0x490] sm:$0xff]
  %v1712 = vld [vmem:[%s2 + $0x498] sm:$0xff]
  %v1713 = vld [vmem:[%s2 + $0x4a0] sm:$0xff]
  %v1714 = vld [vmem:[%s2 + $0x4a8] sm:$0xff]
  %v1715 = vld [vmem:[%s2 + $0x4b0] sm:$0xff]
  %v1716 = vld [vmem:[%s2 + $0x4b8] sm:$0xff]
  %v1717 = vld [vmem:[%s2 + $0x4c0] sm:$0xff]
  %v1718 = vld [vmem:[%s2 + $0x4c8] sm:$0xff]
  %v1719 = vld [vmem:[%s2 + $0x4d0] sm:$0xff]
  %v1720 = vld [vmem:[%s2 + $0x4d8] sm:$0xff]
  %v1721 = vld [vmem:[%s2 + $0x4e0] sm:$0xff]
  %v1722 = vld [vmem:[%s2 + $0x4e8] sm:$0xff]
  %v1723 = vld [vmem:[%s2 + $0x4f0] sm:$0xff]
  %v1724 = vld [vmem:[%s2 + $0x4f8] sm:$0xff]
  %v1725 = vld [vmem:[%s2 + $0x500] sm:$0xff]
  %v1726 = vld [vmem:[%s2 + $0x508] sm:$0xff]
  %v1727 = vld [vmem:[%s2 + $0x510] sm:$0xff]
  %v1728 = vld [vmem:[%s2 + $0x518] sm:$0xff]
  %v1729 = vld [vmem:[%s2 + $0x520] sm:$0xff]
  %v1730 = vld [vmem:[%s2 + $0x528] sm:$0xff]
  %v1731 = vld [vmem:[%s2 + $0x530] sm:$0xff]
  %v1732 = vld [vmem:[%s2 + $0x538] sm:$0xff]
  %v1733 = vld [vmem:[%s2 + $0x540] sm:$0xff]
  %v1734 = vld [vmem:[%s2 + $0x548] sm:$0xff]
  %v1735 = vld [vmem:[%s2 + $0x550] sm:$0xff]
  %v1736 = vld [vmem:[%s2 + $0x558] sm:$0xff]
  %v1737 = vld [vmem:[%s2 + $0x560] sm:$0xff]
  %v1738 = vld [vmem:[%s2 + $0x568] sm:$0xff]
  %v1739 = vld [vmem:[%s2 + $0x570] sm:$0xff]
  %v1740 = vld [vmem:[%s2 + $0x578] sm:$0xff]
  %v1741 = vld [vmem:[%s2 + $0x580] sm:$0xff]
  %v1742 = vld [vmem:[%s2 + $0x588] sm:$0xff]
  %v1743 = vld [vmem:[%s2 + $0x590] sm:$0xff]
  %v1744 = vld [vmem:[%s2 + $0x598] sm:$0xff]
  %v1745 = vld [vmem:[%s2 + $0x5a0] sm:$0xff]
  %v1746 = vld [vmem:[%s2 + $0x5a8] sm:$0xff]
  %v1747 = vld [vmem:[%s2 + $0x5b0] sm:$0xff]
  %v1748 = vld [vmem:[%s2 + $0x5b8] sm:$0xff]
  %v1749 = vld [vmem:[%s2 + $0x5c0] sm:$0xff]
  %v1750 = vld [vmem:[%s2 + $0x5c8] sm:$0xff]
  %v1751 = vld [vmem:[%s2 + $0x5d0] sm:$0xff]
  %v1752 = vld [vmem:[%s2 + $0x5d8] sm:$0xff]
  %v1753 = vld [vmem:[%s2 + $0x5e0] sm:$0xff]
  %v1754 = vld [vmem:[%s2 + $0x5e8] sm:$0xff]
  %v1755 = vld [vmem:[%s2 + $0x5f0] sm:$0xff]
  %v1756 = vld [vmem:[%s2 + $0x5f8] sm:$0xff]
  %v1757 = vld [vmem:[%s2 + $0x600] sm:$0xff]
  %v1758 = vld [vmem:[%s2 + $0x608] sm:$0xff]
  %v1759 = vld [vmem:[%s2 + $0x610] sm:$0xff]
  %v1760 = vld [vmem:[%s2 + $0x618] sm:$0xff]
  %v1761 = vld [vmem:[%s2 + $0x620] sm:$0xff]
  %v1762 = vld [vmem:[%s2 + $0x628] sm:$0xff]
  %v1763 = vld [vmem:[%s2 + $0x630] sm:$0xff]
  %v1764 = vld [vmem:[%s2 + $0x638] sm:$0xff]
  %v1765 = vld [vmem:[%s2 + $0x640] sm:$0xff]
  %v1766 = vld [vmem:[%s2 + $0x648] sm:$0xff]
  %v1767 = vld [vmem:[%s2 + $0x650] sm:$0xff]
  %v1768 = vld [vmem:[%s2 + $0x658] sm:$0xff]
  %v1769 = vld [vmem:[%s2 + $0x660] sm:$0xff]
  %v1770 = vld [vmem:[%s2 + $0x668] sm:$0xff]
  %v1771 = vld [vmem:[%s2 + $0x670] sm:$0xff]
  %v1772 = vld [vmem:[%s2 + $0x678] sm:$0xff]
  %v1773 = vld [vmem:[%s2 + $0x680] sm:$0xff]
  %v1774 = vld [vmem:[%s2 + $0x688] sm:$0xff]
  %v1775 = vld [vmem:[%s2 + $0x690] sm:$0xff]
  %v1776 = vld [vmem:[%s2 + $0x698] sm:$0xff]
  %v1777 = vld [vmem:[%s2 + $0x6a0] sm:$0xff]
  %v1778 = vld [vmem:[%s2 + $0x6a8] sm:$0xff]
  %v1779 = vld [vmem:[%s2 + $0x6b0] sm:$0xff]
  %v1780 = vld [vmem:[%s2 + $0x6b8] sm:$0xff]
  %v1781 = vld [vmem:[%s2 + $0x6c0] sm:$0xff]
  %v1782 = vld [vmem:[%s2 + $0x6c8] sm:$0xff]
  %v1783 = vld [vmem:[%s2 + $0x6d0] sm:$0xff]
  %v1784 = vld [vmem:[%s2 + $0x6d8] sm:$0xff]
  %v1785 = vld [vmem:[%s2 + $0x6e0] sm:$0xff]
  %v1786 = vld [vmem:[%s2 + $0x6e8] sm:$0xff]
  %v1787 = vld [vmem:[%s2 + $0x6f0] sm:$0xff]
  %v1788 = vld [vmem:[%s2 + $0x6f8] sm:$0xff]
  %v1789 = vld [vmem:[%s2 + $0x700] sm:$0xff]
  %v1790 = vld [vmem:[%s2 + $0x708] sm:$0xff]
  %v1791 = vld [vmem:[%s2 + $0x710] sm:$0xff]
  %v1792 = vld [vmem:[%s2 + $0x718] sm:$0xff]
  %v1793 = vld [vmem:[%s2 + $0x720] sm:$0xff]
  %v1794 = vld [vmem:[%s2 + $0x728] sm:$0xff]
  %v1795 = vld [vmem:[%s2 + $0x730] sm:$0xff]
  %v1796 = vld [vmem:[%s2 + $0x738] sm:$0xff]
  %v1797 = vld [vmem:[%s2 + $0x740] sm:$0xff]
  %v1798 = vld [vmem:[%s2 + $0x748] sm:$0xff]
  %v1799 = vld [vmem:[%s2 + $0x750] sm:$0xff]
  %v1800 = vld [vmem:[%s2 + $0x758] sm:$0xff]
  %v1801 = vld [vmem:[%s2 + $0x760] sm:$0xff]
  %v1802 = vld [vmem:[%s2 + $0x768] sm:$0xff]
  %v1803 = vld [vmem:[%s2 + $0x770] sm:$0xff]
  %v1804 = vld [vmem:[%s2 + $0x778] sm:$0xff]
  %v1805 = vld [vmem:[%s2 + $0x780] sm:$0xff]
  %v1806 = vld [vmem:[%s2 + $0x788] sm:$0xff]
  %v1807 = vld [vmem:[%s2 + $0x790] sm:$0xff]
  %v1808 = vld [vmem:[%s2 + $0x798] sm:$0xff]
  %v1809 = vld [vmem:[%s2 + $0x7a0] sm:$0xff]
  %v1810 = vld [vmem:[%s2 + $0x7a8] sm:$0xff]
  %v1811 = vld [vmem:[%s2 + $0x7b0] sm:$0xff]
  %v1812 = vld [vmem:[%s2 + $0x7b8] sm:$0xff]
  %v1813 = vld [vmem:[%s2 + $0x7c0] sm:$0xff]
  %v1814 = vld [vmem:[%s2 + $0x7c8] sm:$0xff]
  %v1815 = vld [vmem:[%s2 + $0x7d0] sm:$0xff]
  %v1816 = vld [vmem:[%s2 + $0x7d8] sm:$0xff]
  %v1817 = vld [vmem:[%s2 + $0x7e0] sm:$0xff]
  %v1818 = vld [vmem:[%s2 + $0x7e8] sm:$0xff]
  %v1819 = vld [vmem:[%s2 + $0x7f0] sm:$0xff]
  %v1820 = vld [vmem:[%s2 + $0x7f8] sm:$0xff]
  %v1821 = vld [vmem:[%s1436] sm:$0xff]
  %v1822 = vld [vmem:[%s1436 + $0x8] sm:$0xff]
  %v1823 = vld [vmem:[%s1436 + $0x10] sm:$0xff]
  %v1824 = vld [vmem:[%s1436 + $0x18] sm:$0xff]
  %v1825 = vld [vmem:[%s1436 + $0x20] sm:$0xff]
  %v1826 = vld [vmem:[%s1436 + $0x28] sm:$0xff]
  %v1827 = vld [vmem:[%s1436 + $0x30] sm:$0xff]
  %v1828 = vld [vmem:[%s1436 + $0x38] sm:$0xff]
  %v1829 = vld [vmem:[%s1436 + $0x40] sm:$0xff]
  %v1830 = vld [vmem:[%s1436 + $0x48] sm:$0xff]
  %v1831 = vld [vmem:[%s1436 + $0x50] sm:$0xff]
  %v1832 = vld [vmem:[%s1436 + $0x58] sm:$0xff]
  %v1833 = vld [vmem:[%s1436 + $0x60] sm:$0xff]
  %v1834 = vld [vmem:[%s1436 + $0x68] sm:$0xff]
  %v1835 = vld [vmem:[%s1436 + $0x70] sm:$0xff]
  %v1836 = vld [vmem:[%s1436 + $0x78] sm:$0xff]
  %v1837 = vld [vmem:[%s1436 + $0x80] sm:$0xff]
  %v1838 = vld [vmem:[%s1436 + $0x88] sm:$0xff]
  %v1839 = vld [vmem:[%s1436 + $0x90] sm:$0xff]
  %v1840 = vld [vmem:[%s1436 + $0x98] sm:$0xff]
  %v1841 = vld [vmem:[%s1436 + $0xa0] sm:$0xff]
  %v1842 = vld [vmem:[%s1436 + $0xa8] sm:$0xff]
  %v1843 = vld [vmem:[%s1436 + $0xb0] sm:$0xff]
  %v1844 = vld [vmem:[%s1436 + $0xb8] sm:$0xff]
  %v1845 = vld [vmem:[%s1436 + $0xc0] sm:$0xff]
  %v1846 = vld [vmem:[%s1436 + $0xc8] sm:$0xff]
  %v1847 = vld [vmem:[%s1436 + $0xd0] sm:$0xff]
  %v1848 = vld [vmem:[%s1436 + $0xd8] sm:$0xff]
  %v1849 = vld [vmem:[%s1436 + $0xe0] sm:$0xff]
  %v1850 = vld [vmem:[%s1436 + $0xe8] sm:$0xff]
  %v1851 = vld [vmem:[%s1436 + $0xf0] sm:$0xff]
  %v1852 = vld [vmem:[%s1436 + $0xf8] sm:$0xff]
  %v1853 = vld [vmem:[%s1436 + $0x100] sm:$0xff]
  %v1854 = vld [vmem:[%s1436 + $0x108] sm:$0xff]
  %v1855 = vld [vmem:[%s1436 + $0x110] sm:$0xff]
  %v1856 = vld [vmem:[%s1436 + $0x118] sm:$0xff]
  %v1857 = vld [vmem:[%s1436 + $0x120] sm:$0xff]
  %v1858 = vld [vmem:[%s1436 + $0x128] sm:$0xff]
  %v1859 = vld [vmem:[%s1436 + $0x130] sm:$0xff]
  %v1860 = vld [vmem:[%s1436 + $0x138] sm:$0xff]
  %v1861 = vld [vmem:[%s1436 + $0x140] sm:$0xff]
  %v1862 = vld [vmem:[%s1436 + $0x148] sm:$0xff]
  %v1863 = vld [vmem:[%s1436 + $0x150] sm:$0xff]
  %v1864 = vld [vmem:[%s1436 + $0x158] sm:$0xff]
  %v1865 = vld [vmem:[%s1436 + $0x160] sm:$0xff]
  %v1866 = vld [vmem:[%s1436 + $0x168] sm:$0xff]
  %v1867 = vld [vmem:[%s1436 + $0x170] sm:$0xff]
  %v1868 = vld [vmem:[%s1436 + $0x178] sm:$0xff]
  %v1869 = vld [vmem:[%s1436 + $0x180] sm:$0xff]
  %v1870 = vld [vmem:[%s1436 + $0x188] sm:$0xff]
  %v1871 = vld [vmem:[%s1436 + $0x190] sm:$0xff]
  %v1872 = vld [vmem:[%s1436 + $0x198] sm:$0xff]
  %v1873 = vld [vmem:[%s1436 + $0x1a0] sm:$0xff]
  %v1874 = vld [vmem:[%s1436 + $0x1a8] sm:$0xff]
  %v1875 = vld [vmem:[%s1436 + $0x1b0] sm:$0xff]
  %v1876 = vld [vmem:[%s1436 + $0x1b8] sm:$0xff]
  %v1877 = vld [vmem:[%s1436 + $0x1c0] sm:$0xff]
  %v1878 = vld [vmem:[%s1436 + $0x1c8] sm:$0xff]
  %v1879 = vld [vmem:[%s1436 + $0x1d0] sm:$0xff]
  %v1880 = vld [vmem:[%s1436 + $0x1d8] sm:$0xff]
  %v1881 = vld [vmem:[%s1436 + $0x1e0] sm:$0xff]
  %v1882 = vld [vmem:[%s1436 + $0x1e8] sm:$0xff]
  %v1883 = vld [vmem:[%s1436 + $0x1f0] sm:$0xff]
  %v1884 = vld [vmem:[%s1436 + $0x1f8] sm:$0xff]
  %s1885 = scalar_lea.vmem %s2, 2048
  %v1886 = vld [vmem:[%s1885] sm:$0xff]
  %v1887 = vld [vmem:[%s1885 + $0x8] sm:$0xff]
  %v1888 = vld [vmem:[%s1885 + $0x10] sm:$0xff]
  %v1889 = vld [vmem:[%s1885 + $0x18] sm:$0xff]
  %v1890 = vld [vmem:[%s1885 + $0x20] sm:$0xff]
  %v1891 = vld [vmem:[%s1885 + $0x28] sm:$0xff]
  %v1892 = vld [vmem:[%s1885 + $0x30] sm:$0xff]
  %v1893 = vld [vmem:[%s1885 + $0x38] sm:$0xff]
  %v1894 = vld [vmem:[%s1885 + $0x40] sm:$0xff]
  %v1895 = vld [vmem:[%s1885 + $0x48] sm:$0xff]
  %v1896 = vld [vmem:[%s1885 + $0x50] sm:$0xff]
  %v1897 = vld [vmem:[%s1885 + $0x58] sm:$0xff]
  %v1898 = vld [vmem:[%s1885 + $0x60] sm:$0xff]
  %v1899 = vld [vmem:[%s1885 + $0x68] sm:$0xff]
  %v1900 = vld [vmem:[%s1885 + $0x70] sm:$0xff]
  %v1901 = vld [vmem:[%s1885 + $0x78] sm:$0xff]
  %v1902 = vld [vmem:[%s1885 + $0x80] sm:$0xff]
  %v1903 = vld [vmem:[%s1885 + $0x88] sm:$0xff]
  %v1904 = vld [vmem:[%s1885 + $0x90] sm:$0xff]
  %v1905 = vld [vmem:[%s1885 + $0x98] sm:$0xff]
  %v1906 = vld [vmem:[%s1885 + $0xa0] sm:$0xff]
  %v1907 = vld [vmem:[%s1885 + $0xa8] sm:$0xff]
  %v1908 = vld [vmem:[%s1885 + $0xb0] sm:$0xff]
  %v1909 = vld [vmem:[%s1885 + $0xb8] sm:$0xff]
  %v1910 = vld [vmem:[%s1885 + $0xc0] sm:$0xff]
  %v1911 = vld [vmem:[%s1885 + $0xc8] sm:$0xff]
  %v1912 = vld [vmem:[%s1885 + $0xd0] sm:$0xff]
  %v1913 = vld [vmem:[%s1885 + $0xd8] sm:$0xff]
  %v1914 = vld [vmem:[%s1885 + $0xe0] sm:$0xff]
  %v1915 = vld [vmem:[%s1885 + $0xe8] sm:$0xff]
  %v1916 = vld [vmem:[%s1885 + $0xf0] sm:$0xff]
  %v1917 = vld [vmem:[%s1885 + $0xf8] sm:$0xff]
  %v1918 = vld [vmem:[%s1885 + $0x100] sm:$0xff]
  %v1919 = vld [vmem:[%s1885 + $0x108] sm:$0xff]
  %v1920 = vld [vmem:[%s1885 + $0x110] sm:$0xff]
  %v1921 = vld [vmem:[%s1885 + $0x118] sm:$0xff]
  %v1922 = vld [vmem:[%s1885 + $0x120] sm:$0xff]
  %v1923 = vld [vmem:[%s1885 + $0x128] sm:$0xff]
  %v1924 = vld [vmem:[%s1885 + $0x130] sm:$0xff]
  %v1925 = vld [vmem:[%s1885 + $0x138] sm:$0xff]
  %v1926 = vld [vmem:[%s1885 + $0x140] sm:$0xff]
  %v1927 = vld [vmem:[%s1885 + $0x148] sm:$0xff]
  %v1928 = vld [vmem:[%s1885 + $0x150] sm:$0xff]
  %v1929 = vld [vmem:[%s1885 + $0x158] sm:$0xff]
  %v1930 = vld [vmem:[%s1885 + $0x160] sm:$0xff]
  %v1931 = vld [vmem:[%s1885 + $0x168] sm:$0xff]
  %v1932 = vld [vmem:[%s1885 + $0x170] sm:$0xff]
  %v1933 = vld [vmem:[%s1885 + $0x178] sm:$0xff]
  %v1934 = vld [vmem:[%s1885 + $0x180] sm:$0xff]
  %v1935 = vld [vmem:[%s1885 + $0x188] sm:$0xff]
  %v1936 = vld [vmem:[%s1885 + $0x190] sm:$0xff]
  %v1937 = vld [vmem:[%s1885 + $0x198] sm:$0xff]
  %v1938 = vld [vmem:[%s1885 + $0x1a0] sm:$0xff]
  %v1939 = vld [vmem:[%s1885 + $0x1a8] sm:$0xff]
  %v1940 = vld [vmem:[%s1885 + $0x1b0] sm:$0xff]
  %v1941 = vld [vmem:[%s1885 + $0x1b8] sm:$0xff]
  %v1942 = vld [vmem:[%s1885 + $0x1c0] sm:$0xff]
  %v1943 = vld [vmem:[%s1885 + $0x1c8] sm:$0xff]
  %v1944 = vld [vmem:[%s1885 + $0x1d0] sm:$0xff]
  %v1945 = vld [vmem:[%s1885 + $0x1d8] sm:$0xff]
  %v1946 = vld [vmem:[%s1885 + $0x1e0] sm:$0xff]
  %v1947 = vld [vmem:[%s1885 + $0x1e8] sm:$0xff]
  %v1948 = vld [vmem:[%s1885 + $0x1f0] sm:$0xff]
  %v1949 = vld [vmem:[%s1885 + $0x1f8] sm:$0xff]
  %v1950 = vld [vmem:[%s1885 + $0x200] sm:$0xff]
  %v1951 = vld [vmem:[%s1885 + $0x208] sm:$0xff]
  %v1952 = vld [vmem:[%s1885 + $0x210] sm:$0xff]
  %v1953 = vld [vmem:[%s1885 + $0x218] sm:$0xff]
  %v1954 = vld [vmem:[%s1885 + $0x220] sm:$0xff]
  %v1955 = vld [vmem:[%s1885 + $0x228] sm:$0xff]
  %v1956 = vld [vmem:[%s1885 + $0x230] sm:$0xff]
  %v1957 = vld [vmem:[%s1885 + $0x238] sm:$0xff]
  %v1958 = vld [vmem:[%s1885 + $0x240] sm:$0xff]
  %v1959 = vld [vmem:[%s1885 + $0x248] sm:$0xff]
  %v1960 = vld [vmem:[%s1885 + $0x250] sm:$0xff]
  %v1961 = vld [vmem:[%s1885 + $0x258] sm:$0xff]
  %v1962 = vld [vmem:[%s1885 + $0x260] sm:$0xff]
  %v1963 = vld [vmem:[%s1885 + $0x268] sm:$0xff]
  %v1964 = vld [vmem:[%s1885 + $0x270] sm:$0xff]
  %v1965 = vld [vmem:[%s1885 + $0x278] sm:$0xff]
  %v1966 = vld [vmem:[%s1885 + $0x280] sm:$0xff]
  %v1967 = vld [vmem:[%s1885 + $0x288] sm:$0xff]
  %v1968 = vld [vmem:[%s1885 + $0x290] sm:$0xff]
  %v1969 = vld [vmem:[%s1885 + $0x298] sm:$0xff]
  %v1970 = vld [vmem:[%s1885 + $0x2a0] sm:$0xff]
  %v1971 = vld [vmem:[%s1885 + $0x2a8] sm:$0xff]
  %v1972 = vld [vmem:[%s1885 + $0x2b0] sm:$0xff]
  %v1973 = vld [vmem:[%s1885 + $0x2b8] sm:$0xff]
  %v1974 = vld [vmem:[%s1885 + $0x2c0] sm:$0xff]
  %v1975 = vld [vmem:[%s1885 + $0x2c8] sm:$0xff]
  %v1976 = vld [vmem:[%s1885 + $0x2d0] sm:$0xff]
  %v1977 = vld [vmem:[%s1885 + $0x2d8] sm:$0xff]
  %v1978 = vld [vmem:[%s1885 + $0x2e0] sm:$0xff]
  %v1979 = vld [vmem:[%s1885 + $0x2e8] sm:$0xff]
  %v1980 = vld [vmem:[%s1885 + $0x2f0] sm:$0xff]
  %v1981 = vld [vmem:[%s1885 + $0x2f8] sm:$0xff]
  %v1982 = vld [vmem:[%s1885 + $0x300] sm:$0xff]
  %v1983 = vld [vmem:[%s1885 + $0x308] sm:$0xff]
  %v1984 = vld [vmem:[%s1885 + $0x310] sm:$0xff]
  %v1985 = vld [vmem:[%s1885 + $0x318] sm:$0xff]
  %v1986 = vld [vmem:[%s1885 + $0x320] sm:$0xff]
  %v1987 = vld [vmem:[%s1885 + $0x328] sm:$0xff]
  %v1988 = vld [vmem:[%s1885 + $0x330] sm:$0xff]
  %v1989 = vld [vmem:[%s1885 + $0x338] sm:$0xff]
  %v1990 = vld [vmem:[%s1885 + $0x340] sm:$0xff]
  %v1991 = vld [vmem:[%s1885 + $0x348] sm:$0xff]
  %v1992 = vld [vmem:[%s1885 + $0x350] sm:$0xff]
  %v1993 = vld [vmem:[%s1885 + $0x358] sm:$0xff]
  %v1994 = vld [vmem:[%s1885 + $0x360] sm:$0xff]
  %v1995 = vld [vmem:[%s1885 + $0x368] sm:$0xff]
  %v1996 = vld [vmem:[%s1885 + $0x370] sm:$0xff]
  %v1997 = vld [vmem:[%s1885 + $0x378] sm:$0xff]
  %v1998 = vld [vmem:[%s1885 + $0x380] sm:$0xff]
  %v1999 = vld [vmem:[%s1885 + $0x388] sm:$0xff]
  %v2000 = vld [vmem:[%s1885 + $0x390] sm:$0xff]
  %v2001 = vld [vmem:[%s1885 + $0x398] sm:$0xff]
  %v2002 = vld [vmem:[%s1885 + $0x3a0] sm:$0xff]
  %v2003 = vld [vmem:[%s1885 + $0x3a8] sm:$0xff]
  %v2004 = vld [vmem:[%s1885 + $0x3b0] sm:$0xff]
  %v2005 = vld [vmem:[%s1885 + $0x3b8] sm:$0xff]
  %v2006 = vld [vmem:[%s1885 + $0x3c0] sm:$0xff]
  %v2007 = vld [vmem:[%s1885 + $0x3c8] sm:$0xff]
  %v2008 = vld [vmem:[%s1885 + $0x3d0] sm:$0xff]
  %v2009 = vld [vmem:[%s1885 + $0x3d8] sm:$0xff]
  %v2010 = vld [vmem:[%s1885 + $0x3e0] sm:$0xff]
  %v2011 = vld [vmem:[%s1885 + $0x3e8] sm:$0xff]
  %v2012 = vld [vmem:[%s1885 + $0x3f0] sm:$0xff]
  %v2013 = vld [vmem:[%s1885 + $0x3f8] sm:$0xff]
  %v2014 = vld [vmem:[%s1885 + $0x400] sm:$0xff]
  %v2015 = vld [vmem:[%s1885 + $0x408] sm:$0xff]
  %v2016 = vld [vmem:[%s1885 + $0x410] sm:$0xff]
  %v2017 = vld [vmem:[%s1885 + $0x418] sm:$0xff]
  %v2018 = vld [vmem:[%s1885 + $0x420] sm:$0xff]
  %v2019 = vld [vmem:[%s1885 + $0x428] sm:$0xff]
  %v2020 = vld [vmem:[%s1885 + $0x430] sm:$0xff]
  %v2021 = vld [vmem:[%s1885 + $0x438] sm:$0xff]
  %v2022 = vld [vmem:[%s1885 + $0x440] sm:$0xff]
  %v2023 = vld [vmem:[%s1885 + $0x448] sm:$0xff]
  %v2024 = vld [vmem:[%s1885 + $0x450] sm:$0xff]
  %v2025 = vld [vmem:[%s1885 + $0x458] sm:$0xff]
  %v2026 = vld [vmem:[%s1885 + $0x460] sm:$0xff]
  %v2027 = vld [vmem:[%s1885 + $0x468] sm:$0xff]
  %v2028 = vld [vmem:[%s1885 + $0x470] sm:$0xff]
  %v2029 = vld [vmem:[%s1885 + $0x478] sm:$0xff]
  %v2030 = vld [vmem:[%s1885 + $0x480] sm:$0xff]
  %v2031 = vld [vmem:[%s1885 + $0x488] sm:$0xff]
  %v2032 = vld [vmem:[%s1885 + $0x490] sm:$0xff]
  %v2033 = vld [vmem:[%s1885 + $0x498] sm:$0xff]
  %v2034 = vld [vmem:[%s1885 + $0x4a0] sm:$0xff]
  %v2035 = vld [vmem:[%s1885 + $0x4a8] sm:$0xff]
  %v2036 = vld [vmem:[%s1885 + $0x4b0] sm:$0xff]
  %v2037 = vld [vmem:[%s1885 + $0x4b8] sm:$0xff]
  %v2038 = vld [vmem:[%s1885 + $0x4c0] sm:$0xff]
  %v2039 = vld [vmem:[%s1885 + $0x4c8] sm:$0xff]
  %v2040 = vld [vmem:[%s1885 + $0x4d0] sm:$0xff]
  %v2041 = vld [vmem:[%s1885 + $0x4d8] sm:$0xff]
  %v2042 = vld [vmem:[%s1885 + $0x4e0] sm:$0xff]
  %v2043 = vld [vmem:[%s1885 + $0x4e8] sm:$0xff]
  %v2044 = vld [vmem:[%s1885 + $0x4f0] sm:$0xff]
  %v2045 = vld [vmem:[%s1885 + $0x4f8] sm:$0xff]
  %v2046 = vld [vmem:[%s1885 + $0x500] sm:$0xff]
  %v2047 = vld [vmem:[%s1885 + $0x508] sm:$0xff]
  %v2048 = vld [vmem:[%s1885 + $0x510] sm:$0xff]
  %v2049 = vld [vmem:[%s1885 + $0x518] sm:$0xff]
  %v2050 = vld [vmem:[%s1885 + $0x520] sm:$0xff]
  %v2051 = vld [vmem:[%s1885 + $0x528] sm:$0xff]
  %v2052 = vld [vmem:[%s1885 + $0x530] sm:$0xff]
  %v2053 = vld [vmem:[%s1885 + $0x538] sm:$0xff]
  %v2054 = vld [vmem:[%s1885 + $0x540] sm:$0xff]
  %v2055 = vld [vmem:[%s1885 + $0x548] sm:$0xff]
  %v2056 = vld [vmem:[%s1885 + $0x550] sm:$0xff]
  %v2057 = vld [vmem:[%s1885 + $0x558] sm:$0xff]
  %v2058 = vld [vmem:[%s1885 + $0x560] sm:$0xff]
  %v2059 = vld [vmem:[%s1885 + $0x568] sm:$0xff]
  %v2060 = vld [vmem:[%s1885 + $0x570] sm:$0xff]
  %v2061 = vld [vmem:[%s1885 + $0x578] sm:$0xff]
  %v2062 = vld [vmem:[%s1885 + $0x580] sm:$0xff]
  %v2063 = vld [vmem:[%s1885 + $0x588] sm:$0xff]
  %v2064 = vld [vmem:[%s1885 + $0x590] sm:$0xff]
  %v2065 = vld [vmem:[%s1885 + $0x598] sm:$0xff]
  %v2066 = vld [vmem:[%s1885 + $0x5a0] sm:$0xff]
  %v2067 = vld [vmem:[%s1885 + $0x5a8] sm:$0xff]
  %v2068 = vld [vmem:[%s1885 + $0x5b0] sm:$0xff]
  %v2069 = vld [vmem:[%s1885 + $0x5b8] sm:$0xff]
  %v2070 = vld [vmem:[%s1885 + $0x5c0] sm:$0xff]
  %v2071 = vld [vmem:[%s1885 + $0x5c8] sm:$0xff]
  %v2072 = vld [vmem:[%s1885 + $0x5d0] sm:$0xff]
  %v2073 = vld [vmem:[%s1885 + $0x5d8] sm:$0xff]
  %v2074 = vld [vmem:[%s1885 + $0x5e0] sm:$0xff]
  %v2075 = vld [vmem:[%s1885 + $0x5e8] sm:$0xff]
  %v2076 = vld [vmem:[%s1885 + $0x5f0] sm:$0xff]
  %v2077 = vld [vmem:[%s1885 + $0x5f8] sm:$0xff]
  %v2078 = vld [vmem:[%s1885 + $0x600] sm:$0xff]
  %v2079 = vld [vmem:[%s1885 + $0x608] sm:$0xff]
  %v2080 = vld [vmem:[%s1885 + $0x610] sm:$0xff]
  %v2081 = vld [vmem:[%s1885 + $0x618] sm:$0xff]
  %v2082 = vld [vmem:[%s1885 + $0x620] sm:$0xff]
  %v2083 = vld [vmem:[%s1885 + $0x628] sm:$0xff]
  %v2084 = vld [vmem:[%s1885 + $0x630] sm:$0xff]
  %v2085 = vld [vmem:[%s1885 + $0x638] sm:$0xff]
  %v2086 = vld [vmem:[%s1885 + $0x640] sm:$0xff]
  %v2087 = vld [vmem:[%s1885 + $0x648] sm:$0xff]
  %v2088 = vld [vmem:[%s1885 + $0x650] sm:$0xff]
  %v2089 = vld [vmem:[%s1885 + $0x658] sm:$0xff]
  %v2090 = vld [vmem:[%s1885 + $0x660] sm:$0xff]
  %v2091 = vld [vmem:[%s1885 + $0x668] sm:$0xff]
  %v2092 = vld [vmem:[%s1885 + $0x670] sm:$0xff]
  %v2093 = vld [vmem:[%s1885 + $0x678] sm:$0xff]
  %v2094 = vld [vmem:[%s1885 + $0x680] sm:$0xff]
  %v2095 = vld [vmem:[%s1885 + $0x688] sm:$0xff]
  %v2096 = vld [vmem:[%s1885 + $0x690] sm:$0xff]
  %v2097 = vld [vmem:[%s1885 + $0x698] sm:$0xff]
  %v2098 = vld [vmem:[%s1885 + $0x6a0] sm:$0xff]
  %v2099 = vld [vmem:[%s1885 + $0x6a8] sm:$0xff]
  %v2100 = vld [vmem:[%s1885 + $0x6b0] sm:$0xff]
  %v2101 = vld [vmem:[%s1885 + $0x6b8] sm:$0xff]
  %v2102 = vld [vmem:[%s1885 + $0x6c0] sm:$0xff]
  %v2103 = vld [vmem:[%s1885 + $0x6c8] sm:$0xff]
  %v2104 = vld [vmem:[%s1885 + $0x6d0] sm:$0xff]
  %v2105 = vld [vmem:[%s1885 + $0x6d8] sm:$0xff]
  %v2106 = vld [vmem:[%s1885 + $0x6e0] sm:$0xff]
  %v2107 = vld [vmem:[%s1885 + $0x6e8] sm:$0xff]
  %v2108 = vld [vmem:[%s1885 + $0x6f0] sm:$0xff]
  %v2109 = vld [vmem:[%s1885 + $0x6f8] sm:$0xff]
  %v2110 = vld [vmem:[%s1885 + $0x700] sm:$0xff]
  %v2111 = vld [vmem:[%s1885 + $0x708] sm:$0xff]
  %v2112 = vld [vmem:[%s1885 + $0x710] sm:$0xff]
  %v2113 = vld [vmem:[%s1885 + $0x718] sm:$0xff]
  %v2114 = vld [vmem:[%s1885 + $0x720] sm:$0xff]
  %v2115 = vld [vmem:[%s1885 + $0x728] sm:$0xff]
  %v2116 = vld [vmem:[%s1885 + $0x730] sm:$0xff]
  %v2117 = vld [vmem:[%s1885 + $0x738] sm:$0xff]
  %v2118 = vld [vmem:[%s1885 + $0x740] sm:$0xff]
  %v2119 = vld [vmem:[%s1885 + $0x748] sm:$0xff]
  %v2120 = vld [vmem:[%s1885 + $0x750] sm:$0xff]
  %v2121 = vld [vmem:[%s1885 + $0x758] sm:$0xff]
  %v2122 = vld [vmem:[%s1885 + $0x760] sm:$0xff]
  %v2123 = vld [vmem:[%s1885 + $0x768] sm:$0xff]
  %v2124 = vld [vmem:[%s1885 + $0x770] sm:$0xff]
  %v2125 = vld [vmem:[%s1885 + $0x778] sm:$0xff]
  %v2126 = vld [vmem:[%s1885 + $0x780] sm:$0xff]
  %v2127 = vld [vmem:[%s1885 + $0x788] sm:$0xff]
  %v2128 = vld [vmem:[%s1885 + $0x790] sm:$0xff]
  %v2129 = vld [vmem:[%s1885 + $0x798] sm:$0xff]
  %v2130 = vld [vmem:[%s1885 + $0x7a0] sm:$0xff]
  %v2131 = vld [vmem:[%s1885 + $0x7a8] sm:$0xff]
  %v2132 = vld [vmem:[%s1885 + $0x7b0] sm:$0xff]
  %v2133 = vld [vmem:[%s1885 + $0x7b8] sm:$0xff]
  %v2134 = vld [vmem:[%s1885 + $0x7c0] sm:$0xff]
  %v2135 = vld [vmem:[%s1885 + $0x7c8] sm:$0xff]
  %v2136 = vld [vmem:[%s1885 + $0x7d0] sm:$0xff]
  %v2137 = vld [vmem:[%s1885 + $0x7d8] sm:$0xff]
  %v2138 = vld [vmem:[%s1885 + $0x7e0] sm:$0xff]
  %v2139 = vld [vmem:[%s1885 + $0x7e8] sm:$0xff]
  %v2140 = vld [vmem:[%s1885 + $0x7f0] sm:$0xff]
  %v2141 = vld [vmem:[%s1885 + $0x7f8] sm:$0xff]
  %2142 = vmatprep.subr.mxu0 %v1947
  %2143 = vmatpush1.msra.mxu0 %v1946
  %2144 = vmatprep.subr.mxu0 %v1943
  %2145 = vmatpush1.msra.mxu0 %v1942
  %2146 = vmatprep.subr.mxu0 %v1939
  %2147 = vmatpush1.msra.mxu0 %v1938
  %2148 = vmatprep.subr.mxu0 %v1935
  %2149 = vmatpush1.msra.mxu0 %v1934
  %2150 = vmatprep.subr.mxu0 %v1931
  %2151 = vmatpush1.msra.mxu0 %v1930
  %2152 = vmatprep.subr.mxu0 %v1927
  %2153 = vmatpush1.msra.mxu0 %v1926
  %2154 = vmatprep.subr.mxu0 %v1923
  %2155 = vmatpush1.msra.mxu0 %v1922
  %2156 = vmatprep.subr.mxu0 %v1919
  %2157 = vmatpush1.msra.mxu0 %v1918
  %2158 = vmatprep.subr.mxu0 %v1915
  %2159 = vmatpush1.msra.mxu0 %v1914
  %2160 = vmatprep.subr.mxu0 %v1911
  %2161 = vmatpush1.msra.mxu0 %v1910
  %2162 = vmatprep.subr.mxu0 %v1907
  %2163 = vmatpush1.msra.mxu0 %v1906
  %2164 = vmatprep.subr.mxu0 %v1903
  %2165 = vmatpush1.msra.mxu0 %v1902
  %2166 = vmatprep.subr.mxu0 %v1899
  %2167 = vmatpush1.msra.mxu0 %v1898
  %2168 = vmatprep.subr.mxu0 %v1895
  %2169 = vmatpush1.msra.mxu0 %v1894
  %2170 = vmatprep.subr.mxu0 %v1891
  %2171 = vmatpush1.msra.mxu0 %v1890
  %2172 = vmatprep.subr.mxu0 %v1887
  %2173 = vmatpush1.msra.mxu0 %v1886
  %2174 = vmatprep.subr.mxu0 %v2011
  %2175 = vmatpush2.msra.mxu0 %v2010
  %2176 = vmatprep.subr.mxu0 %v2007
  %2177 = vmatpush2.msra.mxu0 %v2006
  %2178 = vmatprep.subr.mxu0 %v2003
  %2179 = vmatpush2.msra.mxu0 %v2002
  %2180 = vmatprep.subr.mxu0 %v1999
  %2181 = vmatpush2.msra.mxu0 %v1998
  %2182 = vmatprep.subr.mxu0 %v1995
  %2183 = vmatpush2.msra.mxu0 %v1994
  %2184 = vmatprep.subr.mxu0 %v1991
  %2185 = vmatpush2.msra.mxu0 %v1990
  %2186 = vmatprep.subr.mxu0 %v1987
  %2187 = vmatpush2.msra.mxu0 %v1986
  %2188 = vmatprep.subr.mxu0 %v1983
  %2189 = vmatpush2.msra.mxu0 %v1982
  %2190 = vmatprep.subr.mxu0 %v1979
  %2191 = vmatpush2.msra.mxu0 %v1978
  %2192 = vmatprep.subr.mxu0 %v1975
  %2193 = vmatpush2.msra.mxu0 %v1974
  %2194 = vmatprep.subr.mxu0 %v1971
  %2195 = vmatpush2.msra.mxu0 %v1970
  %2196 = vmatprep.subr.mxu0 %v1967
  %2197 = vmatpush2.msra.mxu0 %v1966
  %2198 = vmatprep.subr.mxu0 %v1963
  %2199 = vmatpush2.msra.mxu0 %v1962
  %2200 = vmatprep.subr.mxu0 %v1959
  %2201 = vmatpush2.msra.mxu0 %v1958
  %2202 = vmatprep.subr.mxu0 %v1955
  %2203 = vmatpush2.msra.mxu0 %v1954
  %2204 = vmatprep.subr.mxu0 %v1951
  %2205 = vmatpush2.msra.mxu0 %v1950
  %2206 = vmatprep.mubr.f32.mxu0 %v1822
  %2207 = vmatmul.mubr.f32.gmra.mxu0 %v1821
  %v2208 = vpop.f32.mrf.mxu0
  %v2209 = vadd.f32 0.0, %v2208
  %v2210 = vpop.f32.mrf.mxu0
  %v2211 = vadd.f32 0.0, %v2210
  %2212 = vmatprep.mubr.f32.mxu0 %v1826
  %2213 = vmatmul.mubr.f32.gmra.mxu0 %v1825
  %v2214 = vpop.f32.mrf.mxu0
  %v2215 = vadd.f32 0.0, %v2214
  %v2216 = vpop.f32.mrf.mxu0
  %v2217 = vadd.f32 0.0, %v2216
  %2218 = vmatprep.mubr.f32.mxu0 %v1830
  %2219 = vmatmul.mubr.f32.gmra.mxu0 %v1829
  %v2220 = vpop.f32.mrf.mxu0
  %v2221 = vadd.f32 0.0, %v2220
  %v2222 = vpop.f32.mrf.mxu0
  %v2223 = vadd.f32 0.0, %v2222
  %2224 = vmatprep.mubr.f32.mxu0 %v1834
  %2225 = vmatmul.mubr.f32.gmra.mxu0 %v1833
  %v2226 = vpop.f32.mrf.mxu0
  %v2227 = vadd.f32 0.0, %v2226
  %v2228 = vpop.f32.mrf.mxu0
  %v2229 = vadd.f32 0.0, %v2228
  %2230 = vmatprep.mubr.f32.mxu0 %v1838
  %2231 = vmatmul.mubr.f32.gmra.mxu0 %v1837
  %v2232 = vpop.f32.mrf.mxu0
  %v2233 = vadd.f32 0.0, %v2232
  %v2234 = vpop.f32.mrf.mxu0
  %v2235 = vadd.f32 0.0, %v2234
  %2236 = vmatprep.mubr.f32.mxu0 %v1842
  %2237 = vmatmul.mubr.f32.gmra.mxu0 %v1841
  %v2238 = vpop.f32.mrf.mxu0
  %v2239 = vadd.f32 0.0, %v2238
  %v2240 = vpop.f32.mrf.mxu0
  %v2241 = vadd.f32 0.0, %v2240
  %2242 = vmatprep.mubr.f32.mxu0 %v1846
  %2243 = vmatmul.mubr.f32.gmra.mxu0 %v1845
  %v2244 = vpop.f32.mrf.mxu0
  %v2245 = vadd.f32 0.0, %v2244
  %v2246 = vpop.f32.mrf.mxu0
  %v2247 = vadd.f32 0.0, %v2246
  %2248 = vmatprep.mubr.f32.mxu0 %v1850
  %2249 = vmatmul.mubr.f32.gmra.mxu0 %v1849
  %v2250 = vpop.f32.mrf.mxu0
  %v2251 = vadd.f32 0.0, %v2250
  %v2252 = vpop.f32.mrf.mxu0
  %v2253 = vadd.f32 0.0, %v2252
  %2254 = vmatprep.mubr.f32.mxu0 %v1854
  %2255 = vmatmul.mubr.f32.gmra.mxu0 %v1853
  %v2256 = vpop.f32.mrf.mxu0
  %v2257 = vadd.f32 0.0, %v2256
  %v2258 = vpop.f32.mrf.mxu0
  %v2259 = vadd.f32 0.0, %v2258
  %2260 = vmatprep.mubr.f32.mxu0 %v1858
  %2261 = vmatmul.mubr.f32.gmra.mxu0 %v1857
  %v2262 = vpop.f32.mrf.mxu0
  %v2263 = vadd.f32 0.0, %v2262
  %v2264 = vpop.f32.mrf.mxu0
  %v2265 = vadd.f32 0.0, %v2264
  %2266 = vmatprep.mubr.f32.mxu0 %v1862
  %2267 = vmatmul.mubr.f32.gmra.mxu0 %v1861
  %v2268 = vpop.f32.mrf.mxu0
  %v2269 = vadd.f32 0.0, %v2268
  %v2270 = vpop.f32.mrf.mxu0
  %v2271 = vadd.f32 0.0, %v2270
  %2272 = vmatprep.mubr.f32.mxu0 %v1866
  %2273 = vmatmul.mubr.f32.gmra.mxu0 %v1865
  %v2274 = vpop.f32.mrf.mxu0
  %v2275 = vadd.f32 0.0, %v2274
  %v2276 = vpop.f32.mrf.mxu0
  %v2277 = vadd.f32 0.0, %v2276
  %2278 = vmatprep.mubr.f32.mxu0 %v1870
  %2279 = vmatmul.mubr.f32.gmra.mxu0 %v1869
  %v2280 = vpop.f32.mrf.mxu0
  %v2281 = vadd.f32 0.0, %v2280
  %v2282 = vpop.f32.mrf.mxu0
  %v2283 = vadd.f32 0.0, %v2282
  %2284 = vmatprep.mubr.f32.mxu0 %v1874
  %2285 = vmatmul.mubr.f32.gmra.mxu0 %v1873
  %v2286 = vpop.f32.mrf.mxu0
  %v2287 = vadd.f32 0.0, %v2286
  %v2288 = vpop.f32.mrf.mxu0
  %v2289 = vadd.f32 0.0, %v2288
  %2290 = vmatprep.mubr.f32.mxu0 %v1878
  %2291 = vmatmul.mubr.f32.gmra.mxu0 %v1877
  %v2292 = vpop.f32.mrf.mxu0
  %v2293 = vadd.f32 0.0, %v2292
  %v2294 = vpop.f32.mrf.mxu0
  %v2295 = vadd.f32 0.0, %v2294
  %2296 = vmatprep.mubr.f32.mxu0 %v1882
  %2297 = vmatmul.mubr.f32.gmra.mxu0 %v1881
  %v2298 = vpop.f32.mrf.mxu0
  %v2299 = vadd.f32 0.0, %v2298
  %v2300 = vpop.f32.mrf.mxu0
  %v2301 = vadd.f32 0.0, %v2300
  %2302 = vdwg.mxu0
  %2303 = vmatprep.subr.mxu0 %v2075
  %2304 = vmatpush1.msra.mxu0 %v2074
  %2305 = vmatprep.subr.mxu0 %v2071
  %2306 = vmatpush1.msra.mxu0 %v2070
  %2307 = vmatprep.subr.mxu0 %v2067
  %2308 = vmatpush1.msra.mxu0 %v2066
  %2309 = vmatprep.subr.mxu0 %v2063
  %2310 = vmatpush1.msra.mxu0 %v2062
  %2311 = vmatprep.subr.mxu0 %v2059
  %2312 = vmatpush1.msra.mxu0 %v2058
  %2313 = vmatprep.subr.mxu0 %v2055
  %2314 = vmatpush1.msra.mxu0 %v2054
  %2315 = vmatprep.subr.mxu0 %v2051
  %2316 = vmatpush1.msra.mxu0 %v2050
  %2317 = vmatprep.subr.mxu0 %v2047
  %2318 = vmatpush1.msra.mxu0 %v2046
  %2319 = vmatprep.subr.mxu0 %v2043
  %2320 = vmatpush1.msra.mxu0 %v2042
  %2321 = vmatprep.subr.mxu0 %v2039
  %2322 = vmatpush1.msra.mxu0 %v2038
  %2323 = vmatprep.subr.mxu0 %v2035
  %2324 = vmatpush1.msra.mxu0 %v2034
  %2325 = vmatprep.subr.mxu0 %v2031
  %2326 = vmatpush1.msra.mxu0 %v2030
  %2327 = vmatprep.subr.mxu0 %v2027
  %2328 = vmatpush1.msra.mxu0 %v2026
  %2329 = vmatprep.subr.mxu0 %v2023
  %2330 = vmatpush1.msra.mxu0 %v2022
  %2331 = vmatprep.subr.mxu0 %v2019
  %2332 = vmatpush1.msra.mxu0 %v2018
  %2333 = vmatprep.subr.mxu0 %v2015
  %2334 = vmatpush1.msra.mxu0 %v2014
  %2335 = vmatprep.subr.mxu0 %v2139
  %2336 = vmatpush2.msra.mxu0 %v2138
  %2337 = vmatprep.subr.mxu0 %v2135
  %2338 = vmatpush2.msra.mxu0 %v2134
  %2339 = vmatprep.subr.mxu0 %v2131
  %2340 = vmatpush2.msra.mxu0 %v2130
  %2341 = vmatprep.subr.mxu0 %v2127
  %2342 = vmatpush2.msra.mxu0 %v2126
  %2343 = vmatprep.subr.mxu0 %v2123
  %2344 = vmatpush2.msra.mxu0 %v2122
  %2345 = vmatprep.subr.mxu0 %v2119
  %2346 = vmatpush2.msra.mxu0 %v2118
  %2347 = vmatprep.subr.mxu0 %v2115
  %2348 = vmatpush2.msra.mxu0 %v2114
  %2349 = vmatprep.subr.mxu0 %v2111
  %2350 = vmatpush2.msra.mxu0 %v2110
  %2351 = vmatprep.subr.mxu0 %v2107
  %2352 = vmatpush2.msra.mxu0 %v2106
  %2353 = vmatprep.subr.mxu0 %v2103
  %2354 = vmatpush2.msra.mxu0 %v2102
  %2355 = vmatprep.subr.mxu0 %v2099
  %2356 = vmatpush2.msra.mxu0 %v2098
  %2357 = vmatprep.subr.mxu0 %v2095
  %2358 = vmatpush2.msra.mxu0 %v2094
  %2359 = vmatprep.subr.mxu0 %v2091
  %2360 = vmatpush2.msra.mxu0 %v2090
  %2361 = vmatprep.subr.mxu0 %v2087
  %2362 = vmatpush2.msra.mxu0 %v2086
  %2363 = vmatprep.subr.mxu0 %v2083
  %2364 = vmatpush2.msra.mxu0 %v2082
  %2365 = vmatprep.subr.mxu0 %v2079
  %2366 = vmatpush2.msra.mxu0 %v2078
  %2367 = vmatprep.mubr.f32.mxu0 %v1824
  %2368 = vmatmul.mubr.f32.gmra.mxu0 %v1823
  %v2369 = vpop.f32.mrf.mxu0
  %v2370 = vadd.f32 %v2209, %v2369
  %v2371 = vpop.f32.mrf.mxu0
  %v2372 = vadd.f32 %v2211, %v2371
  %2373 = vmatprep.mubr.f32.mxu0 %v1828
  %2374 = vmatmul.mubr.f32.gmra.mxu0 %v1827
  %v2375 = vpop.f32.mrf.mxu0
  %v2376 = vadd.f32 %v2215, %v2375
  %v2377 = vpop.f32.mrf.mxu0
  %v2378 = vadd.f32 %v2217, %v2377
  %2379 = vmatprep.mubr.f32.mxu0 %v1832
  %2380 = vmatmul.mubr.f32.gmra.mxu0 %v1831
  %v2381 = vpop.f32.mrf.mxu0
  %v2382 = vadd.f32 %v2221, %v2381
  %v2383 = vpop.f32.mrf.mxu0
  %v2384 = vadd.f32 %v2223, %v2383
  %2385 = vmatprep.mubr.f32.mxu0 %v1836
  %2386 = vmatmul.mubr.f32.gmra.mxu0 %v1835
  %v2387 = vpop.f32.mrf.mxu0
  %v2388 = vadd.f32 %v2227, %v2387
  %v2389 = vpop.f32.mrf.mxu0
  %v2390 = vadd.f32 %v2229, %v2389
  %2391 = vmatprep.mubr.f32.mxu0 %v1840
  %2392 = vmatmul.mubr.f32.gmra.mxu0 %v1839
  %v2393 = vpop.f32.mrf.mxu0
  %v2394 = vadd.f32 %v2233, %v2393
  %v2395 = vpop.f32.mrf.mxu0
  %v2396 = vadd.f32 %v2235, %v2395
  %2397 = vmatprep.mubr.f32.mxu0 %v1844
  %2398 = vmatmul.mubr.f32.gmra.mxu0 %v1843
  %v2399 = vpop.f32.mrf.mxu0
  %v2400 = vadd.f32 %v2239, %v2399
  %v2401 = vpop.f32.mrf.mxu0
  %v2402 = vadd.f32 %v2241, %v2401
  %2403 = vmatprep.mubr.f32.mxu0 %v1848
  %2404 = vmatmul.mubr.f32.gmra.mxu0 %v1847
  %v2405 = vpop.f32.mrf.mxu0
  %v2406 = vadd.f32 %v2245, %v2405
  %v2407 = vpop.f32.mrf.mxu0
  %v2408 = vadd.f32 %v2247, %v2407
  %2409 = vmatprep.mubr.f32.mxu0 %v1852
  %2410 = vmatmul.mubr.f32.gmra.mxu0 %v1851
  %v2411 = vpop.f32.mrf.mxu0
  %v2412 = vadd.f32 %v2251, %v2411
  %v2413 = vpop.f32.mrf.mxu0
  %v2414 = vadd.f32 %v2253, %v2413
  %2415 = vmatprep.mubr.f32.mxu0 %v1856
  %2416 = vmatmul.mubr.f32.gmra.mxu0 %v1855
  %v2417 = vpop.f32.mrf.mxu0
  %v2418 = vadd.f32 %v2257, %v2417
  %v2419 = vpop.f32.mrf.mxu0
  %v2420 = vadd.f32 %v2259, %v2419
  %2421 = vmatprep.mubr.f32.mxu0 %v1860
  %2422 = vmatmul.mubr.f32.gmra.mxu0 %v1859
  %v2423 = vpop.f32.mrf.mxu0
  %v2424 = vadd.f32 %v2263, %v2423
  %v2425 = vpop.f32.mrf.mxu0
  %v2426 = vadd.f32 %v2265, %v2425
  %2427 = vmatprep.mubr.f32.mxu0 %v1864
  %2428 = vmatmul.mubr.f32.gmra.mxu0 %v1863
  %v2429 = vpop.f32.mrf.mxu0
  %v2430 = vadd.f32 %v2269, %v2429
  %v2431 = vpop.f32.mrf.mxu0
  %v2432 = vadd.f32 %v2271, %v2431
  %2433 = vmatprep.mubr.f32.mxu0 %v1868
  %2434 = vmatmul.mubr.f32.gmra.mxu0 %v1867
  %v2435 = vpop.f32.mrf.mxu0
  %v2436 = vadd.f32 %v2275, %v2435
  %v2437 = vpop.f32.mrf.mxu0
  %v2438 = vadd.f32 %v2277, %v2437
  %2439 = vmatprep.mubr.f32.mxu0 %v1872
  %2440 = vmatmul.mubr.f32.gmra.mxu0 %v1871
  %v2441 = vpop.f32.mrf.mxu0
  %v2442 = vadd.f32 %v2281, %v2441
  %v2443 = vpop.f32.mrf.mxu0
  %v2444 = vadd.f32 %v2283, %v2443
  %2445 = vmatprep.mubr.f32.mxu0 %v1876
  %2446 = vmatmul.mubr.f32.gmra.mxu0 %v1875
  %v2447 = vpop.f32.mrf.mxu0
  %v2448 = vadd.f32 %v2287, %v2447
  %v2449 = vpop.f32.mrf.mxu0
  %v2450 = vadd.f32 %v2289, %v2449
  %2451 = vmatprep.mubr.f32.mxu0 %v1880
  %2452 = vmatmul.mubr.f32.gmra.mxu0 %v1879
  %v2453 = vpop.f32.mrf.mxu0
  %v2454 = vadd.f32 %v2293, %v2453
  %v2455 = vpop.f32.mrf.mxu0
  %v2456 = vadd.f32 %v2295, %v2455
  %2457 = vmatprep.mubr.f32.mxu0 %v1884
  %2458 = vmatmul.mubr.f32.gmra.mxu0 %v1883
  %v2459 = vpop.f32.mrf.mxu0
  %v2460 = vadd.f32 %v2299, %v2459
  %v2461 = vpop.f32.mrf.mxu0
  %v2462 = vadd.f32 %v2301, %v2461
  %2463 = vdwg.mxu0
  %2464 = vmatprep.subr.mxu0 %v1949
  %2465 = vmatpush1.msra.mxu0 %v1948
  %2466 = vmatprep.subr.mxu0 %v1945
  %2467 = vmatpush1.msra.mxu0 %v1944
  %2468 = vmatprep.subr.mxu0 %v1941
  %2469 = vmatpush1.msra.mxu0 %v1940
  %2470 = vmatprep.subr.mxu0 %v1937
  %2471 = vmatpush1.msra.mxu0 %v1936
  %2472 = vmatprep.subr.mxu0 %v1933
  %2473 = vmatpush1.msra.mxu0 %v1932
  %2474 = vmatprep.subr.mxu0 %v1929
  %2475 = vmatpush1.msra.mxu0 %v1928
  %2476 = vmatprep.subr.mxu0 %v1925
  %2477 = vmatpush1.msra.mxu0 %v1924
  %2478 = vmatprep.subr.mxu0 %v1921
  %2479 = vmatpush1.msra.mxu0 %v1920
  %2480 = vmatprep.subr.mxu0 %v1917
  %2481 = vmatpush1.msra.mxu0 %v1916
  %2482 = vmatprep.subr.mxu0 %v1913
  %2483 = vmatpush1.msra.mxu0 %v1912
  %2484 = vmatprep.subr.mxu0 %v1909
  %2485 = vmatpush1.msra.mxu0 %v1908
  %2486 = vmatprep.subr.mxu0 %v1905
  %2487 = vmatpush1.msra.mxu0 %v1904
  %2488 = vmatprep.subr.mxu0 %v1901
  %2489 = vmatpush1.msra.mxu0 %v1900
  %2490 = vmatprep.subr.mxu0 %v1897
  %2491 = vmatpush1.msra.mxu0 %v1896
  %2492 = vmatprep.subr.mxu0 %v1893
  %2493 = vmatpush1.msra.mxu0 %v1892
  %2494 = vmatprep.subr.mxu0 %v1889
  %2495 = vmatpush1.msra.mxu0 %v1888
  %2496 = vmatprep.subr.mxu0 %v2013
  %2497 = vmatpush2.msra.mxu0 %v2012
  %2498 = vmatprep.subr.mxu0 %v2009
  %2499 = vmatpush2.msra.mxu0 %v2008
  %2500 = vmatprep.subr.mxu0 %v2005
  %2501 = vmatpush2.msra.mxu0 %v2004
  %2502 = vmatprep.subr.mxu0 %v2001
  %2503 = vmatpush2.msra.mxu0 %v2000
  %2504 = vmatprep.subr.mxu0 %v1997
  %2505 = vmatpush2.msra.mxu0 %v1996
  %2506 = vmatprep.subr.mxu0 %v1993
  %2507 = vmatpush2.msra.mxu0 %v1992
  %2508 = vmatprep.subr.mxu0 %v1989
  %2509 = vmatpush2.msra.mxu0 %v1988
  %2510 = vmatprep.subr.mxu0 %v1985
  %2511 = vmatpush2.msra.mxu0 %v1984
  %2512 = vmatprep.subr.mxu0 %v1981
  %2513 = vmatpush2.msra.mxu0 %v1980
  %2514 = vmatprep.subr.mxu0 %v1977
  %2515 = vmatpush2.msra.mxu0 %v1976
  %2516 = vmatprep.subr.mxu0 %v1973
  %2517 = vmatpush2.msra.mxu0 %v1972
  %2518 = vmatprep.subr.mxu0 %v1969
  %2519 = vmatpush2.msra.mxu0 %v1968
  %2520 = vmatprep.subr.mxu0 %v1965
  %2521 = vmatpush2.msra.mxu0 %v1964
  %2522 = vmatprep.subr.mxu0 %v1961
  %2523 = vmatpush2.msra.mxu0 %v1960
  %2524 = vmatprep.subr.mxu0 %v1957
  %2525 = vmatpush2.msra.mxu0 %v1956
  %2526 = vmatprep.subr.mxu0 %v1953
  %2527 = vmatpush2.msra.mxu0 %v1952
  %2528 = vmatprep.mubr.f32.mxu0 %v1822
  %2529 = vmatmul.mubr.f32.gmra.mxu0 %v1821
  %v2530 = vpop.f32.mrf.mxu0
  %v2531 = vadd.f32 0.0, %v2530
  %v2532 = vpop.f32.mrf.mxu0
  %v2533 = vadd.f32 0.0, %v2532
  %2534 = vmatprep.mubr.f32.mxu0 %v1826
  %2535 = vmatmul.mubr.f32.gmra.mxu0 %v1825
  %v2536 = vpop.f32.mrf.mxu0
  %v2537 = vadd.f32 0.0, %v2536
  %v2538 = vpop.f32.mrf.mxu0
  %v2539 = vadd.f32 0.0, %v2538
  %2540 = vmatprep.mubr.f32.mxu0 %v1830
  %2541 = vmatmul.mubr.f32.gmra.mxu0 %v1829
  %v2542 = vpop.f32.mrf.mxu0
  %v2543 = vadd.f32 0.0, %v2542
  %v2544 = vpop.f32.mrf.mxu0
  %v2545 = vadd.f32 0.0, %v2544
  %2546 = vmatprep.mubr.f32.mxu0 %v1834
  %2547 = vmatmul.mubr.f32.gmra.mxu0 %v1833
  %v2548 = vpop.f32.mrf.mxu0
  %v2549 = vadd.f32 0.0, %v2548
  %v2550 = vpop.f32.mrf.mxu0
  %v2551 = vadd.f32 0.0, %v2550
  %2552 = vmatprep.mubr.f32.mxu0 %v1838
  %2553 = vmatmul.mubr.f32.gmra.mxu0 %v1837
  %v2554 = vpop.f32.mrf.mxu0
  %v2555 = vadd.f32 0.0, %v2554
  %v2556 = vpop.f32.mrf.mxu0
  %v2557 = vadd.f32 0.0, %v2556
  %2558 = vmatprep.mubr.f32.mxu0 %v1842
  %2559 = vmatmul.mubr.f32.gmra.mxu0 %v1841
  %v2560 = vpop.f32.mrf.mxu0
  %v2561 = vadd.f32 0.0, %v2560
  %v2562 = vpop.f32.mrf.mxu0
  %v2563 = vadd.f32 0.0, %v2562
  %2564 = vmatprep.mubr.f32.mxu0 %v1846
  %2565 = vmatmul.mubr.f32.gmra.mxu0 %v1845
  %v2566 = vpop.f32.mrf.mxu0
  %v2567 = vadd.f32 0.0, %v2566
  %v2568 = vpop.f32.mrf.mxu0
  %v2569 = vadd.f32 0.0, %v2568
  %2570 = vmatprep.mubr.f32.mxu0 %v1850
  %2571 = vmatmul.mubr.f32.gmra.mxu0 %v1849
  %v2572 = vpop.f32.mrf.mxu0
  %v2573 = vadd.f32 0.0, %v2572
  %v2574 = vpop.f32.mrf.mxu0
  %v2575 = vadd.f32 0.0, %v2574
  %2576 = vmatprep.mubr.f32.mxu0 %v1854
  %2577 = vmatmul.mubr.f32.gmra.mxu0 %v1853
  %v2578 = vpop.f32.mrf.mxu0
  %v2579 = vadd.f32 0.0, %v2578
  %v2580 = vpop.f32.mrf.mxu0
  %v2581 = vadd.f32 0.0, %v2580
  %2582 = vmatprep.mubr.f32.mxu0 %v1858
  %2583 = vmatmul.mubr.f32.gmra.mxu0 %v1857
  %v2584 = vpop.f32.mrf.mxu0
  %v2585 = vadd.f32 0.0, %v2584
  %v2586 = vpop.f32.mrf.mxu0
  %v2587 = vadd.f32 0.0, %v2586
  %2588 = vmatprep.mubr.f32.mxu0 %v1862
  %2589 = vmatmul.mubr.f32.gmra.mxu0 %v1861
  %v2590 = vpop.f32.mrf.mxu0
  %v2591 = vadd.f32 0.0, %v2590
  %v2592 = vpop.f32.mrf.mxu0
  %v2593 = vadd.f32 0.0, %v2592
  %2594 = vmatprep.mubr.f32.mxu0 %v1866
  %2595 = vmatmul.mubr.f32.gmra.mxu0 %v1865
  %v2596 = vpop.f32.mrf.mxu0
  %v2597 = vadd.f32 0.0, %v2596
  %v2598 = vpop.f32.mrf.mxu0
  %v2599 = vadd.f32 0.0, %v2598
  %2600 = vmatprep.mubr.f32.mxu0 %v1870
  %2601 = vmatmul.mubr.f32.gmra.mxu0 %v1869
  %v2602 = vpop.f32.mrf.mxu0
  %v2603 = vadd.f32 0.0, %v2602
  %v2604 = vpop.f32.mrf.mxu0
  %v2605 = vadd.f32 0.0, %v2604
  %2606 = vmatprep.mubr.f32.mxu0 %v1874
  %2607 = vmatmul.mubr.f32.gmra.mxu0 %v1873
  %v2608 = vpop.f32.mrf.mxu0
  %v2609 = vadd.f32 0.0, %v2608
  %v2610 = vpop.f32.mrf.mxu0
  %v2611 = vadd.f32 0.0, %v2610
  %2612 = vmatprep.mubr.f32.mxu0 %v1878
  %2613 = vmatmul.mubr.f32.gmra.mxu0 %v1877
  %v2614 = vpop.f32.mrf.mxu0
  %v2615 = vadd.f32 0.0, %v2614
  %v2616 = vpop.f32.mrf.mxu0
  %v2617 = vadd.f32 0.0, %v2616
  %2618 = vmatprep.mubr.f32.mxu0 %v1882
  %2619 = vmatmul.mubr.f32.gmra.mxu0 %v1881
  %v2620 = vpop.f32.mrf.mxu0
  %v2621 = vadd.f32 0.0, %v2620
  %v2622 = vpop.f32.mrf.mxu0
  %v2623 = vadd.f32 0.0, %v2622
  %2624 = vdwg.mxu0
  %2625 = vmatprep.subr.mxu0 %v2077
  %2626 = vmatpush1.msra.mxu0 %v2076
  %2627 = vmatprep.subr.mxu0 %v2073
  %2628 = vmatpush1.msra.mxu0 %v2072
  %2629 = vmatprep.subr.mxu0 %v2069
  %2630 = vmatpush1.msra.mxu0 %v2068
  %2631 = vmatprep.subr.mxu0 %v2065
  %2632 = vmatpush1.msra.mxu0 %v2064
  %2633 = vmatprep.subr.mxu0 %v2061
  %2634 = vmatpush1.msra.mxu0 %v2060
  %2635 = vmatprep.subr.mxu0 %v2057
  %2636 = vmatpush1.msra.mxu0 %v2056
  %2637 = vmatprep.subr.mxu0 %v2053
  %2638 = vmatpush1.msra.mxu0 %v2052
  %2639 = vmatprep.subr.mxu0 %v2049
  %2640 = vmatpush1.msra.mxu0 %v2048
  %2641 = vmatprep.subr.mxu0 %v2045
  %2642 = vmatpush1.msra.mxu0 %v2044
  %2643 = vmatprep.subr.mxu0 %v2041
  %2644 = vmatpush1.msra.mxu0 %v2040
  %2645 = vmatprep.subr.mxu0 %v2037
  %2646 = vmatpush1.msra.mxu0 %v2036
  %2647 = vmatprep.subr.mxu0 %v2033
  %2648 = vmatpush1.msra.mxu0 %v2032
  %2649 = vmatprep.subr.mxu0 %v2029
  %2650 = vmatpush1.msra.mxu0 %v2028
  %2651 = vmatprep.subr.mxu0 %v2025
  %2652 = vmatpush1.msra.mxu0 %v2024
  %2653 = vmatprep.subr.mxu0 %v2021
  %2654 = vmatpush1.msra.mxu0 %v2020
  %2655 = vmatprep.subr.mxu0 %v2017
  %2656 = vmatpush1.msra.mxu0 %v2016
  %2657 = vmatprep.subr.mxu0 %v2141
  %2658 = vmatpush2.msra.mxu0 %v2140
  %2659 = vmatprep.subr.mxu0 %v2137
  %2660 = vmatpush2.msra.mxu0 %v2136
  %2661 = vmatprep.subr.mxu0 %v2133
  %2662 = vmatpush2.msra.mxu0 %v2132
  %2663 = vmatprep.subr.mxu0 %v2129
  %2664 = vmatpush2.msra.mxu0 %v2128
  %2665 = vmatprep.subr.mxu0 %v2125
  %2666 = vmatpush2.msra.mxu0 %v2124
  %2667 = vmatprep.subr.mxu0 %v2121
  %2668 = vmatpush2.msra.mxu0 %v2120
  %2669 = vmatprep.subr.mxu0 %v2117
  %2670 = vmatpush2.msra.mxu0 %v2116
  %2671 = vmatprep.subr.mxu0 %v2113
  %2672 = vmatpush2.msra.mxu0 %v2112
  %2673 = vmatprep.subr.mxu0 %v2109
  %2674 = vmatpush2.msra.mxu0 %v2108
  %2675 = vmatprep.subr.mxu0 %v2105
  %2676 = vmatpush2.msra.mxu0 %v2104
  %2677 = vmatprep.subr.mxu0 %v2101
  %2678 = vmatpush2.msra.mxu0 %v2100
  %2679 = vmatprep.subr.mxu0 %v2097
  %2680 = vmatpush2.msra.mxu0 %v2096
  %2681 = vmatprep.subr.mxu0 %v2093
  %2682 = vmatpush2.msra.mxu0 %v2092
  %2683 = vmatprep.subr.mxu0 %v2089
  %2684 = vmatpush2.msra.mxu0 %v2088
  %2685 = vmatprep.subr.mxu0 %v2085
  %2686 = vmatpush2.msra.mxu0 %v2084
  %2687 = vmatprep.subr.mxu0 %v2081
  %2688 = vmatpush2.msra.mxu0 %v2080
  %2689 = vmatprep.mubr.f32.mxu0 %v1824
  %2690 = vmatmul.mubr.f32.gmra.mxu0 %v1823
  %v2691 = vpop.f32.mrf.mxu0
  %v2692 = vadd.f32 %v2531, %v2691
  %v2693 = vpop.f32.mrf.mxu0
  %v2694 = vadd.f32 %v2533, %v2693
  %2695 = vmatprep.mubr.f32.mxu0 %v1828
  %2696 = vmatmul.mubr.f32.gmra.mxu0 %v1827
  %v2697 = vpop.f32.mrf.mxu0
  %v2698 = vadd.f32 %v2537, %v2697
  %v2699 = vpop.f32.mrf.mxu0
  %v2700 = vadd.f32 %v2539, %v2699
  %2701 = vmatprep.mubr.f32.mxu0 %v1832
  %2702 = vmatmul.mubr.f32.gmra.mxu0 %v1831
  %v2703 = vpop.f32.mrf.mxu0
  %v2704 = vadd.f32 %v2543, %v2703
  %v2705 = vpop.f32.mrf.mxu0
  %v2706 = vadd.f32 %v2545, %v2705
  %2707 = vmatprep.mubr.f32.mxu0 %v1836
  %2708 = vmatmul.mubr.f32.gmra.mxu0 %v1835
  %v2709 = vpop.f32.mrf.mxu0
  %v2710 = vadd.f32 %v2549, %v2709
  %v2711 = vpop.f32.mrf.mxu0
  %v2712 = vadd.f32 %v2551, %v2711
  %2713 = vmatprep.mubr.f32.mxu0 %v1840
  %2714 = vmatmul.mubr.f32.gmra.mxu0 %v1839
  %v2715 = vpop.f32.mrf.mxu0
  %v2716 = vadd.f32 %v2555, %v2715
  %v2717 = vpop.f32.mrf.mxu0
  %v2718 = vadd.f32 %v2557, %v2717
  %2719 = vmatprep.mubr.f32.mxu0 %v1844
  %2720 = vmatmul.mubr.f32.gmra.mxu0 %v1843
  %v2721 = vpop.f32.mrf.mxu0
  %v2722 = vadd.f32 %v2561, %v2721
  %v2723 = vpop.f32.mrf.mxu0
  %v2724 = vadd.f32 %v2563, %v2723
  %2725 = vmatprep.mubr.f32.mxu0 %v1848
  %2726 = vmatmul.mubr.f32.gmra.mxu0 %v1847
  %v2727 = vpop.f32.mrf.mxu0
  %v2728 = vadd.f32 %v2567, %v2727
  %v2729 = vpop.f32.mrf.mxu0
  %v2730 = vadd.f32 %v2569, %v2729
  %2731 = vmatprep.mubr.f32.mxu0 %v1852
  %2732 = vmatmul.mubr.f32.gmra.mxu0 %v1851
  %v2733 = vpop.f32.mrf.mxu0
  %v2734 = vadd.f32 %v2573, %v2733
  %v2735 = vpop.f32.mrf.mxu0
  %v2736 = vadd.f32 %v2575, %v2735
  %2737 = vmatprep.mubr.f32.mxu0 %v1856
  %2738 = vmatmul.mubr.f32.gmra.mxu0 %v1855
  %v2739 = vpop.f32.mrf.mxu0
  %v2740 = vadd.f32 %v2579, %v2739
  %v2741 = vpop.f32.mrf.mxu0
  %v2742 = vadd.f32 %v2581, %v2741
  %2743 = vmatprep.mubr.f32.mxu0 %v1860
  %2744 = vmatmul.mubr.f32.gmra.mxu0 %v1859
  %v2745 = vpop.f32.mrf.mxu0
  %v2746 = vadd.f32 %v2585, %v2745
  %v2747 = vpop.f32.mrf.mxu0
  %v2748 = vadd.f32 %v2587, %v2747
  %2749 = vmatprep.mubr.f32.mxu0 %v1864
  %2750 = vmatmul.mubr.f32.gmra.mxu0 %v1863
  %v2751 = vpop.f32.mrf.mxu0
  %v2752 = vadd.f32 %v2591, %v2751
  %v2753 = vpop.f32.mrf.mxu0
  %v2754 = vadd.f32 %v2593, %v2753
  %2755 = vmatprep.mubr.f32.mxu0 %v1868
  %2756 = vmatmul.mubr.f32.gmra.mxu0 %v1867
  %v2757 = vpop.f32.mrf.mxu0
  %v2758 = vadd.f32 %v2597, %v2757
  %v2759 = vpop.f32.mrf.mxu0
  %v2760 = vadd.f32 %v2599, %v2759
  %2761 = vmatprep.mubr.f32.mxu0 %v1872
  %2762 = vmatmul.mubr.f32.gmra.mxu0 %v1871
  %v2763 = vpop.f32.mrf.mxu0
  %v2764 = vadd.f32 %v2603, %v2763
  %v2765 = vpop.f32.mrf.mxu0
  %v2766 = vadd.f32 %v2605, %v2765
  %2767 = vmatprep.mubr.f32.mxu0 %v1876
  %2768 = vmatmul.mubr.f32.gmra.mxu0 %v1875
  %v2769 = vpop.f32.mrf.mxu0
  %v2770 = vadd.f32 %v2609, %v2769
  %v2771 = vpop.f32.mrf.mxu0
  %v2772 = vadd.f32 %v2611, %v2771
  %2773 = vmatprep.mubr.f32.mxu0 %v1880
  %2774 = vmatmul.mubr.f32.gmra.mxu0 %v1879
  %v2775 = vpop.f32.mrf.mxu0
  %v2776 = vadd.f32 %v2615, %v2775
  %v2777 = vpop.f32.mrf.mxu0
  %v2778 = vadd.f32 %v2617, %v2777
  %2779 = vmatprep.mubr.f32.mxu0 %v1884
  %2780 = vmatmul.mubr.f32.gmra.mxu0 %v1883
  %v2781 = vpop.f32.mrf.mxu0
  %v2782 = vadd.f32 %v2621, %v2781
  %v2783 = vpop.f32.mrf.mxu0
  %v2784 = vadd.f32 %v2623, %v2783
  %2785 = vdwg.mxu0
  %2786 = vmatprep.subr.mxu0 %v1626
  %2787 = vmatpush1.msra.mxu0 %v1625
  %2788 = vmatprep.subr.mxu0 %v1622
  %2789 = vmatpush1.msra.mxu0 %v1621
  %2790 = vmatprep.subr.mxu0 %v1618
  %2791 = vmatpush1.msra.mxu0 %v1617
  %2792 = vmatprep.subr.mxu0 %v1614
  %2793 = vmatpush1.msra.mxu0 %v1613
  %2794 = vmatprep.subr.mxu0 %v1610
  %2795 = vmatpush1.msra.mxu0 %v1609
  %2796 = vmatprep.subr.mxu0 %v1606
  %2797 = vmatpush1.msra.mxu0 %v1605
  %2798 = vmatprep.subr.mxu0 %v1602
  %2799 = vmatpush1.msra.mxu0 %v1601
  %2800 = vmatprep.subr.mxu0 %v1598
  %2801 = vmatpush1.msra.mxu0 %v1597
  %2802 = vmatprep.subr.mxu0 %v1594
  %2803 = vmatpush1.msra.mxu0 %v1593
  %2804 = vmatprep.subr.mxu0 %v1590
  %2805 = vmatpush1.msra.mxu0 %v1589
  %2806 = vmatprep.subr.mxu0 %v1586
  %2807 = vmatpush1.msra.mxu0 %v1585
  %2808 = vmatprep.subr.mxu0 %v1582
  %2809 = vmatpush1.msra.mxu0 %v1581
  %2810 = vmatprep.subr.mxu0 %v1578
  %2811 = vmatpush1.msra.mxu0 %v1577
  %2812 = vmatprep.subr.mxu0 %v1574
  %2813 = vmatpush1.msra.mxu0 %v1573
  %2814 = vmatprep.subr.mxu0 %v1570
  %2815 = vmatpush1.msra.mxu0 %v1569
  %2816 = vmatprep.subr.mxu0 %v1566
  %2817 = vmatpush1.msra.mxu0 %v1565
  %2818 = vmatprep.subr.mxu0 %v1690
  %2819 = vmatpush2.msra.mxu0 %v1689
  %2820 = vmatprep.subr.mxu0 %v1686
  %2821 = vmatpush2.msra.mxu0 %v1685
  %2822 = vmatprep.subr.mxu0 %v1682
  %2823 = vmatpush2.msra.mxu0 %v1681
  %2824 = vmatprep.subr.mxu0 %v1678
  %2825 = vmatpush2.msra.mxu0 %v1677
  %2826 = vmatprep.subr.mxu0 %v1674
  %2827 = vmatpush2.msra.mxu0 %v1673
  %2828 = vmatprep.subr.mxu0 %v1670
  %2829 = vmatpush2.msra.mxu0 %v1669
  %2830 = vmatprep.subr.mxu0 %v1666
  %2831 = vmatpush2.msra.mxu0 %v1665
  %2832 = vmatprep.subr.mxu0 %v1662
  %2833 = vmatpush2.msra.mxu0 %v1661
  %2834 = vmatprep.subr.mxu0 %v1658
  %2835 = vmatpush2.msra.mxu0 %v1657
  %2836 = vmatprep.subr.mxu0 %v1654
  %2837 = vmatpush2.msra.mxu0 %v1653
  %2838 = vmatprep.subr.mxu0 %v1650
  %2839 = vmatpush2.msra.mxu0 %v1649
  %2840 = vmatprep.subr.mxu0 %v1646
  %2841 = vmatpush2.msra.mxu0 %v1645
  %2842 = vmatprep.subr.mxu0 %v1642
  %2843 = vmatpush2.msra.mxu0 %v1641
  %2844 = vmatprep.subr.mxu0 %v1638
  %2845 = vmatpush2.msra.mxu0 %v1637
  %2846 = vmatprep.subr.mxu0 %v1634
  %2847 = vmatpush2.msra.mxu0 %v1633
  %2848 = vmatprep.subr.mxu0 %v1630
  %2849 = vmatpush2.msra.mxu0 %v1629
  %2850 = vmatprep.mubr.f32.mxu0 %v1502
  %2851 = vmatmul.mubr.f32.gmra.mxu0 %v1501
  %v2852 = vpop.f32.mrf.mxu0
  %v2853 = vadd.f32 %v2370, %v2852
  %v2854 = vpop.f32.mrf.mxu0
  %v2855 = vadd.f32 %v2372, %v2854
  %2856 = vmatprep.mubr.f32.mxu0 %v1506
  %2857 = vmatmul.mubr.f32.gmra.mxu0 %v1505
  %v2858 = vpop.f32.mrf.mxu0
  %v2859 = vadd.f32 %v2376, %v2858
  %v2860 = vpop.f32.mrf.mxu0
  %v2861 = vadd.f32 %v2378, %v2860
  %2862 = vmatprep.mubr.f32.mxu0 %v1510
  %2863 = vmatmul.mubr.f32.gmra.mxu0 %v1509
  %v2864 = vpop.f32.mrf.mxu0
  %v2865 = vadd.f32 %v2382, %v2864
  %v2866 = vpop.f32.mrf.mxu0
  %v2867 = vadd.f32 %v2384, %v2866
  %2868 = vmatprep.mubr.f32.mxu0 %v1514
  %2869 = vmatmul.mubr.f32.gmra.mxu0 %v1513
  %v2870 = vpop.f32.mrf.mxu0
  %v2871 = vadd.f32 %v2388, %v2870
  %v2872 = vpop.f32.mrf.mxu0
  %v2873 = vadd.f32 %v2390, %v2872
  %2874 = vmatprep.mubr.f32.mxu0 %v1518
  %2875 = vmatmul.mubr.f32.gmra.mxu0 %v1517
  %v2876 = vpop.f32.mrf.mxu0
  %v2877 = vadd.f32 %v2394, %v2876
  %v2878 = vpop.f32.mrf.mxu0
  %v2879 = vadd.f32 %v2396, %v2878
  %2880 = vmatprep.mubr.f32.mxu0 %v1522
  %2881 = vmatmul.mubr.f32.gmra.mxu0 %v1521
  %v2882 = vpop.f32.mrf.mxu0
  %v2883 = vadd.f32 %v2400, %v2882
  %v2884 = vpop.f32.mrf.mxu0
  %v2885 = vadd.f32 %v2402, %v2884
  %2886 = vmatprep.mubr.f32.mxu0 %v1526
  %2887 = vmatmul.mubr.f32.gmra.mxu0 %v1525
  %v2888 = vpop.f32.mrf.mxu0
  %v2889 = vadd.f32 %v2406, %v2888
  %v2890 = vpop.f32.mrf.mxu0
  %v2891 = vadd.f32 %v2408, %v2890
  %2892 = vmatprep.mubr.f32.mxu0 %v1530
  %2893 = vmatmul.mubr.f32.gmra.mxu0 %v1529
  %v2894 = vpop.f32.mrf.mxu0
  %v2895 = vadd.f32 %v2412, %v2894
  %v2896 = vpop.f32.mrf.mxu0
  %v2897 = vadd.f32 %v2414, %v2896
  %2898 = vmatprep.mubr.f32.mxu0 %v1534
  %2899 = vmatmul.mubr.f32.gmra.mxu0 %v1533
  %v2900 = vpop.f32.mrf.mxu0
  %v2901 = vadd.f32 %v2418, %v2900
  %v2902 = vpop.f32.mrf.mxu0
  %v2903 = vadd.f32 %v2420, %v2902
  %2904 = vmatprep.mubr.f32.mxu0 %v1538
  %2905 = vmatmul.mubr.f32.gmra.mxu0 %v1537
  %v2906 = vpop.f32.mrf.mxu0
  %v2907 = vadd.f32 %v2424, %v2906
  %v2908 = vpop.f32.mrf.mxu0
  %v2909 = vadd.f32 %v2426, %v2908
  %2910 = vmatprep.mubr.f32.mxu0 %v1542
  %2911 = vmatmul.mubr.f32.gmra.mxu0 %v1541
  %v2912 = vpop.f32.mrf.mxu0
  %v2913 = vadd.f32 %v2430, %v2912
  %v2914 = vpop.f32.mrf.mxu0
  %v2915 = vadd.f32 %v2432, %v2914
  %2916 = vmatprep.mubr.f32.mxu0 %v1546
  %2917 = vmatmul.mubr.f32.gmra.mxu0 %v1545
  %v2918 = vpop.f32.mrf.mxu0
  %v2919 = vadd.f32 %v2436, %v2918
  %v2920 = vpop.f32.mrf.mxu0
  %v2921 = vadd.f32 %v2438, %v2920
  %2922 = vmatprep.mubr.f32.mxu0 %v1550
  %2923 = vmatmul.mubr.f32.gmra.mxu0 %v1549
  %v2924 = vpop.f32.mrf.mxu0
  %v2925 = vadd.f32 %v2442, %v2924
  %v2926 = vpop.f32.mrf.mxu0
  %v2927 = vadd.f32 %v2444, %v2926
  %2928 = vmatprep.mubr.f32.mxu0 %v1554
  %2929 = vmatmul.mubr.f32.gmra.mxu0 %v1553
  %v2930 = vpop.f32.mrf.mxu0
  %v2931 = vadd.f32 %v2448, %v2930
  %v2932 = vpop.f32.mrf.mxu0
  %v2933 = vadd.f32 %v2450, %v2932
  %2934 = vmatprep.mubr.f32.mxu0 %v1558
  %2935 = vmatmul.mubr.f32.gmra.mxu0 %v1557
  %v2936 = vpop.f32.mrf.mxu0
  %v2937 = vadd.f32 %v2454, %v2936
  %v2938 = vpop.f32.mrf.mxu0
  %v2939 = vadd.f32 %v2456, %v2938
  %2940 = vmatprep.mubr.f32.mxu0 %v1562
  %2941 = vmatmul.mubr.f32.gmra.mxu0 %v1561
  %v2942 = vpop.f32.mrf.mxu0
  %v2943 = vadd.f32 %v2460, %v2942
  %v2944 = vpop.f32.mrf.mxu0
  %v2945 = vadd.f32 %v2462, %v2944
  %2946 = vdwg.mxu0
  %2947 = vmatprep.subr.mxu0 %v1754
  %2948 = vmatpush1.msra.mxu0 %v1753
  %2949 = vmatprep.subr.mxu0 %v1750
  %2950 = vmatpush1.msra.mxu0 %v1749
  %2951 = vmatprep.subr.mxu0 %v1746
  %2952 = vmatpush1.msra.mxu0 %v1745
  %2953 = vmatprep.subr.mxu0 %v1742
  %2954 = vmatpush1.msra.mxu0 %v1741
  %2955 = vmatprep.subr.mxu0 %v1738
  %2956 = vmatpush1.msra.mxu0 %v1737
  %2957 = vmatprep.subr.mxu0 %v1734
  %2958 = vmatpush1.msra.mxu0 %v1733
  %2959 = vmatprep.subr.mxu0 %v1730
  %2960 = vmatpush1.msra.mxu0 %v1729
  %2961 = vmatprep.subr.mxu0 %v1726
  %2962 = vmatpush1.msra.mxu0 %v1725
  %2963 = vmatprep.subr.mxu0 %v1722
  %2964 = vmatpush1.msra.mxu0 %v1721
  %2965 = vmatprep.subr.mxu0 %v1718
  %2966 = vmatpush1.msra.mxu0 %v1717
  %2967 = vmatprep.subr.mxu0 %v1714
  %2968 = vmatpush1.msra.mxu0 %v1713
  %2969 = vmatprep.subr.mxu0 %v1710
  %2970 = vmatpush1.msra.mxu0 %v1709
  %2971 = vmatprep.subr.mxu0 %v1706
  %2972 = vmatpush1.msra.mxu0 %v1705
  %2973 = vmatprep.subr.mxu0 %v1702
  %2974 = vmatpush1.msra.mxu0 %v1701
  %2975 = vmatprep.subr.mxu0 %v1698
  %2976 = vmatpush1.msra.mxu0 %v1697
  %2977 = vmatprep.subr.mxu0 %v1694
  %2978 = vmatpush1.msra.mxu0 %v1693
  %2979 = vmatprep.subr.mxu0 %v1818
  %2980 = vmatpush2.msra.mxu0 %v1817
  %2981 = vmatprep.subr.mxu0 %v1814
  %2982 = vmatpush2.msra.mxu0 %v1813
  %2983 = vmatprep.subr.mxu0 %v1810
  %2984 = vmatpush2.msra.mxu0 %v1809
  %2985 = vmatprep.subr.mxu0 %v1806
  %2986 = vmatpush2.msra.mxu0 %v1805
  %2987 = vmatprep.subr.mxu0 %v1802
  %2988 = vmatpush2.msra.mxu0 %v1801
  %2989 = vmatprep.subr.mxu0 %v1798
  %2990 = vmatpush2.msra.mxu0 %v1797
  %2991 = vmatprep.subr.mxu0 %v1794
  %2992 = vmatpush2.msra.mxu0 %v1793
  %2993 = vmatprep.subr.mxu0 %v1790
  %2994 = vmatpush2.msra.mxu0 %v1789
  %2995 = vmatprep.subr.mxu0 %v1786
  %2996 = vmatpush2.msra.mxu0 %v1785
  %2997 = vmatprep.subr.mxu0 %v1782
  %2998 = vmatpush2.msra.mxu0 %v1781
  %2999 = vmatprep.subr.mxu0 %v1778
  %3000 = vmatpush2.msra.mxu0 %v1777
  %3001 = vmatprep.subr.mxu0 %v1774
  %3002 = vmatpush2.msra.mxu0 %v1773
  %3003 = vmatprep.subr.mxu0 %v1770
  %3004 = vmatpush2.msra.mxu0 %v1769
  %3005 = vmatprep.subr.mxu0 %v1766
  %3006 = vmatpush2.msra.mxu0 %v1765
  %3007 = vmatprep.subr.mxu0 %v1762
  %3008 = vmatpush2.msra.mxu0 %v1761
  %3009 = vmatprep.subr.mxu0 %v1758
  %3010 = vmatpush2.msra.mxu0 %v1757
  %3011 = vmatprep.mubr.f32.mxu0 %v1504
  %3012 = vmatmul.mubr.f32.gmra.mxu0 %v1503
  %v3013 = vpop.f32.mrf.mxu0
  %v3014 = vadd.f32 %v2853, %v3013
  %v3015 = vpop.f32.mrf.mxu0
  %v3016 = vadd.f32 %v2855, %v3015
  %3017 = vmatprep.mubr.f32.mxu0 %v1508
  %3018 = vmatmul.mubr.f32.gmra.mxu0 %v1507
  %v3019 = vpop.f32.mrf.mxu0
  %v3020 = vadd.f32 %v2859, %v3019
  %v3021 = vpop.f32.mrf.mxu0
  %v3022 = vadd.f32 %v2861, %v3021
  %3023 = vmatprep.mubr.f32.mxu0 %v1512
  %3024 = vmatmul.mubr.f32.gmra.mxu0 %v1511
  %v3025 = vpop.f32.mrf.mxu0
  %v3026 = vadd.f32 %v2865, %v3025
  %v3027 = vpop.f32.mrf.mxu0
  %v3028 = vadd.f32 %v2867, %v3027
  %3029 = vmatprep.mubr.f32.mxu0 %v1516
  %3030 = vmatmul.mubr.f32.gmra.mxu0 %v1515
  %v3031 = vpop.f32.mrf.mxu0
  %v3032 = vadd.f32 %v2871, %v3031
  %v3033 = vpop.f32.mrf.mxu0
  %v3034 = vadd.f32 %v2873, %v3033
  %3035 = vmatprep.mubr.f32.mxu0 %v1520
  %3036 = vmatmul.mubr.f32.gmra.mxu0 %v1519
  %v3037 = vpop.f32.mrf.mxu0
  %v3038 = vadd.f32 %v2877, %v3037
  %v3039 = vpop.f32.mrf.mxu0
  %v3040 = vadd.f32 %v2879, %v3039
  %3041 = vmatprep.mubr.f32.mxu0 %v1524
  %3042 = vmatmul.mubr.f32.gmra.mxu0 %v1523
  %v3043 = vpop.f32.mrf.mxu0
  %v3044 = vadd.f32 %v2883, %v3043
  %v3045 = vpop.f32.mrf.mxu0
  %v3046 = vadd.f32 %v2885, %v3045
  %3047 = vmatprep.mubr.f32.mxu0 %v1528
  %3048 = vmatmul.mubr.f32.gmra.mxu0 %v1527
  %v3049 = vpop.f32.mrf.mxu0
  %v3050 = vadd.f32 %v2889, %v3049
  %v3051 = vpop.f32.mrf.mxu0
  %v3052 = vadd.f32 %v2891, %v3051
  %3053 = vmatprep.mubr.f32.mxu0 %v1532
  %3054 = vmatmul.mubr.f32.gmra.mxu0 %v1531
  %v3055 = vpop.f32.mrf.mxu0
  %v3056 = vadd.f32 %v2895, %v3055
  %v3057 = vpop.f32.mrf.mxu0
  %v3058 = vadd.f32 %v2897, %v3057
  %3059 = vmatprep.mubr.f32.mxu0 %v1536
  %3060 = vmatmul.mubr.f32.gmra.mxu0 %v1535
  %v3061 = vpop.f32.mrf.mxu0
  %v3062 = vadd.f32 %v2901, %v3061
  %v3063 = vpop.f32.mrf.mxu0
  %v3064 = vadd.f32 %v2903, %v3063
  %3065 = vmatprep.mubr.f32.mxu0 %v1540
  %3066 = vmatmul.mubr.f32.gmra.mxu0 %v1539
  %v3067 = vpop.f32.mrf.mxu0
  %v3068 = vadd.f32 %v2907, %v3067
  %v3069 = vpop.f32.mrf.mxu0
  %v3070 = vadd.f32 %v2909, %v3069
  %3071 = vmatprep.mubr.f32.mxu0 %v1544
  %3072 = vmatmul.mubr.f32.gmra.mxu0 %v1543
  %v3073 = vpop.f32.mrf.mxu0
  %v3074 = vadd.f32 %v2913, %v3073
  %v3075 = vpop.f32.mrf.mxu0
  %v3076 = vadd.f32 %v2915, %v3075
  %3077 = vmatprep.mubr.f32.mxu0 %v1548
  %3078 = vmatmul.mubr.f32.gmra.mxu0 %v1547
  %v3079 = vpop.f32.mrf.mxu0
  %v3080 = vadd.f32 %v2919, %v3079
  %v3081 = vpop.f32.mrf.mxu0
  %v3082 = vadd.f32 %v2921, %v3081
  %3083 = vmatprep.mubr.f32.mxu0 %v1552
  %3084 = vmatmul.mubr.f32.gmra.mxu0 %v1551
  %v3085 = vpop.f32.mrf.mxu0
  %v3086 = vadd.f32 %v2925, %v3085
  %v3087 = vpop.f32.mrf.mxu0
  %v3088 = vadd.f32 %v2927, %v3087
  %3089 = vmatprep.mubr.f32.mxu0 %v1556
  %3090 = vmatmul.mubr.f32.gmra.mxu0 %v1555
  %v3091 = vpop.f32.mrf.mxu0
  %v3092 = vadd.f32 %v2931, %v3091
  %v3093 = vpop.f32.mrf.mxu0
  %v3094 = vadd.f32 %v2933, %v3093
  %3095 = vmatprep.mubr.f32.mxu0 %v1560
  %3096 = vmatmul.mubr.f32.gmra.mxu0 %v1559
  %v3097 = vpop.f32.mrf.mxu0
  %v3098 = vadd.f32 %v2937, %v3097
  %v3099 = vpop.f32.mrf.mxu0
  %v3100 = vadd.f32 %v2939, %v3099
  %3101 = vmatprep.mubr.f32.mxu0 %v1564
  %3102 = vmatmul.mubr.f32.gmra.mxu0 %v1563
  %v3103 = vpop.f32.mrf.mxu0
  %v3104 = vadd.f32 %v2943, %v3103
  %v3105 = vpop.f32.mrf.mxu0
  %v3106 = vadd.f32 %v2945, %v3105
  %3107 = vdwg.mxu0
  %3108 = vmatprep.subr.mxu0 %v1628
  %3109 = vmatpush1.msra.mxu0 %v1627
  %3110 = vmatprep.subr.mxu0 %v1624
  %3111 = vmatpush1.msra.mxu0 %v1623
  %3112 = vmatprep.subr.mxu0 %v1620
  %3113 = vmatpush1.msra.mxu0 %v1619
  %3114 = vmatprep.subr.mxu0 %v1616
  %3115 = vmatpush1.msra.mxu0 %v1615
  %3116 = vmatprep.subr.mxu0 %v1612
  %3117 = vmatpush1.msra.mxu0 %v1611
  %3118 = vmatprep.subr.mxu0 %v1608
  %3119 = vmatpush1.msra.mxu0 %v1607
  %3120 = vmatprep.subr.mxu0 %v1604
  %3121 = vmatpush1.msra.mxu0 %v1603
  %3122 = vmatprep.subr.mxu0 %v1600
  %3123 = vmatpush1.msra.mxu0 %v1599
  %3124 = vmatprep.subr.mxu0 %v1596
  %3125 = vmatpush1.msra.mxu0 %v1595
  %3126 = vmatprep.subr.mxu0 %v1592
  %3127 = vmatpush1.msra.mxu0 %v1591
  %3128 = vmatprep.subr.mxu0 %v1588
  %3129 = vmatpush1.msra.mxu0 %v1587
  %3130 = vmatprep.subr.mxu0 %v1584
  %3131 = vmatpush1.msra.mxu0 %v1583
  %3132 = vmatprep.subr.mxu0 %v1580
  %3133 = vmatpush1.msra.mxu0 %v1579
  %3134 = vmatprep.subr.mxu0 %v1576
  %3135 = vmatpush1.msra.mxu0 %v1575
  %3136 = vmatprep.subr.mxu0 %v1572
  %3137 = vmatpush1.msra.mxu0 %v1571
  %3138 = vmatprep.subr.mxu0 %v1568
  %3139 = vmatpush1.msra.mxu0 %v1567
  %3140 = vmatprep.subr.mxu0 %v1692
  %3141 = vmatpush2.msra.mxu0 %v1691
  %3142 = vmatprep.subr.mxu0 %v1688
  %3143 = vmatpush2.msra.mxu0 %v1687
  %3144 = vmatprep.subr.mxu0 %v1684
  %3145 = vmatpush2.msra.mxu0 %v1683
  %3146 = vmatprep.subr.mxu0 %v1680
  %3147 = vmatpush2.msra.mxu0 %v1679
  %3148 = vmatprep.subr.mxu0 %v1676
  %3149 = vmatpush2.msra.mxu0 %v1675
  %3150 = vmatprep.subr.mxu0 %v1672
  %3151 = vmatpush2.msra.mxu0 %v1671
  %3152 = vmatprep.subr.mxu0 %v1668
  %3153 = vmatpush2.msra.mxu0 %v1667
  %3154 = vmatprep.subr.mxu0 %v1664
  %3155 = vmatpush2.msra.mxu0 %v1663
  %3156 = vmatprep.subr.mxu0 %v1660
  %3157 = vmatpush2.msra.mxu0 %v1659
  %3158 = vmatprep.subr.mxu0 %v1656
  %3159 = vmatpush2.msra.mxu0 %v1655
  %3160 = vmatprep.subr.mxu0 %v1652
  %3161 = vmatpush2.msra.mxu0 %v1651
  %3162 = vmatprep.subr.mxu0 %v1648
  %3163 = vmatpush2.msra.mxu0 %v1647
  %3164 = vmatprep.subr.mxu0 %v1644
  %3165 = vmatpush2.msra.mxu0 %v1643
  %3166 = vmatprep.subr.mxu0 %v1640
  %3167 = vmatpush2.msra.mxu0 %v1639
  %3168 = vmatprep.subr.mxu0 %v1636
  %3169 = vmatpush2.msra.mxu0 %v1635
  %3170 = vmatprep.subr.mxu0 %v1632
  %3171 = vmatpush2.msra.mxu0 %v1631
  %3172 = vmatprep.mubr.f32.mxu0 %v1502
  %3173 = vmatmul.mubr.f32.gmra.mxu0 %v1501
  %v3174 = vpop.f32.mrf.mxu0
  %v3175 = vadd.f32 %v2692, %v3174
  %v3176 = vpop.f32.mrf.mxu0
  %v3177 = vadd.f32 %v2694, %v3176
  %3178 = vmatprep.mubr.f32.mxu0 %v1506
  %3179 = vmatmul.mubr.f32.gmra.mxu0 %v1505
  %v3180 = vpop.f32.mrf.mxu0
  %v3181 = vadd.f32 %v2698, %v3180
  %v3182 = vpop.f32.mrf.mxu0
  %v3183 = vadd.f32 %v2700, %v3182
  %3184 = vmatprep.mubr.f32.mxu0 %v1510
  %3185 = vmatmul.mubr.f32.gmra.mxu0 %v1509
  %v3186 = vpop.f32.mrf.mxu0
  %v3187 = vadd.f32 %v2704, %v3186
  %v3188 = vpop.f32.mrf.mxu0
  %v3189 = vadd.f32 %v2706, %v3188
  %3190 = vmatprep.mubr.f32.mxu0 %v1514
  %3191 = vmatmul.mubr.f32.gmra.mxu0 %v1513
  %v3192 = vpop.f32.mrf.mxu0
  %v3193 = vadd.f32 %v2710, %v3192
  %v3194 = vpop.f32.mrf.mxu0
  %v3195 = vadd.f32 %v2712, %v3194
  %3196 = vmatprep.mubr.f32.mxu0 %v1518
  %3197 = vmatmul.mubr.f32.gmra.mxu0 %v1517
  %v3198 = vpop.f32.mrf.mxu0
  %v3199 = vadd.f32 %v2716, %v3198
  %v3200 = vpop.f32.mrf.mxu0
  %v3201 = vadd.f32 %v2718, %v3200
  %3202 = vmatprep.mubr.f32.mxu0 %v1522
  %3203 = vmatmul.mubr.f32.gmra.mxu0 %v1521
  %v3204 = vpop.f32.mrf.mxu0
  %v3205 = vadd.f32 %v2722, %v3204
  %v3206 = vpop.f32.mrf.mxu0
  %v3207 = vadd.f32 %v2724, %v3206
  %3208 = vmatprep.mubr.f32.mxu0 %v1526
  %3209 = vmatmul.mubr.f32.gmra.mxu0 %v1525
  %v3210 = vpop.f32.mrf.mxu0
  %v3211 = vadd.f32 %v2728, %v3210
  %v3212 = vpop.f32.mrf.mxu0
  %v3213 = vadd.f32 %v2730, %v3212
  %3214 = vmatprep.mubr.f32.mxu0 %v1530
  %3215 = vmatmul.mubr.f32.gmra.mxu0 %v1529
  %v3216 = vpop.f32.mrf.mxu0
  %v3217 = vadd.f32 %v2734, %v3216
  %v3218 = vpop.f32.mrf.mxu0
  %v3219 = vadd.f32 %v2736, %v3218
  %3220 = vmatprep.mubr.f32.mxu0 %v1534
  %3221 = vmatmul.mubr.f32.gmra.mxu0 %v1533
  %v3222 = vpop.f32.mrf.mxu0
  %v3223 = vadd.f32 %v2740, %v3222
  %v3224 = vpop.f32.mrf.mxu0
  %v3225 = vadd.f32 %v2742, %v3224
  %3226 = vmatprep.mubr.f32.mxu0 %v1538
  %3227 = vmatmul.mubr.f32.gmra.mxu0 %v1537
  %v3228 = vpop.f32.mrf.mxu0
  %v3229 = vadd.f32 %v2746, %v3228
  %v3230 = vpop.f32.mrf.mxu0
  %v3231 = vadd.f32 %v2748, %v3230
  %3232 = vmatprep.mubr.f32.mxu0 %v1542
  %3233 = vmatmul.mubr.f32.gmra.mxu0 %v1541
  %v3234 = vpop.f32.mrf.mxu0
  %v3235 = vadd.f32 %v2752, %v3234
  %v3236 = vpop.f32.mrf.mxu0
  %v3237 = vadd.f32 %v2754, %v3236
  %3238 = vmatprep.mubr.f32.mxu0 %v1546
  %3239 = vmatmul.mubr.f32.gmra.mxu0 %v1545
  %v3240 = vpop.f32.mrf.mxu0
  %v3241 = vadd.f32 %v2758, %v3240
  %v3242 = vpop.f32.mrf.mxu0
  %v3243 = vadd.f32 %v2760, %v3242
  %3244 = vmatprep.mubr.f32.mxu0 %v1550
  %3245 = vmatmul.mubr.f32.gmra.mxu0 %v1549
  %v3246 = vpop.f32.mrf.mxu0
  %v3247 = vadd.f32 %v2764, %v3246
  %v3248 = vpop.f32.mrf.mxu0
  %v3249 = vadd.f32 %v2766, %v3248
  %3250 = vmatprep.mubr.f32.mxu0 %v1554
  %3251 = vmatmul.mubr.f32.gmra.mxu0 %v1553
  %v3252 = vpop.f32.mrf.mxu0
  %v3253 = vadd.f32 %v2770, %v3252
  %v3254 = vpop.f32.mrf.mxu0
  %v3255 = vadd.f32 %v2772, %v3254
  %3256 = vmatprep.mubr.f32.mxu0 %v1558
  %3257 = vmatmul.mubr.f32.gmra.mxu0 %v1557
  %v3258 = vpop.f32.mrf.mxu0
  %v3259 = vadd.f32 %v2776, %v3258
  %v3260 = vpop.f32.mrf.mxu0
  %v3261 = vadd.f32 %v2778, %v3260
  %3262 = vmatprep.mubr.f32.mxu0 %v1562
  %3263 = vmatmul.mubr.f32.gmra.mxu0 %v1561
  %v3264 = vpop.f32.mrf.mxu0
  %v3265 = vadd.f32 %v2782, %v3264
  %v3266 = vpop.f32.mrf.mxu0
  %v3267 = vadd.f32 %v2784, %v3266
  %3268 = vdwg.mxu0
  %3269 = vmatprep.subr.mxu0 %v1756
  %3270 = vmatpush1.msra.mxu0 %v1755
  %3271 = vmatprep.subr.mxu0 %v1752
  %3272 = vmatpush1.msra.mxu0 %v1751
  %3273 = vmatprep.subr.mxu0 %v1748
  %3274 = vmatpush1.msra.mxu0 %v1747
  %3275 = vmatprep.subr.mxu0 %v1744
  %3276 = vmatpush1.msra.mxu0 %v1743
  %3277 = vmatprep.subr.mxu0 %v1740
  %3278 = vmatpush1.msra.mxu0 %v1739
  %3279 = vmatprep.subr.mxu0 %v1736
  %3280 = vmatpush1.msra.mxu0 %v1735
  %3281 = vmatprep.subr.mxu0 %v1732
  %3282 = vmatpush1.msra.mxu0 %v1731
  %3283 = vmatprep.subr.mxu0 %v1728
  %3284 = vmatpush1.msra.mxu0 %v1727
  %3285 = vmatprep.subr.mxu0 %v1724
  %3286 = vmatpush1.msra.mxu0 %v1723
  %3287 = vmatprep.subr.mxu0 %v1720
  %3288 = vmatpush1.msra.mxu0 %v1719
  %3289 = vmatprep.subr.mxu0 %v1716
  %3290 = vmatpush1.msra.mxu0 %v1715
  %3291 = vmatprep.subr.mxu0 %v1712
  %3292 = vmatpush1.msra.mxu0 %v1711
  %3293 = vmatprep.subr.mxu0 %v1708
  %3294 = vmatpush1.msra.mxu0 %v1707
  %3295 = vmatprep.subr.mxu0 %v1704
  %3296 = vmatpush1.msra.mxu0 %v1703
  %3297 = vmatprep.subr.mxu0 %v1700
  %3298 = vmatpush1.msra.mxu0 %v1699
  %3299 = vmatprep.subr.mxu0 %v1696
  %3300 = vmatpush1.msra.mxu0 %v1695
  %3301 = vmatprep.subr.mxu0 %v1820
  %3302 = vmatpush2.msra.mxu0 %v1819
  %3303 = vmatprep.subr.mxu0 %v1816
  %3304 = vmatpush2.msra.mxu0 %v1815
  %3305 = vmatprep.subr.mxu0 %v1812
  %3306 = vmatpush2.msra.mxu0 %v1811
  %3307 = vmatprep.subr.mxu0 %v1808
  %3308 = vmatpush2.msra.mxu0 %v1807
  %3309 = vmatprep.subr.mxu0 %v1804
  %3310 = vmatpush2.msra.mxu0 %v1803
  %3311 = vmatprep.subr.mxu0 %v1800
  %3312 = vmatpush2.msra.mxu0 %v1799
  %3313 = vmatprep.subr.mxu0 %v1796
  %3314 = vmatpush2.msra.mxu0 %v1795
  %3315 = vmatprep.subr.mxu0 %v1792
  %3316 = vmatpush2.msra.mxu0 %v1791
  %3317 = vmatprep.subr.mxu0 %v1788
  %3318 = vmatpush2.msra.mxu0 %v1787
  %3319 = vmatprep.subr.mxu0 %v1784
  %3320 = vmatpush2.msra.mxu0 %v1783
  %3321 = vmatprep.subr.mxu0 %v1780
  %3322 = vmatpush2.msra.mxu0 %v1779
  %3323 = vmatprep.subr.mxu0 %v1776
  %3324 = vmatpush2.msra.mxu0 %v1775
  %3325 = vmatprep.subr.mxu0 %v1772
  %3326 = vmatpush2.msra.mxu0 %v1771
  %3327 = vmatprep.subr.mxu0 %v1768
  %3328 = vmatpush2.msra.mxu0 %v1767
  %3329 = vmatprep.subr.mxu0 %v1764
  %3330 = vmatpush2.msra.mxu0 %v1763
  %3331 = vmatprep.subr.mxu0 %v1760
  %3332 = vmatpush2.msra.mxu0 %v1759
  %3333 = vmatprep.mubr.f32.mxu0 %v1504
  %3334 = vmatmul.mubr.f32.gmra.mxu0 %v1503
  %v3335 = vpop.f32.mrf.mxu0
  %v3336 = vadd.f32 %v3175, %v3335
  %v3337 = vpop.f32.mrf.mxu0
  %v3338 = vadd.f32 %v3177, %v3337
  %3339 = vmatprep.mubr.f32.mxu0 %v1508
  %3340 = vmatmul.mubr.f32.gmra.mxu0 %v1507
  %v3341 = vpop.f32.mrf.mxu0
  %v3342 = vadd.f32 %v3181, %v3341
  %v3343 = vpop.f32.mrf.mxu0
  %v3344 = vadd.f32 %v3183, %v3343
  %3345 = vmatprep.mubr.f32.mxu0 %v1512
  %3346 = vmatmul.mubr.f32.gmra.mxu0 %v1511
  %v3347 = vpop.f32.mrf.mxu0
  %v3348 = vadd.f32 %v3187, %v3347
  %v3349 = vpop.f32.mrf.mxu0
  %v3350 = vadd.f32 %v3189, %v3349
  %3351 = vmatprep.mubr.f32.mxu0 %v1516
  %3352 = vmatmul.mubr.f32.gmra.mxu0 %v1515
  %v3353 = vpop.f32.mrf.mxu0
  %v3354 = vadd.f32 %v3193, %v3353
  %v3355 = vpop.f32.mrf.mxu0
  %v3356 = vadd.f32 %v3195, %v3355
  %3357 = vmatprep.mubr.f32.mxu0 %v1520
  %3358 = vmatmul.mubr.f32.gmra.mxu0 %v1519
  %v3359 = vpop.f32.mrf.mxu0
  %v3360 = vadd.f32 %v3199, %v3359
  %v3361 = vpop.f32.mrf.mxu0
  %v3362 = vadd.f32 %v3201, %v3361
  %3363 = vmatprep.mubr.f32.mxu0 %v1524
  %3364 = vmatmul.mubr.f32.gmra.mxu0 %v1523
  %v3365 = vpop.f32.mrf.mxu0
  %v3366 = vadd.f32 %v3205, %v3365
  %v3367 = vpop.f32.mrf.mxu0
  %v3368 = vadd.f32 %v3207, %v3367
  %3369 = vmatprep.mubr.f32.mxu0 %v1528
  %3370 = vmatmul.mubr.f32.gmra.mxu0 %v1527
  %v3371 = vpop.f32.mrf.mxu0
  %v3372 = vadd.f32 %v3211, %v3371
  %v3373 = vpop.f32.mrf.mxu0
  %v3374 = vadd.f32 %v3213, %v3373
  %3375 = vmatprep.mubr.f32.mxu0 %v1532
  %3376 = vmatmul.mubr.f32.gmra.mxu0 %v1531
  %v3377 = vpop.f32.mrf.mxu0
  %v3378 = vadd.f32 %v3217, %v3377
  %v3379 = vpop.f32.mrf.mxu0
  %v3380 = vadd.f32 %v3219, %v3379
  %3381 = vmatprep.mubr.f32.mxu0 %v1536
  %3382 = vmatmul.mubr.f32.gmra.mxu0 %v1535
  %v3383 = vpop.f32.mrf.mxu0
  %v3384 = vadd.f32 %v3223, %v3383
  %v3385 = vpop.f32.mrf.mxu0
  %v3386 = vadd.f32 %v3225, %v3385
  %3387 = vmatprep.mubr.f32.mxu0 %v1540
  %3388 = vmatmul.mubr.f32.gmra.mxu0 %v1539
  %v3389 = vpop.f32.mrf.mxu0
  %v3390 = vadd.f32 %v3229, %v3389
  %v3391 = vpop.f32.mrf.mxu0
  %v3392 = vadd.f32 %v3231, %v3391
  %3393 = vmatprep.mubr.f32.mxu0 %v1544
  %3394 = vmatmul.mubr.f32.gmra.mxu0 %v1543
  %v3395 = vpop.f32.mrf.mxu0
  %v3396 = vadd.f32 %v3235, %v3395
  %v3397 = vpop.f32.mrf.mxu0
  %v3398 = vadd.f32 %v3237, %v3397
  %3399 = vmatprep.mubr.f32.mxu0 %v1548
  %3400 = vmatmul.mubr.f32.gmra.mxu0 %v1547
  %v3401 = vpop.f32.mrf.mxu0
  %v3402 = vadd.f32 %v3241, %v3401
  %v3403 = vpop.f32.mrf.mxu0
  %v3404 = vadd.f32 %v3243, %v3403
  %3405 = vmatprep.mubr.f32.mxu0 %v1552
  %3406 = vmatmul.mubr.f32.gmra.mxu0 %v1551
  %v3407 = vpop.f32.mrf.mxu0
  %v3408 = vadd.f32 %v3247, %v3407
  %v3409 = vpop.f32.mrf.mxu0
  %v3410 = vadd.f32 %v3249, %v3409
  %3411 = vmatprep.mubr.f32.mxu0 %v1556
  %3412 = vmatmul.mubr.f32.gmra.mxu0 %v1555
  %v3413 = vpop.f32.mrf.mxu0
  %v3414 = vadd.f32 %v3253, %v3413
  %v3415 = vpop.f32.mrf.mxu0
  %v3416 = vadd.f32 %v3255, %v3415
  %3417 = vmatprep.mubr.f32.mxu0 %v1560
  %3418 = vmatmul.mubr.f32.gmra.mxu0 %v1559
  %v3419 = vpop.f32.mrf.mxu0
  %v3420 = vadd.f32 %v3259, %v3419
  %v3421 = vpop.f32.mrf.mxu0
  %v3422 = vadd.f32 %v3261, %v3421
  %3423 = vmatprep.mubr.f32.mxu0 %v1564
  %3424 = vmatmul.mubr.f32.gmra.mxu0 %v1563
  %v3425 = vpop.f32.mrf.mxu0
  %v3426 = vadd.f32 %v3265, %v3425
  %v3427 = vpop.f32.mrf.mxu0
  %v3428 = vadd.f32 %v3267, %v3427
  %3429 = vdwg.mxu0
  %s3430 = scalar_lea.vmem [#allocation2], 64
  %v3431 = vld [vmem:[%s3430] sm:$0xff]
  %v3432 = vld [vmem:[%s3430 + $0x8] sm:$0xff]
  %v3433 = vld [vmem:[%s3430 + $0x10] sm:$0xff]
  %v3434 = vld [vmem:[%s3430 + $0x18] sm:$0xff]
  %v3435 = vld [vmem:[%s3430 + $0x20] sm:$0xff]
  %v3436 = vld [vmem:[%s3430 + $0x28] sm:$0xff]
  %v3437 = vld [vmem:[%s3430 + $0x30] sm:$0xff]
  %v3438 = vld [vmem:[%s3430 + $0x38] sm:$0xff]
  %v3439 = vld [vmem:[%s3430 + $0x40] sm:$0xff]
  %v3440 = vld [vmem:[%s3430 + $0x48] sm:$0xff]
  %v3441 = vld [vmem:[%s3430 + $0x50] sm:$0xff]
  %v3442 = vld [vmem:[%s3430 + $0x58] sm:$0xff]
  %v3443 = vld [vmem:[%s3430 + $0x60] sm:$0xff]
  %v3444 = vld [vmem:[%s3430 + $0x68] sm:$0xff]
  %v3445 = vld [vmem:[%s3430 + $0x70] sm:$0xff]
  %v3446 = vld [vmem:[%s3430 + $0x78] sm:$0xff]
  %v3447 = vld [vmem:[%s3430 + $0x80] sm:$0xff]
  %v3448 = vld [vmem:[%s3430 + $0x88] sm:$0xff]
  %v3449 = vld [vmem:[%s3430 + $0x90] sm:$0xff]
  %v3450 = vld [vmem:[%s3430 + $0x98] sm:$0xff]
  %v3451 = vld [vmem:[%s3430 + $0xa0] sm:$0xff]
  %v3452 = vld [vmem:[%s3430 + $0xa8] sm:$0xff]
  %v3453 = vld [vmem:[%s3430 + $0xb0] sm:$0xff]
  %v3454 = vld [vmem:[%s3430 + $0xb8] sm:$0xff]
  %v3455 = vld [vmem:[%s3430 + $0xc0] sm:$0xff]
  %v3456 = vld [vmem:[%s3430 + $0xc8] sm:$0xff]
  %v3457 = vld [vmem:[%s3430 + $0xd0] sm:$0xff]
  %v3458 = vld [vmem:[%s3430 + $0xd8] sm:$0xff]
  %v3459 = vld [vmem:[%s3430 + $0xe0] sm:$0xff]
  %v3460 = vld [vmem:[%s3430 + $0xe8] sm:$0xff]
  %v3461 = vld [vmem:[%s3430 + $0xf0] sm:$0xff]
  %v3462 = vld [vmem:[%s3430 + $0xf8] sm:$0xff]
  %v3463 = vld [vmem:[%s3430 + $0x100] sm:$0xff]
  %v3464 = vld [vmem:[%s3430 + $0x108] sm:$0xff]
  %v3465 = vld [vmem:[%s3430 + $0x110] sm:$0xff]
  %v3466 = vld [vmem:[%s3430 + $0x118] sm:$0xff]
  %v3467 = vld [vmem:[%s3430 + $0x120] sm:$0xff]
  %v3468 = vld [vmem:[%s3430 + $0x128] sm:$0xff]
  %v3469 = vld [vmem:[%s3430 + $0x130] sm:$0xff]
  %v3470 = vld [vmem:[%s3430 + $0x138] sm:$0xff]
  %v3471 = vld [vmem:[%s3430 + $0x140] sm:$0xff]
  %v3472 = vld [vmem:[%s3430 + $0x148] sm:$0xff]
  %v3473 = vld [vmem:[%s3430 + $0x150] sm:$0xff]
  %v3474 = vld [vmem:[%s3430 + $0x158] sm:$0xff]
  %v3475 = vld [vmem:[%s3430 + $0x160] sm:$0xff]
  %v3476 = vld [vmem:[%s3430 + $0x168] sm:$0xff]
  %v3477 = vld [vmem:[%s3430 + $0x170] sm:$0xff]
  %v3478 = vld [vmem:[%s3430 + $0x178] sm:$0xff]
  %v3479 = vld [vmem:[%s3430 + $0x180] sm:$0xff]
  %v3480 = vld [vmem:[%s3430 + $0x188] sm:$0xff]
  %v3481 = vld [vmem:[%s3430 + $0x190] sm:$0xff]
  %v3482 = vld [vmem:[%s3430 + $0x198] sm:$0xff]
  %v3483 = vld [vmem:[%s3430 + $0x1a0] sm:$0xff]
  %v3484 = vld [vmem:[%s3430 + $0x1a8] sm:$0xff]
  %v3485 = vld [vmem:[%s3430 + $0x1b0] sm:$0xff]
  %v3486 = vld [vmem:[%s3430 + $0x1b8] sm:$0xff]
  %v3487 = vld [vmem:[%s3430 + $0x1c0] sm:$0xff]
  %v3488 = vld [vmem:[%s3430 + $0x1c8] sm:$0xff]
  %v3489 = vld [vmem:[%s3430 + $0x1d0] sm:$0xff]
  %v3490 = vld [vmem:[%s3430 + $0x1d8] sm:$0xff]
  %v3491 = vld [vmem:[%s3430 + $0x1e0] sm:$0xff]
  %v3492 = vld [vmem:[%s3430 + $0x1e8] sm:$0xff]
  %v3493 = vld [vmem:[%s3430 + $0x1f0] sm:$0xff]
  %v3494 = vld [vmem:[%s3430 + $0x1f8] sm:$0xff]
  %s3495 = scalar_lea.vmem %s2, 4096
  %v3496 = vld [vmem:[%s3495] sm:$0xff]
  %v3497 = vld [vmem:[%s3495 + $0x8] sm:$0xff]
  %v3498 = vld [vmem:[%s3495 + $0x10] sm:$0xff]
  %v3499 = vld [vmem:[%s3495 + $0x18] sm:$0xff]
  %v3500 = vld [vmem:[%s3495 + $0x20] sm:$0xff]
  %v3501 = vld [vmem:[%s3495 + $0x28] sm:$0xff]
  %v3502 = vld [vmem:[%s3495 + $0x30] sm:$0xff]
  %v3503 = vld [vmem:[%s3495 + $0x38] sm:$0xff]
  %v3504 = vld [vmem:[%s3495 + $0x40] sm:$0xff]
  %v3505 = vld [vmem:[%s3495 + $0x48] sm:$0xff]
  %v3506 = vld [vmem:[%s3495 + $0x50] sm:$0xff]
  %v3507 = vld [vmem:[%s3495 + $0x58] sm:$0xff]
  %v3508 = vld [vmem:[%s3495 + $0x60] sm:$0xff]
  %v3509 = vld [vmem:[%s3495 + $0x68] sm:$0xff]
  %v3510 = vld [vmem:[%s3495 + $0x70] sm:$0xff]
  %v3511 = vld [vmem:[%s3495 + $0x78] sm:$0xff]
  %v3512 = vld [vmem:[%s3495 + $0x80] sm:$0xff]
  %v3513 = vld [vmem:[%s3495 + $0x88] sm:$0xff]
  %v3514 = vld [vmem:[%s3495 + $0x90] sm:$0xff]
  %v3515 = vld [vmem:[%s3495 + $0x98] sm:$0xff]
  %v3516 = vld [vmem:[%s3495 + $0xa0] sm:$0xff]
  %v3517 = vld [vmem:[%s3495 + $0xa8] sm:$0xff]
  %v3518 = vld [vmem:[%s3495 + $0xb0] sm:$0xff]
  %v3519 = vld [vmem:[%s3495 + $0xb8] sm:$0xff]
  %v3520 = vld [vmem:[%s3495 + $0xc0] sm:$0xff]
  %v3521 = vld [vmem:[%s3495 + $0xc8] sm:$0xff]
  %v3522 = vld [vmem:[%s3495 + $0xd0] sm:$0xff]
  %v3523 = vld [vmem:[%s3495 + $0xd8] sm:$0xff]
  %v3524 = vld [vmem:[%s3495 + $0xe0] sm:$0xff]
  %v3525 = vld [vmem:[%s3495 + $0xe8] sm:$0xff]
  %v3526 = vld [vmem:[%s3495 + $0xf0] sm:$0xff]
  %v3527 = vld [vmem:[%s3495 + $0xf8] sm:$0xff]
  %v3528 = vld [vmem:[%s3495 + $0x100] sm:$0xff]
  %v3529 = vld [vmem:[%s3495 + $0x108] sm:$0xff]
  %v3530 = vld [vmem:[%s3495 + $0x110] sm:$0xff]
  %v3531 = vld [vmem:[%s3495 + $0x118] sm:$0xff]
  %v3532 = vld [vmem:[%s3495 + $0x120] sm:$0xff]
  %v3533 = vld [vmem:[%s3495 + $0x128] sm:$0xff]
  %v3534 = vld [vmem:[%s3495 + $0x130] sm:$0xff]
  %v3535 = vld [vmem:[%s3495 + $0x138] sm:$0xff]
  %v3536 = vld [vmem:[%s3495 + $0x140] sm:$0xff]
  %v3537 = vld [vmem:[%s3495 + $0x148] sm:$0xff]
  %v3538 = vld [vmem:[%s3495 + $0x150] sm:$0xff]
  %v3539 = vld [vmem:[%s3495 + $0x158] sm:$0xff]
  %v3540 = vld [vmem:[%s3495 + $0x160] sm:$0xff]
  %v3541 = vld [vmem:[%s3495 + $0x168] sm:$0xff]
  %v3542 = vld [vmem:[%s3495 + $0x170] sm:$0xff]
  %v3543 = vld [vmem:[%s3495 + $0x178] sm:$0xff]
  %v3544 = vld [vmem:[%s3495 + $0x180] sm:$0xff]
  %v3545 = vld [vmem:[%s3495 + $0x188] sm:$0xff]
  %v3546 = vld [vmem:[%s3495 + $0x190] sm:$0xff]
  %v3547 = vld [vmem:[%s3495 + $0x198] sm:$0xff]
  %v3548 = vld [vmem:[%s3495 + $0x1a0] sm:$0xff]
  %v3549 = vld [vmem:[%s3495 + $0x1a8] sm:$0xff]
  %v3550 = vld [vmem:[%s3495 + $0x1b0] sm:$0xff]
  %v3551 = vld [vmem:[%s3495 + $0x1b8] sm:$0xff]
  %v3552 = vld [vmem:[%s3495 + $0x1c0] sm:$0xff]
  %v3553 = vld [vmem:[%s3495 + $0x1c8] sm:$0xff]
  %v3554 = vld [vmem:[%s3495 + $0x1d0] sm:$0xff]
  %v3555 = vld [vmem:[%s3495 + $0x1d8] sm:$0xff]
  %v3556 = vld [vmem:[%s3495 + $0x1e0] sm:$0xff]
  %v3557 = vld [vmem:[%s3495 + $0x1e8] sm:$0xff]
  %v3558 = vld [vmem:[%s3495 + $0x1f0] sm:$0xff]
  %v3559 = vld [vmem:[%s3495 + $0x1f8] sm:$0xff]
  %v3560 = vld [vmem:[%s3495 + $0x200] sm:$0xff]
  %v3561 = vld [vmem:[%s3495 + $0x208] sm:$0xff]
  %v3562 = vld [vmem:[%s3495 + $0x210] sm:$0xff]
  %v3563 = vld [vmem:[%s3495 + $0x218] sm:$0xff]
  %v3564 = vld [vmem:[%s3495 + $0x220] sm:$0xff]
  %v3565 = vld [vmem:[%s3495 + $0x228] sm:$0xff]
  %v3566 = vld [vmem:[%s3495 + $0x230] sm:$0xff]
  %v3567 = vld [vmem:[%s3495 + $0x238] sm:$0xff]
  %v3568 = vld [vmem:[%s3495 + $0x240] sm:$0xff]
  %v3569 = vld [vmem:[%s3495 + $0x248] sm:$0xff]
  %v3570 = vld [vmem:[%s3495 + $0x250] sm:$0xff]
  %v3571 = vld [vmem:[%s3495 + $0x258] sm:$0xff]
  %v3572 = vld [vmem:[%s3495 + $0x260] sm:$0xff]
  %v3573 = vld [vmem:[%s3495 + $0x268] sm:$0xff]
  %v3574 = vld [vmem:[%s3495 + $0x270] sm:$0xff]
  %v3575 = vld [vmem:[%s3495 + $0x278] sm:$0xff]
  %v3576 = vld [vmem:[%s3495 + $0x280] sm:$0xff]
  %v3577 = vld [vmem:[%s3495 + $0x288] sm:$0xff]
  %v3578 = vld [vmem:[%s3495 + $0x290] sm:$0xff]
  %v3579 = vld [vmem:[%s3495 + $0x298] sm:$0xff]
  %v3580 = vld [vmem:[%s3495 + $0x2a0] sm:$0xff]
  %v3581 = vld [vmem:[%s3495 + $0x2a8] sm:$0xff]
  %v3582 = vld [vmem:[%s3495 + $0x2b0] sm:$0xff]
  %v3583 = vld [vmem:[%s3495 + $0x2b8] sm:$0xff]
  %v3584 = vld [vmem:[%s3495 + $0x2c0] sm:$0xff]
  %v3585 = vld [vmem:[%s3495 + $0x2c8] sm:$0xff]
  %v3586 = vld [vmem:[%s3495 + $0x2d0] sm:$0xff]
  %v3587 = vld [vmem:[%s3495 + $0x2d8] sm:$0xff]
  %v3588 = vld [vmem:[%s3495 + $0x2e0] sm:$0xff]
  %v3589 = vld [vmem:[%s3495 + $0x2e8] sm:$0xff]
  %v3590 = vld [vmem:[%s3495 + $0x2f0] sm:$0xff]
  %v3591 = vld [vmem:[%s3495 + $0x2f8] sm:$0xff]
  %v3592 = vld [vmem:[%s3495 + $0x300] sm:$0xff]
  %v3593 = vld [vmem:[%s3495 + $0x308] sm:$0xff]
  %v3594 = vld [vmem:[%s3495 + $0x310] sm:$0xff]
  %v3595 = vld [vmem:[%s3495 + $0x318] sm:$0xff]
  %v3596 = vld [vmem:[%s3495 + $0x320] sm:$0xff]
  %v3597 = vld [vmem:[%s3495 + $0x328] sm:$0xff]
  %v3598 = vld [vmem:[%s3495 + $0x330] sm:$0xff]
  %v3599 = vld [vmem:[%s3495 + $0x338] sm:$0xff]
  %v3600 = vld [vmem:[%s3495 + $0x340] sm:$0xff]
  %v3601 = vld [vmem:[%s3495 + $0x348] sm:$0xff]
  %v3602 = vld [vmem:[%s3495 + $0x350] sm:$0xff]
  %v3603 = vld [vmem:[%s3495 + $0x358] sm:$0xff]
  %v3604 = vld [vmem:[%s3495 + $0x360] sm:$0xff]
  %v3605 = vld [vmem:[%s3495 + $0x368] sm:$0xff]
  %v3606 = vld [vmem:[%s3495 + $0x370] sm:$0xff]
  %v3607 = vld [vmem:[%s3495 + $0x378] sm:$0xff]
  %v3608 = vld [vmem:[%s3495 + $0x380] sm:$0xff]
  %v3609 = vld [vmem:[%s3495 + $0x388] sm:$0xff]
  %v3610 = vld [vmem:[%s3495 + $0x390] sm:$0xff]
  %v3611 = vld [vmem:[%s3495 + $0x398] sm:$0xff]
  %v3612 = vld [vmem:[%s3495 + $0x3a0] sm:$0xff]
  %v3613 = vld [vmem:[%s3495 + $0x3a8] sm:$0xff]
  %v3614 = vld [vmem:[%s3495 + $0x3b0] sm:$0xff]
  %v3615 = vld [vmem:[%s3495 + $0x3b8] sm:$0xff]
  %v3616 = vld [vmem:[%s3495 + $0x3c0] sm:$0xff]
  %v3617 = vld [vmem:[%s3495 + $0x3c8] sm:$0xff]
  %v3618 = vld [vmem:[%s3495 + $0x3d0] sm:$0xff]
  %v3619 = vld [vmem:[%s3495 + $0x3d8] sm:$0xff]
  %v3620 = vld [vmem:[%s3495 + $0x3e0] sm:$0xff]
  %v3621 = vld [vmem:[%s3495 + $0x3e8] sm:$0xff]
  %v3622 = vld [vmem:[%s3495 + $0x3f0] sm:$0xff]
  %v3623 = vld [vmem:[%s3495 + $0x3f8] sm:$0xff]
  %v3624 = vld [vmem:[%s3495 + $0x400] sm:$0xff]
  %v3625 = vld [vmem:[%s3495 + $0x408] sm:$0xff]
  %v3626 = vld [vmem:[%s3495 + $0x410] sm:$0xff]
  %v3627 = vld [vmem:[%s3495 + $0x418] sm:$0xff]
  %v3628 = vld [vmem:[%s3495 + $0x420] sm:$0xff]
  %v3629 = vld [vmem:[%s3495 + $0x428] sm:$0xff]
  %v3630 = vld [vmem:[%s3495 + $0x430] sm:$0xff]
  %v3631 = vld [vmem:[%s3495 + $0x438] sm:$0xff]
  %v3632 = vld [vmem:[%s3495 + $0x440] sm:$0xff]
  %v3633 = vld [vmem:[%s3495 + $0x448] sm:$0xff]
  %v3634 = vld [vmem:[%s3495 + $0x450] sm:$0xff]
  %v3635 = vld [vmem:[%s3495 + $0x458] sm:$0xff]
  %v3636 = vld [vmem:[%s3495 + $0x460] sm:$0xff]
  %v3637 = vld [vmem:[%s3495 + $0x468] sm:$0xff]
  %v3638 = vld [vmem:[%s3495 + $0x470] sm:$0xff]
  %v3639 = vld [vmem:[%s3495 + $0x478] sm:$0xff]
  %v3640 = vld [vmem:[%s3495 + $0x480] sm:$0xff]
  %v3641 = vld [vmem:[%s3495 + $0x488] sm:$0xff]
  %v3642 = vld [vmem:[%s3495 + $0x490] sm:$0xff]
  %v3643 = vld [vmem:[%s3495 + $0x498] sm:$0xff]
  %v3644 = vld [vmem:[%s3495 + $0x4a0] sm:$0xff]
  %v3645 = vld [vmem:[%s3495 + $0x4a8] sm:$0xff]
  %v3646 = vld [vmem:[%s3495 + $0x4b0] sm:$0xff]
  %v3647 = vld [vmem:[%s3495 + $0x4b8] sm:$0xff]
  %v3648 = vld [vmem:[%s3495 + $0x4c0] sm:$0xff]
  %v3649 = vld [vmem:[%s3495 + $0x4c8] sm:$0xff]
  %v3650 = vld [vmem:[%s3495 + $0x4d0] sm:$0xff]
  %v3651 = vld [vmem:[%s3495 + $0x4d8] sm:$0xff]
  %v3652 = vld [vmem:[%s3495 + $0x4e0] sm:$0xff]
  %v3653 = vld [vmem:[%s3495 + $0x4e8] sm:$0xff]
  %v3654 = vld [vmem:[%s3495 + $0x4f0] sm:$0xff]
  %v3655 = vld [vmem:[%s3495 + $0x4f8] sm:$0xff]
  %v3656 = vld [vmem:[%s3495 + $0x500] sm:$0xff]
  %v3657 = vld [vmem:[%s3495 + $0x508] sm:$0xff]
  %v3658 = vld [vmem:[%s3495 + $0x510] sm:$0xff]
  %v3659 = vld [vmem:[%s3495 + $0x518] sm:$0xff]
  %v3660 = vld [vmem:[%s3495 + $0x520] sm:$0xff]
  %v3661 = vld [vmem:[%s3495 + $0x528] sm:$0xff]
  %v3662 = vld [vmem:[%s3495 + $0x530] sm:$0xff]
  %v3663 = vld [vmem:[%s3495 + $0x538] sm:$0xff]
  %v3664 = vld [vmem:[%s3495 + $0x540] sm:$0xff]
  %v3665 = vld [vmem:[%s3495 + $0x548] sm:$0xff]
  %v3666 = vld [vmem:[%s3495 + $0x550] sm:$0xff]
  %v3667 = vld [vmem:[%s3495 + $0x558] sm:$0xff]
  %v3668 = vld [vmem:[%s3495 + $0x560] sm:$0xff]
  %v3669 = vld [vmem:[%s3495 + $0x568] sm:$0xff]
  %v3670 = vld [vmem:[%s3495 + $0x570] sm:$0xff]
  %v3671 = vld [vmem:[%s3495 + $0x578] sm:$0xff]
  %v3672 = vld [vmem:[%s3495 + $0x580] sm:$0xff]
  %v3673 = vld [vmem:[%s3495 + $0x588] sm:$0xff]
  %v3674 = vld [vmem:[%s3495 + $0x590] sm:$0xff]
  %v3675 = vld [vmem:[%s3495 + $0x598] sm:$0xff]
  %v3676 = vld [vmem:[%s3495 + $0x5a0] sm:$0xff]
  %v3677 = vld [vmem:[%s3495 + $0x5a8] sm:$0xff]
  %v3678 = vld [vmem:[%s3495 + $0x5b0] sm:$0xff]
  %v3679 = vld [vmem:[%s3495 + $0x5b8] sm:$0xff]
  %v3680 = vld [vmem:[%s3495 + $0x5c0] sm:$0xff]
  %v3681 = vld [vmem:[%s3495 + $0x5c8] sm:$0xff]
  %v3682 = vld [vmem:[%s3495 + $0x5d0] sm:$0xff]
  %v3683 = vld [vmem:[%s3495 + $0x5d8] sm:$0xff]
  %v3684 = vld [vmem:[%s3495 + $0x5e0] sm:$0xff]
  %v3685 = vld [vmem:[%s3495 + $0x5e8] sm:$0xff]
  %v3686 = vld [vmem:[%s3495 + $0x5f0] sm:$0xff]
  %v3687 = vld [vmem:[%s3495 + $0x5f8] sm:$0xff]
  %v3688 = vld [vmem:[%s3495 + $0x600] sm:$0xff]
  %v3689 = vld [vmem:[%s3495 + $0x608] sm:$0xff]
  %v3690 = vld [vmem:[%s3495 + $0x610] sm:$0xff]
  %v3691 = vld [vmem:[%s3495 + $0x618] sm:$0xff]
  %v3692 = vld [vmem:[%s3495 + $0x620] sm:$0xff]
  %v3693 = vld [vmem:[%s3495 + $0x628] sm:$0xff]
  %v3694 = vld [vmem:[%s3495 + $0x630] sm:$0xff]
  %v3695 = vld [vmem:[%s3495 + $0x638] sm:$0xff]
  %v3696 = vld [vmem:[%s3495 + $0x640] sm:$0xff]
  %v3697 = vld [vmem:[%s3495 + $0x648] sm:$0xff]
  %v3698 = vld [vmem:[%s3495 + $0x650] sm:$0xff]
  %v3699 = vld [vmem:[%s3495 + $0x658] sm:$0xff]
  %v3700 = vld [vmem:[%s3495 + $0x660] sm:$0xff]
  %v3701 = vld [vmem:[%s3495 + $0x668] sm:$0xff]
  %v3702 = vld [vmem:[%s3495 + $0x670] sm:$0xff]
  %v3703 = vld [vmem:[%s3495 + $0x678] sm:$0xff]
  %v3704 = vld [vmem:[%s3495 + $0x680] sm:$0xff]
  %v3705 = vld [vmem:[%s3495 + $0x688] sm:$0xff]
  %v3706 = vld [vmem:[%s3495 + $0x690] sm:$0xff]
  %v3707 = vld [vmem:[%s3495 + $0x698] sm:$0xff]
  %v3708 = vld [vmem:[%s3495 + $0x6a0] sm:$0xff]
  %v3709 = vld [vmem:[%s3495 + $0x6a8] sm:$0xff]
  %v3710 = vld [vmem:[%s3495 + $0x6b0] sm:$0xff]
  %v3711 = vld [vmem:[%s3495 + $0x6b8] sm:$0xff]
  %v3712 = vld [vmem:[%s3495 + $0x6c0] sm:$0xff]
  %v3713 = vld [vmem:[%s3495 + $0x6c8] sm:$0xff]
  %v3714 = vld [vmem:[%s3495 + $0x6d0] sm:$0xff]
  %v3715 = vld [vmem:[%s3495 + $0x6d8] sm:$0xff]
  %v3716 = vld [vmem:[%s3495 + $0x6e0] sm:$0xff]
  %v3717 = vld [vmem:[%s3495 + $0x6e8] sm:$0xff]
  %v3718 = vld [vmem:[%s3495 + $0x6f0] sm:$0xff]
  %v3719 = vld [vmem:[%s3495 + $0x6f8] sm:$0xff]
  %v3720 = vld [vmem:[%s3495 + $0x700] sm:$0xff]
  %v3721 = vld [vmem:[%s3495 + $0x708] sm:$0xff]
  %v3722 = vld [vmem:[%s3495 + $0x710] sm:$0xff]
  %v3723 = vld [vmem:[%s3495 + $0x718] sm:$0xff]
  %v3724 = vld [vmem:[%s3495 + $0x720] sm:$0xff]
  %v3725 = vld [vmem:[%s3495 + $0x728] sm:$0xff]
  %v3726 = vld [vmem:[%s3495 + $0x730] sm:$0xff]
  %v3727 = vld [vmem:[%s3495 + $0x738] sm:$0xff]
  %v3728 = vld [vmem:[%s3495 + $0x740] sm:$0xff]
  %v3729 = vld [vmem:[%s3495 + $0x748] sm:$0xff]
  %v3730 = vld [vmem:[%s3495 + $0x750] sm:$0xff]
  %v3731 = vld [vmem:[%s3495 + $0x758] sm:$0xff]
  %v3732 = vld [vmem:[%s3495 + $0x760] sm:$0xff]
  %v3733 = vld [vmem:[%s3495 + $0x768] sm:$0xff]
  %v3734 = vld [vmem:[%s3495 + $0x770] sm:$0xff]
  %v3735 = vld [vmem:[%s3495 + $0x778] sm:$0xff]
  %v3736 = vld [vmem:[%s3495 + $0x780] sm:$0xff]
  %v3737 = vld [vmem:[%s3495 + $0x788] sm:$0xff]
  %v3738 = vld [vmem:[%s3495 + $0x790] sm:$0xff]
  %v3739 = vld [vmem:[%s3495 + $0x798] sm:$0xff]
  %v3740 = vld [vmem:[%s3495 + $0x7a0] sm:$0xff]
  %v3741 = vld [vmem:[%s3495 + $0x7a8] sm:$0xff]
  %v3742 = vld [vmem:[%s3495 + $0x7b0] sm:$0xff]
  %v3743 = vld [vmem:[%s3495 + $0x7b8] sm:$0xff]
  %v3744 = vld [vmem:[%s3495 + $0x7c0] sm:$0xff]
  %v3745 = vld [vmem:[%s3495 + $0x7c8] sm:$0xff]
  %v3746 = vld [vmem:[%s3495 + $0x7d0] sm:$0xff]
  %v3747 = vld [vmem:[%s3495 + $0x7d8] sm:$0xff]
  %v3748 = vld [vmem:[%s3495 + $0x7e0] sm:$0xff]
  %v3749 = vld [vmem:[%s3495 + $0x7e8] sm:$0xff]
  %v3750 = vld [vmem:[%s3495 + $0x7f0] sm:$0xff]
  %v3751 = vld [vmem:[%s3495 + $0x7f8] sm:$0xff]
  %3752 = vmatprep.subr.mxu0 %v3557
  %3753 = vmatpush1.msra.mxu0 %v3556
  %3754 = vmatprep.subr.mxu0 %v3553
  %3755 = vmatpush1.msra.mxu0 %v3552
  %3756 = vmatprep.subr.mxu0 %v3549
  %3757 = vmatpush1.msra.mxu0 %v3548
  %3758 = vmatprep.subr.mxu0 %v3545
  %3759 = vmatpush1.msra.mxu0 %v3544
  %3760 = vmatprep.subr.mxu0 %v3541
  %3761 = vmatpush1.msra.mxu0 %v3540
  %3762 = vmatprep.subr.mxu0 %v3537
  %3763 = vmatpush1.msra.mxu0 %v3536
  %3764 = vmatprep.subr.mxu0 %v3533
  %3765 = vmatpush1.msra.mxu0 %v3532
  %3766 = vmatprep.subr.mxu0 %v3529
  %3767 = vmatpush1.msra.mxu0 %v3528
  %3768 = vmatprep.subr.mxu0 %v3525
  %3769 = vmatpush1.msra.mxu0 %v3524
  %3770 = vmatprep.subr.mxu0 %v3521
  %3771 = vmatpush1.msra.mxu0 %v3520
  %3772 = vmatprep.subr.mxu0 %v3517
  %3773 = vmatpush1.msra.mxu0 %v3516
  %3774 = vmatprep.subr.mxu0 %v3513
  %3775 = vmatpush1.msra.mxu0 %v3512
  %3776 = vmatprep.subr.mxu0 %v3509
  %3777 = vmatpush1.msra.mxu0 %v3508
  %3778 = vmatprep.subr.mxu0 %v3505
  %3779 = vmatpush1.msra.mxu0 %v3504
  %3780 = vmatprep.subr.mxu0 %v3501
  %3781 = vmatpush1.msra.mxu0 %v3500
  %3782 = vmatprep.subr.mxu0 %v3497
  %3783 = vmatpush1.msra.mxu0 %v3496
  %3784 = vmatprep.subr.mxu0 %v3621
  %3785 = vmatpush2.msra.mxu0 %v3620
  %3786 = vmatprep.subr.mxu0 %v3617
  %3787 = vmatpush2.msra.mxu0 %v3616
  %3788 = vmatprep.subr.mxu0 %v3613
  %3789 = vmatpush2.msra.mxu0 %v3612
  %3790 = vmatprep.subr.mxu0 %v3609
  %3791 = vmatpush2.msra.mxu0 %v3608
  %3792 = vmatprep.subr.mxu0 %v3605
  %3793 = vmatpush2.msra.mxu0 %v3604
  %3794 = vmatprep.subr.mxu0 %v3601
  %3795 = vmatpush2.msra.mxu0 %v3600
  %3796 = vmatprep.subr.mxu0 %v3597
  %3797 = vmatpush2.msra.mxu0 %v3596
  %3798 = vmatprep.subr.mxu0 %v3593
  %3799 = vmatpush2.msra.mxu0 %v3592
  %3800 = vmatprep.subr.mxu0 %v3589
  %3801 = vmatpush2.msra.mxu0 %v3588
  %3802 = vmatprep.subr.mxu0 %v3585
  %3803 = vmatpush2.msra.mxu0 %v3584
  %3804 = vmatprep.subr.mxu0 %v3581
  %3805 = vmatpush2.msra.mxu0 %v3580
  %3806 = vmatprep.subr.mxu0 %v3577
  %3807 = vmatpush2.msra.mxu0 %v3576
  %3808 = vmatprep.subr.mxu0 %v3573
  %3809 = vmatpush2.msra.mxu0 %v3572
  %3810 = vmatprep.subr.mxu0 %v3569
  %3811 = vmatpush2.msra.mxu0 %v3568
  %3812 = vmatprep.subr.mxu0 %v3565
  %3813 = vmatpush2.msra.mxu0 %v3564
  %3814 = vmatprep.subr.mxu0 %v3561
  %3815 = vmatpush2.msra.mxu0 %v3560
  %3816 = vmatprep.mubr.f32.mxu0 %v3432
  %3817 = vmatmul.mubr.f32.gmra.mxu0 %v3431
  %v3818 = vpop.f32.mrf.mxu0
  %v3819 = vadd.f32 0.0, %v3818
  %v3820 = vpop.f32.mrf.mxu0
  %v3821 = vadd.f32 0.0, %v3820
  %3822 = vmatprep.mubr.f32.mxu0 %v3436
  %3823 = vmatmul.mubr.f32.gmra.mxu0 %v3435
  %v3824 = vpop.f32.mrf.mxu0
  %v3825 = vadd.f32 0.0, %v3824
  %v3826 = vpop.f32.mrf.mxu0
  %v3827 = vadd.f32 0.0, %v3826
  %3828 = vmatprep.mubr.f32.mxu0 %v3440
  %3829 = vmatmul.mubr.f32.gmra.mxu0 %v3439
  %v3830 = vpop.f32.mrf.mxu0
  %v3831 = vadd.f32 0.0, %v3830
  %v3832 = vpop.f32.mrf.mxu0
  %v3833 = vadd.f32 0.0, %v3832
  %3834 = vmatprep.mubr.f32.mxu0 %v3444
  %3835 = vmatmul.mubr.f32.gmra.mxu0 %v3443
  %v3836 = vpop.f32.mrf.mxu0
  %v3837 = vadd.f32 0.0, %v3836
  %v3838 = vpop.f32.mrf.mxu0
  %v3839 = vadd.f32 0.0, %v3838
  %3840 = vmatprep.mubr.f32.mxu0 %v3448
  %3841 = vmatmul.mubr.f32.gmra.mxu0 %v3447
  %v3842 = vpop.f32.mrf.mxu0
  %v3843 = vadd.f32 0.0, %v3842
  %v3844 = vpop.f32.mrf.mxu0
  %v3845 = vadd.f32 0.0, %v3844
  %3846 = vmatprep.mubr.f32.mxu0 %v3452
  %3847 = vmatmul.mubr.f32.gmra.mxu0 %v3451
  %v3848 = vpop.f32.mrf.mxu0
  %v3849 = vadd.f32 0.0, %v3848
  %v3850 = vpop.f32.mrf.mxu0
  %v3851 = vadd.f32 0.0, %v3850
  %3852 = vmatprep.mubr.f32.mxu0 %v3456
  %3853 = vmatmul.mubr.f32.gmra.mxu0 %v3455
  %v3854 = vpop.f32.mrf.mxu0
  %v3855 = vadd.f32 0.0, %v3854
  %v3856 = vpop.f32.mrf.mxu0
  %v3857 = vadd.f32 0.0, %v3856
  %3858 = vmatprep.mubr.f32.mxu0 %v3460
  %3859 = vmatmul.mubr.f32.gmra.mxu0 %v3459
  %v3860 = vpop.f32.mrf.mxu0
  %v3861 = vadd.f32 0.0, %v3860
  %v3862 = vpop.f32.mrf.mxu0
  %v3863 = vadd.f32 0.0, %v3862
  %3864 = vmatprep.mubr.f32.mxu0 %v3464
  %3865 = vmatmul.mubr.f32.gmra.mxu0 %v3463
  %v3866 = vpop.f32.mrf.mxu0
  %v3867 = vadd.f32 0.0, %v3866
  %v3868 = vpop.f32.mrf.mxu0
  %v3869 = vadd.f32 0.0, %v3868
  %3870 = vmatprep.mubr.f32.mxu0 %v3468
  %3871 = vmatmul.mubr.f32.gmra.mxu0 %v3467
  %v3872 = vpop.f32.mrf.mxu0
  %v3873 = vadd.f32 0.0, %v3872
  %v3874 = vpop.f32.mrf.mxu0
  %v3875 = vadd.f32 0.0, %v3874
  %3876 = vmatprep.mubr.f32.mxu0 %v3472
  %3877 = vmatmul.mubr.f32.gmra.mxu0 %v3471
  %v3878 = vpop.f32.mrf.mxu0
  %v3879 = vadd.f32 0.0, %v3878
  %v3880 = vpop.f32.mrf.mxu0
  %v3881 = vadd.f32 0.0, %v3880
  %3882 = vmatprep.mubr.f32.mxu0 %v3476
  %3883 = vmatmul.mubr.f32.gmra.mxu0 %v3475
  %v3884 = vpop.f32.mrf.mxu0
  %v3885 = vadd.f32 0.0, %v3884
  %v3886 = vpop.f32.mrf.mxu0
  %v3887 = vadd.f32 0.0, %v3886
  %3888 = vmatprep.mubr.f32.mxu0 %v3480
  %3889 = vmatmul.mubr.f32.gmra.mxu0 %v3479
  %v3890 = vpop.f32.mrf.mxu0
  %v3891 = vadd.f32 0.0, %v3890
  %v3892 = vpop.f32.mrf.mxu0
  %v3893 = vadd.f32 0.0, %v3892
  %3894 = vmatprep.mubr.f32.mxu0 %v3484
  %3895 = vmatmul.mubr.f32.gmra.mxu0 %v3483
  %v3896 = vpop.f32.mrf.mxu0
  %v3897 = vadd.f32 0.0, %v3896
  %v3898 = vpop.f32.mrf.mxu0
  %v3899 = vadd.f32 0.0, %v3898
  %3900 = vmatprep.mubr.f32.mxu0 %v3488
  %3901 = vmatmul.mubr.f32.gmra.mxu0 %v3487
  %v3902 = vpop.f32.mrf.mxu0
  %v3903 = vadd.f32 0.0, %v3902
  %v3904 = vpop.f32.mrf.mxu0
  %v3905 = vadd.f32 0.0, %v3904
  %3906 = vmatprep.mubr.f32.mxu0 %v3492
  %3907 = vmatmul.mubr.f32.gmra.mxu0 %v3491
  %v3908 = vpop.f32.mrf.mxu0
  %v3909 = vadd.f32 0.0, %v3908
  %v3910 = vpop.f32.mrf.mxu0
  %v3911 = vadd.f32 0.0, %v3910
  %3912 = vdwg.mxu0
  %3913 = vmatprep.subr.mxu0 %v3685
  %3914 = vmatpush1.msra.mxu0 %v3684
  %3915 = vmatprep.subr.mxu0 %v3681
  %3916 = vmatpush1.msra.mxu0 %v3680
  %3917 = vmatprep.subr.mxu0 %v3677
  %3918 = vmatpush1.msra.mxu0 %v3676
  %3919 = vmatprep.subr.mxu0 %v3673
  %3920 = vmatpush1.msra.mxu0 %v3672
  %3921 = vmatprep.subr.mxu0 %v3669
  %3922 = vmatpush1.msra.mxu0 %v3668
  %3923 = vmatprep.subr.mxu0 %v3665
  %3924 = vmatpush1.msra.mxu0 %v3664
  %3925 = vmatprep.subr.mxu0 %v3661
  %3926 = vmatpush1.msra.mxu0 %v3660
  %3927 = vmatprep.subr.mxu0 %v3657
  %3928 = vmatpush1.msra.mxu0 %v3656
  %3929 = vmatprep.subr.mxu0 %v3653
  %3930 = vmatpush1.msra.mxu0 %v3652
  %3931 = vmatprep.subr.mxu0 %v3649
  %3932 = vmatpush1.msra.mxu0 %v3648
  %3933 = vmatprep.subr.mxu0 %v3645
  %3934 = vmatpush1.msra.mxu0 %v3644
  %3935 = vmatprep.subr.mxu0 %v3641
  %3936 = vmatpush1.msra.mxu0 %v3640
  %3937 = vmatprep.subr.mxu0 %v3637
  %3938 = vmatpush1.msra.mxu0 %v3636
  %3939 = vmatprep.subr.mxu0 %v3633
  %3940 = vmatpush1.msra.mxu0 %v3632
  %3941 = vmatprep.subr.mxu0 %v3629
  %3942 = vmatpush1.msra.mxu0 %v3628
  %3943 = vmatprep.subr.mxu0 %v3625
  %3944 = vmatpush1.msra.mxu0 %v3624
  %3945 = vmatprep.subr.mxu0 %v3749
  %3946 = vmatpush2.msra.mxu0 %v3748
  %3947 = vmatprep.subr.mxu0 %v3745
  %3948 = vmatpush2.msra.mxu0 %v3744
  %3949 = vmatprep.subr.mxu0 %v3741
  %3950 = vmatpush2.msra.mxu0 %v3740
  %3951 = vmatprep.subr.mxu0 %v3737
  %3952 = vmatpush2.msra.mxu0 %v3736
  %3953 = vmatprep.subr.mxu0 %v3733
  %3954 = vmatpush2.msra.mxu0 %v3732
  %3955 = vmatprep.subr.mxu0 %v3729
  %3956 = vmatpush2.msra.mxu0 %v3728
  %3957 = vmatprep.subr.mxu0 %v3725
  %3958 = vmatpush2.msra.mxu0 %v3724
  %3959 = vmatprep.subr.mxu0 %v3721
  %3960 = vmatpush2.msra.mxu0 %v3720
  %3961 = vmatprep.subr.mxu0 %v3717
  %3962 = vmatpush2.msra.mxu0 %v3716
  %3963 = vmatprep.subr.mxu0 %v3713
  %3964 = vmatpush2.msra.mxu0 %v3712
  %3965 = vmatprep.subr.mxu0 %v3709
  %3966 = vmatpush2.msra.mxu0 %v3708
  %3967 = vmatprep.subr.mxu0 %v3705
  %3968 = vmatpush2.msra.mxu0 %v3704
  %3969 = vmatprep.subr.mxu0 %v3701
  %3970 = vmatpush2.msra.mxu0 %v3700
  %3971 = vmatprep.subr.mxu0 %v3697
  %3972 = vmatpush2.msra.mxu0 %v3696
  %3973 = vmatprep.subr.mxu0 %v3693
  %3974 = vmatpush2.msra.mxu0 %v3692
  %3975 = vmatprep.subr.mxu0 %v3689
  %3976 = vmatpush2.msra.mxu0 %v3688
  %3977 = vmatprep.mubr.f32.mxu0 %v3434
  %3978 = vmatmul.mubr.f32.gmra.mxu0 %v3433
  %v3979 = vpop.f32.mrf.mxu0
  %v3980 = vadd.f32 %v3819, %v3979
  %v3981 = vpop.f32.mrf.mxu0
  %v3982 = vadd.f32 %v3821, %v3981
  %3983 = vmatprep.mubr.f32.mxu0 %v3438
  %3984 = vmatmul.mubr.f32.gmra.mxu0 %v3437
  %v3985 = vpop.f32.mrf.mxu0
  %v3986 = vadd.f32 %v3825, %v3985
  %v3987 = vpop.f32.mrf.mxu0
  %v3988 = vadd.f32 %v3827, %v3987
  %3989 = vmatprep.mubr.f32.mxu0 %v3442
  %3990 = vmatmul.mubr.f32.gmra.mxu0 %v3441
  %v3991 = vpop.f32.mrf.mxu0
  %v3992 = vadd.f32 %v3831, %v3991
  %v3993 = vpop.f32.mrf.mxu0
  %v3994 = vadd.f32 %v3833, %v3993
  %3995 = vmatprep.mubr.f32.mxu0 %v3446
  %3996 = vmatmul.mubr.f32.gmra.mxu0 %v3445
  %v3997 = vpop.f32.mrf.mxu0
  %v3998 = vadd.f32 %v3837, %v3997
  %v3999 = vpop.f32.mrf.mxu0
  %v4000 = vadd.f32 %v3839, %v3999
  %4001 = vmatprep.mubr.f32.mxu0 %v3450
  %4002 = vmatmul.mubr.f32.gmra.mxu0 %v3449
  %v4003 = vpop.f32.mrf.mxu0
  %v4004 = vadd.f32 %v3843, %v4003
  %v4005 = vpop.f32.mrf.mxu0
  %v4006 = vadd.f32 %v3845, %v4005
  %4007 = vmatprep.mubr.f32.mxu0 %v3454
  %4008 = vmatmul.mubr.f32.gmra.mxu0 %v3453
  %v4009 = vpop.f32.mrf.mxu0
  %v4010 = vadd.f32 %v3849, %v4009
  %v4011 = vpop.f32.mrf.mxu0
  %v4012 = vadd.f32 %v3851, %v4011
  %4013 = vmatprep.mubr.f32.mxu0 %v3458
  %4014 = vmatmul.mubr.f32.gmra.mxu0 %v3457
  %v4015 = vpop.f32.mrf.mxu0
  %v4016 = vadd.f32 %v3855, %v4015
  %v4017 = vpop.f32.mrf.mxu0
  %v4018 = vadd.f32 %v3857, %v4017
  %4019 = vmatprep.mubr.f32.mxu0 %v3462
  %4020 = vmatmul.mubr.f32.gmra.mxu0 %v3461
  %v4021 = vpop.f32.mrf.mxu0
  %v4022 = vadd.f32 %v3861, %v4021
  %v4023 = vpop.f32.mrf.mxu0
  %v4024 = vadd.f32 %v3863, %v4023
  %4025 = vmatprep.mubr.f32.mxu0 %v3466
  %4026 = vmatmul.mubr.f32.gmra.mxu0 %v3465
  %v4027 = vpop.f32.mrf.mxu0
  %v4028 = vadd.f32 %v3867, %v4027
  %v4029 = vpop.f32.mrf.mxu0
  %v4030 = vadd.f32 %v3869, %v4029
  %4031 = vmatprep.mubr.f32.mxu0 %v3470
  %4032 = vmatmul.mubr.f32.gmra.mxu0 %v3469
  %v4033 = vpop.f32.mrf.mxu0
  %v4034 = vadd.f32 %v3873, %v4033
  %v4035 = vpop.f32.mrf.mxu0
  %v4036 = vadd.f32 %v3875, %v4035
  %4037 = vmatprep.mubr.f32.mxu0 %v3474
  %4038 = vmatmul.mubr.f32.gmra.mxu0 %v3473
  %v4039 = vpop.f32.mrf.mxu0
  %v4040 = vadd.f32 %v3879, %v4039
  %v4041 = vpop.f32.mrf.mxu0
  %v4042 = vadd.f32 %v3881, %v4041
  %4043 = vmatprep.mubr.f32.mxu0 %v3478
  %4044 = vmatmul.mubr.f32.gmra.mxu0 %v3477
  %v4045 = vpop.f32.mrf.mxu0
  %v4046 = vadd.f32 %v3885, %v4045
  %v4047 = vpop.f32.mrf.mxu0
  %v4048 = vadd.f32 %v3887, %v4047
  %4049 = vmatprep.mubr.f32.mxu0 %v3482
  %4050 = vmatmul.mubr.f32.gmra.mxu0 %v3481
  %v4051 = vpop.f32.mrf.mxu0
  %v4052 = vadd.f32 %v3891, %v4051
  %v4053 = vpop.f32.mrf.mxu0
  %v4054 = vadd.f32 %v3893, %v4053
  %4055 = vmatprep.mubr.f32.mxu0 %v3486
  %4056 = vmatmul.mubr.f32.gmra.mxu0 %v3485
  %v4057 = vpop.f32.mrf.mxu0
  %v4058 = vadd.f32 %v3897, %v4057
  %v4059 = vpop.f32.mrf.mxu0
  %v4060 = vadd.f32 %v3899, %v4059
  %4061 = vmatprep.mubr.f32.mxu0 %v3490
  %4062 = vmatmul.mubr.f32.gmra.mxu0 %v3489
  %v4063 = vpop.f32.mrf.mxu0
  %v4064 = vadd.f32 %v3903, %v4063
  %v4065 = vpop.f32.mrf.mxu0
  %v4066 = vadd.f32 %v3905, %v4065
  %4067 = vmatprep.mubr.f32.mxu0 %v3494
  %4068 = vmatmul.mubr.f32.gmra.mxu0 %v3493
  %v4069 = vpop.f32.mrf.mxu0
  %v4070 = vadd.f32 %v3909, %v4069
  %v4071 = vpop.f32.mrf.mxu0
  %v4072 = vadd.f32 %v3911, %v4071
  %4073 = vdwg.mxu0
  %4074 = vmatprep.subr.mxu0 %v3559
  %4075 = vmatpush1.msra.mxu0 %v3558
  %4076 = vmatprep.subr.mxu0 %v3555
  %4077 = vmatpush1.msra.mxu0 %v3554
  %4078 = vmatprep.subr.mxu0 %v3551
  %4079 = vmatpush1.msra.mxu0 %v3550
  %4080 = vmatprep.subr.mxu0 %v3547
  %4081 = vmatpush1.msra.mxu0 %v3546
  %4082 = vmatprep.subr.mxu0 %v3543
  %4083 = vmatpush1.msra.mxu0 %v3542
  %4084 = vmatprep.subr.mxu0 %v3539
  %4085 = vmatpush1.msra.mxu0 %v3538
  %4086 = vmatprep.subr.mxu0 %v3535
  %4087 = vmatpush1.msra.mxu0 %v3534
  %4088 = vmatprep.subr.mxu0 %v3531
  %4089 = vmatpush1.msra.mxu0 %v3530
  %4090 = vmatprep.subr.mxu0 %v3527
  %4091 = vmatpush1.msra.mxu0 %v3526
  %4092 = vmatprep.subr.mxu0 %v3523
  %4093 = vmatpush1.msra.mxu0 %v3522
  %4094 = vmatprep.subr.mxu0 %v3519
  %4095 = vmatpush1.msra.mxu0 %v3518
  %4096 = vmatprep.subr.mxu0 %v3515
  %4097 = vmatpush1.msra.mxu0 %v3514
  %4098 = vmatprep.subr.mxu0 %v3511
  %4099 = vmatpush1.msra.mxu0 %v3510
  %4100 = vmatprep.subr.mxu0 %v3507
  %4101 = vmatpush1.msra.mxu0 %v3506
  %4102 = vmatprep.subr.mxu0 %v3503
  %4103 = vmatpush1.msra.mxu0 %v3502
  %4104 = vmatprep.subr.mxu0 %v3499
  %4105 = vmatpush1.msra.mxu0 %v3498
  %4106 = vmatprep.subr.mxu0 %v3623
  %4107 = vmatpush2.msra.mxu0 %v3622
  %4108 = vmatprep.subr.mxu0 %v3619
  %4109 = vmatpush2.msra.mxu0 %v3618
  %4110 = vmatprep.subr.mxu0 %v3615
  %4111 = vmatpush2.msra.mxu0 %v3614
  %4112 = vmatprep.subr.mxu0 %v3611
  %4113 = vmatpush2.msra.mxu0 %v3610
  %4114 = vmatprep.subr.mxu0 %v3607
  %4115 = vmatpush2.msra.mxu0 %v3606
  %4116 = vmatprep.subr.mxu0 %v3603
  %4117 = vmatpush2.msra.mxu0 %v3602
  %4118 = vmatprep.subr.mxu0 %v3599
  %4119 = vmatpush2.msra.mxu0 %v3598
  %4120 = vmatprep.subr.mxu0 %v3595
  %4121 = vmatpush2.msra.mxu0 %v3594
  %4122 = vmatprep.subr.mxu0 %v3591
  %4123 = vmatpush2.msra.mxu0 %v3590
  %4124 = vmatprep.subr.mxu0 %v3587
  %4125 = vmatpush2.msra.mxu0 %v3586
  %4126 = vmatprep.subr.mxu0 %v3583
  %4127 = vmatpush2.msra.mxu0 %v3582
  %4128 = vmatprep.subr.mxu0 %v3579
  %4129 = vmatpush2.msra.mxu0 %v3578
  %4130 = vmatprep.subr.mxu0 %v3575
  %4131 = vmatpush2.msra.mxu0 %v3574
  %4132 = vmatprep.subr.mxu0 %v3571
  %4133 = vmatpush2.msra.mxu0 %v3570
  %4134 = vmatprep.subr.mxu0 %v3567
  %4135 = vmatpush2.msra.mxu0 %v3566
  %4136 = vmatprep.subr.mxu0 %v3563
  %4137 = vmatpush2.msra.mxu0 %v3562
  %4138 = vmatprep.mubr.f32.mxu0 %v3432
  %4139 = vmatmul.mubr.f32.gmra.mxu0 %v3431
  %v4140 = vpop.f32.mrf.mxu0
  %v4141 = vadd.f32 0.0, %v4140
  %v4142 = vpop.f32.mrf.mxu0
  %v4143 = vadd.f32 0.0, %v4142
  %4144 = vmatprep.mubr.f32.mxu0 %v3436
  %4145 = vmatmul.mubr.f32.gmra.mxu0 %v3435
  %v4146 = vpop.f32.mrf.mxu0
  %v4147 = vadd.f32 0.0, %v4146
  %v4148 = vpop.f32.mrf.mxu0
  %v4149 = vadd.f32 0.0, %v4148
  %4150 = vmatprep.mubr.f32.mxu0 %v3440
  %4151 = vmatmul.mubr.f32.gmra.mxu0 %v3439
  %v4152 = vpop.f32.mrf.mxu0
  %v4153 = vadd.f32 0.0, %v4152
  %v4154 = vpop.f32.mrf.mxu0
  %v4155 = vadd.f32 0.0, %v4154
  %4156 = vmatprep.mubr.f32.mxu0 %v3444
  %4157 = vmatmul.mubr.f32.gmra.mxu0 %v3443
  %v4158 = vpop.f32.mrf.mxu0
  %v4159 = vadd.f32 0.0, %v4158
  %v4160 = vpop.f32.mrf.mxu0
  %v4161 = vadd.f32 0.0, %v4160
  %4162 = vmatprep.mubr.f32.mxu0 %v3448
  %4163 = vmatmul.mubr.f32.gmra.mxu0 %v3447
  %v4164 = vpop.f32.mrf.mxu0
  %v4165 = vadd.f32 0.0, %v4164
  %v4166 = vpop.f32.mrf.mxu0
  %v4167 = vadd.f32 0.0, %v4166
  %4168 = vmatprep.mubr.f32.mxu0 %v3452
  %4169 = vmatmul.mubr.f32.gmra.mxu0 %v3451
  %v4170 = vpop.f32.mrf.mxu0
  %v4171 = vadd.f32 0.0, %v4170
  %v4172 = vpop.f32.mrf.mxu0
  %v4173 = vadd.f32 0.0, %v4172
  %4174 = vmatprep.mubr.f32.mxu0 %v3456
  %4175 = vmatmul.mubr.f32.gmra.mxu0 %v3455
  %v4176 = vpop.f32.mrf.mxu0
  %v4177 = vadd.f32 0.0, %v4176
  %v4178 = vpop.f32.mrf.mxu0
  %v4179 = vadd.f32 0.0, %v4178
  %4180 = vmatprep.mubr.f32.mxu0 %v3460
  %4181 = vmatmul.mubr.f32.gmra.mxu0 %v3459
  %v4182 = vpop.f32.mrf.mxu0
  %v4183 = vadd.f32 0.0, %v4182
  %v4184 = vpop.f32.mrf.mxu0
  %v4185 = vadd.f32 0.0, %v4184
  %4186 = vmatprep.mubr.f32.mxu0 %v3464
  %4187 = vmatmul.mubr.f32.gmra.mxu0 %v3463
  %v4188 = vpop.f32.mrf.mxu0
  %v4189 = vadd.f32 0.0, %v4188
  %v4190 = vpop.f32.mrf.mxu0
  %v4191 = vadd.f32 0.0, %v4190
  %4192 = vmatprep.mubr.f32.mxu0 %v3468
  %4193 = vmatmul.mubr.f32.gmra.mxu0 %v3467
  %v4194 = vpop.f32.mrf.mxu0
  %v4195 = vadd.f32 0.0, %v4194
  %v4196 = vpop.f32.mrf.mxu0
  %v4197 = vadd.f32 0.0, %v4196
  %4198 = vmatprep.mubr.f32.mxu0 %v3472
  %4199 = vmatmul.mubr.f32.gmra.mxu0 %v3471
  %v4200 = vpop.f32.mrf.mxu0
  %v4201 = vadd.f32 0.0, %v4200
  %v4202 = vpop.f32.mrf.mxu0
  %v4203 = vadd.f32 0.0, %v4202
  %4204 = vmatprep.mubr.f32.mxu0 %v3476
  %4205 = vmatmul.mubr.f32.gmra.mxu0 %v3475
  %v4206 = vpop.f32.mrf.mxu0
  %v4207 = vadd.f32 0.0, %v4206
  %v4208 = vpop.f32.mrf.mxu0
  %v4209 = vadd.f32 0.0, %v4208
  %4210 = vmatprep.mubr.f32.mxu0 %v3480
  %4211 = vmatmul.mubr.f32.gmra.mxu0 %v3479
  %v4212 = vpop.f32.mrf.mxu0
  %v4213 = vadd.f32 0.0, %v4212
  %v4214 = vpop.f32.mrf.mxu0
  %v4215 = vadd.f32 0.0, %v4214
  %4216 = vmatprep.mubr.f32.mxu0 %v3484
  %4217 = vmatmul.mubr.f32.gmra.mxu0 %v3483
  %v4218 = vpop.f32.mrf.mxu0
  %v4219 = vadd.f32 0.0, %v4218
  %v4220 = vpop.f32.mrf.mxu0
  %v4221 = vadd.f32 0.0, %v4220
  %4222 = vmatprep.mubr.f32.mxu0 %v3488
  %4223 = vmatmul.mubr.f32.gmra.mxu0 %v3487
  %v4224 = vpop.f32.mrf.mxu0
  %v4225 = vadd.f32 0.0, %v4224
  %v4226 = vpop.f32.mrf.mxu0
  %v4227 = vadd.f32 0.0, %v4226
  %4228 = vmatprep.mubr.f32.mxu0 %v3492
  %4229 = vmatmul.mubr.f32.gmra.mxu0 %v3491
  %v4230 = vpop.f32.mrf.mxu0
  %v4231 = vadd.f32 0.0, %v4230
  %v4232 = vpop.f32.mrf.mxu0
  %v4233 = vadd.f32 0.0, %v4232
  %4234 = vdwg.mxu0
  %4235 = vmatprep.subr.mxu0 %v3687
  %4236 = vmatpush1.msra.mxu0 %v3686
  %4237 = vmatprep.subr.mxu0 %v3683
  %4238 = vmatpush1.msra.mxu0 %v3682
  %4239 = vmatprep.subr.mxu0 %v3679
  %4240 = vmatpush1.msra.mxu0 %v3678
  %4241 = vmatprep.subr.mxu0 %v3675
  %4242 = vmatpush1.msra.mxu0 %v3674
  %4243 = vmatprep.subr.mxu0 %v3671
  %4244 = vmatpush1.msra.mxu0 %v3670
  %4245 = vmatprep.subr.mxu0 %v3667
  %4246 = vmatpush1.msra.mxu0 %v3666
  %4247 = vmatprep.subr.mxu0 %v3663
  %4248 = vmatpush1.msra.mxu0 %v3662
  %4249 = vmatprep.subr.mxu0 %v3659
  %4250 = vmatpush1.msra.mxu0 %v3658
  %4251 = vmatprep.subr.mxu0 %v3655
  %4252 = vmatpush1.msra.mxu0 %v3654
  %4253 = vmatprep.subr.mxu0 %v3651
  %4254 = vmatpush1.msra.mxu0 %v3650
  %4255 = vmatprep.subr.mxu0 %v3647
  %4256 = vmatpush1.msra.mxu0 %v3646
  %4257 = vmatprep.subr.mxu0 %v3643
  %4258 = vmatpush1.msra.mxu0 %v3642
  %4259 = vmatprep.subr.mxu0 %v3639
  %4260 = vmatpush1.msra.mxu0 %v3638
  %4261 = vmatprep.subr.mxu0 %v3635
  %4262 = vmatpush1.msra.mxu0 %v3634
  %4263 = vmatprep.subr.mxu0 %v3631
  %4264 = vmatpush1.msra.mxu0 %v3630
  %4265 = vmatprep.subr.mxu0 %v3627
  %4266 = vmatpush1.msra.mxu0 %v3626
  %4267 = vmatprep.subr.mxu0 %v3751
  %4268 = vmatpush2.msra.mxu0 %v3750
  %4269 = vmatprep.subr.mxu0 %v3747
  %4270 = vmatpush2.msra.mxu0 %v3746
  %4271 = vmatprep.subr.mxu0 %v3743
  %4272 = vmatpush2.msra.mxu0 %v3742
  %4273 = vmatprep.subr.mxu0 %v3739
  %4274 = vmatpush2.msra.mxu0 %v3738
  %4275 = vmatprep.subr.mxu0 %v3735
  %4276 = vmatpush2.msra.mxu0 %v3734
  %4277 = vmatprep.subr.mxu0 %v3731
  %4278 = vmatpush2.msra.mxu0 %v3730
  %4279 = vmatprep.subr.mxu0 %v3727
  %4280 = vmatpush2.msra.mxu0 %v3726
  %4281 = vmatprep.subr.mxu0 %v3723
  %4282 = vmatpush2.msra.mxu0 %v3722
  %4283 = vmatprep.subr.mxu0 %v3719
  %4284 = vmatpush2.msra.mxu0 %v3718
  %4285 = vmatprep.subr.mxu0 %v3715
  %4286 = vmatpush2.msra.mxu0 %v3714
  %4287 = vmatprep.subr.mxu0 %v3711
  %4288 = vmatpush2.msra.mxu0 %v3710
  %4289 = vmatprep.subr.mxu0 %v3707
  %4290 = vmatpush2.msra.mxu0 %v3706
  %4291 = vmatprep.subr.mxu0 %v3703
  %4292 = vmatpush2.msra.mxu0 %v3702
  %4293 = vmatprep.subr.mxu0 %v3699
  %4294 = vmatpush2.msra.mxu0 %v3698
  %4295 = vmatprep.subr.mxu0 %v3695
  %4296 = vmatpush2.msra.mxu0 %v3694
  %4297 = vmatprep.subr.mxu0 %v3691
  %4298 = vmatpush2.msra.mxu0 %v3690
  %4299 = vmatprep.mubr.f32.mxu0 %v3434
  %4300 = vmatmul.mubr.f32.gmra.mxu0 %v3433
  %v4301 = vpop.f32.mrf.mxu0
  %v4302 = vadd.f32 %v4141, %v4301
  %v4303 = vpop.f32.mrf.mxu0
  %v4304 = vadd.f32 %v4143, %v4303
  %4305 = vmatprep.mubr.f32.mxu0 %v3438
  %4306 = vmatmul.mubr.f32.gmra.mxu0 %v3437
  %v4307 = vpop.f32.mrf.mxu0
  %v4308 = vadd.f32 %v4147, %v4307
  %v4309 = vpop.f32.mrf.mxu0
  %v4310 = vadd.f32 %v4149, %v4309
  %4311 = vmatprep.mubr.f32.mxu0 %v3442
  %4312 = vmatmul.mubr.f32.gmra.mxu0 %v3441
  %v4313 = vpop.f32.mrf.mxu0
  %v4314 = vadd.f32 %v4153, %v4313
  %v4315 = vpop.f32.mrf.mxu0
  %v4316 = vadd.f32 %v4155, %v4315
  %4317 = vmatprep.mubr.f32.mxu0 %v3446
  %4318 = vmatmul.mubr.f32.gmra.mxu0 %v3445
  %v4319 = vpop.f32.mrf.mxu0
  %v4320 = vadd.f32 %v4159, %v4319
  %v4321 = vpop.f32.mrf.mxu0
  %v4322 = vadd.f32 %v4161, %v4321
  %4323 = vmatprep.mubr.f32.mxu0 %v3450
  %4324 = vmatmul.mubr.f32.gmra.mxu0 %v3449
  %v4325 = vpop.f32.mrf.mxu0
  %v4326 = vadd.f32 %v4165, %v4325
  %v4327 = vpop.f32.mrf.mxu0
  %v4328 = vadd.f32 %v4167, %v4327
  %4329 = vmatprep.mubr.f32.mxu0 %v3454
  %4330 = vmatmul.mubr.f32.gmra.mxu0 %v3453
  %v4331 = vpop.f32.mrf.mxu0
  %v4332 = vadd.f32 %v4171, %v4331
  %v4333 = vpop.f32.mrf.mxu0
  %v4334 = vadd.f32 %v4173, %v4333
  %4335 = vmatprep.mubr.f32.mxu0 %v3458
  %4336 = vmatmul.mubr.f32.gmra.mxu0 %v3457
  %v4337 = vpop.f32.mrf.mxu0
  %v4338 = vadd.f32 %v4177, %v4337
  %v4339 = vpop.f32.mrf.mxu0
  %v4340 = vadd.f32 %v4179, %v4339
  %4341 = vmatprep.mubr.f32.mxu0 %v3462
  %4342 = vmatmul.mubr.f32.gmra.mxu0 %v3461
  %v4343 = vpop.f32.mrf.mxu0
  %v4344 = vadd.f32 %v4183, %v4343
  %v4345 = vpop.f32.mrf.mxu0
  %v4346 = vadd.f32 %v4185, %v4345
  %4347 = vmatprep.mubr.f32.mxu0 %v3466
  %4348 = vmatmul.mubr.f32.gmra.mxu0 %v3465
  %v4349 = vpop.f32.mrf.mxu0
  %v4350 = vadd.f32 %v4189, %v4349
  %v4351 = vpop.f32.mrf.mxu0
  %v4352 = vadd.f32 %v4191, %v4351
  %4353 = vmatprep.mubr.f32.mxu0 %v3470
  %4354 = vmatmul.mubr.f32.gmra.mxu0 %v3469
  %v4355 = vpop.f32.mrf.mxu0
  %v4356 = vadd.f32 %v4195, %v4355
  %v4357 = vpop.f32.mrf.mxu0
  %v4358 = vadd.f32 %v4197, %v4357
  %4359 = vmatprep.mubr.f32.mxu0 %v3474
  %4360 = vmatmul.mubr.f32.gmra.mxu0 %v3473
  %v4361 = vpop.f32.mrf.mxu0
  %v4362 = vadd.f32 %v4201, %v4361
  %v4363 = vpop.f32.mrf.mxu0
  %v4364 = vadd.f32 %v4203, %v4363
  %4365 = vmatprep.mubr.f32.mxu0 %v3478
  %4366 = vmatmul.mubr.f32.gmra.mxu0 %v3477
  %v4367 = vpop.f32.mrf.mxu0
  %v4368 = vadd.f32 %v4207, %v4367
  %v4369 = vpop.f32.mrf.mxu0
  %v4370 = vadd.f32 %v4209, %v4369
  %4371 = vmatprep.mubr.f32.mxu0 %v3482
  %4372 = vmatmul.mubr.f32.gmra.mxu0 %v3481
  %v4373 = vpop.f32.mrf.mxu0
  %v4374 = vadd.f32 %v4213, %v4373
  %v4375 = vpop.f32.mrf.mxu0
  %v4376 = vadd.f32 %v4215, %v4375
  %4377 = vmatprep.mubr.f32.mxu0 %v3486
  %4378 = vmatmul.mubr.f32.gmra.mxu0 %v3485
  %v4379 = vpop.f32.mrf.mxu0
  %v4380 = vadd.f32 %v4219, %v4379
  %v4381 = vpop.f32.mrf.mxu0
  %v4382 = vadd.f32 %v4221, %v4381
  %4383 = vmatprep.mubr.f32.mxu0 %v3490
  %4384 = vmatmul.mubr.f32.gmra.mxu0 %v3489
  %v4385 = vpop.f32.mrf.mxu0
  %v4386 = vadd.f32 %v4225, %v4385
  %v4387 = vpop.f32.mrf.mxu0
  %v4388 = vadd.f32 %v4227, %v4387
  %4389 = vmatprep.mubr.f32.mxu0 %v3494
  %4390 = vmatmul.mubr.f32.gmra.mxu0 %v3493
  %v4391 = vpop.f32.mrf.mxu0
  %v4392 = vadd.f32 %v4231, %v4391
  %v4393 = vpop.f32.mrf.mxu0
  %v4394 = vadd.f32 %v4233, %v4393
  %4395 = vdwg.mxu0
  %v4396 = vadd.f32 %v3014, %v3980
  %v4397 = vadd.f32 %v3016, %v3982
  %v4398 = vadd.f32 %v3336, %v4302
  %v4399 = vadd.f32 %v3338, %v4304
  %v4400 = vadd.f32 %v3020, %v3986
  %v4401 = vadd.f32 %v3022, %v3988
  %v4402 = vadd.f32 %v3342, %v4308
  %v4403 = vadd.f32 %v3344, %v4310
  %v4404 = vadd.f32 %v3026, %v3992
  %v4405 = vadd.f32 %v3028, %v3994
  %v4406 = vadd.f32 %v3348, %v4314
  %v4407 = vadd.f32 %v3350, %v4316
  %v4408 = vadd.f32 %v3032, %v3998
  %v4409 = vadd.f32 %v3034, %v4000
  %v4410 = vadd.f32 %v3354, %v4320
  %v4411 = vadd.f32 %v3356, %v4322
  %v4412 = vadd.f32 %v3038, %v4004
  %v4413 = vadd.f32 %v3040, %v4006
  %v4414 = vadd.f32 %v3360, %v4326
  %v4415 = vadd.f32 %v3362, %v4328
  %v4416 = vadd.f32 %v3044, %v4010
  %v4417 = vadd.f32 %v3046, %v4012
  %v4418 = vadd.f32 %v3366, %v4332
  %v4419 = vadd.f32 %v3368, %v4334
  %v4420 = vadd.f32 %v3050, %v4016
  %v4421 = vadd.f32 %v3052, %v4018
  %v4422 = vadd.f32 %v3372, %v4338
  %v4423 = vadd.f32 %v3374, %v4340
  %v4424 = vadd.f32 %v3056, %v4022
  %v4425 = vadd.f32 %v3058, %v4024
  %v4426 = vadd.f32 %v3378, %v4344
  %v4427 = vadd.f32 %v3380, %v4346
  %v4428 = vadd.f32 %v3062, %v4028
  %v4429 = vadd.f32 %v3064, %v4030
  %v4430 = vadd.f32 %v3384, %v4350
  %v4431 = vadd.f32 %v3386, %v4352
  %v4432 = vadd.f32 %v3068, %v4034
  %v4433 = vadd.f32 %v3070, %v4036
  %v4434 = vadd.f32 %v3390, %v4356
  %v4435 = vadd.f32 %v3392, %v4358
  %v4436 = vadd.f32 %v3074, %v4040
  %v4437 = vadd.f32 %v3076, %v4042
  %v4438 = vadd.f32 %v3396, %v4362
  %v4439 = vadd.f32 %v3398, %v4364
  %v4440 = vadd.f32 %v3080, %v4046
  %v4441 = vadd.f32 %v3082, %v4048
  %v4442 = vadd.f32 %v3402, %v4368
  %v4443 = vadd.f32 %v3404, %v4370
  %v4444 = vadd.f32 %v3086, %v4052
  %v4445 = vadd.f32 %v3088, %v4054
  %v4446 = vadd.f32 %v3408, %v4374
  %v4447 = vadd.f32 %v3410, %v4376
  %v4448 = vadd.f32 %v3092, %v4058
  %v4449 = vadd.f32 %v3094, %v4060
  %v4450 = vadd.f32 %v3414, %v4380
  %v4451 = vadd.f32 %v3416, %v4382
  %v4452 = vadd.f32 %v3098, %v4064
  %v4453 = vadd.f32 %v3100, %v4066
  %v4454 = vadd.f32 %v3420, %v4386
  %v4455 = vadd.f32 %v3422, %v4388
  %v4456 = vadd.f32 %v3104, %v4070
  %v4457 = vadd.f32 %v3106, %v4072
  %v4458 = vadd.f32 %v3426, %v4392
  %v4459 = vadd.f32 %v3428, %v4394
  %v4460 = vld [vmem:[%s5] sm:$0xf]
  %v4462 = vlaneseq
  %v4463 = vshrl.u32 %v4462, 7
  %v4464 = vsub.s32 0, %v4463
  %v4465 = vrot.slane %v4460, %v4464
  %v4466 = vlaneseq
  %v4467 = vshrl.u32 %v4466, 7
  %v4468 = vsub.s32 1, %v4467
  %v4469 = vrot.slane %v4460, %v4468
  %v4470 = vlaneseq
  %v4471 = vshrl.u32 %v4470, 7
  %v4472 = vsub.s32 2, %v4471
  %v4473 = vrot.slane %v4460, %v4472
  %v4474 = vlaneseq
  %v4475 = vshrl.u32 %v4474, 7
  %v4476 = vsub.s32 3, %v4475
  %v4477 = vrot.slane %v4460, %v4476
  %v4482 = vadd.f32 %v4396, %v4465
  %v4483 = vadd.f32 %v4397, %v4469
  %v4484 = vadd.f32 %v4398, %v4473
  %v4485 = vadd.f32 %v4399, %v4477
  %v4486 = vadd.f32 %v4400, %v4465
  %v4487 = vadd.f32 %v4401, %v4469
  %v4488 = vadd.f32 %v4402, %v4473
  %v4489 = vadd.f32 %v4403, %v4477
  %v4490 = vadd.f32 %v4404, %v4465
  %v4491 = vadd.f32 %v4405, %v4469
  %v4492 = vadd.f32 %v4406, %v4473
  %v4493 = vadd.f32 %v4407, %v4477
  %v4494 = vadd.f32 %v4408, %v4465
  %v4495 = vadd.f32 %v4409, %v4469
  %v4496 = vadd.f32 %v4410, %v4473
  %v4497 = vadd.f32 %v4411, %v4477
  %v4498 = vadd.f32 %v4412, %v4465
  %v4499 = vadd.f32 %v4413, %v4469
  %v4500 = vadd.f32 %v4414, %v4473
  %v4501 = vadd.f32 %v4415, %v4477
  %v4502 = vadd.f32 %v4416, %v4465
  %v4503 = vadd.f32 %v4417, %v4469
  %v4504 = vadd.f32 %v4418, %v4473
  %v4505 = vadd.f32 %v4419, %v4477
  %v4506 = vadd.f32 %v4420, %v4465
  %v4507 = vadd.f32 %v4421, %v4469
  %v4508 = vadd.f32 %v4422, %v4473
  %v4509 = vadd.f32 %v4423, %v4477
  %v4510 = vadd.f32 %v4424, %v4465
  %v4511 = vadd.f32 %v4425, %v4469
  %v4512 = vadd.f32 %v4426, %v4473
  %v4513 = vadd.f32 %v4427, %v4477
  %v4514 = vadd.f32 %v4428, %v4465
  %v4515 = vadd.f32 %v4429, %v4469
  %v4516 = vadd.f32 %v4430, %v4473
  %v4517 = vadd.f32 %v4431, %v4477
  %v4518 = vadd.f32 %v4432, %v4465
  %v4519 = vadd.f32 %v4433, %v4469
  %v4520 = vadd.f32 %v4434, %v4473
  %v4521 = vadd.f32 %v4435, %v4477
  %v4522 = vadd.f32 %v4436, %v4465
  %v4523 = vadd.f32 %v4437, %v4469
  %v4524 = vadd.f32 %v4438, %v4473
  %v4525 = vadd.f32 %v4439, %v4477
  %v4526 = vadd.f32 %v4440, %v4465
  %v4527 = vadd.f32 %v4441, %v4469
  %v4528 = vadd.f32 %v4442, %v4473
  %v4529 = vadd.f32 %v4443, %v4477
  %v4530 = vadd.f32 %v4444, %v4465
  %v4531 = vadd.f32 %v4445, %v4469
  %v4532 = vadd.f32 %v4446, %v4473
  %v4533 = vadd.f32 %v4447, %v4477
  %v4534 = vadd.f32 %v4448, %v4465
  %v4535 = vadd.f32 %v4449, %v4469
  %v4536 = vadd.f32 %v4450, %v4473
  %v4537 = vadd.f32 %v4451, %v4477
  %v4538 = vadd.f32 %v4452, %v4465
  %v4539 = vadd.f32 %v4453, %v4469
  %v4540 = vadd.f32 %v4454, %v4473
  %v4541 = vadd.f32 %v4455, %v4477
  %v4542 = vadd.f32 %v4456, %v4465
  %v4543 = vadd.f32 %v4457, %v4469
  %v4544 = vadd.f32 %v4458, %v4473
  %v4545 = vadd.f32 %v4459, %v4477
  %v4546 = vmax.f32 %v4482, 0.0
  %v4547 = vmax.f32 %v4483, 0.0
  %v4548 = vmax.f32 %v4484, 0.0
  %v4549 = vmax.f32 %v4485, 0.0
  %v4550 = vmax.f32 %v4486, 0.0
  %v4551 = vmax.f32 %v4487, 0.0
  %v4552 = vmax.f32 %v4488, 0.0
  %v4553 = vmax.f32 %v4489, 0.0
  %v4554 = vmax.f32 %v4490, 0.0
  %v4555 = vmax.f32 %v4491, 0.0
  %v4556 = vmax.f32 %v4492, 0.0
  %v4557 = vmax.f32 %v4493, 0.0
  %v4558 = vmax.f32 %v4494, 0.0
  %v4559 = vmax.f32 %v4495, 0.0
  %v4560 = vmax.f32 %v4496, 0.0
  %v4561 = vmax.f32 %v4497, 0.0
  %v4562 = vmax.f32 %v4498, 0.0
  %v4563 = vmax.f32 %v4499, 0.0
  %v4564 = vmax.f32 %v4500, 0.0
  %v4565 = vmax.f32 %v4501, 0.0
  %v4566 = vmax.f32 %v4502, 0.0
  %v4567 = vmax.f32 %v4503, 0.0
  %v4568 = vmax.f32 %v4504, 0.0
  %v4569 = vmax.f32 %v4505, 0.0
  %v4570 = vmax.f32 %v4506, 0.0
  %v4571 = vmax.f32 %v4507, 0.0
  %v4572 = vmax.f32 %v4508, 0.0
  %v4573 = vmax.f32 %v4509, 0.0
  %v4574 = vmax.f32 %v4510, 0.0
  %v4575 = vmax.f32 %v4511, 0.0
  %v4576 = vmax.f32 %v4512, 0.0
  %v4577 = vmax.f32 %v4513, 0.0
  %v4578 = vmax.f32 %v4514, 0.0
  %v4579 = vmax.f32 %v4515, 0.0
  %v4580 = vmax.f32 %v4516, 0.0
  %v4581 = vmax.f32 %v4517, 0.0
  %v4582 = vmax.f32 %v4518, 0.0
  %v4583 = vmax.f32 %v4519, 0.0
  %v4584 = vmax.f32 %v4520, 0.0
  %v4585 = vmax.f32 %v4521, 0.0
  %v4586 = vmax.f32 %v4522, 0.0
  %v4587 = vmax.f32 %v4523, 0.0
  %v4588 = vmax.f32 %v4524, 0.0
  %v4589 = vmax.f32 %v4525, 0.0
  %v4590 = vmax.f32 %v4526, 0.0
  %v4591 = vmax.f32 %v4527, 0.0
  %v4592 = vmax.f32 %v4528, 0.0
  %v4593 = vmax.f32 %v4529, 0.0
  %v4594 = vmax.f32 %v4530, 0.0
  %v4595 = vmax.f32 %v4531, 0.0
  %v4596 = vmax.f32 %v4532, 0.0
  %v4597 = vmax.f32 %v4533, 0.0
  %v4598 = vmax.f32 %v4534, 0.0
  %v4599 = vmax.f32 %v4535, 0.0
  %v4600 = vmax.f32 %v4536, 0.0
  %v4601 = vmax.f32 %v4537, 0.0
  %v4602 = vmax.f32 %v4538, 0.0
  %v4603 = vmax.f32 %v4539, 0.0
  %v4604 = vmax.f32 %v4540, 0.0
  %v4605 = vmax.f32 %v4541, 0.0
  %v4606 = vmax.f32 %v4542, 0.0
  %v4607 = vmax.f32 %v4543, 0.0
  %v4608 = vmax.f32 %v4544, 0.0
  %v4609 = vmax.f32 %v4545, 0.0
  %4610 = vst [vmem:[#allocation3] sm:$0xff] 0.0
  %4611 = vst [vmem:[#allocation3 + $0x8] sm:$0xff] 0.0
  %4612 = vst [vmem:[#allocation3 + $0x10] sm:$0xff] 0.0
  %4613 = vst [vmem:[#allocation3 + $0x18] sm:$0xff] 0.0
  %s4614 = scalar_lea.vmem [#allocation3], 544
  %4615 = vst [vmem:[%s4614] sm:$0xff] 0.0
  %4616 = vst [vmem:[%s4614 + $0x8] sm:$0xff] 0.0
  %4617 = vst [vmem:[%s4614 + $0x10] sm:$0xff] 0.0
  %4618 = vst [vmem:[%s4614 + $0x18] sm:$0xff] 0.0
  %s4619 = scalar_lea.vmem [#allocation3], 32
  %4620 = vst [vmem:[%s4619] sm:$0xff] %v4546
  %4621 = vst [vmem:[%s4619 + $0x8] sm:$0xff] %v4547
  %4622 = vst [vmem:[%s4619 + $0x10] sm:$0xff] %v4548
  %4623 = vst [vmem:[%s4619 + $0x18] sm:$0xff] %v4549
  %4624 = vst [vmem:[%s4619 + $0x20] sm:$0xff] %v4550
  %4625 = vst [vmem:[%s4619 + $0x28] sm:$0xff] %v4551
  %4626 = vst [vmem:[%s4619 + $0x30] sm:$0xff] %v4552
  %4627 = vst [vmem:[%s4619 + $0x38] sm:$0xff] %v4553
  %4628 = vst [vmem:[%s4619 + $0x40] sm:$0xff] %v4554
  %4629 = vst [vmem:[%s4619 + $0x48] sm:$0xff] %v4555
  %4630 = vst [vmem:[%s4619 + $0x50] sm:$0xff] %v4556
  %4631 = vst [vmem:[%s4619 + $0x58] sm:$0xff] %v4557
  %4632 = vst [vmem:[%s4619 + $0x60] sm:$0xff] %v4558
  %4633 = vst [vmem:[%s4619 + $0x68] sm:$0xff] %v4559
  %4634 = vst [vmem:[%s4619 + $0x70] sm:$0xff] %v4560
  %4635 = vst [vmem:[%s4619 + $0x78] sm:$0xff] %v4561
  %4636 = vst [vmem:[%s4619 + $0x80] sm:$0xff] %v4562
  %4637 = vst [vmem:[%s4619 + $0x88] sm:$0xff] %v4563
  %4638 = vst [vmem:[%s4619 + $0x90] sm:$0xff] %v4564
  %4639 = vst [vmem:[%s4619 + $0x98] sm:$0xff] %v4565
  %4640 = vst [vmem:[%s4619 + $0xa0] sm:$0xff] %v4566
  %4641 = vst [vmem:[%s4619 + $0xa8] sm:$0xff] %v4567
  %4642 = vst [vmem:[%s4619 + $0xb0] sm:$0xff] %v4568
  %4643 = vst [vmem:[%s4619 + $0xb8] sm:$0xff] %v4569
  %4644 = vst [vmem:[%s4619 + $0xc0] sm:$0xff] %v4570
  %4645 = vst [vmem:[%s4619 + $0xc8] sm:$0xff] %v4571
  %4646 = vst [vmem:[%s4619 + $0xd0] sm:$0xff] %v4572
  %4647 = vst [vmem:[%s4619 + $0xd8] sm:$0xff] %v4573
  %4648 = vst [vmem:[%s4619 + $0xe0] sm:$0xff] %v4574
  %4649 = vst [vmem:[%s4619 + $0xe8] sm:$0xff] %v4575
  %4650 = vst [vmem:[%s4619 + $0xf0] sm:$0xff] %v4576
  %4651 = vst [vmem:[%s4619 + $0xf8] sm:$0xff] %v4577
  %4652 = vst [vmem:[%s4619 + $0x100] sm:$0xff] %v4578
  %4653 = vst [vmem:[%s4619 + $0x108] sm:$0xff] %v4579
  %4654 = vst [vmem:[%s4619 + $0x110] sm:$0xff] %v4580
  %4655 = vst [vmem:[%s4619 + $0x118] sm:$0xff] %v4581
  %4656 = vst [vmem:[%s4619 + $0x120] sm:$0xff] %v4582
  %4657 = vst [vmem:[%s4619 + $0x128] sm:$0xff] %v4583
  %4658 = vst [vmem:[%s4619 + $0x130] sm:$0xff] %v4584
  %4659 = vst [vmem:[%s4619 + $0x138] sm:$0xff] %v4585
  %4660 = vst [vmem:[%s4619 + $0x140] sm:$0xff] %v4586
  %4661 = vst [vmem:[%s4619 + $0x148] sm:$0xff] %v4587
  %4662 = vst [vmem:[%s4619 + $0x150] sm:$0xff] %v4588
  %4663 = vst [vmem:[%s4619 + $0x158] sm:$0xff] %v4589
  %4664 = vst [vmem:[%s4619 + $0x160] sm:$0xff] %v4590
  %4665 = vst [vmem:[%s4619 + $0x168] sm:$0xff] %v4591
  %4666 = vst [vmem:[%s4619 + $0x170] sm:$0xff] %v4592
  %4667 = vst [vmem:[%s4619 + $0x178] sm:$0xff] %v4593
  %4668 = vst [vmem:[%s4619 + $0x180] sm:$0xff] %v4594
  %4669 = vst [vmem:[%s4619 + $0x188] sm:$0xff] %v4595
  %4670 = vst [vmem:[%s4619 + $0x190] sm:$0xff] %v4596
  %4671 = vst [vmem:[%s4619 + $0x198] sm:$0xff] %v4597
  %4672 = vst [vmem:[%s4619 + $0x1a0] sm:$0xff] %v4598
  %4673 = vst [vmem:[%s4619 + $0x1a8] sm:$0xff] %v4599
  %4674 = vst [vmem:[%s4619 + $0x1b0] sm:$0xff] %v4600
  %4675 = vst [vmem:[%s4619 + $0x1b8] sm:$0xff] %v4601
  %4676 = vst [vmem:[%s4619 + $0x1c0] sm:$0xff] %v4602
  %4677 = vst [vmem:[%s4619 + $0x1c8] sm:$0xff] %v4603
  %4678 = vst [vmem:[%s4619 + $0x1d0] sm:$0xff] %v4604
  %4679 = vst [vmem:[%s4619 + $0x1d8] sm:$0xff] %v4605
  %4680 = vst [vmem:[%s4619 + $0x1e0] sm:$0xff] %v4606
  %4681 = vst [vmem:[%s4619 + $0x1e8] sm:$0xff] %v4607
  %4682 = vst [vmem:[%s4619 + $0x1f0] sm:$0xff] %v4608
  %4683 = vst [vmem:[%s4619 + $0x1f8] sm:$0xff] %v4609
  %v4684 = vld [vmem:[#allocation3] sm:$0xff]
  %v4685 = vld [vmem:[#allocation3 + $0x8] sm:$0xff]
  %v4686 = vld [vmem:[#allocation3 + $0x10] sm:$0xff]
  %v4687 = vld [vmem:[#allocation3 + $0x18] sm:$0xff]
  %v4688 = vld [vmem:[#allocation3 + $0x20] sm:$0xff]
  %v4689 = vld [vmem:[#allocation3 + $0x28] sm:$0xff]
  %v4690 = vld [vmem:[#allocation3 + $0x30] sm:$0xff]
  %v4691 = vld [vmem:[#allocation3 + $0x38] sm:$0xff]
  %v4692 = vld [vmem:[#allocation3 + $0x40] sm:$0xff]
  %v4693 = vld [vmem:[#allocation3 + $0x48] sm:$0xff]
  %v4694 = vld [vmem:[#allocation3 + $0x50] sm:$0xff]
  %v4695 = vld [vmem:[#allocation3 + $0x58] sm:$0xff]
  %v4696 = vld [vmem:[#allocation3 + $0x60] sm:$0xff]
  %v4697 = vld [vmem:[#allocation3 + $0x68] sm:$0xff]
  %v4698 = vld [vmem:[#allocation3 + $0x70] sm:$0xff]
  %v4699 = vld [vmem:[#allocation3 + $0x78] sm:$0xff]
  %v4700 = vld [vmem:[#allocation3 + $0x80] sm:$0xff]
  %v4701 = vld [vmem:[#allocation3 + $0x88] sm:$0xff]
  %v4702 = vld [vmem:[#allocation3 + $0x90] sm:$0xff]
  %v4703 = vld [vmem:[#allocation3 + $0x98] sm:$0xff]
  %v4704 = vld [vmem:[#allocation3 + $0xa0] sm:$0xff]
  %v4705 = vld [vmem:[#allocation3 + $0xa8] sm:$0xff]
  %v4706 = vld [vmem:[#allocation3 + $0xb0] sm:$0xff]
  %v4707 = vld [vmem:[#allocation3 + $0xb8] sm:$0xff]
  %v4708 = vld [vmem:[#allocation3 + $0xc0] sm:$0xff]
  %v4709 = vld [vmem:[#allocation3 + $0xc8] sm:$0xff]
  %v4710 = vld [vmem:[#allocation3 + $0xd0] sm:$0xff]
  %v4711 = vld [vmem:[#allocation3 + $0xd8] sm:$0xff]
  %v4712 = vld [vmem:[#allocation3 + $0xe0] sm:$0xff]
  %v4713 = vld [vmem:[#allocation3 + $0xe8] sm:$0xff]
  %v4714 = vld [vmem:[#allocation3 + $0xf0] sm:$0xff]
  %v4715 = vld [vmem:[#allocation3 + $0xf8] sm:$0xff]
  %v4716 = vld [vmem:[#allocation3 + $0x100] sm:$0xff]
  %v4717 = vld [vmem:[#allocation3 + $0x108] sm:$0xff]
  %v4718 = vld [vmem:[#allocation3 + $0x110] sm:$0xff]
  %v4719 = vld [vmem:[#allocation3 + $0x118] sm:$0xff]
  %v4720 = vld [vmem:[#allocation3 + $0x120] sm:$0xff]
  %v4721 = vld [vmem:[#allocation3 + $0x128] sm:$0xff]
  %v4722 = vld [vmem:[#allocation3 + $0x130] sm:$0xff]
  %v4723 = vld [vmem:[#allocation3 + $0x138] sm:$0xff]
  %v4724 = vld [vmem:[#allocation3 + $0x140] sm:$0xff]
  %v4725 = vld [vmem:[#allocation3 + $0x148] sm:$0xff]
  %v4726 = vld [vmem:[#allocation3 + $0x150] sm:$0xff]
  %v4727 = vld [vmem:[#allocation3 + $0x158] sm:$0xff]
  %v4728 = vld [vmem:[#allocation3 + $0x160] sm:$0xff]
  %v4729 = vld [vmem:[#allocation3 + $0x168] sm:$0xff]
  %v4730 = vld [vmem:[#allocation3 + $0x170] sm:$0xff]
  %v4731 = vld [vmem:[#allocation3 + $0x178] sm:$0xff]
  %v4732 = vld [vmem:[#allocation3 + $0x180] sm:$0xff]
  %v4733 = vld [vmem:[#allocation3 + $0x188] sm:$0xff]
  %v4734 = vld [vmem:[#allocation3 + $0x190] sm:$0xff]
  %v4735 = vld [vmem:[#allocation3 + $0x198] sm:$0xff]
  %v4736 = vld [vmem:[#allocation3 + $0x1a0] sm:$0xff]
  %v4737 = vld [vmem:[#allocation3 + $0x1a8] sm:$0xff]
  %v4738 = vld [vmem:[#allocation3 + $0x1b0] sm:$0xff]
  %v4739 = vld [vmem:[#allocation3 + $0x1b8] sm:$0xff]
  %v4740 = vld [vmem:[#allocation3 + $0x1c0] sm:$0xff]
  %v4741 = vld [vmem:[#allocation3 + $0x1c8] sm:$0xff]
  %v4742 = vld [vmem:[#allocation3 + $0x1d0] sm:$0xff]
  %v4743 = vld [vmem:[#allocation3 + $0x1d8] sm:$0xff]
  %v4744 = vld [vmem:[#allocation3 + $0x1e0] sm:$0xff]
  %v4745 = vld [vmem:[#allocation3 + $0x1e8] sm:$0xff]
  %v4746 = vld [vmem:[#allocation3 + $0x1f0] sm:$0xff]
  %v4747 = vld [vmem:[#allocation3 + $0x1f8] sm:$0xff]
  %v4748 = vld [vmem:[%s3] sm:$0xff]
  %v4749 = vld [vmem:[%s3 + $0x8] sm:$0xff]
  %v4750 = vld [vmem:[%s3 + $0x10] sm:$0xff]
  %v4751 = vld [vmem:[%s3 + $0x18] sm:$0xff]
  %v4752 = vld [vmem:[%s3 + $0x20] sm:$0xff]
  %v4753 = vld [vmem:[%s3 + $0x28] sm:$0xff]
  %v4754 = vld [vmem:[%s3 + $0x30] sm:$0xff]
  %v4755 = vld [vmem:[%s3 + $0x38] sm:$0xff]
  %v4756 = vld [vmem:[%s3 + $0x40] sm:$0xff]
  %v4757 = vld [vmem:[%s3 + $0x48] sm:$0xff]
  %v4758 = vld [vmem:[%s3 + $0x50] sm:$0xff]
  %v4759 = vld [vmem:[%s3 + $0x58] sm:$0xff]
  %v4760 = vld [vmem:[%s3 + $0x60] sm:$0xff]
  %v4761 = vld [vmem:[%s3 + $0x68] sm:$0xff]
  %v4762 = vld [vmem:[%s3 + $0x70] sm:$0xff]
  %v4763 = vld [vmem:[%s3 + $0x78] sm:$0xff]
  %v4764 = vld [vmem:[%s3 + $0x80] sm:$0xff]
  %v4765 = vld [vmem:[%s3 + $0x88] sm:$0xff]
  %v4766 = vld [vmem:[%s3 + $0x90] sm:$0xff]
  %v4767 = vld [vmem:[%s3 + $0x98] sm:$0xff]
  %v4768 = vld [vmem:[%s3 + $0xa0] sm:$0xff]
  %v4769 = vld [vmem:[%s3 + $0xa8] sm:$0xff]
  %v4770 = vld [vmem:[%s3 + $0xb0] sm:$0xff]
  %v4771 = vld [vmem:[%s3 + $0xb8] sm:$0xff]
  %v4772 = vld [vmem:[%s3 + $0xc0] sm:$0xff]
  %v4773 = vld [vmem:[%s3 + $0xc8] sm:$0xff]
  %v4774 = vld [vmem:[%s3 + $0xd0] sm:$0xff]
  %v4775 = vld [vmem:[%s3 + $0xd8] sm:$0xff]
  %v4776 = vld [vmem:[%s3 + $0xe0] sm:$0xff]
  %v4777 = vld [vmem:[%s3 + $0xe8] sm:$0xff]
  %v4778 = vld [vmem:[%s3 + $0xf0] sm:$0xff]
  %v4779 = vld [vmem:[%s3 + $0xf8] sm:$0xff]
  %v4780 = vld [vmem:[%s3 + $0x100] sm:$0xff]
  %v4781 = vld [vmem:[%s3 + $0x108] sm:$0xff]
  %v4782 = vld [vmem:[%s3 + $0x110] sm:$0xff]
  %v4783 = vld [vmem:[%s3 + $0x118] sm:$0xff]
  %v4784 = vld [vmem:[%s3 + $0x120] sm:$0xff]
  %v4785 = vld [vmem:[%s3 + $0x128] sm:$0xff]
  %v4786 = vld [vmem:[%s3 + $0x130] sm:$0xff]
  %v4787 = vld [vmem:[%s3 + $0x138] sm:$0xff]
  %v4788 = vld [vmem:[%s3 + $0x140] sm:$0xff]
  %v4789 = vld [vmem:[%s3 + $0x148] sm:$0xff]
  %v4790 = vld [vmem:[%s3 + $0x150] sm:$0xff]
  %v4791 = vld [vmem:[%s3 + $0x158] sm:$0xff]
  %v4792 = vld [vmem:[%s3 + $0x160] sm:$0xff]
  %v4793 = vld [vmem:[%s3 + $0x168] sm:$0xff]
  %v4794 = vld [vmem:[%s3 + $0x170] sm:$0xff]
  %v4795 = vld [vmem:[%s3 + $0x178] sm:$0xff]
  %v4796 = vld [vmem:[%s3 + $0x180] sm:$0xff]
  %v4797 = vld [vmem:[%s3 + $0x188] sm:$0xff]
  %v4798 = vld [vmem:[%s3 + $0x190] sm:$0xff]
  %v4799 = vld [vmem:[%s3 + $0x198] sm:$0xff]
  %v4800 = vld [vmem:[%s3 + $0x1a0] sm:$0xff]
  %v4801 = vld [vmem:[%s3 + $0x1a8] sm:$0xff]
  %v4802 = vld [vmem:[%s3 + $0x1b0] sm:$0xff]
  %v4803 = vld [vmem:[%s3 + $0x1b8] sm:$0xff]
  %v4804 = vld [vmem:[%s3 + $0x1c0] sm:$0xff]
  %v4805 = vld [vmem:[%s3 + $0x1c8] sm:$0xff]
  %v4806 = vld [vmem:[%s3 + $0x1d0] sm:$0xff]
  %v4807 = vld [vmem:[%s3 + $0x1d8] sm:$0xff]
  %v4808 = vld [vmem:[%s3 + $0x1e0] sm:$0xff]
  %v4809 = vld [vmem:[%s3 + $0x1e8] sm:$0xff]
  %v4810 = vld [vmem:[%s3 + $0x1f0] sm:$0xff]
  %v4811 = vld [vmem:[%s3 + $0x1f8] sm:$0xff]
  %v4812 = vld [vmem:[%s3 + $0x200] sm:$0xff]
  %v4813 = vld [vmem:[%s3 + $0x208] sm:$0xff]
  %v4814 = vld [vmem:[%s3 + $0x210] sm:$0xff]
  %v4815 = vld [vmem:[%s3 + $0x218] sm:$0xff]
  %v4816 = vld [vmem:[%s3 + $0x220] sm:$0xff]
  %v4817 = vld [vmem:[%s3 + $0x228] sm:$0xff]
  %v4818 = vld [vmem:[%s3 + $0x230] sm:$0xff]
  %v4819 = vld [vmem:[%s3 + $0x238] sm:$0xff]
  %v4820 = vld [vmem:[%s3 + $0x240] sm:$0xff]
  %v4821 = vld [vmem:[%s3 + $0x248] sm:$0xff]
  %v4822 = vld [vmem:[%s3 + $0x250] sm:$0xff]
  %v4823 = vld [vmem:[%s3 + $0x258] sm:$0xff]
  %v4824 = vld [vmem:[%s3 + $0x260] sm:$0xff]
  %v4825 = vld [vmem:[%s3 + $0x268] sm:$0xff]
  %v4826 = vld [vmem:[%s3 + $0x270] sm:$0xff]
  %v4827 = vld [vmem:[%s3 + $0x278] sm:$0xff]
  %v4828 = vld [vmem:[%s3 + $0x280] sm:$0xff]
  %v4829 = vld [vmem:[%s3 + $0x288] sm:$0xff]
  %v4830 = vld [vmem:[%s3 + $0x290] sm:$0xff]
  %v4831 = vld [vmem:[%s3 + $0x298] sm:$0xff]
  %v4832 = vld [vmem:[%s3 + $0x2a0] sm:$0xff]
  %v4833 = vld [vmem:[%s3 + $0x2a8] sm:$0xff]
  %v4834 = vld [vmem:[%s3 + $0x2b0] sm:$0xff]
  %v4835 = vld [vmem:[%s3 + $0x2b8] sm:$0xff]
  %v4836 = vld [vmem:[%s3 + $0x2c0] sm:$0xff]
  %v4837 = vld [vmem:[%s3 + $0x2c8] sm:$0xff]
  %v4838 = vld [vmem:[%s3 + $0x2d0] sm:$0xff]
  %v4839 = vld [vmem:[%s3 + $0x2d8] sm:$0xff]
  %v4840 = vld [vmem:[%s3 + $0x2e0] sm:$0xff]
  %v4841 = vld [vmem:[%s3 + $0x2e8] sm:$0xff]
  %v4842 = vld [vmem:[%s3 + $0x2f0] sm:$0xff]
  %v4843 = vld [vmem:[%s3 + $0x2f8] sm:$0xff]
  %v4844 = vld [vmem:[%s3 + $0x300] sm:$0xff]
  %v4845 = vld [vmem:[%s3 + $0x308] sm:$0xff]
  %v4846 = vld [vmem:[%s3 + $0x310] sm:$0xff]
  %v4847 = vld [vmem:[%s3 + $0x318] sm:$0xff]
  %v4848 = vld [vmem:[%s3 + $0x320] sm:$0xff]
  %v4849 = vld [vmem:[%s3 + $0x328] sm:$0xff]
  %v4850 = vld [vmem:[%s3 + $0x330] sm:$0xff]
  %v4851 = vld [vmem:[%s3 + $0x338] sm:$0xff]
  %v4852 = vld [vmem:[%s3 + $0x340] sm:$0xff]
  %v4853 = vld [vmem:[%s3 + $0x348] sm:$0xff]
  %v4854 = vld [vmem:[%s3 + $0x350] sm:$0xff]
  %v4855 = vld [vmem:[%s3 + $0x358] sm:$0xff]
  %v4856 = vld [vmem:[%s3 + $0x360] sm:$0xff]
  %v4857 = vld [vmem:[%s3 + $0x368] sm:$0xff]
  %v4858 = vld [vmem:[%s3 + $0x370] sm:$0xff]
  %v4859 = vld [vmem:[%s3 + $0x378] sm:$0xff]
  %v4860 = vld [vmem:[%s3 + $0x380] sm:$0xff]
  %v4861 = vld [vmem:[%s3 + $0x388] sm:$0xff]
  %v4862 = vld [vmem:[%s3 + $0x390] sm:$0xff]
  %v4863 = vld [vmem:[%s3 + $0x398] sm:$0xff]
  %v4864 = vld [vmem:[%s3 + $0x3a0] sm:$0xff]
  %v4865 = vld [vmem:[%s3 + $0x3a8] sm:$0xff]
  %v4866 = vld [vmem:[%s3 + $0x3b0] sm:$0xff]
  %v4867 = vld [vmem:[%s3 + $0x3b8] sm:$0xff]
  %v4868 = vld [vmem:[%s3 + $0x3c0] sm:$0xff]
  %v4869 = vld [vmem:[%s3 + $0x3c8] sm:$0xff]
  %v4870 = vld [vmem:[%s3 + $0x3d0] sm:$0xff]
  %v4871 = vld [vmem:[%s3 + $0x3d8] sm:$0xff]
  %v4872 = vld [vmem:[%s3 + $0x3e0] sm:$0xff]
  %v4873 = vld [vmem:[%s3 + $0x3e8] sm:$0xff]
  %v4874 = vld [vmem:[%s3 + $0x3f0] sm:$0xff]
  %v4875 = vld [vmem:[%s3 + $0x3f8] sm:$0xff]
  %v4876 = vld [vmem:[%s3 + $0x400] sm:$0xff]
  %v4877 = vld [vmem:[%s3 + $0x408] sm:$0xff]
  %v4878 = vld [vmem:[%s3 + $0x410] sm:$0xff]
  %v4879 = vld [vmem:[%s3 + $0x418] sm:$0xff]
  %v4880 = vld [vmem:[%s3 + $0x420] sm:$0xff]
  %v4881 = vld [vmem:[%s3 + $0x428] sm:$0xff]
  %v4882 = vld [vmem:[%s3 + $0x430] sm:$0xff]
  %v4883 = vld [vmem:[%s3 + $0x438] sm:$0xff]
  %v4884 = vld [vmem:[%s3 + $0x440] sm:$0xff]
  %v4885 = vld [vmem:[%s3 + $0x448] sm:$0xff]
  %v4886 = vld [vmem:[%s3 + $0x450] sm:$0xff]
  %v4887 = vld [vmem:[%s3 + $0x458] sm:$0xff]
  %v4888 = vld [vmem:[%s3 + $0x460] sm:$0xff]
  %v4889 = vld [vmem:[%s3 + $0x468] sm:$0xff]
  %v4890 = vld [vmem:[%s3 + $0x470] sm:$0xff]
  %v4891 = vld [vmem:[%s3 + $0x478] sm:$0xff]
  %v4892 = vld [vmem:[%s3 + $0x480] sm:$0xff]
  %v4893 = vld [vmem:[%s3 + $0x488] sm:$0xff]
  %v4894 = vld [vmem:[%s3 + $0x490] sm:$0xff]
  %v4895 = vld [vmem:[%s3 + $0x498] sm:$0xff]
  %v4896 = vld [vmem:[%s3 + $0x4a0] sm:$0xff]
  %v4897 = vld [vmem:[%s3 + $0x4a8] sm:$0xff]
  %v4898 = vld [vmem:[%s3 + $0x4b0] sm:$0xff]
  %v4899 = vld [vmem:[%s3 + $0x4b8] sm:$0xff]
  %v4900 = vld [vmem:[%s3 + $0x4c0] sm:$0xff]
  %v4901 = vld [vmem:[%s3 + $0x4c8] sm:$0xff]
  %v4902 = vld [vmem:[%s3 + $0x4d0] sm:$0xff]
  %v4903 = vld [vmem:[%s3 + $0x4d8] sm:$0xff]
  %v4904 = vld [vmem:[%s3 + $0x4e0] sm:$0xff]
  %v4905 = vld [vmem:[%s3 + $0x4e8] sm:$0xff]
  %v4906 = vld [vmem:[%s3 + $0x4f0] sm:$0xff]
  %v4907 = vld [vmem:[%s3 + $0x4f8] sm:$0xff]
  %v4908 = vld [vmem:[%s3 + $0x500] sm:$0xff]
  %v4909 = vld [vmem:[%s3 + $0x508] sm:$0xff]
  %v4910 = vld [vmem:[%s3 + $0x510] sm:$0xff]
  %v4911 = vld [vmem:[%s3 + $0x518] sm:$0xff]
  %v4912 = vld [vmem:[%s3 + $0x520] sm:$0xff]
  %v4913 = vld [vmem:[%s3 + $0x528] sm:$0xff]
  %v4914 = vld [vmem:[%s3 + $0x530] sm:$0xff]
  %v4915 = vld [vmem:[%s3 + $0x538] sm:$0xff]
  %v4916 = vld [vmem:[%s3 + $0x540] sm:$0xff]
  %v4917 = vld [vmem:[%s3 + $0x548] sm:$0xff]
  %v4918 = vld [vmem:[%s3 + $0x550] sm:$0xff]
  %v4919 = vld [vmem:[%s3 + $0x558] sm:$0xff]
  %v4920 = vld [vmem:[%s3 + $0x560] sm:$0xff]
  %v4921 = vld [vmem:[%s3 + $0x568] sm:$0xff]
  %v4922 = vld [vmem:[%s3 + $0x570] sm:$0xff]
  %v4923 = vld [vmem:[%s3 + $0x578] sm:$0xff]
  %v4924 = vld [vmem:[%s3 + $0x580] sm:$0xff]
  %v4925 = vld [vmem:[%s3 + $0x588] sm:$0xff]
  %v4926 = vld [vmem:[%s3 + $0x590] sm:$0xff]
  %v4927 = vld [vmem:[%s3 + $0x598] sm:$0xff]
  %v4928 = vld [vmem:[%s3 + $0x5a0] sm:$0xff]
  %v4929 = vld [vmem:[%s3 + $0x5a8] sm:$0xff]
  %v4930 = vld [vmem:[%s3 + $0x5b0] sm:$0xff]
  %v4931 = vld [vmem:[%s3 + $0x5b8] sm:$0xff]
  %v4932 = vld [vmem:[%s3 + $0x5c0] sm:$0xff]
  %v4933 = vld [vmem:[%s3 + $0x5c8] sm:$0xff]
  %v4934 = vld [vmem:[%s3 + $0x5d0] sm:$0xff]
  %v4935 = vld [vmem:[%s3 + $0x5d8] sm:$0xff]
  %v4936 = vld [vmem:[%s3 + $0x5e0] sm:$0xff]
  %v4937 = vld [vmem:[%s3 + $0x5e8] sm:$0xff]
  %v4938 = vld [vmem:[%s3 + $0x5f0] sm:$0xff]
  %v4939 = vld [vmem:[%s3 + $0x5f8] sm:$0xff]
  %v4940 = vld [vmem:[%s3 + $0x600] sm:$0xff]
  %v4941 = vld [vmem:[%s3 + $0x608] sm:$0xff]
  %v4942 = vld [vmem:[%s3 + $0x610] sm:$0xff]
  %v4943 = vld [vmem:[%s3 + $0x618] sm:$0xff]
  %v4944 = vld [vmem:[%s3 + $0x620] sm:$0xff]
  %v4945 = vld [vmem:[%s3 + $0x628] sm:$0xff]
  %v4946 = vld [vmem:[%s3 + $0x630] sm:$0xff]
  %v4947 = vld [vmem:[%s3 + $0x638] sm:$0xff]
  %v4948 = vld [vmem:[%s3 + $0x640] sm:$0xff]
  %v4949 = vld [vmem:[%s3 + $0x648] sm:$0xff]
  %v4950 = vld [vmem:[%s3 + $0x650] sm:$0xff]
  %v4951 = vld [vmem:[%s3 + $0x658] sm:$0xff]
  %v4952 = vld [vmem:[%s3 + $0x660] sm:$0xff]
  %v4953 = vld [vmem:[%s3 + $0x668] sm:$0xff]
  %v4954 = vld [vmem:[%s3 + $0x670] sm:$0xff]
  %v4955 = vld [vmem:[%s3 + $0x678] sm:$0xff]
  %v4956 = vld [vmem:[%s3 + $0x680] sm:$0xff]
  %v4957 = vld [vmem:[%s3 + $0x688] sm:$0xff]
  %v4958 = vld [vmem:[%s3 + $0x690] sm:$0xff]
  %v4959 = vld [vmem:[%s3 + $0x698] sm:$0xff]
  %v4960 = vld [vmem:[%s3 + $0x6a0] sm:$0xff]
  %v4961 = vld [vmem:[%s3 + $0x6a8] sm:$0xff]
  %v4962 = vld [vmem:[%s3 + $0x6b0] sm:$0xff]
  %v4963 = vld [vmem:[%s3 + $0x6b8] sm:$0xff]
  %v4964 = vld [vmem:[%s3 + $0x6c0] sm:$0xff]
  %v4965 = vld [vmem:[%s3 + $0x6c8] sm:$0xff]
  %v4966 = vld [vmem:[%s3 + $0x6d0] sm:$0xff]
  %v4967 = vld [vmem:[%s3 + $0x6d8] sm:$0xff]
  %v4968 = vld [vmem:[%s3 + $0x6e0] sm:$0xff]
  %v4969 = vld [vmem:[%s3 + $0x6e8] sm:$0xff]
  %v4970 = vld [vmem:[%s3 + $0x6f0] sm:$0xff]
  %v4971 = vld [vmem:[%s3 + $0x6f8] sm:$0xff]
  %v4972 = vld [vmem:[%s3 + $0x700] sm:$0xff]
  %v4973 = vld [vmem:[%s3 + $0x708] sm:$0xff]
  %v4974 = vld [vmem:[%s3 + $0x710] sm:$0xff]
  %v4975 = vld [vmem:[%s3 + $0x718] sm:$0xff]
  %v4976 = vld [vmem:[%s3 + $0x720] sm:$0xff]
  %v4977 = vld [vmem:[%s3 + $0x728] sm:$0xff]
  %v4978 = vld [vmem:[%s3 + $0x730] sm:$0xff]
  %v4979 = vld [vmem:[%s3 + $0x738] sm:$0xff]
  %v4980 = vld [vmem:[%s3 + $0x740] sm:$0xff]
  %v4981 = vld [vmem:[%s3 + $0x748] sm:$0xff]
  %v4982 = vld [vmem:[%s3 + $0x750] sm:$0xff]
  %v4983 = vld [vmem:[%s3 + $0x758] sm:$0xff]
  %v4984 = vld [vmem:[%s3 + $0x760] sm:$0xff]
  %v4985 = vld [vmem:[%s3 + $0x768] sm:$0xff]
  %v4986 = vld [vmem:[%s3 + $0x770] sm:$0xff]
  %v4987 = vld [vmem:[%s3 + $0x778] sm:$0xff]
  %v4988 = vld [vmem:[%s3 + $0x780] sm:$0xff]
  %v4989 = vld [vmem:[%s3 + $0x788] sm:$0xff]
  %v4990 = vld [vmem:[%s3 + $0x790] sm:$0xff]
  %v4991 = vld [vmem:[%s3 + $0x798] sm:$0xff]
  %v4992 = vld [vmem:[%s3 + $0x7a0] sm:$0xff]
  %v4993 = vld [vmem:[%s3 + $0x7a8] sm:$0xff]
  %v4994 = vld [vmem:[%s3 + $0x7b0] sm:$0xff]
  %v4995 = vld [vmem:[%s3 + $0x7b8] sm:$0xff]
  %v4996 = vld [vmem:[%s3 + $0x7c0] sm:$0xff]
  %v4997 = vld [vmem:[%s3 + $0x7c8] sm:$0xff]
  %v4998 = vld [vmem:[%s3 + $0x7d0] sm:$0xff]
  %v4999 = vld [vmem:[%s3 + $0x7d8] sm:$0xff]
  %v5000 = vld [vmem:[%s3 + $0x7e0] sm:$0xff]
  %v5001 = vld [vmem:[%s3 + $0x7e8] sm:$0xff]
  %v5002 = vld [vmem:[%s3 + $0x7f0] sm:$0xff]
  %v5003 = vld [vmem:[%s3 + $0x7f8] sm:$0xff]
  %v5004 = vld [vmem:[%s4619] sm:$0xff]
  %v5005 = vld [vmem:[%s4619 + $0x8] sm:$0xff]
  %v5006 = vld [vmem:[%s4619 + $0x10] sm:$0xff]
  %v5007 = vld [vmem:[%s4619 + $0x18] sm:$0xff]
  %v5008 = vld [vmem:[%s4619 + $0x20] sm:$0xff]
  %v5009 = vld [vmem:[%s4619 + $0x28] sm:$0xff]
  %v5010 = vld [vmem:[%s4619 + $0x30] sm:$0xff]
  %v5011 = vld [vmem:[%s4619 + $0x38] sm:$0xff]
  %v5012 = vld [vmem:[%s4619 + $0x40] sm:$0xff]
  %v5013 = vld [vmem:[%s4619 + $0x48] sm:$0xff]
  %v5014 = vld [vmem:[%s4619 + $0x50] sm:$0xff]
  %v5015 = vld [vmem:[%s4619 + $0x58] sm:$0xff]
  %v5016 = vld [vmem:[%s4619 + $0x60] sm:$0xff]
  %v5017 = vld [vmem:[%s4619 + $0x68] sm:$0xff]
  %v5018 = vld [vmem:[%s4619 + $0x70] sm:$0xff]
  %v5019 = vld [vmem:[%s4619 + $0x78] sm:$0xff]
  %v5020 = vld [vmem:[%s4619 + $0x80] sm:$0xff]
  %v5021 = vld [vmem:[%s4619 + $0x88] sm:$0xff]
  %v5022 = vld [vmem:[%s4619 + $0x90] sm:$0xff]
  %v5023 = vld [vmem:[%s4619 + $0x98] sm:$0xff]
  %v5024 = vld [vmem:[%s4619 + $0xa0] sm:$0xff]
  %v5025 = vld [vmem:[%s4619 + $0xa8] sm:$0xff]
  %v5026 = vld [vmem:[%s4619 + $0xb0] sm:$0xff]
  %v5027 = vld [vmem:[%s4619 + $0xb8] sm:$0xff]
  %v5028 = vld [vmem:[%s4619 + $0xc0] sm:$0xff]
  %v5029 = vld [vmem:[%s4619 + $0xc8] sm:$0xff]
  %v5030 = vld [vmem:[%s4619 + $0xd0] sm:$0xff]
  %v5031 = vld [vmem:[%s4619 + $0xd8] sm:$0xff]
  %v5032 = vld [vmem:[%s4619 + $0xe0] sm:$0xff]
  %v5033 = vld [vmem:[%s4619 + $0xe8] sm:$0xff]
  %v5034 = vld [vmem:[%s4619 + $0xf0] sm:$0xff]
  %v5035 = vld [vmem:[%s4619 + $0xf8] sm:$0xff]
  %v5036 = vld [vmem:[%s4619 + $0x100] sm:$0xff]
  %v5037 = vld [vmem:[%s4619 + $0x108] sm:$0xff]
  %v5038 = vld [vmem:[%s4619 + $0x110] sm:$0xff]
  %v5039 = vld [vmem:[%s4619 + $0x118] sm:$0xff]
  %v5040 = vld [vmem:[%s4619 + $0x120] sm:$0xff]
  %v5041 = vld [vmem:[%s4619 + $0x128] sm:$0xff]
  %v5042 = vld [vmem:[%s4619 + $0x130] sm:$0xff]
  %v5043 = vld [vmem:[%s4619 + $0x138] sm:$0xff]
  %v5044 = vld [vmem:[%s4619 + $0x140] sm:$0xff]
  %v5045 = vld [vmem:[%s4619 + $0x148] sm:$0xff]
  %v5046 = vld [vmem:[%s4619 + $0x150] sm:$0xff]
  %v5047 = vld [vmem:[%s4619 + $0x158] sm:$0xff]
  %v5048 = vld [vmem:[%s4619 + $0x160] sm:$0xff]
  %v5049 = vld [vmem:[%s4619 + $0x168] sm:$0xff]
  %v5050 = vld [vmem:[%s4619 + $0x170] sm:$0xff]
  %v5051 = vld [vmem:[%s4619 + $0x178] sm:$0xff]
  %v5052 = vld [vmem:[%s4619 + $0x180] sm:$0xff]
  %v5053 = vld [vmem:[%s4619 + $0x188] sm:$0xff]
  %v5054 = vld [vmem:[%s4619 + $0x190] sm:$0xff]
  %v5055 = vld [vmem:[%s4619 + $0x198] sm:$0xff]
  %v5056 = vld [vmem:[%s4619 + $0x1a0] sm:$0xff]
  %v5057 = vld [vmem:[%s4619 + $0x1a8] sm:$0xff]
  %v5058 = vld [vmem:[%s4619 + $0x1b0] sm:$0xff]
  %v5059 = vld [vmem:[%s4619 + $0x1b8] sm:$0xff]
  %v5060 = vld [vmem:[%s4619 + $0x1c0] sm:$0xff]
  %v5061 = vld [vmem:[%s4619 + $0x1c8] sm:$0xff]
  %v5062 = vld [vmem:[%s4619 + $0x1d0] sm:$0xff]
  %v5063 = vld [vmem:[%s4619 + $0x1d8] sm:$0xff]
  %v5064 = vld [vmem:[%s4619 + $0x1e0] sm:$0xff]
  %v5065 = vld [vmem:[%s4619 + $0x1e8] sm:$0xff]
  %v5066 = vld [vmem:[%s4619 + $0x1f0] sm:$0xff]
  %v5067 = vld [vmem:[%s4619 + $0x1f8] sm:$0xff]
  %s5068 = scalar_lea.vmem %s3, 2048
  %v5069 = vld [vmem:[%s5068] sm:$0xff]
  %v5070 = vld [vmem:[%s5068 + $0x8] sm:$0xff]
  %v5071 = vld [vmem:[%s5068 + $0x10] sm:$0xff]
  %v5072 = vld [vmem:[%s5068 + $0x18] sm:$0xff]
  %v5073 = vld [vmem:[%s5068 + $0x20] sm:$0xff]
  %v5074 = vld [vmem:[%s5068 + $0x28] sm:$0xff]
  %v5075 = vld [vmem:[%s5068 + $0x30] sm:$0xff]
  %v5076 = vld [vmem:[%s5068 + $0x38] sm:$0xff]
  %v5077 = vld [vmem:[%s5068 + $0x40] sm:$0xff]
  %v5078 = vld [vmem:[%s5068 + $0x48] sm:$0xff]
  %v5079 = vld [vmem:[%s5068 + $0x50] sm:$0xff]
  %v5080 = vld [vmem:[%s5068 + $0x58] sm:$0xff]
  %v5081 = vld [vmem:[%s5068 + $0x60] sm:$0xff]
  %v5082 = vld [vmem:[%s5068 + $0x68] sm:$0xff]
  %v5083 = vld [vmem:[%s5068 + $0x70] sm:$0xff]
  %v5084 = vld [vmem:[%s5068 + $0x78] sm:$0xff]
  %v5085 = vld [vmem:[%s5068 + $0x80] sm:$0xff]
  %v5086 = vld [vmem:[%s5068 + $0x88] sm:$0xff]
  %v5087 = vld [vmem:[%s5068 + $0x90] sm:$0xff]
  %v5088 = vld [vmem:[%s5068 + $0x98] sm:$0xff]
  %v5089 = vld [vmem:[%s5068 + $0xa0] sm:$0xff]
  %v5090 = vld [vmem:[%s5068 + $0xa8] sm:$0xff]
  %v5091 = vld [vmem:[%s5068 + $0xb0] sm:$0xff]
  %v5092 = vld [vmem:[%s5068 + $0xb8] sm:$0xff]
  %v5093 = vld [vmem:[%s5068 + $0xc0] sm:$0xff]
  %v5094 = vld [vmem:[%s5068 + $0xc8] sm:$0xff]
  %v5095 = vld [vmem:[%s5068 + $0xd0] sm:$0xff]
  %v5096 = vld [vmem:[%s5068 + $0xd8] sm:$0xff]
  %v5097 = vld [vmem:[%s5068 + $0xe0] sm:$0xff]
  %v5098 = vld [vmem:[%s5068 + $0xe8] sm:$0xff]
  %v5099 = vld [vmem:[%s5068 + $0xf0] sm:$0xff]
  %v5100 = vld [vmem:[%s5068 + $0xf8] sm:$0xff]
  %v5101 = vld [vmem:[%s5068 + $0x100] sm:$0xff]
  %v5102 = vld [vmem:[%s5068 + $0x108] sm:$0xff]
  %v5103 = vld [vmem:[%s5068 + $0x110] sm:$0xff]
  %v5104 = vld [vmem:[%s5068 + $0x118] sm:$0xff]
  %v5105 = vld [vmem:[%s5068 + $0x120] sm:$0xff]
  %v5106 = vld [vmem:[%s5068 + $0x128] sm:$0xff]
  %v5107 = vld [vmem:[%s5068 + $0x130] sm:$0xff]
  %v5108 = vld [vmem:[%s5068 + $0x138] sm:$0xff]
  %v5109 = vld [vmem:[%s5068 + $0x140] sm:$0xff]
  %v5110 = vld [vmem:[%s5068 + $0x148] sm:$0xff]
  %v5111 = vld [vmem:[%s5068 + $0x150] sm:$0xff]
  %v5112 = vld [vmem:[%s5068 + $0x158] sm:$0xff]
  %v5113 = vld [vmem:[%s5068 + $0x160] sm:$0xff]
  %v5114 = vld [vmem:[%s5068 + $0x168] sm:$0xff]
  %v5115 = vld [vmem:[%s5068 + $0x170] sm:$0xff]
  %v5116 = vld [vmem:[%s5068 + $0x178] sm:$0xff]
  %v5117 = vld [vmem:[%s5068 + $0x180] sm:$0xff]
  %v5118 = vld [vmem:[%s5068 + $0x188] sm:$0xff]
  %v5119 = vld [vmem:[%s5068 + $0x190] sm:$0xff]
  %v5120 = vld [vmem:[%s5068 + $0x198] sm:$0xff]
  %v5121 = vld [vmem:[%s5068 + $0x1a0] sm:$0xff]
  %v5122 = vld [vmem:[%s5068 + $0x1a8] sm:$0xff]
  %v5123 = vld [vmem:[%s5068 + $0x1b0] sm:$0xff]
  %v5124 = vld [vmem:[%s5068 + $0x1b8] sm:$0xff]
  %v5125 = vld [vmem:[%s5068 + $0x1c0] sm:$0xff]
  %v5126 = vld [vmem:[%s5068 + $0x1c8] sm:$0xff]
  %v5127 = vld [vmem:[%s5068 + $0x1d0] sm:$0xff]
  %v5128 = vld [vmem:[%s5068 + $0x1d8] sm:$0xff]
  %v5129 = vld [vmem:[%s5068 + $0x1e0] sm:$0xff]
  %v5130 = vld [vmem:[%s5068 + $0x1e8] sm:$0xff]
  %v5131 = vld [vmem:[%s5068 + $0x1f0] sm:$0xff]
  %v5132 = vld [vmem:[%s5068 + $0x1f8] sm:$0xff]
  %v5133 = vld [vmem:[%s5068 + $0x200] sm:$0xff]
  %v5134 = vld [vmem:[%s5068 + $0x208] sm:$0xff]
  %v5135 = vld [vmem:[%s5068 + $0x210] sm:$0xff]
  %v5136 = vld [vmem:[%s5068 + $0x218] sm:$0xff]
  %v5137 = vld [vmem:[%s5068 + $0x220] sm:$0xff]
  %v5138 = vld [vmem:[%s5068 + $0x228] sm:$0xff]
  %v5139 = vld [vmem:[%s5068 + $0x230] sm:$0xff]
  %v5140 = vld [vmem:[%s5068 + $0x238] sm:$0xff]
  %v5141 = vld [vmem:[%s5068 + $0x240] sm:$0xff]
  %v5142 = vld [vmem:[%s5068 + $0x248] sm:$0xff]
  %v5143 = vld [vmem:[%s5068 + $0x250] sm:$0xff]
  %v5144 = vld [vmem:[%s5068 + $0x258] sm:$0xff]
  %v5145 = vld [vmem:[%s5068 + $0x260] sm:$0xff]
  %v5146 = vld [vmem:[%s5068 + $0x268] sm:$0xff]
  %v5147 = vld [vmem:[%s5068 + $0x270] sm:$0xff]
  %v5148 = vld [vmem:[%s5068 + $0x278] sm:$0xff]
  %v5149 = vld [vmem:[%s5068 + $0x280] sm:$0xff]
  %v5150 = vld [vmem:[%s5068 + $0x288] sm:$0xff]
  %v5151 = vld [vmem:[%s5068 + $0x290] sm:$0xff]
  %v5152 = vld [vmem:[%s5068 + $0x298] sm:$0xff]
  %v5153 = vld [vmem:[%s5068 + $0x2a0] sm:$0xff]
  %v5154 = vld [vmem:[%s5068 + $0x2a8] sm:$0xff]
  %v5155 = vld [vmem:[%s5068 + $0x2b0] sm:$0xff]
  %v5156 = vld [vmem:[%s5068 + $0x2b8] sm:$0xff]
  %v5157 = vld [vmem:[%s5068 + $0x2c0] sm:$0xff]
  %v5158 = vld [vmem:[%s5068 + $0x2c8] sm:$0xff]
  %v5159 = vld [vmem:[%s5068 + $0x2d0] sm:$0xff]
  %v5160 = vld [vmem:[%s5068 + $0x2d8] sm:$0xff]
  %v5161 = vld [vmem:[%s5068 + $0x2e0] sm:$0xff]
  %v5162 = vld [vmem:[%s5068 + $0x2e8] sm:$0xff]
  %v5163 = vld [vmem:[%s5068 + $0x2f0] sm:$0xff]
  %v5164 = vld [vmem:[%s5068 + $0x2f8] sm:$0xff]
  %v5165 = vld [vmem:[%s5068 + $0x300] sm:$0xff]
  %v5166 = vld [vmem:[%s5068 + $0x308] sm:$0xff]
  %v5167 = vld [vmem:[%s5068 + $0x310] sm:$0xff]
  %v5168 = vld [vmem:[%s5068 + $0x318] sm:$0xff]
  %v5169 = vld [vmem:[%s5068 + $0x320] sm:$0xff]
  %v5170 = vld [vmem:[%s5068 + $0x328] sm:$0xff]
  %v5171 = vld [vmem:[%s5068 + $0x330] sm:$0xff]
  %v5172 = vld [vmem:[%s5068 + $0x338] sm:$0xff]
  %v5173 = vld [vmem:[%s5068 + $0x340] sm:$0xff]
  %v5174 = vld [vmem:[%s5068 + $0x348] sm:$0xff]
  %v5175 = vld [vmem:[%s5068 + $0x350] sm:$0xff]
  %v5176 = vld [vmem:[%s5068 + $0x358] sm:$0xff]
  %v5177 = vld [vmem:[%s5068 + $0x360] sm:$0xff]
  %v5178 = vld [vmem:[%s5068 + $0x368] sm:$0xff]
  %v5179 = vld [vmem:[%s5068 + $0x370] sm:$0xff]
  %v5180 = vld [vmem:[%s5068 + $0x378] sm:$0xff]
  %v5181 = vld [vmem:[%s5068 + $0x380] sm:$0xff]
  %v5182 = vld [vmem:[%s5068 + $0x388] sm:$0xff]
  %v5183 = vld [vmem:[%s5068 + $0x390] sm:$0xff]
  %v5184 = vld [vmem:[%s5068 + $0x398] sm:$0xff]
  %v5185 = vld [vmem:[%s5068 + $0x3a0] sm:$0xff]
  %v5186 = vld [vmem:[%s5068 + $0x3a8] sm:$0xff]
  %v5187 = vld [vmem:[%s5068 + $0x3b0] sm:$0xff]
  %v5188 = vld [vmem:[%s5068 + $0x3b8] sm:$0xff]
  %v5189 = vld [vmem:[%s5068 + $0x3c0] sm:$0xff]
  %v5190 = vld [vmem:[%s5068 + $0x3c8] sm:$0xff]
  %v5191 = vld [vmem:[%s5068 + $0x3d0] sm:$0xff]
  %v5192 = vld [vmem:[%s5068 + $0x3d8] sm:$0xff]
  %v5193 = vld [vmem:[%s5068 + $0x3e0] sm:$0xff]
  %v5194 = vld [vmem:[%s5068 + $0x3e8] sm:$0xff]
  %v5195 = vld [vmem:[%s5068 + $0x3f0] sm:$0xff]
  %v5196 = vld [vmem:[%s5068 + $0x3f8] sm:$0xff]
  %v5197 = vld [vmem:[%s5068 + $0x400] sm:$0xff]
  %v5198 = vld [vmem:[%s5068 + $0x408] sm:$0xff]
  %v5199 = vld [vmem:[%s5068 + $0x410] sm:$0xff]
  %v5200 = vld [vmem:[%s5068 + $0x418] sm:$0xff]
  %v5201 = vld [vmem:[%s5068 + $0x420] sm:$0xff]
  %v5202 = vld [vmem:[%s5068 + $0x428] sm:$0xff]
  %v5203 = vld [vmem:[%s5068 + $0x430] sm:$0xff]
  %v5204 = vld [vmem:[%s5068 + $0x438] sm:$0xff]
  %v5205 = vld [vmem:[%s5068 + $0x440] sm:$0xff]
  %v5206 = vld [vmem:[%s5068 + $0x448] sm:$0xff]
  %v5207 = vld [vmem:[%s5068 + $0x450] sm:$0xff]
  %v5208 = vld [vmem:[%s5068 + $0x458] sm:$0xff]
  %v5209 = vld [vmem:[%s5068 + $0x460] sm:$0xff]
  %v5210 = vld [vmem:[%s5068 + $0x468] sm:$0xff]
  %v5211 = vld [vmem:[%s5068 + $0x470] sm:$0xff]
  %v5212 = vld [vmem:[%s5068 + $0x478] sm:$0xff]
  %v5213 = vld [vmem:[%s5068 + $0x480] sm:$0xff]
  %v5214 = vld [vmem:[%s5068 + $0x488] sm:$0xff]
  %v5215 = vld [vmem:[%s5068 + $0x490] sm:$0xff]
  %v5216 = vld [vmem:[%s5068 + $0x498] sm:$0xff]
  %v5217 = vld [vmem:[%s5068 + $0x4a0] sm:$0xff]
  %v5218 = vld [vmem:[%s5068 + $0x4a8] sm:$0xff]
  %v5219 = vld [vmem:[%s5068 + $0x4b0] sm:$0xff]
  %v5220 = vld [vmem:[%s5068 + $0x4b8] sm:$0xff]
  %v5221 = vld [vmem:[%s5068 + $0x4c0] sm:$0xff]
  %v5222 = vld [vmem:[%s5068 + $0x4c8] sm:$0xff]
  %v5223 = vld [vmem:[%s5068 + $0x4d0] sm:$0xff]
  %v5224 = vld [vmem:[%s5068 + $0x4d8] sm:$0xff]
  %v5225 = vld [vmem:[%s5068 + $0x4e0] sm:$0xff]
  %v5226 = vld [vmem:[%s5068 + $0x4e8] sm:$0xff]
  %v5227 = vld [vmem:[%s5068 + $0x4f0] sm:$0xff]
  %v5228 = vld [vmem:[%s5068 + $0x4f8] sm:$0xff]
  %v5229 = vld [vmem:[%s5068 + $0x500] sm:$0xff]
  %v5230 = vld [vmem:[%s5068 + $0x508] sm:$0xff]
  %v5231 = vld [vmem:[%s5068 + $0x510] sm:$0xff]
  %v5232 = vld [vmem:[%s5068 + $0x518] sm:$0xff]
  %v5233 = vld [vmem:[%s5068 + $0x520] sm:$0xff]
  %v5234 = vld [vmem:[%s5068 + $0x528] sm:$0xff]
  %v5235 = vld [vmem:[%s5068 + $0x530] sm:$0xff]
  %v5236 = vld [vmem:[%s5068 + $0x538] sm:$0xff]
  %v5237 = vld [vmem:[%s5068 + $0x540] sm:$0xff]
  %v5238 = vld [vmem:[%s5068 + $0x548] sm:$0xff]
  %v5239 = vld [vmem:[%s5068 + $0x550] sm:$0xff]
  %v5240 = vld [vmem:[%s5068 + $0x558] sm:$0xff]
  %v5241 = vld [vmem:[%s5068 + $0x560] sm:$0xff]
  %v5242 = vld [vmem:[%s5068 + $0x568] sm:$0xff]
  %v5243 = vld [vmem:[%s5068 + $0x570] sm:$0xff]
  %v5244 = vld [vmem:[%s5068 + $0x578] sm:$0xff]
  %v5245 = vld [vmem:[%s5068 + $0x580] sm:$0xff]
  %v5246 = vld [vmem:[%s5068 + $0x588] sm:$0xff]
  %v5247 = vld [vmem:[%s5068 + $0x590] sm:$0xff]
  %v5248 = vld [vmem:[%s5068 + $0x598] sm:$0xff]
  %v5249 = vld [vmem:[%s5068 + $0x5a0] sm:$0xff]
  %v5250 = vld [vmem:[%s5068 + $0x5a8] sm:$0xff]
  %v5251 = vld [vmem:[%s5068 + $0x5b0] sm:$0xff]
  %v5252 = vld [vmem:[%s5068 + $0x5b8] sm:$0xff]
  %v5253 = vld [vmem:[%s5068 + $0x5c0] sm:$0xff]
  %v5254 = vld [vmem:[%s5068 + $0x5c8] sm:$0xff]
  %v5255 = vld [vmem:[%s5068 + $0x5d0] sm:$0xff]
  %v5256 = vld [vmem:[%s5068 + $0x5d8] sm:$0xff]
  %v5257 = vld [vmem:[%s5068 + $0x5e0] sm:$0xff]
  %v5258 = vld [vmem:[%s5068 + $0x5e8] sm:$0xff]
  %v5259 = vld [vmem:[%s5068 + $0x5f0] sm:$0xff]
  %v5260 = vld [vmem:[%s5068 + $0x5f8] sm:$0xff]
  %v5261 = vld [vmem:[%s5068 + $0x600] sm:$0xff]
  %v5262 = vld [vmem:[%s5068 + $0x608] sm:$0xff]
  %v5263 = vld [vmem:[%s5068 + $0x610] sm:$0xff]
  %v5264 = vld [vmem:[%s5068 + $0x618] sm:$0xff]
  %v5265 = vld [vmem:[%s5068 + $0x620] sm:$0xff]
  %v5266 = vld [vmem:[%s5068 + $0x628] sm:$0xff]
  %v5267 = vld [vmem:[%s5068 + $0x630] sm:$0xff]
  %v5268 = vld [vmem:[%s5068 + $0x638] sm:$0xff]
  %v5269 = vld [vmem:[%s5068 + $0x640] sm:$0xff]
  %v5270 = vld [vmem:[%s5068 + $0x648] sm:$0xff]
  %v5271 = vld [vmem:[%s5068 + $0x650] sm:$0xff]
  %v5272 = vld [vmem:[%s5068 + $0x658] sm:$0xff]
  %v5273 = vld [vmem:[%s5068 + $0x660] sm:$0xff]
  %v5274 = vld [vmem:[%s5068 + $0x668] sm:$0xff]
  %v5275 = vld [vmem:[%s5068 + $0x670] sm:$0xff]
  %v5276 = vld [vmem:[%s5068 + $0x678] sm:$0xff]
  %v5277 = vld [vmem:[%s5068 + $0x680] sm:$0xff]
  %v5278 = vld [vmem:[%s5068 + $0x688] sm:$0xff]
  %v5279 = vld [vmem:[%s5068 + $0x690] sm:$0xff]
  %v5280 = vld [vmem:[%s5068 + $0x698] sm:$0xff]
  %v5281 = vld [vmem:[%s5068 + $0x6a0] sm:$0xff]
  %v5282 = vld [vmem:[%s5068 + $0x6a8] sm:$0xff]
  %v5283 = vld [vmem:[%s5068 + $0x6b0] sm:$0xff]
  %v5284 = vld [vmem:[%s5068 + $0x6b8] sm:$0xff]
  %v5285 = vld [vmem:[%s5068 + $0x6c0] sm:$0xff]
  %v5286 = vld [vmem:[%s5068 + $0x6c8] sm:$0xff]
  %v5287 = vld [vmem:[%s5068 + $0x6d0] sm:$0xff]
  %v5288 = vld [vmem:[%s5068 + $0x6d8] sm:$0xff]
  %v5289 = vld [vmem:[%s5068 + $0x6e0] sm:$0xff]
  %v5290 = vld [vmem:[%s5068 + $0x6e8] sm:$0xff]
  %v5291 = vld [vmem:[%s5068 + $0x6f0] sm:$0xff]
  %v5292 = vld [vmem:[%s5068 + $0x6f8] sm:$0xff]
  %v5293 = vld [vmem:[%s5068 + $0x700] sm:$0xff]
  %v5294 = vld [vmem:[%s5068 + $0x708] sm:$0xff]
  %v5295 = vld [vmem:[%s5068 + $0x710] sm:$0xff]
  %v5296 = vld [vmem:[%s5068 + $0x718] sm:$0xff]
  %v5297 = vld [vmem:[%s5068 + $0x720] sm:$0xff]
  %v5298 = vld [vmem:[%s5068 + $0x728] sm:$0xff]
  %v5299 = vld [vmem:[%s5068 + $0x730] sm:$0xff]
  %v5300 = vld [vmem:[%s5068 + $0x738] sm:$0xff]
  %v5301 = vld [vmem:[%s5068 + $0x740] sm:$0xff]
  %v5302 = vld [vmem:[%s5068 + $0x748] sm:$0xff]
  %v5303 = vld [vmem:[%s5068 + $0x750] sm:$0xff]
  %v5304 = vld [vmem:[%s5068 + $0x758] sm:$0xff]
  %v5305 = vld [vmem:[%s5068 + $0x760] sm:$0xff]
  %v5306 = vld [vmem:[%s5068 + $0x768] sm:$0xff]
  %v5307 = vld [vmem:[%s5068 + $0x770] sm:$0xff]
  %v5308 = vld [vmem:[%s5068 + $0x778] sm:$0xff]
  %v5309 = vld [vmem:[%s5068 + $0x780] sm:$0xff]
  %v5310 = vld [vmem:[%s5068 + $0x788] sm:$0xff]
  %v5311 = vld [vmem:[%s5068 + $0x790] sm:$0xff]
  %v5312 = vld [vmem:[%s5068 + $0x798] sm:$0xff]
  %v5313 = vld [vmem:[%s5068 + $0x7a0] sm:$0xff]
  %v5314 = vld [vmem:[%s5068 + $0x7a8] sm:$0xff]
  %v5315 = vld [vmem:[%s5068 + $0x7b0] sm:$0xff]
  %v5316 = vld [vmem:[%s5068 + $0x7b8] sm:$0xff]
  %v5317 = vld [vmem:[%s5068 + $0x7c0] sm:$0xff]
  %v5318 = vld [vmem:[%s5068 + $0x7c8] sm:$0xff]
  %v5319 = vld [vmem:[%s5068 + $0x7d0] sm:$0xff]
  %v5320 = vld [vmem:[%s5068 + $0x7d8] sm:$0xff]
  %v5321 = vld [vmem:[%s5068 + $0x7e0] sm:$0xff]
  %v5322 = vld [vmem:[%s5068 + $0x7e8] sm:$0xff]
  %v5323 = vld [vmem:[%s5068 + $0x7f0] sm:$0xff]
  %v5324 = vld [vmem:[%s5068 + $0x7f8] sm:$0xff]
  %5325 = vmatprep.subr.mxu0 %v5130
  %5326 = vmatpush1.msra.mxu0 %v5129
  %5327 = vmatprep.subr.mxu0 %v5126
  %5328 = vmatpush1.msra.mxu0 %v5125
  %5329 = vmatprep.subr.mxu0 %v5122
  %5330 = vmatpush1.msra.mxu0 %v5121
  %5331 = vmatprep.subr.mxu0 %v5118
  %5332 = vmatpush1.msra.mxu0 %v5117
  %5333 = vmatprep.subr.mxu0 %v5114
  %5334 = vmatpush1.msra.mxu0 %v5113
  %5335 = vmatprep.subr.mxu0 %v5110
  %5336 = vmatpush1.msra.mxu0 %v5109
  %5337 = vmatprep.subr.mxu0 %v5106
  %5338 = vmatpush1.msra.mxu0 %v5105
  %5339 = vmatprep.subr.mxu0 %v5102
  %5340 = vmatpush1.msra.mxu0 %v5101
  %5341 = vmatprep.subr.mxu0 %v5098
  %5342 = vmatpush1.msra.mxu0 %v5097
  %5343 = vmatprep.subr.mxu0 %v5094
  %5344 = vmatpush1.msra.mxu0 %v5093
  %5345 = vmatprep.subr.mxu0 %v5090
  %5346 = vmatpush1.msra.mxu0 %v5089
  %5347 = vmatprep.subr.mxu0 %v5086
  %5348 = vmatpush1.msra.mxu0 %v5085
  %5349 = vmatprep.subr.mxu0 %v5082
  %5350 = vmatpush1.msra.mxu0 %v5081
  %5351 = vmatprep.subr.mxu0 %v5078
  %5352 = vmatpush1.msra.mxu0 %v5077
  %5353 = vmatprep.subr.mxu0 %v5074
  %5354 = vmatpush1.msra.mxu0 %v5073
  %5355 = vmatprep.subr.mxu0 %v5070
  %5356 = vmatpush1.msra.mxu0 %v5069
  %5357 = vmatprep.subr.mxu0 %v5194
  %5358 = vmatpush2.msra.mxu0 %v5193
  %5359 = vmatprep.subr.mxu0 %v5190
  %5360 = vmatpush2.msra.mxu0 %v5189
  %5361 = vmatprep.subr.mxu0 %v5186
  %5362 = vmatpush2.msra.mxu0 %v5185
  %5363 = vmatprep.subr.mxu0 %v5182
  %5364 = vmatpush2.msra.mxu0 %v5181
  %5365 = vmatprep.subr.mxu0 %v5178
  %5366 = vmatpush2.msra.mxu0 %v5177
  %5367 = vmatprep.subr.mxu0 %v5174
  %5368 = vmatpush2.msra.mxu0 %v5173
  %5369 = vmatprep.subr.mxu0 %v5170
  %5370 = vmatpush2.msra.mxu0 %v5169
  %5371 = vmatprep.subr.mxu0 %v5166
  %5372 = vmatpush2.msra.mxu0 %v5165
  %5373 = vmatprep.subr.mxu0 %v5162
  %5374 = vmatpush2.msra.mxu0 %v5161
  %5375 = vmatprep.subr.mxu0 %v5158
  %5376 = vmatpush2.msra.mxu0 %v5157
  %5377 = vmatprep.subr.mxu0 %v5154
  %5378 = vmatpush2.msra.mxu0 %v5153
  %5379 = vmatprep.subr.mxu0 %v5150
  %5380 = vmatpush2.msra.mxu0 %v5149
  %5381 = vmatprep.subr.mxu0 %v5146
  %5382 = vmatpush2.msra.mxu0 %v5145
  %5383 = vmatprep.subr.mxu0 %v5142
  %5384 = vmatpush2.msra.mxu0 %v5141
  %5385 = vmatprep.subr.mxu0 %v5138
  %5386 = vmatpush2.msra.mxu0 %v5137
  %5387 = vmatprep.subr.mxu0 %v5134
  %5388 = vmatpush2.msra.mxu0 %v5133
  %5389 = vmatprep.mubr.f32.mxu0 %v5005
  %5390 = vmatmul.mubr.f32.gmra.mxu0 %v5004
  %v5391 = vpop.f32.mrf.mxu0
  %v5392 = vadd.f32 0.0, %v5391
  %v5393 = vpop.f32.mrf.mxu0
  %v5394 = vadd.f32 0.0, %v5393
  %5395 = vmatprep.mubr.f32.mxu0 %v5009
  %5396 = vmatmul.mubr.f32.gmra.mxu0 %v5008
  %v5397 = vpop.f32.mrf.mxu0
  %v5398 = vadd.f32 0.0, %v5397
  %v5399 = vpop.f32.mrf.mxu0
  %v5400 = vadd.f32 0.0, %v5399
  %5401 = vmatprep.mubr.f32.mxu0 %v5013
  %5402 = vmatmul.mubr.f32.gmra.mxu0 %v5012
  %v5403 = vpop.f32.mrf.mxu0
  %v5404 = vadd.f32 0.0, %v5403
  %v5405 = vpop.f32.mrf.mxu0
  %v5406 = vadd.f32 0.0, %v5405
  %5407 = vmatprep.mubr.f32.mxu0 %v5017
  %5408 = vmatmul.mubr.f32.gmra.mxu0 %v5016
  %v5409 = vpop.f32.mrf.mxu0
  %v5410 = vadd.f32 0.0, %v5409
  %v5411 = vpop.f32.mrf.mxu0
  %v5412 = vadd.f32 0.0, %v5411
  %5413 = vmatprep.mubr.f32.mxu0 %v5021
  %5414 = vmatmul.mubr.f32.gmra.mxu0 %v5020
  %v5415 = vpop.f32.mrf.mxu0
  %v5416 = vadd.f32 0.0, %v5415
  %v5417 = vpop.f32.mrf.mxu0
  %v5418 = vadd.f32 0.0, %v5417
  %5419 = vmatprep.mubr.f32.mxu0 %v5025
  %5420 = vmatmul.mubr.f32.gmra.mxu0 %v5024
  %v5421 = vpop.f32.mrf.mxu0
  %v5422 = vadd.f32 0.0, %v5421
  %v5423 = vpop.f32.mrf.mxu0
  %v5424 = vadd.f32 0.0, %v5423
  %5425 = vmatprep.mubr.f32.mxu0 %v5029
  %5426 = vmatmul.mubr.f32.gmra.mxu0 %v5028
  %v5427 = vpop.f32.mrf.mxu0
  %v5428 = vadd.f32 0.0, %v5427
  %v5429 = vpop.f32.mrf.mxu0
  %v5430 = vadd.f32 0.0, %v5429
  %5431 = vmatprep.mubr.f32.mxu0 %v5033
  %5432 = vmatmul.mubr.f32.gmra.mxu0 %v5032
  %v5433 = vpop.f32.mrf.mxu0
  %v5434 = vadd.f32 0.0, %v5433
  %v5435 = vpop.f32.mrf.mxu0
  %v5436 = vadd.f32 0.0, %v5435
  %5437 = vmatprep.mubr.f32.mxu0 %v5037
  %5438 = vmatmul.mubr.f32.gmra.mxu0 %v5036
  %v5439 = vpop.f32.mrf.mxu0
  %v5440 = vadd.f32 0.0, %v5439
  %v5441 = vpop.f32.mrf.mxu0
  %v5442 = vadd.f32 0.0, %v5441
  %5443 = vmatprep.mubr.f32.mxu0 %v5041
  %5444 = vmatmul.mubr.f32.gmra.mxu0 %v5040
  %v5445 = vpop.f32.mrf.mxu0
  %v5446 = vadd.f32 0.0, %v5445
  %v5447 = vpop.f32.mrf.mxu0
  %v5448 = vadd.f32 0.0, %v5447
  %5449 = vmatprep.mubr.f32.mxu0 %v5045
  %5450 = vmatmul.mubr.f32.gmra.mxu0 %v5044
  %v5451 = vpop.f32.mrf.mxu0
  %v5452 = vadd.f32 0.0, %v5451
  %v5453 = vpop.f32.mrf.mxu0
  %v5454 = vadd.f32 0.0, %v5453
  %5455 = vmatprep.mubr.f32.mxu0 %v5049
  %5456 = vmatmul.mubr.f32.gmra.mxu0 %v5048
  %v5457 = vpop.f32.mrf.mxu0
  %v5458 = vadd.f32 0.0, %v5457
  %v5459 = vpop.f32.mrf.mxu0
  %v5460 = vadd.f32 0.0, %v5459
  %5461 = vmatprep.mubr.f32.mxu0 %v5053
  %5462 = vmatmul.mubr.f32.gmra.mxu0 %v5052
  %v5463 = vpop.f32.mrf.mxu0
  %v5464 = vadd.f32 0.0, %v5463
  %v5465 = vpop.f32.mrf.mxu0
  %v5466 = vadd.f32 0.0, %v5465
  %5467 = vmatprep.mubr.f32.mxu0 %v5057
  %5468 = vmatmul.mubr.f32.gmra.mxu0 %v5056
  %v5469 = vpop.f32.mrf.mxu0
  %v5470 = vadd.f32 0.0, %v5469
  %v5471 = vpop.f32.mrf.mxu0
  %v5472 = vadd.f32 0.0, %v5471
  %5473 = vmatprep.mubr.f32.mxu0 %v5061
  %5474 = vmatmul.mubr.f32.gmra.mxu0 %v5060
  %v5475 = vpop.f32.mrf.mxu0
  %v5476 = vadd.f32 0.0, %v5475
  %v5477 = vpop.f32.mrf.mxu0
  %v5478 = vadd.f32 0.0, %v5477
  %5479 = vmatprep.mubr.f32.mxu0 %v5065
  %5480 = vmatmul.mubr.f32.gmra.mxu0 %v5064
  %v5481 = vpop.f32.mrf.mxu0
  %v5482 = vadd.f32 0.0, %v5481
  %v5483 = vpop.f32.mrf.mxu0
  %v5484 = vadd.f32 0.0, %v5483
  %5485 = vdwg.mxu0
  %5486 = vmatprep.subr.mxu0 %v5258
  %5487 = vmatpush1.msra.mxu0 %v5257
  %5488 = vmatprep.subr.mxu0 %v5254
  %5489 = vmatpush1.msra.mxu0 %v5253
  %5490 = vmatprep.subr.mxu0 %v5250
  %5491 = vmatpush1.msra.mxu0 %v5249
  %5492 = vmatprep.subr.mxu0 %v5246
  %5493 = vmatpush1.msra.mxu0 %v5245
  %5494 = vmatprep.subr.mxu0 %v5242
  %5495 = vmatpush1.msra.mxu0 %v5241
  %5496 = vmatprep.subr.mxu0 %v5238
  %5497 = vmatpush1.msra.mxu0 %v5237
  %5498 = vmatprep.subr.mxu0 %v5234
  %5499 = vmatpush1.msra.mxu0 %v5233
  %5500 = vmatprep.subr.mxu0 %v5230
  %5501 = vmatpush1.msra.mxu0 %v5229
  %5502 = vmatprep.subr.mxu0 %v5226
  %5503 = vmatpush1.msra.mxu0 %v5225
  %5504 = vmatprep.subr.mxu0 %v5222
  %5505 = vmatpush1.msra.mxu0 %v5221
  %5506 = vmatprep.subr.mxu0 %v5218
  %5507 = vmatpush1.msra.mxu0 %v5217
  %5508 = vmatprep.subr.mxu0 %v5214
  %5509 = vmatpush1.msra.mxu0 %v5213
  %5510 = vmatprep.subr.mxu0 %v5210
  %5511 = vmatpush1.msra.mxu0 %v5209
  %5512 = vmatprep.subr.mxu0 %v5206
  %5513 = vmatpush1.msra.mxu0 %v5205
  %5514 = vmatprep.subr.mxu0 %v5202
  %5515 = vmatpush1.msra.mxu0 %v5201
  %5516 = vmatprep.subr.mxu0 %v5198
  %5517 = vmatpush1.msra.mxu0 %v5197
  %5518 = vmatprep.subr.mxu0 %v5322
  %5519 = vmatpush2.msra.mxu0 %v5321
  %5520 = vmatprep.subr.mxu0 %v5318
  %5521 = vmatpush2.msra.mxu0 %v5317
  %5522 = vmatprep.subr.mxu0 %v5314
  %5523 = vmatpush2.msra.mxu0 %v5313
  %5524 = vmatprep.subr.mxu0 %v5310
  %5525 = vmatpush2.msra.mxu0 %v5309
  %5526 = vmatprep.subr.mxu0 %v5306
  %5527 = vmatpush2.msra.mxu0 %v5305
  %5528 = vmatprep.subr.mxu0 %v5302
  %5529 = vmatpush2.msra.mxu0 %v5301
  %5530 = vmatprep.subr.mxu0 %v5298
  %5531 = vmatpush2.msra.mxu0 %v5297
  %5532 = vmatprep.subr.mxu0 %v5294
  %5533 = vmatpush2.msra.mxu0 %v5293
  %5534 = vmatprep.subr.mxu0 %v5290
  %5535 = vmatpush2.msra.mxu0 %v5289
  %5536 = vmatprep.subr.mxu0 %v5286
  %5537 = vmatpush2.msra.mxu0 %v5285
  %5538 = vmatprep.subr.mxu0 %v5282
  %5539 = vmatpush2.msra.mxu0 %v5281
  %5540 = vmatprep.subr.mxu0 %v5278
  %5541 = vmatpush2.msra.mxu0 %v5277
  %5542 = vmatprep.subr.mxu0 %v5274
  %5543 = vmatpush2.msra.mxu0 %v5273
  %5544 = vmatprep.subr.mxu0 %v5270
  %5545 = vmatpush2.msra.mxu0 %v5269
  %5546 = vmatprep.subr.mxu0 %v5266
  %5547 = vmatpush2.msra.mxu0 %v5265
  %5548 = vmatprep.subr.mxu0 %v5262
  %5549 = vmatpush2.msra.mxu0 %v5261
  %5550 = vmatprep.mubr.f32.mxu0 %v5007
  %5551 = vmatmul.mubr.f32.gmra.mxu0 %v5006
  %v5552 = vpop.f32.mrf.mxu0
  %v5553 = vadd.f32 %v5392, %v5552
  %v5554 = vpop.f32.mrf.mxu0
  %v5555 = vadd.f32 %v5394, %v5554
  %5556 = vmatprep.mubr.f32.mxu0 %v5011
  %5557 = vmatmul.mubr.f32.gmra.mxu0 %v5010
  %v5558 = vpop.f32.mrf.mxu0
  %v5559 = vadd.f32 %v5398, %v5558
  %v5560 = vpop.f32.mrf.mxu0
  %v5561 = vadd.f32 %v5400, %v5560
  %5562 = vmatprep.mubr.f32.mxu0 %v5015
  %5563 = vmatmul.mubr.f32.gmra.mxu0 %v5014
  %v5564 = vpop.f32.mrf.mxu0
  %v5565 = vadd.f32 %v5404, %v5564
  %v5566 = vpop.f32.mrf.mxu0
  %v5567 = vadd.f32 %v5406, %v5566
  %5568 = vmatprep.mubr.f32.mxu0 %v5019
  %5569 = vmatmul.mubr.f32.gmra.mxu0 %v5018
  %v5570 = vpop.f32.mrf.mxu0
  %v5571 = vadd.f32 %v5410, %v5570
  %v5572 = vpop.f32.mrf.mxu0
  %v5573 = vadd.f32 %v5412, %v5572
  %5574 = vmatprep.mubr.f32.mxu0 %v5023
  %5575 = vmatmul.mubr.f32.gmra.mxu0 %v5022
  %v5576 = vpop.f32.mrf.mxu0
  %v5577 = vadd.f32 %v5416, %v5576
  %v5578 = vpop.f32.mrf.mxu0
  %v5579 = vadd.f32 %v5418, %v5578
  %5580 = vmatprep.mubr.f32.mxu0 %v5027
  %5581 = vmatmul.mubr.f32.gmra.mxu0 %v5026
  %v5582 = vpop.f32.mrf.mxu0
  %v5583 = vadd.f32 %v5422, %v5582
  %v5584 = vpop.f32.mrf.mxu0
  %v5585 = vadd.f32 %v5424, %v5584
  %5586 = vmatprep.mubr.f32.mxu0 %v5031
  %5587 = vmatmul.mubr.f32.gmra.mxu0 %v5030
  %v5588 = vpop.f32.mrf.mxu0
  %v5589 = vadd.f32 %v5428, %v5588
  %v5590 = vpop.f32.mrf.mxu0
  %v5591 = vadd.f32 %v5430, %v5590
  %5592 = vmatprep.mubr.f32.mxu0 %v5035
  %5593 = vmatmul.mubr.f32.gmra.mxu0 %v5034
  %v5594 = vpop.f32.mrf.mxu0
  %v5595 = vadd.f32 %v5434, %v5594
  %v5596 = vpop.f32.mrf.mxu0
  %v5597 = vadd.f32 %v5436, %v5596
  %5598 = vmatprep.mubr.f32.mxu0 %v5039
  %5599 = vmatmul.mubr.f32.gmra.mxu0 %v5038
  %v5600 = vpop.f32.mrf.mxu0
  %v5601 = vadd.f32 %v5440, %v5600
  %v5602 = vpop.f32.mrf.mxu0
  %v5603 = vadd.f32 %v5442, %v5602
  %5604 = vmatprep.mubr.f32.mxu0 %v5043
  %5605 = vmatmul.mubr.f32.gmra.mxu0 %v5042
  %v5606 = vpop.f32.mrf.mxu0
  %v5607 = vadd.f32 %v5446, %v5606
  %v5608 = vpop.f32.mrf.mxu0
  %v5609 = vadd.f32 %v5448, %v5608
  %5610 = vmatprep.mubr.f32.mxu0 %v5047
  %5611 = vmatmul.mubr.f32.gmra.mxu0 %v5046
  %v5612 = vpop.f32.mrf.mxu0
  %v5613 = vadd.f32 %v5452, %v5612
  %v5614 = vpop.f32.mrf.mxu0
  %v5615 = vadd.f32 %v5454, %v5614
  %5616 = vmatprep.mubr.f32.mxu0 %v5051
  %5617 = vmatmul.mubr.f32.gmra.mxu0 %v5050
  %v5618 = vpop.f32.mrf.mxu0
  %v5619 = vadd.f32 %v5458, %v5618
  %v5620 = vpop.f32.mrf.mxu0
  %v5621 = vadd.f32 %v5460, %v5620
  %5622 = vmatprep.mubr.f32.mxu0 %v5055
  %5623 = vmatmul.mubr.f32.gmra.mxu0 %v5054
  %v5624 = vpop.f32.mrf.mxu0
  %v5625 = vadd.f32 %v5464, %v5624
  %v5626 = vpop.f32.mrf.mxu0
  %v5627 = vadd.f32 %v5466, %v5626
  %5628 = vmatprep.mubr.f32.mxu0 %v5059
  %5629 = vmatmul.mubr.f32.gmra.mxu0 %v5058
  %v5630 = vpop.f32.mrf.mxu0
  %v5631 = vadd.f32 %v5470, %v5630
  %v5632 = vpop.f32.mrf.mxu0
  %v5633 = vadd.f32 %v5472, %v5632
  %5634 = vmatprep.mubr.f32.mxu0 %v5063
  %5635 = vmatmul.mubr.f32.gmra.mxu0 %v5062
  %v5636 = vpop.f32.mrf.mxu0
  %v5637 = vadd.f32 %v5476, %v5636
  %v5638 = vpop.f32.mrf.mxu0
  %v5639 = vadd.f32 %v5478, %v5638
  %5640 = vmatprep.mubr.f32.mxu0 %v5067
  %5641 = vmatmul.mubr.f32.gmra.mxu0 %v5066
  %v5642 = vpop.f32.mrf.mxu0
  %v5643 = vadd.f32 %v5482, %v5642
  %v5644 = vpop.f32.mrf.mxu0
  %v5645 = vadd.f32 %v5484, %v5644
  %5646 = vdwg.mxu0
  %5647 = vmatprep.subr.mxu0 %v5132
  %5648 = vmatpush1.msra.mxu0 %v5131
  %5649 = vmatprep.subr.mxu0 %v5128
  %5650 = vmatpush1.msra.mxu0 %v5127
  %5651 = vmatprep.subr.mxu0 %v5124
  %5652 = vmatpush1.msra.mxu0 %v5123
  %5653 = vmatprep.subr.mxu0 %v5120
  %5654 = vmatpush1.msra.mxu0 %v5119
  %5655 = vmatprep.subr.mxu0 %v5116
  %5656 = vmatpush1.msra.mxu0 %v5115
  %5657 = vmatprep.subr.mxu0 %v5112
  %5658 = vmatpush1.msra.mxu0 %v5111
  %5659 = vmatprep.subr.mxu0 %v5108
  %5660 = vmatpush1.msra.mxu0 %v5107
  %5661 = vmatprep.subr.mxu0 %v5104
  %5662 = vmatpush1.msra.mxu0 %v5103
  %5663 = vmatprep.subr.mxu0 %v5100
  %5664 = vmatpush1.msra.mxu0 %v5099
  %5665 = vmatprep.subr.mxu0 %v5096
  %5666 = vmatpush1.msra.mxu0 %v5095
  %5667 = vmatprep.subr.mxu0 %v5092
  %5668 = vmatpush1.msra.mxu0 %v5091
  %5669 = vmatprep.subr.mxu0 %v5088
  %5670 = vmatpush1.msra.mxu0 %v5087
  %5671 = vmatprep.subr.mxu0 %v5084
  %5672 = vmatpush1.msra.mxu0 %v5083
  %5673 = vmatprep.subr.mxu0 %v5080
  %5674 = vmatpush1.msra.mxu0 %v5079
  %5675 = vmatprep.subr.mxu0 %v5076
  %5676 = vmatpush1.msra.mxu0 %v5075
  %5677 = vmatprep.subr.mxu0 %v5072
  %5678 = vmatpush1.msra.mxu0 %v5071
  %5679 = vmatprep.subr.mxu0 %v5196
  %5680 = vmatpush2.msra.mxu0 %v5195
  %5681 = vmatprep.subr.mxu0 %v5192
  %5682 = vmatpush2.msra.mxu0 %v5191
  %5683 = vmatprep.subr.mxu0 %v5188
  %5684 = vmatpush2.msra.mxu0 %v5187
  %5685 = vmatprep.subr.mxu0 %v5184
  %5686 = vmatpush2.msra.mxu0 %v5183
  %5687 = vmatprep.subr.mxu0 %v5180
  %5688 = vmatpush2.msra.mxu0 %v5179
  %5689 = vmatprep.subr.mxu0 %v5176
  %5690 = vmatpush2.msra.mxu0 %v5175
  %5691 = vmatprep.subr.mxu0 %v5172
  %5692 = vmatpush2.msra.mxu0 %v5171
  %5693 = vmatprep.subr.mxu0 %v5168
  %5694 = vmatpush2.msra.mxu0 %v5167
  %5695 = vmatprep.subr.mxu0 %v5164
  %5696 = vmatpush2.msra.mxu0 %v5163
  %5697 = vmatprep.subr.mxu0 %v5160
  %5698 = vmatpush2.msra.mxu0 %v5159
  %5699 = vmatprep.subr.mxu0 %v5156
  %5700 = vmatpush2.msra.mxu0 %v5155
  %5701 = vmatprep.subr.mxu0 %v5152
  %5702 = vmatpush2.msra.mxu0 %v5151
  %5703 = vmatprep.subr.mxu0 %v5148
  %5704 = vmatpush2.msra.mxu0 %v5147
  %5705 = vmatprep.subr.mxu0 %v5144
  %5706 = vmatpush2.msra.mxu0 %v5143
  %5707 = vmatprep.subr.mxu0 %v5140
  %5708 = vmatpush2.msra.mxu0 %v5139
  %5709 = vmatprep.subr.mxu0 %v5136
  %5710 = vmatpush2.msra.mxu0 %v5135
  %5711 = vmatprep.mubr.f32.mxu0 %v5005
  %5712 = vmatmul.mubr.f32.gmra.mxu0 %v5004
  %v5713 = vpop.f32.mrf.mxu0
  %v5714 = vadd.f32 0.0, %v5713
  %v5715 = vpop.f32.mrf.mxu0
  %v5716 = vadd.f32 0.0, %v5715
  %5717 = vmatprep.mubr.f32.mxu0 %v5009
  %5718 = vmatmul.mubr.f32.gmra.mxu0 %v5008
  %v5719 = vpop.f32.mrf.mxu0
  %v5720 = vadd.f32 0.0, %v5719
  %v5721 = vpop.f32.mrf.mxu0
  %v5722 = vadd.f32 0.0, %v5721
  %5723 = vmatprep.mubr.f32.mxu0 %v5013
  %5724 = vmatmul.mubr.f32.gmra.mxu0 %v5012
  %v5725 = vpop.f32.mrf.mxu0
  %v5726 = vadd.f32 0.0, %v5725
  %v5727 = vpop.f32.mrf.mxu0
  %v5728 = vadd.f32 0.0, %v5727
  %5729 = vmatprep.mubr.f32.mxu0 %v5017
  %5730 = vmatmul.mubr.f32.gmra.mxu0 %v5016
  %v5731 = vpop.f32.mrf.mxu0
  %v5732 = vadd.f32 0.0, %v5731
  %v5733 = vpop.f32.mrf.mxu0
  %v5734 = vadd.f32 0.0, %v5733
  %5735 = vmatprep.mubr.f32.mxu0 %v5021
  %5736 = vmatmul.mubr.f32.gmra.mxu0 %v5020
  %v5737 = vpop.f32.mrf.mxu0
  %v5738 = vadd.f32 0.0, %v5737
  %v5739 = vpop.f32.mrf.mxu0
  %v5740 = vadd.f32 0.0, %v5739
  %5741 = vmatprep.mubr.f32.mxu0 %v5025
  %5742 = vmatmul.mubr.f32.gmra.mxu0 %v5024
  %v5743 = vpop.f32.mrf.mxu0
  %v5744 = vadd.f32 0.0, %v5743
  %v5745 = vpop.f32.mrf.mxu0
  %v5746 = vadd.f32 0.0, %v5745
  %5747 = vmatprep.mubr.f32.mxu0 %v5029
  %5748 = vmatmul.mubr.f32.gmra.mxu0 %v5028
  %v5749 = vpop.f32.mrf.mxu0
  %v5750 = vadd.f32 0.0, %v5749
  %v5751 = vpop.f32.mrf.mxu0
  %v5752 = vadd.f32 0.0, %v5751
  %5753 = vmatprep.mubr.f32.mxu0 %v5033
  %5754 = vmatmul.mubr.f32.gmra.mxu0 %v5032
  %v5755 = vpop.f32.mrf.mxu0
  %v5756 = vadd.f32 0.0, %v5755
  %v5757 = vpop.f32.mrf.mxu0
  %v5758 = vadd.f32 0.0, %v5757
  %5759 = vmatprep.mubr.f32.mxu0 %v5037
  %5760 = vmatmul.mubr.f32.gmra.mxu0 %v5036
  %v5761 = vpop.f32.mrf.mxu0
  %v5762 = vadd.f32 0.0, %v5761
  %v5763 = vpop.f32.mrf.mxu0
  %v5764 = vadd.f32 0.0, %v5763
  %5765 = vmatprep.mubr.f32.mxu0 %v5041
  %5766 = vmatmul.mubr.f32.gmra.mxu0 %v5040
  %v5767 = vpop.f32.mrf.mxu0
  %v5768 = vadd.f32 0.0, %v5767
  %v5769 = vpop.f32.mrf.mxu0
  %v5770 = vadd.f32 0.0, %v5769
  %5771 = vmatprep.mubr.f32.mxu0 %v5045
  %5772 = vmatmul.mubr.f32.gmra.mxu0 %v5044
  %v5773 = vpop.f32.mrf.mxu0
  %v5774 = vadd.f32 0.0, %v5773
  %v5775 = vpop.f32.mrf.mxu0
  %v5776 = vadd.f32 0.0, %v5775
  %5777 = vmatprep.mubr.f32.mxu0 %v5049
  %5778 = vmatmul.mubr.f32.gmra.mxu0 %v5048
  %v5779 = vpop.f32.mrf.mxu0
  %v5780 = vadd.f32 0.0, %v5779
  %v5781 = vpop.f32.mrf.mxu0
  %v5782 = vadd.f32 0.0, %v5781
  %5783 = vmatprep.mubr.f32.mxu0 %v5053
  %5784 = vmatmul.mubr.f32.gmra.mxu0 %v5052
  %v5785 = vpop.f32.mrf.mxu0
  %v5786 = vadd.f32 0.0, %v5785
  %v5787 = vpop.f32.mrf.mxu0
  %v5788 = vadd.f32 0.0, %v5787
  %5789 = vmatprep.mubr.f32.mxu0 %v5057
  %5790 = vmatmul.mubr.f32.gmra.mxu0 %v5056
  %v5791 = vpop.f32.mrf.mxu0
  %v5792 = vadd.f32 0.0, %v5791
  %v5793 = vpop.f32.mrf.mxu0
  %v5794 = vadd.f32 0.0, %v5793
  %5795 = vmatprep.mubr.f32.mxu0 %v5061
  %5796 = vmatmul.mubr.f32.gmra.mxu0 %v5060
  %v5797 = vpop.f32.mrf.mxu0
  %v5798 = vadd.f32 0.0, %v5797
  %v5799 = vpop.f32.mrf.mxu0
  %v5800 = vadd.f32 0.0, %v5799
  %5801 = vmatprep.mubr.f32.mxu0 %v5065
  %5802 = vmatmul.mubr.f32.gmra.mxu0 %v5064
  %v5803 = vpop.f32.mrf.mxu0
  %v5804 = vadd.f32 0.0, %v5803
  %v5805 = vpop.f32.mrf.mxu0
  %v5806 = vadd.f32 0.0, %v5805
  %5807 = vdwg.mxu0
  %5808 = vmatprep.subr.mxu0 %v5260
  %5809 = vmatpush1.msra.mxu0 %v5259
  %5810 = vmatprep.subr.mxu0 %v5256
  %5811 = vmatpush1.msra.mxu0 %v5255
  %5812 = vmatprep.subr.mxu0 %v5252
  %5813 = vmatpush1.msra.mxu0 %v5251
  %5814 = vmatprep.subr.mxu0 %v5248
  %5815 = vmatpush1.msra.mxu0 %v5247
  %5816 = vmatprep.subr.mxu0 %v5244
  %5817 = vmatpush1.msra.mxu0 %v5243
  %5818 = vmatprep.subr.mxu0 %v5240
  %5819 = vmatpush1.msra.mxu0 %v5239
  %5820 = vmatprep.subr.mxu0 %v5236
  %5821 = vmatpush1.msra.mxu0 %v5235
  %5822 = vmatprep.subr.mxu0 %v5232
  %5823 = vmatpush1.msra.mxu0 %v5231
  %5824 = vmatprep.subr.mxu0 %v5228
  %5825 = vmatpush1.msra.mxu0 %v5227
  %5826 = vmatprep.subr.mxu0 %v5224
  %5827 = vmatpush1.msra.mxu0 %v5223
  %5828 = vmatprep.subr.mxu0 %v5220
  %5829 = vmatpush1.msra.mxu0 %v5219
  %5830 = vmatprep.subr.mxu0 %v5216
  %5831 = vmatpush1.msra.mxu0 %v5215
  %5832 = vmatprep.subr.mxu0 %v5212
  %5833 = vmatpush1.msra.mxu0 %v5211
  %5834 = vmatprep.subr.mxu0 %v5208
  %5835 = vmatpush1.msra.mxu0 %v5207
  %5836 = vmatprep.subr.mxu0 %v5204
  %5837 = vmatpush1.msra.mxu0 %v5203
  %5838 = vmatprep.subr.mxu0 %v5200
  %5839 = vmatpush1.msra.mxu0 %v5199
  %5840 = vmatprep.subr.mxu0 %v5324
  %5841 = vmatpush2.msra.mxu0 %v5323
  %5842 = vmatprep.subr.mxu0 %v5320
  %5843 = vmatpush2.msra.mxu0 %v5319
  %5844 = vmatprep.subr.mxu0 %v5316
  %5845 = vmatpush2.msra.mxu0 %v5315
  %5846 = vmatprep.subr.mxu0 %v5312
  %5847 = vmatpush2.msra.mxu0 %v5311
  %5848 = vmatprep.subr.mxu0 %v5308
  %5849 = vmatpush2.msra.mxu0 %v5307
  %5850 = vmatprep.subr.mxu0 %v5304
  %5851 = vmatpush2.msra.mxu0 %v5303
  %5852 = vmatprep.subr.mxu0 %v5300
  %5853 = vmatpush2.msra.mxu0 %v5299
  %5854 = vmatprep.subr.mxu0 %v5296
  %5855 = vmatpush2.msra.mxu0 %v5295
  %5856 = vmatprep.subr.mxu0 %v5292
  %5857 = vmatpush2.msra.mxu0 %v5291
  %5858 = vmatprep.subr.mxu0 %v5288
  %5859 = vmatpush2.msra.mxu0 %v5287
  %5860 = vmatprep.subr.mxu0 %v5284
  %5861 = vmatpush2.msra.mxu0 %v5283
  %5862 = vmatprep.subr.mxu0 %v5280
  %5863 = vmatpush2.msra.mxu0 %v5279
  %5864 = vmatprep.subr.mxu0 %v5276
  %5865 = vmatpush2.msra.mxu0 %v5275
  %5866 = vmatprep.subr.mxu0 %v5272
  %5867 = vmatpush2.msra.mxu0 %v5271
  %5868 = vmatprep.subr.mxu0 %v5268
  %5869 = vmatpush2.msra.mxu0 %v5267
  %5870 = vmatprep.subr.mxu0 %v5264
  %5871 = vmatpush2.msra.mxu0 %v5263
  %5872 = vmatprep.mubr.f32.mxu0 %v5007
  %5873 = vmatmul.mubr.f32.gmra.mxu0 %v5006
  %v5874 = vpop.f32.mrf.mxu0
  %v5875 = vadd.f32 %v5714, %v5874
  %v5876 = vpop.f32.mrf.mxu0
  %v5877 = vadd.f32 %v5716, %v5876
  %5878 = vmatprep.mubr.f32.mxu0 %v5011
  %5879 = vmatmul.mubr.f32.gmra.mxu0 %v5010
  %v5880 = vpop.f32.mrf.mxu0
  %v5881 = vadd.f32 %v5720, %v5880
  %v5882 = vpop.f32.mrf.mxu0
  %v5883 = vadd.f32 %v5722, %v5882
  %5884 = vmatprep.mubr.f32.mxu0 %v5015
  %5885 = vmatmul.mubr.f32.gmra.mxu0 %v5014
  %v5886 = vpop.f32.mrf.mxu0
  %v5887 = vadd.f32 %v5726, %v5886
  %v5888 = vpop.f32.mrf.mxu0
  %v5889 = vadd.f32 %v5728, %v5888
  %5890 = vmatprep.mubr.f32.mxu0 %v5019
  %5891 = vmatmul.mubr.f32.gmra.mxu0 %v5018
  %v5892 = vpop.f32.mrf.mxu0
  %v5893 = vadd.f32 %v5732, %v5892
  %v5894 = vpop.f32.mrf.mxu0
  %v5895 = vadd.f32 %v5734, %v5894
  %5896 = vmatprep.mubr.f32.mxu0 %v5023
  %5897 = vmatmul.mubr.f32.gmra.mxu0 %v5022
  %v5898 = vpop.f32.mrf.mxu0
  %v5899 = vadd.f32 %v5738, %v5898
  %v5900 = vpop.f32.mrf.mxu0
  %v5901 = vadd.f32 %v5740, %v5900
  %5902 = vmatprep.mubr.f32.mxu0 %v5027
  %5903 = vmatmul.mubr.f32.gmra.mxu0 %v5026
  %v5904 = vpop.f32.mrf.mxu0
  %v5905 = vadd.f32 %v5744, %v5904
  %v5906 = vpop.f32.mrf.mxu0
  %v5907 = vadd.f32 %v5746, %v5906
  %5908 = vmatprep.mubr.f32.mxu0 %v5031
  %5909 = vmatmul.mubr.f32.gmra.mxu0 %v5030
  %v5910 = vpop.f32.mrf.mxu0
  %v5911 = vadd.f32 %v5750, %v5910
  %v5912 = vpop.f32.mrf.mxu0
  %v5913 = vadd.f32 %v5752, %v5912
  %5914 = vmatprep.mubr.f32.mxu0 %v5035
  %5915 = vmatmul.mubr.f32.gmra.mxu0 %v5034
  %v5916 = vpop.f32.mrf.mxu0
  %v5917 = vadd.f32 %v5756, %v5916
  %v5918 = vpop.f32.mrf.mxu0
  %v5919 = vadd.f32 %v5758, %v5918
  %5920 = vmatprep.mubr.f32.mxu0 %v5039
  %5921 = vmatmul.mubr.f32.gmra.mxu0 %v5038
  %v5922 = vpop.f32.mrf.mxu0
  %v5923 = vadd.f32 %v5762, %v5922
  %v5924 = vpop.f32.mrf.mxu0
  %v5925 = vadd.f32 %v5764, %v5924
  %5926 = vmatprep.mubr.f32.mxu0 %v5043
  %5927 = vmatmul.mubr.f32.gmra.mxu0 %v5042
  %v5928 = vpop.f32.mrf.mxu0
  %v5929 = vadd.f32 %v5768, %v5928
  %v5930 = vpop.f32.mrf.mxu0
  %v5931 = vadd.f32 %v5770, %v5930
  %5932 = vmatprep.mubr.f32.mxu0 %v5047
  %5933 = vmatmul.mubr.f32.gmra.mxu0 %v5046
  %v5934 = vpop.f32.mrf.mxu0
  %v5935 = vadd.f32 %v5774, %v5934
  %v5936 = vpop.f32.mrf.mxu0
  %v5937 = vadd.f32 %v5776, %v5936
  %5938 = vmatprep.mubr.f32.mxu0 %v5051
  %5939 = vmatmul.mubr.f32.gmra.mxu0 %v5050
  %v5940 = vpop.f32.mrf.mxu0
  %v5941 = vadd.f32 %v5780, %v5940
  %v5942 = vpop.f32.mrf.mxu0
  %v5943 = vadd.f32 %v5782, %v5942
  %5944 = vmatprep.mubr.f32.mxu0 %v5055
  %5945 = vmatmul.mubr.f32.gmra.mxu0 %v5054
  %v5946 = vpop.f32.mrf.mxu0
  %v5947 = vadd.f32 %v5786, %v5946
  %v5948 = vpop.f32.mrf.mxu0
  %v5949 = vadd.f32 %v5788, %v5948
  %5950 = vmatprep.mubr.f32.mxu0 %v5059
  %5951 = vmatmul.mubr.f32.gmra.mxu0 %v5058
  %v5952 = vpop.f32.mrf.mxu0
  %v5953 = vadd.f32 %v5792, %v5952
  %v5954 = vpop.f32.mrf.mxu0
  %v5955 = vadd.f32 %v5794, %v5954
  %5956 = vmatprep.mubr.f32.mxu0 %v5063
  %5957 = vmatmul.mubr.f32.gmra.mxu0 %v5062
  %v5958 = vpop.f32.mrf.mxu0
  %v5959 = vadd.f32 %v5798, %v5958
  %v5960 = vpop.f32.mrf.mxu0
  %v5961 = vadd.f32 %v5800, %v5960
  %5962 = vmatprep.mubr.f32.mxu0 %v5067
  %5963 = vmatmul.mubr.f32.gmra.mxu0 %v5066
  %v5964 = vpop.f32.mrf.mxu0
  %v5965 = vadd.f32 %v5804, %v5964
  %v5966 = vpop.f32.mrf.mxu0
  %v5967 = vadd.f32 %v5806, %v5966
  %5968 = vdwg.mxu0
  %5969 = vmatprep.subr.mxu0 %v4809
  %5970 = vmatpush1.msra.mxu0 %v4808
  %5971 = vmatprep.subr.mxu0 %v4805
  %5972 = vmatpush1.msra.mxu0 %v4804
  %5973 = vmatprep.subr.mxu0 %v4801
  %5974 = vmatpush1.msra.mxu0 %v4800
  %5975 = vmatprep.subr.mxu0 %v4797
  %5976 = vmatpush1.msra.mxu0 %v4796
  %5977 = vmatprep.subr.mxu0 %v4793
  %5978 = vmatpush1.msra.mxu0 %v4792
  %5979 = vmatprep.subr.mxu0 %v4789
  %5980 = vmatpush1.msra.mxu0 %v4788
  %5981 = vmatprep.subr.mxu0 %v4785
  %5982 = vmatpush1.msra.mxu0 %v4784
  %5983 = vmatprep.subr.mxu0 %v4781
  %5984 = vmatpush1.msra.mxu0 %v4780
  %5985 = vmatprep.subr.mxu0 %v4777
  %5986 = vmatpush1.msra.mxu0 %v4776
  %5987 = vmatprep.subr.mxu0 %v4773
  %5988 = vmatpush1.msra.mxu0 %v4772
  %5989 = vmatprep.subr.mxu0 %v4769
  %5990 = vmatpush1.msra.mxu0 %v4768
  %5991 = vmatprep.subr.mxu0 %v4765
  %5992 = vmatpush1.msra.mxu0 %v4764
  %5993 = vmatprep.subr.mxu0 %v4761
  %5994 = vmatpush1.msra.mxu0 %v4760
  %5995 = vmatprep.subr.mxu0 %v4757
  %5996 = vmatpush1.msra.mxu0 %v4756
  %5997 = vmatprep.subr.mxu0 %v4753
  %5998 = vmatpush1.msra.mxu0 %v4752
  %5999 = vmatprep.subr.mxu0 %v4749
  %6000 = vmatpush1.msra.mxu0 %v4748
  %6001 = vmatprep.subr.mxu0 %v4873
  %6002 = vmatpush2.msra.mxu0 %v4872
  %6003 = vmatprep.subr.mxu0 %v4869
  %6004 = vmatpush2.msra.mxu0 %v4868
  %6005 = vmatprep.subr.mxu0 %v4865
  %6006 = vmatpush2.msra.mxu0 %v4864
  %6007 = vmatprep.subr.mxu0 %v4861
  %6008 = vmatpush2.msra.mxu0 %v4860
  %6009 = vmatprep.subr.mxu0 %v4857
  %6010 = vmatpush2.msra.mxu0 %v4856
  %6011 = vmatprep.subr.mxu0 %v4853
  %6012 = vmatpush2.msra.mxu0 %v4852
  %6013 = vmatprep.subr.mxu0 %v4849
  %6014 = vmatpush2.msra.mxu0 %v4848
  %6015 = vmatprep.subr.mxu0 %v4845
  %6016 = vmatpush2.msra.mxu0 %v4844
  %6017 = vmatprep.subr.mxu0 %v4841
  %6018 = vmatpush2.msra.mxu0 %v4840
  %6019 = vmatprep.subr.mxu0 %v4837
  %6020 = vmatpush2.msra.mxu0 %v4836
  %6021 = vmatprep.subr.mxu0 %v4833
  %6022 = vmatpush2.msra.mxu0 %v4832
  %6023 = vmatprep.subr.mxu0 %v4829
  %6024 = vmatpush2.msra.mxu0 %v4828
  %6025 = vmatprep.subr.mxu0 %v4825
  %6026 = vmatpush2.msra.mxu0 %v4824
  %6027 = vmatprep.subr.mxu0 %v4821
  %6028 = vmatpush2.msra.mxu0 %v4820
  %6029 = vmatprep.subr.mxu0 %v4817
  %6030 = vmatpush2.msra.mxu0 %v4816
  %6031 = vmatprep.subr.mxu0 %v4813
  %6032 = vmatpush2.msra.mxu0 %v4812
  %6033 = vmatprep.mubr.f32.mxu0 %v4685
  %6034 = vmatmul.mubr.f32.gmra.mxu0 %v4684
  %v6035 = vpop.f32.mrf.mxu0
  %v6036 = vadd.f32 %v5553, %v6035
  %v6037 = vpop.f32.mrf.mxu0
  %v6038 = vadd.f32 %v5555, %v6037
  %6039 = vmatprep.mubr.f32.mxu0 %v4689
  %6040 = vmatmul.mubr.f32.gmra.mxu0 %v4688
  %v6041 = vpop.f32.mrf.mxu0
  %v6042 = vadd.f32 %v5559, %v6041
  %v6043 = vpop.f32.mrf.mxu0
  %v6044 = vadd.f32 %v5561, %v6043
  %6045 = vmatprep.mubr.f32.mxu0 %v4693
  %6046 = vmatmul.mubr.f32.gmra.mxu0 %v4692
  %v6047 = vpop.f32.mrf.mxu0
  %v6048 = vadd.f32 %v5565, %v6047
  %v6049 = vpop.f32.mrf.mxu0
  %v6050 = vadd.f32 %v5567, %v6049
  %6051 = vmatprep.mubr.f32.mxu0 %v4697
  %6052 = vmatmul.mubr.f32.gmra.mxu0 %v4696
  %v6053 = vpop.f32.mrf.mxu0
  %v6054 = vadd.f32 %v5571, %v6053
  %v6055 = vpop.f32.mrf.mxu0
  %v6056 = vadd.f32 %v5573, %v6055
  %6057 = vmatprep.mubr.f32.mxu0 %v4701
  %6058 = vmatmul.mubr.f32.gmra.mxu0 %v4700
  %v6059 = vpop.f32.mrf.mxu0
  %v6060 = vadd.f32 %v5577, %v6059
  %v6061 = vpop.f32.mrf.mxu0
  %v6062 = vadd.f32 %v5579, %v6061
  %6063 = vmatprep.mubr.f32.mxu0 %v4705
  %6064 = vmatmul.mubr.f32.gmra.mxu0 %v4704
  %v6065 = vpop.f32.mrf.mxu0
  %v6066 = vadd.f32 %v5583, %v6065
  %v6067 = vpop.f32.mrf.mxu0
  %v6068 = vadd.f32 %v5585, %v6067
  %6069 = vmatprep.mubr.f32.mxu0 %v4709
  %6070 = vmatmul.mubr.f32.gmra.mxu0 %v4708
  %v6071 = vpop.f32.mrf.mxu0
  %v6072 = vadd.f32 %v5589, %v6071
  %v6073 = vpop.f32.mrf.mxu0
  %v6074 = vadd.f32 %v5591, %v6073
  %6075 = vmatprep.mubr.f32.mxu0 %v4713
  %6076 = vmatmul.mubr.f32.gmra.mxu0 %v4712
  %v6077 = vpop.f32.mrf.mxu0
  %v6078 = vadd.f32 %v5595, %v6077
  %v6079 = vpop.f32.mrf.mxu0
  %v6080 = vadd.f32 %v5597, %v6079
  %6081 = vmatprep.mubr.f32.mxu0 %v4717
  %6082 = vmatmul.mubr.f32.gmra.mxu0 %v4716
  %v6083 = vpop.f32.mrf.mxu0
  %v6084 = vadd.f32 %v5601, %v6083
  %v6085 = vpop.f32.mrf.mxu0
  %v6086 = vadd.f32 %v5603, %v6085
  %6087 = vmatprep.mubr.f32.mxu0 %v4721
  %6088 = vmatmul.mubr.f32.gmra.mxu0 %v4720
  %v6089 = vpop.f32.mrf.mxu0
  %v6090 = vadd.f32 %v5607, %v6089
  %v6091 = vpop.f32.mrf.mxu0
  %v6092 = vadd.f32 %v5609, %v6091
  %6093 = vmatprep.mubr.f32.mxu0 %v4725
  %6094 = vmatmul.mubr.f32.gmra.mxu0 %v4724
  %v6095 = vpop.f32.mrf.mxu0
  %v6096 = vadd.f32 %v5613, %v6095
  %v6097 = vpop.f32.mrf.mxu0
  %v6098 = vadd.f32 %v5615, %v6097
  %6099 = vmatprep.mubr.f32.mxu0 %v4729
  %6100 = vmatmul.mubr.f32.gmra.mxu0 %v4728
  %v6101 = vpop.f32.mrf.mxu0
  %v6102 = vadd.f32 %v5619, %v6101
  %v6103 = vpop.f32.mrf.mxu0
  %v6104 = vadd.f32 %v5621, %v6103
  %6105 = vmatprep.mubr.f32.mxu0 %v4733
  %6106 = vmatmul.mubr.f32.gmra.mxu0 %v4732
  %v6107 = vpop.f32.mrf.mxu0
  %v6108 = vadd.f32 %v5625, %v6107
  %v6109 = vpop.f32.mrf.mxu0
  %v6110 = vadd.f32 %v5627, %v6109
  %6111 = vmatprep.mubr.f32.mxu0 %v4737
  %6112 = vmatmul.mubr.f32.gmra.mxu0 %v4736
  %v6113 = vpop.f32.mrf.mxu0
  %v6114 = vadd.f32 %v5631, %v6113
  %v6115 = vpop.f32.mrf.mxu0
  %v6116 = vadd.f32 %v5633, %v6115
  %6117 = vmatprep.mubr.f32.mxu0 %v4741
  %6118 = vmatmul.mubr.f32.gmra.mxu0 %v4740
  %v6119 = vpop.f32.mrf.mxu0
  %v6120 = vadd.f32 %v5637, %v6119
  %v6121 = vpop.f32.mrf.mxu0
  %v6122 = vadd.f32 %v5639, %v6121
  %6123 = vmatprep.mubr.f32.mxu0 %v4745
  %6124 = vmatmul.mubr.f32.gmra.mxu0 %v4744
  %v6125 = vpop.f32.mrf.mxu0
  %v6126 = vadd.f32 %v5643, %v6125
  %v6127 = vpop.f32.mrf.mxu0
  %v6128 = vadd.f32 %v5645, %v6127
  %6129 = vdwg.mxu0
  %6130 = vmatprep.subr.mxu0 %v4937
  %6131 = vmatpush1.msra.mxu0 %v4936
  %6132 = vmatprep.subr.mxu0 %v4933
  %6133 = vmatpush1.msra.mxu0 %v4932
  %6134 = vmatprep.subr.mxu0 %v4929
  %6135 = vmatpush1.msra.mxu0 %v4928
  %6136 = vmatprep.subr.mxu0 %v4925
  %6137 = vmatpush1.msra.mxu0 %v4924
  %6138 = vmatprep.subr.mxu0 %v4921
  %6139 = vmatpush1.msra.mxu0 %v4920
  %6140 = vmatprep.subr.mxu0 %v4917
  %6141 = vmatpush1.msra.mxu0 %v4916
  %6142 = vmatprep.subr.mxu0 %v4913
  %6143 = vmatpush1.msra.mxu0 %v4912
  %6144 = vmatprep.subr.mxu0 %v4909
  %6145 = vmatpush1.msra.mxu0 %v4908
  %6146 = vmatprep.subr.mxu0 %v4905
  %6147 = vmatpush1.msra.mxu0 %v4904
  %6148 = vmatprep.subr.mxu0 %v4901
  %6149 = vmatpush1.msra.mxu0 %v4900
  %6150 = vmatprep.subr.mxu0 %v4897
  %6151 = vmatpush1.msra.mxu0 %v4896
  %6152 = vmatprep.subr.mxu0 %v4893
  %6153 = vmatpush1.msra.mxu0 %v4892
  %6154 = vmatprep.subr.mxu0 %v4889
  %6155 = vmatpush1.msra.mxu0 %v4888
  %6156 = vmatprep.subr.mxu0 %v4885
  %6157 = vmatpush1.msra.mxu0 %v4884
  %6158 = vmatprep.subr.mxu0 %v4881
  %6159 = vmatpush1.msra.mxu0 %v4880
  %6160 = vmatprep.subr.mxu0 %v4877
  %6161 = vmatpush1.msra.mxu0 %v4876
  %6162 = vmatprep.subr.mxu0 %v5001
  %6163 = vmatpush2.msra.mxu0 %v5000
  %6164 = vmatprep.subr.mxu0 %v4997
  %6165 = vmatpush2.msra.mxu0 %v4996
  %6166 = vmatprep.subr.mxu0 %v4993
  %6167 = vmatpush2.msra.mxu0 %v4992
  %6168 = vmatprep.subr.mxu0 %v4989
  %6169 = vmatpush2.msra.mxu0 %v4988
  %6170 = vmatprep.subr.mxu0 %v4985
  %6171 = vmatpush2.msra.mxu0 %v4984
  %6172 = vmatprep.subr.mxu0 %v4981
  %6173 = vmatpush2.msra.mxu0 %v4980
  %6174 = vmatprep.subr.mxu0 %v4977
  %6175 = vmatpush2.msra.mxu0 %v4976
  %6176 = vmatprep.subr.mxu0 %v4973
  %6177 = vmatpush2.msra.mxu0 %v4972
  %6178 = vmatprep.subr.mxu0 %v4969
  %6179 = vmatpush2.msra.mxu0 %v4968
  %6180 = vmatprep.subr.mxu0 %v4965
  %6181 = vmatpush2.msra.mxu0 %v4964
  %6182 = vmatprep.subr.mxu0 %v4961
  %6183 = vmatpush2.msra.mxu0 %v4960
  %6184 = vmatprep.subr.mxu0 %v4957
  %6185 = vmatpush2.msra.mxu0 %v4956
  %6186 = vmatprep.subr.mxu0 %v4953
  %6187 = vmatpush2.msra.mxu0 %v4952
  %6188 = vmatprep.subr.mxu0 %v4949
  %6189 = vmatpush2.msra.mxu0 %v4948
  %6190 = vmatprep.subr.mxu0 %v4945
  %6191 = vmatpush2.msra.mxu0 %v4944
  %6192 = vmatprep.subr.mxu0 %v4941
  %6193 = vmatpush2.msra.mxu0 %v4940
  %6194 = vmatprep.mubr.f32.mxu0 %v4687
  %6195 = vmatmul.mubr.f32.gmra.mxu0 %v4686
  %v6196 = vpop.f32.mrf.mxu0
  %v6197 = vadd.f32 %v6036, %v6196
  %v6198 = vpop.f32.mrf.mxu0
  %v6199 = vadd.f32 %v6038, %v6198
  %6200 = vmatprep.mubr.f32.mxu0 %v4691
  %6201 = vmatmul.mubr.f32.gmra.mxu0 %v4690
  %v6202 = vpop.f32.mrf.mxu0
  %v6203 = vadd.f32 %v6042, %v6202
  %v6204 = vpop.f32.mrf.mxu0
  %v6205 = vadd.f32 %v6044, %v6204
  %6206 = vmatprep.mubr.f32.mxu0 %v4695
  %6207 = vmatmul.mubr.f32.gmra.mxu0 %v4694
  %v6208 = vpop.f32.mrf.mxu0
  %v6209 = vadd.f32 %v6048, %v6208
  %v6210 = vpop.f32.mrf.mxu0
  %v6211 = vadd.f32 %v6050, %v6210
  %6212 = vmatprep.mubr.f32.mxu0 %v4699
  %6213 = vmatmul.mubr.f32.gmra.mxu0 %v4698
  %v6214 = vpop.f32.mrf.mxu0
  %v6215 = vadd.f32 %v6054, %v6214
  %v6216 = vpop.f32.mrf.mxu0
  %v6217 = vadd.f32 %v6056, %v6216
  %6218 = vmatprep.mubr.f32.mxu0 %v4703
  %6219 = vmatmul.mubr.f32.gmra.mxu0 %v4702
  %v6220 = vpop.f32.mrf.mxu0
  %v6221 = vadd.f32 %v6060, %v6220
  %v6222 = vpop.f32.mrf.mxu0
  %v6223 = vadd.f32 %v6062, %v6222
  %6224 = vmatprep.mubr.f32.mxu0 %v4707
  %6225 = vmatmul.mubr.f32.gmra.mxu0 %v4706
  %v6226 = vpop.f32.mrf.mxu0
  %v6227 = vadd.f32 %v6066, %v6226
  %v6228 = vpop.f32.mrf.mxu0
  %v6229 = vadd.f32 %v6068, %v6228
  %6230 = vmatprep.mubr.f32.mxu0 %v4711
  %6231 = vmatmul.mubr.f32.gmra.mxu0 %v4710
  %v6232 = vpop.f32.mrf.mxu0
  %v6233 = vadd.f32 %v6072, %v6232
  %v6234 = vpop.f32.mrf.mxu0
  %v6235 = vadd.f32 %v6074, %v6234
  %6236 = vmatprep.mubr.f32.mxu0 %v4715
  %6237 = vmatmul.mubr.f32.gmra.mxu0 %v4714
  %v6238 = vpop.f32.mrf.mxu0
  %v6239 = vadd.f32 %v6078, %v6238
  %v6240 = vpop.f32.mrf.mxu0
  %v6241 = vadd.f32 %v6080, %v6240
  %6242 = vmatprep.mubr.f32.mxu0 %v4719
  %6243 = vmatmul.mubr.f32.gmra.mxu0 %v4718
  %v6244 = vpop.f32.mrf.mxu0
  %v6245 = vadd.f32 %v6084, %v6244
  %v6246 = vpop.f32.mrf.mxu0
  %v6247 = vadd.f32 %v6086, %v6246
  %6248 = vmatprep.mubr.f32.mxu0 %v4723
  %6249 = vmatmul.mubr.f32.gmra.mxu0 %v4722
  %v6250 = vpop.f32.mrf.mxu0
  %v6251 = vadd.f32 %v6090, %v6250
  %v6252 = vpop.f32.mrf.mxu0
  %v6253 = vadd.f32 %v6092, %v6252
  %6254 = vmatprep.mubr.f32.mxu0 %v4727
  %6255 = vmatmul.mubr.f32.gmra.mxu0 %v4726
  %v6256 = vpop.f32.mrf.mxu0
  %v6257 = vadd.f32 %v6096, %v6256
  %v6258 = vpop.f32.mrf.mxu0
  %v6259 = vadd.f32 %v6098, %v6258
  %6260 = vmatprep.mubr.f32.mxu0 %v4731
  %6261 = vmatmul.mubr.f32.gmra.mxu0 %v4730
  %v6262 = vpop.f32.mrf.mxu0
  %v6263 = vadd.f32 %v6102, %v6262
  %v6264 = vpop.f32.mrf.mxu0
  %v6265 = vadd.f32 %v6104, %v6264
  %6266 = vmatprep.mubr.f32.mxu0 %v4735
  %6267 = vmatmul.mubr.f32.gmra.mxu0 %v4734
  %v6268 = vpop.f32.mrf.mxu0
  %v6269 = vadd.f32 %v6108, %v6268
  %v6270 = vpop.f32.mrf.mxu0
  %v6271 = vadd.f32 %v6110, %v6270
  %6272 = vmatprep.mubr.f32.mxu0 %v4739
  %6273 = vmatmul.mubr.f32.gmra.mxu0 %v4738
  %v6274 = vpop.f32.mrf.mxu0
  %v6275 = vadd.f32 %v6114, %v6274
  %v6276 = vpop.f32.mrf.mxu0
  %v6277 = vadd.f32 %v6116, %v6276
  %6278 = vmatprep.mubr.f32.mxu0 %v4743
  %6279 = vmatmul.mubr.f32.gmra.mxu0 %v4742
  %v6280 = vpop.f32.mrf.mxu0
  %v6281 = vadd.f32 %v6120, %v6280
  %v6282 = vpop.f32.mrf.mxu0
  %v6283 = vadd.f32 %v6122, %v6282
  %6284 = vmatprep.mubr.f32.mxu0 %v4747
  %6285 = vmatmul.mubr.f32.gmra.mxu0 %v4746
  %v6286 = vpop.f32.mrf.mxu0
  %v6287 = vadd.f32 %v6126, %v6286
  %v6288 = vpop.f32.mrf.mxu0
  %v6289 = vadd.f32 %v6128, %v6288
  %6290 = vdwg.mxu0
  %6291 = vmatprep.subr.mxu0 %v4811
  %6292 = vmatpush1.msra.mxu0 %v4810
  %6293 = vmatprep.subr.mxu0 %v4807
  %6294 = vmatpush1.msra.mxu0 %v4806
  %6295 = vmatprep.subr.mxu0 %v4803
  %6296 = vmatpush1.msra.mxu0 %v4802
  %6297 = vmatprep.subr.mxu0 %v4799
  %6298 = vmatpush1.msra.mxu0 %v4798
  %6299 = vmatprep.subr.mxu0 %v4795
  %6300 = vmatpush1.msra.mxu0 %v4794
  %6301 = vmatprep.subr.mxu0 %v4791
  %6302 = vmatpush1.msra.mxu0 %v4790
  %6303 = vmatprep.subr.mxu0 %v4787
  %6304 = vmatpush1.msra.mxu0 %v4786
  %6305 = vmatprep.subr.mxu0 %v4783
  %6306 = vmatpush1.msra.mxu0 %v4782
  %6307 = vmatprep.subr.mxu0 %v4779
  %6308 = vmatpush1.msra.mxu0 %v4778
  %6309 = vmatprep.subr.mxu0 %v4775
  %6310 = vmatpush1.msra.mxu0 %v4774
  %6311 = vmatprep.subr.mxu0 %v4771
  %6312 = vmatpush1.msra.mxu0 %v4770
  %6313 = vmatprep.subr.mxu0 %v4767
  %6314 = vmatpush1.msra.mxu0 %v4766
  %6315 = vmatprep.subr.mxu0 %v4763
  %6316 = vmatpush1.msra.mxu0 %v4762
  %6317 = vmatprep.subr.mxu0 %v4759
  %6318 = vmatpush1.msra.mxu0 %v4758
  %6319 = vmatprep.subr.mxu0 %v4755
  %6320 = vmatpush1.msra.mxu0 %v4754
  %6321 = vmatprep.subr.mxu0 %v4751
  %6322 = vmatpush1.msra.mxu0 %v4750
  %6323 = vmatprep.subr.mxu0 %v4875
  %6324 = vmatpush2.msra.mxu0 %v4874
  %6325 = vmatprep.subr.mxu0 %v4871
  %6326 = vmatpush2.msra.mxu0 %v4870
  %6327 = vmatprep.subr.mxu0 %v4867
  %6328 = vmatpush2.msra.mxu0 %v4866
  %6329 = vmatprep.subr.mxu0 %v4863
  %6330 = vmatpush2.msra.mxu0 %v4862
  %6331 = vmatprep.subr.mxu0 %v4859
  %6332 = vmatpush2.msra.mxu0 %v4858
  %6333 = vmatprep.subr.mxu0 %v4855
  %6334 = vmatpush2.msra.mxu0 %v4854
  %6335 = vmatprep.subr.mxu0 %v4851
  %6336 = vmatpush2.msra.mxu0 %v4850
  %6337 = vmatprep.subr.mxu0 %v4847
  %6338 = vmatpush2.msra.mxu0 %v4846
  %6339 = vmatprep.subr.mxu0 %v4843
  %6340 = vmatpush2.msra.mxu0 %v4842
  %6341 = vmatprep.subr.mxu0 %v4839
  %6342 = vmatpush2.msra.mxu0 %v4838
  %6343 = vmatprep.subr.mxu0 %v4835
  %6344 = vmatpush2.msra.mxu0 %v4834
  %6345 = vmatprep.subr.mxu0 %v4831
  %6346 = vmatpush2.msra.mxu0 %v4830
  %6347 = vmatprep.subr.mxu0 %v4827
  %6348 = vmatpush2.msra.mxu0 %v4826
  %6349 = vmatprep.subr.mxu0 %v4823
  %6350 = vmatpush2.msra.mxu0 %v4822
  %6351 = vmatprep.subr.mxu0 %v4819
  %6352 = vmatpush2.msra.mxu0 %v4818
  %6353 = vmatprep.subr.mxu0 %v4815
  %6354 = vmatpush2.msra.mxu0 %v4814
  %6355 = vmatprep.mubr.f32.mxu0 %v4685
  %6356 = vmatmul.mubr.f32.gmra.mxu0 %v4684
  %v6357 = vpop.f32.mrf.mxu0
  %v6358 = vadd.f32 %v5875, %v6357
  %v6359 = vpop.f32.mrf.mxu0
  %v6360 = vadd.f32 %v5877, %v6359
  %6361 = vmatprep.mubr.f32.mxu0 %v4689
  %6362 = vmatmul.mubr.f32.gmra.mxu0 %v4688
  %v6363 = vpop.f32.mrf.mxu0
  %v6364 = vadd.f32 %v5881, %v6363
  %v6365 = vpop.f32.mrf.mxu0
  %v6366 = vadd.f32 %v5883, %v6365
  %6367 = vmatprep.mubr.f32.mxu0 %v4693
  %6368 = vmatmul.mubr.f32.gmra.mxu0 %v4692
  %v6369 = vpop.f32.mrf.mxu0
  %v6370 = vadd.f32 %v5887, %v6369
  %v6371 = vpop.f32.mrf.mxu0
  %v6372 = vadd.f32 %v5889, %v6371
  %6373 = vmatprep.mubr.f32.mxu0 %v4697
  %6374 = vmatmul.mubr.f32.gmra.mxu0 %v4696
  %v6375 = vpop.f32.mrf.mxu0
  %v6376 = vadd.f32 %v5893, %v6375
  %v6377 = vpop.f32.mrf.mxu0
  %v6378 = vadd.f32 %v5895, %v6377
  %6379 = vmatprep.mubr.f32.mxu0 %v4701
  %6380 = vmatmul.mubr.f32.gmra.mxu0 %v4700
  %v6381 = vpop.f32.mrf.mxu0
  %v6382 = vadd.f32 %v5899, %v6381
  %v6383 = vpop.f32.mrf.mxu0
  %v6384 = vadd.f32 %v5901, %v6383
  %6385 = vmatprep.mubr.f32.mxu0 %v4705
  %6386 = vmatmul.mubr.f32.gmra.mxu0 %v4704
  %v6387 = vpop.f32.mrf.mxu0
  %v6388 = vadd.f32 %v5905, %v6387
  %v6389 = vpop.f32.mrf.mxu0
  %v6390 = vadd.f32 %v5907, %v6389
  %6391 = vmatprep.mubr.f32.mxu0 %v4709
  %6392 = vmatmul.mubr.f32.gmra.mxu0 %v4708
  %v6393 = vpop.f32.mrf.mxu0
  %v6394 = vadd.f32 %v5911, %v6393
  %v6395 = vpop.f32.mrf.mxu0
  %v6396 = vadd.f32 %v5913, %v6395
  %6397 = vmatprep.mubr.f32.mxu0 %v4713
  %6398 = vmatmul.mubr.f32.gmra.mxu0 %v4712
  %v6399 = vpop.f32.mrf.mxu0
  %v6400 = vadd.f32 %v5917, %v6399
  %v6401 = vpop.f32.mrf.mxu0
  %v6402 = vadd.f32 %v5919, %v6401
  %6403 = vmatprep.mubr.f32.mxu0 %v4717
  %6404 = vmatmul.mubr.f32.gmra.mxu0 %v4716
  %v6405 = vpop.f32.mrf.mxu0
  %v6406 = vadd.f32 %v5923, %v6405
  %v6407 = vpop.f32.mrf.mxu0
  %v6408 = vadd.f32 %v5925, %v6407
  %6409 = vmatprep.mubr.f32.mxu0 %v4721
  %6410 = vmatmul.mubr.f32.gmra.mxu0 %v4720
  %v6411 = vpop.f32.mrf.mxu0
  %v6412 = vadd.f32 %v5929, %v6411
  %v6413 = vpop.f32.mrf.mxu0
  %v6414 = vadd.f32 %v5931, %v6413
  %6415 = vmatprep.mubr.f32.mxu0 %v4725
  %6416 = vmatmul.mubr.f32.gmra.mxu0 %v4724
  %v6417 = vpop.f32.mrf.mxu0
  %v6418 = vadd.f32 %v5935, %v6417
  %v6419 = vpop.f32.mrf.mxu0
  %v6420 = vadd.f32 %v5937, %v6419
  %6421 = vmatprep.mubr.f32.mxu0 %v4729
  %6422 = vmatmul.mubr.f32.gmra.mxu0 %v4728
  %v6423 = vpop.f32.mrf.mxu0
  %v6424 = vadd.f32 %v5941, %v6423
  %v6425 = vpop.f32.mrf.mxu0
  %v6426 = vadd.f32 %v5943, %v6425
  %6427 = vmatprep.mubr.f32.mxu0 %v4733
  %6428 = vmatmul.mubr.f32.gmra.mxu0 %v4732
  %v6429 = vpop.f32.mrf.mxu0
  %v6430 = vadd.f32 %v5947, %v6429
  %v6431 = vpop.f32.mrf.mxu0
  %v6432 = vadd.f32 %v5949, %v6431
  %6433 = vmatprep.mubr.f32.mxu0 %v4737
  %6434 = vmatmul.mubr.f32.gmra.mxu0 %v4736
  %v6435 = vpop.f32.mrf.mxu0
  %v6436 = vadd.f32 %v5953, %v6435
  %v6437 = vpop.f32.mrf.mxu0
  %v6438 = vadd.f32 %v5955, %v6437
  %6439 = vmatprep.mubr.f32.mxu0 %v4741
  %6440 = vmatmul.mubr.f32.gmra.mxu0 %v4740
  %v6441 = vpop.f32.mrf.mxu0
  %v6442 = vadd.f32 %v5959, %v6441
  %v6443 = vpop.f32.mrf.mxu0
  %v6444 = vadd.f32 %v5961, %v6443
  %6445 = vmatprep.mubr.f32.mxu0 %v4745
  %6446 = vmatmul.mubr.f32.gmra.mxu0 %v4744
  %v6447 = vpop.f32.mrf.mxu0
  %v6448 = vadd.f32 %v5965, %v6447
  %v6449 = vpop.f32.mrf.mxu0
  %v6450 = vadd.f32 %v5967, %v6449
  %6451 = vdwg.mxu0
  %6452 = vmatprep.subr.mxu0 %v4939
  %6453 = vmatpush1.msra.mxu0 %v4938
  %6454 = vmatprep.subr.mxu0 %v4935
  %6455 = vmatpush1.msra.mxu0 %v4934
  %6456 = vmatprep.subr.mxu0 %v4931
  %6457 = vmatpush1.msra.mxu0 %v4930
  %6458 = vmatprep.subr.mxu0 %v4927
  %6459 = vmatpush1.msra.mxu0 %v4926
  %6460 = vmatprep.subr.mxu0 %v4923
  %6461 = vmatpush1.msra.mxu0 %v4922
  %6462 = vmatprep.subr.mxu0 %v4919
  %6463 = vmatpush1.msra.mxu0 %v4918
  %6464 = vmatprep.subr.mxu0 %v4915
  %6465 = vmatpush1.msra.mxu0 %v4914
  %6466 = vmatprep.subr.mxu0 %v4911
  %6467 = vmatpush1.msra.mxu0 %v4910
  %6468 = vmatprep.subr.mxu0 %v4907
  %6469 = vmatpush1.msra.mxu0 %v4906
  %6470 = vmatprep.subr.mxu0 %v4903
  %6471 = vmatpush1.msra.mxu0 %v4902
  %6472 = vmatprep.subr.mxu0 %v4899
  %6473 = vmatpush1.msra.mxu0 %v4898
  %6474 = vmatprep.subr.mxu0 %v4895
  %6475 = vmatpush1.msra.mxu0 %v4894
  %6476 = vmatprep.subr.mxu0 %v4891
  %6477 = vmatpush1.msra.mxu0 %v4890
  %6478 = vmatprep.subr.mxu0 %v4887
  %6479 = vmatpush1.msra.mxu0 %v4886
  %6480 = vmatprep.subr.mxu0 %v4883
  %6481 = vmatpush1.msra.mxu0 %v4882
  %6482 = vmatprep.subr.mxu0 %v4879
  %6483 = vmatpush1.msra.mxu0 %v4878
  %6484 = vmatprep.subr.mxu0 %v5003
  %6485 = vmatpush2.msra.mxu0 %v5002
  %6486 = vmatprep.subr.mxu0 %v4999
  %6487 = vmatpush2.msra.mxu0 %v4998
  %6488 = vmatprep.subr.mxu0 %v4995
  %6489 = vmatpush2.msra.mxu0 %v4994
  %6490 = vmatprep.subr.mxu0 %v4991
  %6491 = vmatpush2.msra.mxu0 %v4990
  %6492 = vmatprep.subr.mxu0 %v4987
  %6493 = vmatpush2.msra.mxu0 %v4986
  %6494 = vmatprep.subr.mxu0 %v4983
  %6495 = vmatpush2.msra.mxu0 %v4982
  %6496 = vmatprep.subr.mxu0 %v4979
  %6497 = vmatpush2.msra.mxu0 %v4978
  %6498 = vmatprep.subr.mxu0 %v4975
  %6499 = vmatpush2.msra.mxu0 %v4974
  %6500 = vmatprep.subr.mxu0 %v4971
  %6501 = vmatpush2.msra.mxu0 %v4970
  %6502 = vmatprep.subr.mxu0 %v4967
  %6503 = vmatpush2.msra.mxu0 %v4966
  %6504 = vmatprep.subr.mxu0 %v4963
  %6505 = vmatpush2.msra.mxu0 %v4962
  %6506 = vmatprep.subr.mxu0 %v4959
  %6507 = vmatpush2.msra.mxu0 %v4958
  %6508 = vmatprep.subr.mxu0 %v4955
  %6509 = vmatpush2.msra.mxu0 %v4954
  %6510 = vmatprep.subr.mxu0 %v4951
  %6511 = vmatpush2.msra.mxu0 %v4950
  %6512 = vmatprep.subr.mxu0 %v4947
  %6513 = vmatpush2.msra.mxu0 %v4946
  %6514 = vmatprep.subr.mxu0 %v4943
  %6515 = vmatpush2.msra.mxu0 %v4942
  %6516 = vmatprep.mubr.f32.mxu0 %v4687
  %6517 = vmatmul.mubr.f32.gmra.mxu0 %v4686
  %v6518 = vpop.f32.mrf.mxu0
  %v6519 = vadd.f32 %v6358, %v6518
  %v6520 = vpop.f32.mrf.mxu0
  %v6521 = vadd.f32 %v6360, %v6520
  %6522 = vmatprep.mubr.f32.mxu0 %v4691
  %6523 = vmatmul.mubr.f32.gmra.mxu0 %v4690
  %v6524 = vpop.f32.mrf.mxu0
  %v6525 = vadd.f32 %v6364, %v6524
  %v6526 = vpop.f32.mrf.mxu0
  %v6527 = vadd.f32 %v6366, %v6526
  %6528 = vmatprep.mubr.f32.mxu0 %v4695
  %6529 = vmatmul.mubr.f32.gmra.mxu0 %v4694
  %v6530 = vpop.f32.mrf.mxu0
  %v6531 = vadd.f32 %v6370, %v6530
  %v6532 = vpop.f32.mrf.mxu0
  %v6533 = vadd.f32 %v6372, %v6532
  %6534 = vmatprep.mubr.f32.mxu0 %v4699
  %6535 = vmatmul.mubr.f32.gmra.mxu0 %v4698
  %v6536 = vpop.f32.mrf.mxu0
  %v6537 = vadd.f32 %v6376, %v6536
  %v6538 = vpop.f32.mrf.mxu0
  %v6539 = vadd.f32 %v6378, %v6538
  %6540 = vmatprep.mubr.f32.mxu0 %v4703
  %6541 = vmatmul.mubr.f32.gmra.mxu0 %v4702
  %v6542 = vpop.f32.mrf.mxu0
  %v6543 = vadd.f32 %v6382, %v6542
  %v6544 = vpop.f32.mrf.mxu0
  %v6545 = vadd.f32 %v6384, %v6544
  %6546 = vmatprep.mubr.f32.mxu0 %v4707
  %6547 = vmatmul.mubr.f32.gmra.mxu0 %v4706
  %v6548 = vpop.f32.mrf.mxu0
  %v6549 = vadd.f32 %v6388, %v6548
  %v6550 = vpop.f32.mrf.mxu0
  %v6551 = vadd.f32 %v6390, %v6550
  %6552 = vmatprep.mubr.f32.mxu0 %v4711
  %6553 = vmatmul.mubr.f32.gmra.mxu0 %v4710
  %v6554 = vpop.f32.mrf.mxu0
  %v6555 = vadd.f32 %v6394, %v6554
  %v6556 = vpop.f32.mrf.mxu0
  %v6557 = vadd.f32 %v6396, %v6556
  %6558 = vmatprep.mubr.f32.mxu0 %v4715
  %6559 = vmatmul.mubr.f32.gmra.mxu0 %v4714
  %v6560 = vpop.f32.mrf.mxu0
  %v6561 = vadd.f32 %v6400, %v6560
  %v6562 = vpop.f32.mrf.mxu0
  %v6563 = vadd.f32 %v6402, %v6562
  %6564 = vmatprep.mubr.f32.mxu0 %v4719
  %6565 = vmatmul.mubr.f32.gmra.mxu0 %v4718
  %v6566 = vpop.f32.mrf.mxu0
  %v6567 = vadd.f32 %v6406, %v6566
  %v6568 = vpop.f32.mrf.mxu0
  %v6569 = vadd.f32 %v6408, %v6568
  %6570 = vmatprep.mubr.f32.mxu0 %v4723
  %6571 = vmatmul.mubr.f32.gmra.mxu0 %v4722
  %v6572 = vpop.f32.mrf.mxu0
  %v6573 = vadd.f32 %v6412, %v6572
  %v6574 = vpop.f32.mrf.mxu0
  %v6575 = vadd.f32 %v6414, %v6574
  %6576 = vmatprep.mubr.f32.mxu0 %v4727
  %6577 = vmatmul.mubr.f32.gmra.mxu0 %v4726
  %v6578 = vpop.f32.mrf.mxu0
  %v6579 = vadd.f32 %v6418, %v6578
  %v6580 = vpop.f32.mrf.mxu0
  %v6581 = vadd.f32 %v6420, %v6580
  %6582 = vmatprep.mubr.f32.mxu0 %v4731
  %6583 = vmatmul.mubr.f32.gmra.mxu0 %v4730
  %v6584 = vpop.f32.mrf.mxu0
  %v6585 = vadd.f32 %v6424, %v6584
  %v6586 = vpop.f32.mrf.mxu0
  %v6587 = vadd.f32 %v6426, %v6586
  %6588 = vmatprep.mubr.f32.mxu0 %v4735
  %6589 = vmatmul.mubr.f32.gmra.mxu0 %v4734
  %v6590 = vpop.f32.mrf.mxu0
  %v6591 = vadd.f32 %v6430, %v6590
  %v6592 = vpop.f32.mrf.mxu0
  %v6593 = vadd.f32 %v6432, %v6592
  %6594 = vmatprep.mubr.f32.mxu0 %v4739
  %6595 = vmatmul.mubr.f32.gmra.mxu0 %v4738
  %v6596 = vpop.f32.mrf.mxu0
  %v6597 = vadd.f32 %v6436, %v6596
  %v6598 = vpop.f32.mrf.mxu0
  %v6599 = vadd.f32 %v6438, %v6598
  %6600 = vmatprep.mubr.f32.mxu0 %v4743
  %6601 = vmatmul.mubr.f32.gmra.mxu0 %v4742
  %v6602 = vpop.f32.mrf.mxu0
  %v6603 = vadd.f32 %v6442, %v6602
  %v6604 = vpop.f32.mrf.mxu0
  %v6605 = vadd.f32 %v6444, %v6604
  %6606 = vmatprep.mubr.f32.mxu0 %v4747
  %6607 = vmatmul.mubr.f32.gmra.mxu0 %v4746
  %v6608 = vpop.f32.mrf.mxu0
  %v6609 = vadd.f32 %v6448, %v6608
  %v6610 = vpop.f32.mrf.mxu0
  %v6611 = vadd.f32 %v6450, %v6610
  %6612 = vdwg.mxu0
  %s6613 = scalar_lea.vmem [#allocation3], 64
  %v6614 = vld [vmem:[%s6613] sm:$0xff]
  %v6615 = vld [vmem:[%s6613 + $0x8] sm:$0xff]
  %v6616 = vld [vmem:[%s6613 + $0x10] sm:$0xff]
  %v6617 = vld [vmem:[%s6613 + $0x18] sm:$0xff]
  %v6618 = vld [vmem:[%s6613 + $0x20] sm:$0xff]
  %v6619 = vld [vmem:[%s6613 + $0x28] sm:$0xff]
  %v6620 = vld [vmem:[%s6613 + $0x30] sm:$0xff]
  %v6621 = vld [vmem:[%s6613 + $0x38] sm:$0xff]
  %v6622 = vld [vmem:[%s6613 + $0x40] sm:$0xff]
  %v6623 = vld [vmem:[%s6613 + $0x48] sm:$0xff]
  %v6624 = vld [vmem:[%s6613 + $0x50] sm:$0xff]
  %v6625 = vld [vmem:[%s6613 + $0x58] sm:$0xff]
  %v6626 = vld [vmem:[%s6613 + $0x60] sm:$0xff]
  %v6627 = vld [vmem:[%s6613 + $0x68] sm:$0xff]
  %v6628 = vld [vmem:[%s6613 + $0x70] sm:$0xff]
  %v6629 = vld [vmem:[%s6613 + $0x78] sm:$0xff]
  %v6630 = vld [vmem:[%s6613 + $0x80] sm:$0xff]
  %v6631 = vld [vmem:[%s6613 + $0x88] sm:$0xff]
  %v6632 = vld [vmem:[%s6613 + $0x90] sm:$0xff]
  %v6633 = vld [vmem:[%s6613 + $0x98] sm:$0xff]
  %v6634 = vld [vmem:[%s6613 + $0xa0] sm:$0xff]
  %v6635 = vld [vmem:[%s6613 + $0xa8] sm:$0xff]
  %v6636 = vld [vmem:[%s6613 + $0xb0] sm:$0xff]
  %v6637 = vld [vmem:[%s6613 + $0xb8] sm:$0xff]
  %v6638 = vld [vmem:[%s6613 + $0xc0] sm:$0xff]
  %v6639 = vld [vmem:[%s6613 + $0xc8] sm:$0xff]
  %v6640 = vld [vmem:[%s6613 + $0xd0] sm:$0xff]
  %v6641 = vld [vmem:[%s6613 + $0xd8] sm:$0xff]
  %v6642 = vld [vmem:[%s6613 + $0xe0] sm:$0xff]
  %v6643 = vld [vmem:[%s6613 + $0xe8] sm:$0xff]
  %v6644 = vld [vmem:[%s6613 + $0xf0] sm:$0xff]
  %v6645 = vld [vmem:[%s6613 + $0xf8] sm:$0xff]
  %v6646 = vld [vmem:[%s6613 + $0x100] sm:$0xff]
  %v6647 = vld [vmem:[%s6613 + $0x108] sm:$0xff]
  %v6648 = vld [vmem:[%s6613 + $0x110] sm:$0xff]
  %v6649 = vld [vmem:[%s6613 + $0x118] sm:$0xff]
  %v6650 = vld [vmem:[%s6613 + $0x120] sm:$0xff]
  %v6651 = vld [vmem:[%s6613 + $0x128] sm:$0xff]
  %v6652 = vld [vmem:[%s6613 + $0x130] sm:$0xff]
  %v6653 = vld [vmem:[%s6613 + $0x138] sm:$0xff]
  %v6654 = vld [vmem:[%s6613 + $0x140] sm:$0xff]
  %v6655 = vld [vmem:[%s6613 + $0x148] sm:$0xff]
  %v6656 = vld [vmem:[%s6613 + $0x150] sm:$0xff]
  %v6657 = vld [vmem:[%s6613 + $0x158] sm:$0xff]
  %v6658 = vld [vmem:[%s6613 + $0x160] sm:$0xff]
  %v6659 = vld [vmem:[%s6613 + $0x168] sm:$0xff]
  %v6660 = vld [vmem:[%s6613 + $0x170] sm:$0xff]
  %v6661 = vld [vmem:[%s6613 + $0x178] sm:$0xff]
  %v6662 = vld [vmem:[%s6613 + $0x180] sm:$0xff]
  %v6663 = vld [vmem:[%s6613 + $0x188] sm:$0xff]
  %v6664 = vld [vmem:[%s6613 + $0x190] sm:$0xff]
  %v6665 = vld [vmem:[%s6613 + $0x198] sm:$0xff]
  %v6666 = vld [vmem:[%s6613 + $0x1a0] sm:$0xff]
  %v6667 = vld [vmem:[%s6613 + $0x1a8] sm:$0xff]
  %v6668 = vld [vmem:[%s6613 + $0x1b0] sm:$0xff]
  %v6669 = vld [vmem:[%s6613 + $0x1b8] sm:$0xff]
  %v6670 = vld [vmem:[%s6613 + $0x1c0] sm:$0xff]
  %v6671 = vld [vmem:[%s6613 + $0x1c8] sm:$0xff]
  %v6672 = vld [vmem:[%s6613 + $0x1d0] sm:$0xff]
  %v6673 = vld [vmem:[%s6613 + $0x1d8] sm:$0xff]
  %v6674 = vld [vmem:[%s6613 + $0x1e0] sm:$0xff]
  %v6675 = vld [vmem:[%s6613 + $0x1e8] sm:$0xff]
  %v6676 = vld [vmem:[%s6613 + $0x1f0] sm:$0xff]
  %v6677 = vld [vmem:[%s6613 + $0x1f8] sm:$0xff]
  %s6678 = scalar_lea.vmem %s3, 4096
  %v6679 = vld [vmem:[%s6678] sm:$0xff]
  %v6680 = vld [vmem:[%s6678 + $0x8] sm:$0xff]
  %v6681 = vld [vmem:[%s6678 + $0x10] sm:$0xff]
  %v6682 = vld [vmem:[%s6678 + $0x18] sm:$0xff]
  %v6683 = vld [vmem:[%s6678 + $0x20] sm:$0xff]
  %v6684 = vld [vmem:[%s6678 + $0x28] sm:$0xff]
  %v6685 = vld [vmem:[%s6678 + $0x30] sm:$0xff]
  %v6686 = vld [vmem:[%s6678 + $0x38] sm:$0xff]
  %v6687 = vld [vmem:[%s6678 + $0x40] sm:$0xff]
  %v6688 = vld [vmem:[%s6678 + $0x48] sm:$0xff]
  %v6689 = vld [vmem:[%s6678 + $0x50] sm:$0xff]
  %v6690 = vld [vmem:[%s6678 + $0x58] sm:$0xff]
  %v6691 = vld [vmem:[%s6678 + $0x60] sm:$0xff]
  %v6692 = vld [vmem:[%s6678 + $0x68] sm:$0xff]
  %v6693 = vld [vmem:[%s6678 + $0x70] sm:$0xff]
  %v6694 = vld [vmem:[%s6678 + $0x78] sm:$0xff]
  %v6695 = vld [vmem:[%s6678 + $0x80] sm:$0xff]
  %v6696 = vld [vmem:[%s6678 + $0x88] sm:$0xff]
  %v6697 = vld [vmem:[%s6678 + $0x90] sm:$0xff]
  %v6698 = vld [vmem:[%s6678 + $0x98] sm:$0xff]
  %v6699 = vld [vmem:[%s6678 + $0xa0] sm:$0xff]
  %v6700 = vld [vmem:[%s6678 + $0xa8] sm:$0xff]
  %v6701 = vld [vmem:[%s6678 + $0xb0] sm:$0xff]
  %v6702 = vld [vmem:[%s6678 + $0xb8] sm:$0xff]
  %v6703 = vld [vmem:[%s6678 + $0xc0] sm:$0xff]
  %v6704 = vld [vmem:[%s6678 + $0xc8] sm:$0xff]
  %v6705 = vld [vmem:[%s6678 + $0xd0] sm:$0xff]
  %v6706 = vld [vmem:[%s6678 + $0xd8] sm:$0xff]
  %v6707 = vld [vmem:[%s6678 + $0xe0] sm:$0xff]
  %v6708 = vld [vmem:[%s6678 + $0xe8] sm:$0xff]
  %v6709 = vld [vmem:[%s6678 + $0xf0] sm:$0xff]
  %v6710 = vld [vmem:[%s6678 + $0xf8] sm:$0xff]
  %v6711 = vld [vmem:[%s6678 + $0x100] sm:$0xff]
  %v6712 = vld [vmem:[%s6678 + $0x108] sm:$0xff]
  %v6713 = vld [vmem:[%s6678 + $0x110] sm:$0xff]
  %v6714 = vld [vmem:[%s6678 + $0x118] sm:$0xff]
  %v6715 = vld [vmem:[%s6678 + $0x120] sm:$0xff]
  %v6716 = vld [vmem:[%s6678 + $0x128] sm:$0xff]
  %v6717 = vld [vmem:[%s6678 + $0x130] sm:$0xff]
  %v6718 = vld [vmem:[%s6678 + $0x138] sm:$0xff]
  %v6719 = vld [vmem:[%s6678 + $0x140] sm:$0xff]
  %v6720 = vld [vmem:[%s6678 + $0x148] sm:$0xff]
  %v6721 = vld [vmem:[%s6678 + $0x150] sm:$0xff]
  %v6722 = vld [vmem:[%s6678 + $0x158] sm:$0xff]
  %v6723 = vld [vmem:[%s6678 + $0x160] sm:$0xff]
  %v6724 = vld [vmem:[%s6678 + $0x168] sm:$0xff]
  %v6725 = vld [vmem:[%s6678 + $0x170] sm:$0xff]
  %v6726 = vld [vmem:[%s6678 + $0x178] sm:$0xff]
  %v6727 = vld [vmem:[%s6678 + $0x180] sm:$0xff]
  %v6728 = vld [vmem:[%s6678 + $0x188] sm:$0xff]
  %v6729 = vld [vmem:[%s6678 + $0x190] sm:$0xff]
  %v6730 = vld [vmem:[%s6678 + $0x198] sm:$0xff]
  %v6731 = vld [vmem:[%s6678 + $0x1a0] sm:$0xff]
  %v6732 = vld [vmem:[%s6678 + $0x1a8] sm:$0xff]
  %v6733 = vld [vmem:[%s6678 + $0x1b0] sm:$0xff]
  %v6734 = vld [vmem:[%s6678 + $0x1b8] sm:$0xff]
  %v6735 = vld [vmem:[%s6678 + $0x1c0] sm:$0xff]
  %v6736 = vld [vmem:[%s6678 + $0x1c8] sm:$0xff]
  %v6737 = vld [vmem:[%s6678 + $0x1d0] sm:$0xff]
  %v6738 = vld [vmem:[%s6678 + $0x1d8] sm:$0xff]
  %v6739 = vld [vmem:[%s6678 + $0x1e0] sm:$0xff]
  %v6740 = vld [vmem:[%s6678 + $0x1e8] sm:$0xff]
  %v6741 = vld [vmem:[%s6678 + $0x1f0] sm:$0xff]
  %v6742 = vld [vmem:[%s6678 + $0x1f8] sm:$0xff]
  %v6743 = vld [vmem:[%s6678 + $0x200] sm:$0xff]
  %v6744 = vld [vmem:[%s6678 + $0x208] sm:$0xff]
  %v6745 = vld [vmem:[%s6678 + $0x210] sm:$0xff]
  %v6746 = vld [vmem:[%s6678 + $0x218] sm:$0xff]
  %v6747 = vld [vmem:[%s6678 + $0x220] sm:$0xff]
  %v6748 = vld [vmem:[%s6678 + $0x228] sm:$0xff]
  %v6749 = vld [vmem:[%s6678 + $0x230] sm:$0xff]
  %v6750 = vld [vmem:[%s6678 + $0x238] sm:$0xff]
  %v6751 = vld [vmem:[%s6678 + $0x240] sm:$0xff]
  %v6752 = vld [vmem:[%s6678 + $0x248] sm:$0xff]
  %v6753 = vld [vmem:[%s6678 + $0x250] sm:$0xff]
  %v6754 = vld [vmem:[%s6678 + $0x258] sm:$0xff]
  %v6755 = vld [vmem:[%s6678 + $0x260] sm:$0xff]
  %v6756 = vld [vmem:[%s6678 + $0x268] sm:$0xff]
  %v6757 = vld [vmem:[%s6678 + $0x270] sm:$0xff]
  %v6758 = vld [vmem:[%s6678 + $0x278] sm:$0xff]
  %v6759 = vld [vmem:[%s6678 + $0x280] sm:$0xff]
  %v6760 = vld [vmem:[%s6678 + $0x288] sm:$0xff]
  %v6761 = vld [vmem:[%s6678 + $0x290] sm:$0xff]
  %v6762 = vld [vmem:[%s6678 + $0x298] sm:$0xff]
  %v6763 = vld [vmem:[%s6678 + $0x2a0] sm:$0xff]
  %v6764 = vld [vmem:[%s6678 + $0x2a8] sm:$0xff]
  %v6765 = vld [vmem:[%s6678 + $0x2b0] sm:$0xff]
  %v6766 = vld [vmem:[%s6678 + $0x2b8] sm:$0xff]
  %v6767 = vld [vmem:[%s6678 + $0x2c0] sm:$0xff]
  %v6768 = vld [vmem:[%s6678 + $0x2c8] sm:$0xff]
  %v6769 = vld [vmem:[%s6678 + $0x2d0] sm:$0xff]
  %v6770 = vld [vmem:[%s6678 + $0x2d8] sm:$0xff]
  %v6771 = vld [vmem:[%s6678 + $0x2e0] sm:$0xff]
  %v6772 = vld [vmem:[%s6678 + $0x2e8] sm:$0xff]
  %v6773 = vld [vmem:[%s6678 + $0x2f0] sm:$0xff]
  %v6774 = vld [vmem:[%s6678 + $0x2f8] sm:$0xff]
  %v6775 = vld [vmem:[%s6678 + $0x300] sm:$0xff]
  %v6776 = vld [vmem:[%s6678 + $0x308] sm:$0xff]
  %v6777 = vld [vmem:[%s6678 + $0x310] sm:$0xff]
  %v6778 = vld [vmem:[%s6678 + $0x318] sm:$0xff]
  %v6779 = vld [vmem:[%s6678 + $0x320] sm:$0xff]
  %v6780 = vld [vmem:[%s6678 + $0x328] sm:$0xff]
  %v6781 = vld [vmem:[%s6678 + $0x330] sm:$0xff]
  %v6782 = vld [vmem:[%s6678 + $0x338] sm:$0xff]
  %v6783 = vld [vmem:[%s6678 + $0x340] sm:$0xff]
  %v6784 = vld [vmem:[%s6678 + $0x348] sm:$0xff]
  %v6785 = vld [vmem:[%s6678 + $0x350] sm:$0xff]
  %v6786 = vld [vmem:[%s6678 + $0x358] sm:$0xff]
  %v6787 = vld [vmem:[%s6678 + $0x360] sm:$0xff]
  %v6788 = vld [vmem:[%s6678 + $0x368] sm:$0xff]
  %v6789 = vld [vmem:[%s6678 + $0x370] sm:$0xff]
  %v6790 = vld [vmem:[%s6678 + $0x378] sm:$0xff]
  %v6791 = vld [vmem:[%s6678 + $0x380] sm:$0xff]
  %v6792 = vld [vmem:[%s6678 + $0x388] sm:$0xff]
  %v6793 = vld [vmem:[%s6678 + $0x390] sm:$0xff]
  %v6794 = vld [vmem:[%s6678 + $0x398] sm:$0xff]
  %v6795 = vld [vmem:[%s6678 + $0x3a0] sm:$0xff]
  %v6796 = vld [vmem:[%s6678 + $0x3a8] sm:$0xff]
  %v6797 = vld [vmem:[%s6678 + $0x3b0] sm:$0xff]
  %v6798 = vld [vmem:[%s6678 + $0x3b8] sm:$0xff]
  %v6799 = vld [vmem:[%s6678 + $0x3c0] sm:$0xff]
  %v6800 = vld [vmem:[%s6678 + $0x3c8] sm:$0xff]
  %v6801 = vld [vmem:[%s6678 + $0x3d0] sm:$0xff]
  %v6802 = vld [vmem:[%s6678 + $0x3d8] sm:$0xff]
  %v6803 = vld [vmem:[%s6678 + $0x3e0] sm:$0xff]
  %v6804 = vld [vmem:[%s6678 + $0x3e8] sm:$0xff]
  %v6805 = vld [vmem:[%s6678 + $0x3f0] sm:$0xff]
  %v6806 = vld [vmem:[%s6678 + $0x3f8] sm:$0xff]
  %v6807 = vld [vmem:[%s6678 + $0x400] sm:$0xff]
  %v6808 = vld [vmem:[%s6678 + $0x408] sm:$0xff]
  %v6809 = vld [vmem:[%s6678 + $0x410] sm:$0xff]
  %v6810 = vld [vmem:[%s6678 + $0x418] sm:$0xff]
  %v6811 = vld [vmem:[%s6678 + $0x420] sm:$0xff]
  %v6812 = vld [vmem:[%s6678 + $0x428] sm:$0xff]
  %v6813 = vld [vmem:[%s6678 + $0x430] sm:$0xff]
  %v6814 = vld [vmem:[%s6678 + $0x438] sm:$0xff]
  %v6815 = vld [vmem:[%s6678 + $0x440] sm:$0xff]
  %v6816 = vld [vmem:[%s6678 + $0x448] sm:$0xff]
  %v6817 = vld [vmem:[%s6678 + $0x450] sm:$0xff]
  %v6818 = vld [vmem:[%s6678 + $0x458] sm:$0xff]
  %v6819 = vld [vmem:[%s6678 + $0x460] sm:$0xff]
  %v6820 = vld [vmem:[%s6678 + $0x468] sm:$0xff]
  %v6821 = vld [vmem:[%s6678 + $0x470] sm:$0xff]
  %v6822 = vld [vmem:[%s6678 + $0x478] sm:$0xff]
  %v6823 = vld [vmem:[%s6678 + $0x480] sm:$0xff]
  %v6824 = vld [vmem:[%s6678 + $0x488] sm:$0xff]
  %v6825 = vld [vmem:[%s6678 + $0x490] sm:$0xff]
  %v6826 = vld [vmem:[%s6678 + $0x498] sm:$0xff]
  %v6827 = vld [vmem:[%s6678 + $0x4a0] sm:$0xff]
  %v6828 = vld [vmem:[%s6678 + $0x4a8] sm:$0xff]
  %v6829 = vld [vmem:[%s6678 + $0x4b0] sm:$0xff]
  %v6830 = vld [vmem:[%s6678 + $0x4b8] sm:$0xff]
  %v6831 = vld [vmem:[%s6678 + $0x4c0] sm:$0xff]
  %v6832 = vld [vmem:[%s6678 + $0x4c8] sm:$0xff]
  %v6833 = vld [vmem:[%s6678 + $0x4d0] sm:$0xff]
  %v6834 = vld [vmem:[%s6678 + $0x4d8] sm:$0xff]
  %v6835 = vld [vmem:[%s6678 + $0x4e0] sm:$0xff]
  %v6836 = vld [vmem:[%s6678 + $0x4e8] sm:$0xff]
  %v6837 = vld [vmem:[%s6678 + $0x4f0] sm:$0xff]
  %v6838 = vld [vmem:[%s6678 + $0x4f8] sm:$0xff]
  %v6839 = vld [vmem:[%s6678 + $0x500] sm:$0xff]
  %v6840 = vld [vmem:[%s6678 + $0x508] sm:$0xff]
  %v6841 = vld [vmem:[%s6678 + $0x510] sm:$0xff]
  %v6842 = vld [vmem:[%s6678 + $0x518] sm:$0xff]
  %v6843 = vld [vmem:[%s6678 + $0x520] sm:$0xff]
  %v6844 = vld [vmem:[%s6678 + $0x528] sm:$0xff]
  %v6845 = vld [vmem:[%s6678 + $0x530] sm:$0xff]
  %v6846 = vld [vmem:[%s6678 + $0x538] sm:$0xff]
  %v6847 = vld [vmem:[%s6678 + $0x540] sm:$0xff]
  %v6848 = vld [vmem:[%s6678 + $0x548] sm:$0xff]
  %v6849 = vld [vmem:[%s6678 + $0x550] sm:$0xff]
  %v6850 = vld [vmem:[%s6678 + $0x558] sm:$0xff]
  %v6851 = vld [vmem:[%s6678 + $0x560] sm:$0xff]
  %v6852 = vld [vmem:[%s6678 + $0x568] sm:$0xff]
  %v6853 = vld [vmem:[%s6678 + $0x570] sm:$0xff]
  %v6854 = vld [vmem:[%s6678 + $0x578] sm:$0xff]
  %v6855 = vld [vmem:[%s6678 + $0x580] sm:$0xff]
  %v6856 = vld [vmem:[%s6678 + $0x588] sm:$0xff]
  %v6857 = vld [vmem:[%s6678 + $0x590] sm:$0xff]
  %v6858 = vld [vmem:[%s6678 + $0x598] sm:$0xff]
  %v6859 = vld [vmem:[%s6678 + $0x5a0] sm:$0xff]
  %v6860 = vld [vmem:[%s6678 + $0x5a8] sm:$0xff]
  %v6861 = vld [vmem:[%s6678 + $0x5b0] sm:$0xff]
  %v6862 = vld [vmem:[%s6678 + $0x5b8] sm:$0xff]
  %v6863 = vld [vmem:[%s6678 + $0x5c0] sm:$0xff]
  %v6864 = vld [vmem:[%s6678 + $0x5c8] sm:$0xff]
  %v6865 = vld [vmem:[%s6678 + $0x5d0] sm:$0xff]
  %v6866 = vld [vmem:[%s6678 + $0x5d8] sm:$0xff]
  %v6867 = vld [vmem:[%s6678 + $0x5e0] sm:$0xff]
  %v6868 = vld [vmem:[%s6678 + $0x5e8] sm:$0xff]
  %v6869 = vld [vmem:[%s6678 + $0x5f0] sm:$0xff]
  %v6870 = vld [vmem:[%s6678 + $0x5f8] sm:$0xff]
  %v6871 = vld [vmem:[%s6678 + $0x600] sm:$0xff]
  %v6872 = vld [vmem:[%s6678 + $0x608] sm:$0xff]
  %v6873 = vld [vmem:[%s6678 + $0x610] sm:$0xff]
  %v6874 = vld [vmem:[%s6678 + $0x618] sm:$0xff]
  %v6875 = vld [vmem:[%s6678 + $0x620] sm:$0xff]
  %v6876 = vld [vmem:[%s6678 + $0x628] sm:$0xff]
  %v6877 = vld [vmem:[%s6678 + $0x630] sm:$0xff]
  %v6878 = vld [vmem:[%s6678 + $0x638] sm:$0xff]
  %v6879 = vld [vmem:[%s6678 + $0x640] sm:$0xff]
  %v6880 = vld [vmem:[%s6678 + $0x648] sm:$0xff]
  %v6881 = vld [vmem:[%s6678 + $0x650] sm:$0xff]
  %v6882 = vld [vmem:[%s6678 + $0x658] sm:$0xff]
  %v6883 = vld [vmem:[%s6678 + $0x660] sm:$0xff]
  %v6884 = vld [vmem:[%s6678 + $0x668] sm:$0xff]
  %v6885 = vld [vmem:[%s6678 + $0x670] sm:$0xff]
  %v6886 = vld [vmem:[%s6678 + $0x678] sm:$0xff]
  %v6887 = vld [vmem:[%s6678 + $0x680] sm:$0xff]
  %v6888 = vld [vmem:[%s6678 + $0x688] sm:$0xff]
  %v6889 = vld [vmem:[%s6678 + $0x690] sm:$0xff]
  %v6890 = vld [vmem:[%s6678 + $0x698] sm:$0xff]
  %v6891 = vld [vmem:[%s6678 + $0x6a0] sm:$0xff]
  %v6892 = vld [vmem:[%s6678 + $0x6a8] sm:$0xff]
  %v6893 = vld [vmem:[%s6678 + $0x6b0] sm:$0xff]
  %v6894 = vld [vmem:[%s6678 + $0x6b8] sm:$0xff]
  %v6895 = vld [vmem:[%s6678 + $0x6c0] sm:$0xff]
  %v6896 = vld [vmem:[%s6678 + $0x6c8] sm:$0xff]
  %v6897 = vld [vmem:[%s6678 + $0x6d0] sm:$0xff]
  %v6898 = vld [vmem:[%s6678 + $0x6d8] sm:$0xff]
  %v6899 = vld [vmem:[%s6678 + $0x6e0] sm:$0xff]
  %v6900 = vld [vmem:[%s6678 + $0x6e8] sm:$0xff]
  %v6901 = vld [vmem:[%s6678 + $0x6f0] sm:$0xff]
  %v6902 = vld [vmem:[%s6678 + $0x6f8] sm:$0xff]
  %v6903 = vld [vmem:[%s6678 + $0x700] sm:$0xff]
  %v6904 = vld [vmem:[%s6678 + $0x708] sm:$0xff]
  %v6905 = vld [vmem:[%s6678 + $0x710] sm:$0xff]
  %v6906 = vld [vmem:[%s6678 + $0x718] sm:$0xff]
  %v6907 = vld [vmem:[%s6678 + $0x720] sm:$0xff]
  %v6908 = vld [vmem:[%s6678 + $0x728] sm:$0xff]
  %v6909 = vld [vmem:[%s6678 + $0x730] sm:$0xff]
  %v6910 = vld [vmem:[%s6678 + $0x738] sm:$0xff]
  %v6911 = vld [vmem:[%s6678 + $0x740] sm:$0xff]
  %v6912 = vld [vmem:[%s6678 + $0x748] sm:$0xff]
  %v6913 = vld [vmem:[%s6678 + $0x750] sm:$0xff]
  %v6914 = vld [vmem:[%s6678 + $0x758] sm:$0xff]
  %v6915 = vld [vmem:[%s6678 + $0x760] sm:$0xff]
  %v6916 = vld [vmem:[%s6678 + $0x768] sm:$0xff]
  %v6917 = vld [vmem:[%s6678 + $0x770] sm:$0xff]
  %v6918 = vld [vmem:[%s6678 + $0x778] sm:$0xff]
  %v6919 = vld [vmem:[%s6678 + $0x780] sm:$0xff]
  %v6920 = vld [vmem:[%s6678 + $0x788] sm:$0xff]
  %v6921 = vld [vmem:[%s6678 + $0x790] sm:$0xff]
  %v6922 = vld [vmem:[%s6678 + $0x798] sm:$0xff]
  %v6923 = vld [vmem:[%s6678 + $0x7a0] sm:$0xff]
  %v6924 = vld [vmem:[%s6678 + $0x7a8] sm:$0xff]
  %v6925 = vld [vmem:[%s6678 + $0x7b0] sm:$0xff]
  %v6926 = vld [vmem:[%s6678 + $0x7b8] sm:$0xff]
  %v6927 = vld [vmem:[%s6678 + $0x7c0] sm:$0xff]
  %v6928 = vld [vmem:[%s6678 + $0x7c8] sm:$0xff]
  %v6929 = vld [vmem:[%s6678 + $0x7d0] sm:$0xff]
  %v6930 = vld [vmem:[%s6678 + $0x7d8] sm:$0xff]
  %v6931 = vld [vmem:[%s6678 + $0x7e0] sm:$0xff]
  %v6932 = vld [vmem:[%s6678 + $0x7e8] sm:$0xff]
  %v6933 = vld [vmem:[%s6678 + $0x7f0] sm:$0xff]
  %v6934 = vld [vmem:[%s6678 + $0x7f8] sm:$0xff]
  %6935 = vmatprep.subr.mxu0 %v6740
  %6936 = vmatpush1.msra.mxu0 %v6739
  %6937 = vmatprep.subr.mxu0 %v6736
  %6938 = vmatpush1.msra.mxu0 %v6735
  %6939 = vmatprep.subr.mxu0 %v6732
  %6940 = vmatpush1.msra.mxu0 %v6731
  %6941 = vmatprep.subr.mxu0 %v6728
  %6942 = vmatpush1.msra.mxu0 %v6727
  %6943 = vmatprep.subr.mxu0 %v6724
  %6944 = vmatpush1.msra.mxu0 %v6723
  %6945 = vmatprep.subr.mxu0 %v6720
  %6946 = vmatpush1.msra.mxu0 %v6719
  %6947 = vmatprep.subr.mxu0 %v6716
  %6948 = vmatpush1.msra.mxu0 %v6715
  %6949 = vmatprep.subr.mxu0 %v6712
  %6950 = vmatpush1.msra.mxu0 %v6711
  %6951 = vmatprep.subr.mxu0 %v6708
  %6952 = vmatpush1.msra.mxu0 %v6707
  %6953 = vmatprep.subr.mxu0 %v6704
  %6954 = vmatpush1.msra.mxu0 %v6703
  %6955 = vmatprep.subr.mxu0 %v6700
  %6956 = vmatpush1.msra.mxu0 %v6699
  %6957 = vmatprep.subr.mxu0 %v6696
  %6958 = vmatpush1.msra.mxu0 %v6695
  %6959 = vmatprep.subr.mxu0 %v6692
  %6960 = vmatpush1.msra.mxu0 %v6691
  %6961 = vmatprep.subr.mxu0 %v6688
  %6962 = vmatpush1.msra.mxu0 %v6687
  %6963 = vmatprep.subr.mxu0 %v6684
  %6964 = vmatpush1.msra.mxu0 %v6683
  %6965 = vmatprep.subr.mxu0 %v6680
  %6966 = vmatpush1.msra.mxu0 %v6679
  %6967 = vmatprep.subr.mxu0 %v6804
  %6968 = vmatpush2.msra.mxu0 %v6803
  %6969 = vmatprep.subr.mxu0 %v6800
  %6970 = vmatpush2.msra.mxu0 %v6799
  %6971 = vmatprep.subr.mxu0 %v6796
  %6972 = vmatpush2.msra.mxu0 %v6795
  %6973 = vmatprep.subr.mxu0 %v6792
  %6974 = vmatpush2.msra.mxu0 %v6791
  %6975 = vmatprep.subr.mxu0 %v6788
  %6976 = vmatpush2.msra.mxu0 %v6787
  %6977 = vmatprep.subr.mxu0 %v6784
  %6978 = vmatpush2.msra.mxu0 %v6783
  %6979 = vmatprep.subr.mxu0 %v6780
  %6980 = vmatpush2.msra.mxu0 %v6779
  %6981 = vmatprep.subr.mxu0 %v6776
  %6982 = vmatpush2.msra.mxu0 %v6775
  %6983 = vmatprep.subr.mxu0 %v6772
  %6984 = vmatpush2.msra.mxu0 %v6771
  %6985 = vmatprep.subr.mxu0 %v6768
  %6986 = vmatpush2.msra.mxu0 %v6767
  %6987 = vmatprep.subr.mxu0 %v6764
  %6988 = vmatpush2.msra.mxu0 %v6763
  %6989 = vmatprep.subr.mxu0 %v6760
  %6990 = vmatpush2.msra.mxu0 %v6759
  %6991 = vmatprep.subr.mxu0 %v6756
  %6992 = vmatpush2.msra.mxu0 %v6755
  %6993 = vmatprep.subr.mxu0 %v6752
  %6994 = vmatpush2.msra.mxu0 %v6751
  %6995 = vmatprep.subr.mxu0 %v6748
  %6996 = vmatpush2.msra.mxu0 %v6747
  %6997 = vmatprep.subr.mxu0 %v6744
  %6998 = vmatpush2.msra.mxu0 %v6743
  %6999 = vmatprep.mubr.f32.mxu0 %v6615
  %7000 = vmatmul.mubr.f32.gmra.mxu0 %v6614
  %v7001 = vpop.f32.mrf.mxu0
  %v7002 = vadd.f32 0.0, %v7001
  %v7003 = vpop.f32.mrf.mxu0
  %v7004 = vadd.f32 0.0, %v7003
  %7005 = vmatprep.mubr.f32.mxu0 %v6619
  %7006 = vmatmul.mubr.f32.gmra.mxu0 %v6618
  %v7007 = vpop.f32.mrf.mxu0
  %v7008 = vadd.f32 0.0, %v7007
  %v7009 = vpop.f32.mrf.mxu0
  %v7010 = vadd.f32 0.0, %v7009
  %7011 = vmatprep.mubr.f32.mxu0 %v6623
  %7012 = vmatmul.mubr.f32.gmra.mxu0 %v6622
  %v7013 = vpop.f32.mrf.mxu0
  %v7014 = vadd.f32 0.0, %v7013
  %v7015 = vpop.f32.mrf.mxu0
  %v7016 = vadd.f32 0.0, %v7015
  %7017 = vmatprep.mubr.f32.mxu0 %v6627
  %7018 = vmatmul.mubr.f32.gmra.mxu0 %v6626
  %v7019 = vpop.f32.mrf.mxu0
  %v7020 = vadd.f32 0.0, %v7019
  %v7021 = vpop.f32.mrf.mxu0
  %v7022 = vadd.f32 0.0, %v7021
  %7023 = vmatprep.mubr.f32.mxu0 %v6631
  %7024 = vmatmul.mubr.f32.gmra.mxu0 %v6630
  %v7025 = vpop.f32.mrf.mxu0
  %v7026 = vadd.f32 0.0, %v7025
  %v7027 = vpop.f32.mrf.mxu0
  %v7028 = vadd.f32 0.0, %v7027
  %7029 = vmatprep.mubr.f32.mxu0 %v6635
  %7030 = vmatmul.mubr.f32.gmra.mxu0 %v6634
  %v7031 = vpop.f32.mrf.mxu0
  %v7032 = vadd.f32 0.0, %v7031
  %v7033 = vpop.f32.mrf.mxu0
  %v7034 = vadd.f32 0.0, %v7033
  %7035 = vmatprep.mubr.f32.mxu0 %v6639
  %7036 = vmatmul.mubr.f32.gmra.mxu0 %v6638
  %v7037 = vpop.f32.mrf.mxu0
  %v7038 = vadd.f32 0.0, %v7037
  %v7039 = vpop.f32.mrf.mxu0
  %v7040 = vadd.f32 0.0, %v7039
  %7041 = vmatprep.mubr.f32.mxu0 %v6643
  %7042 = vmatmul.mubr.f32.gmra.mxu0 %v6642
  %v7043 = vpop.f32.mrf.mxu0
  %v7044 = vadd.f32 0.0, %v7043
  %v7045 = vpop.f32.mrf.mxu0
  %v7046 = vadd.f32 0.0, %v7045
  %7047 = vmatprep.mubr.f32.mxu0 %v6647
  %7048 = vmatmul.mubr.f32.gmra.mxu0 %v6646
  %v7049 = vpop.f32.mrf.mxu0
  %v7050 = vadd.f32 0.0, %v7049
  %v7051 = vpop.f32.mrf.mxu0
  %v7052 = vadd.f32 0.0, %v7051
  %7053 = vmatprep.mubr.f32.mxu0 %v6651
  %7054 = vmatmul.mubr.f32.gmra.mxu0 %v6650
  %v7055 = vpop.f32.mrf.mxu0
  %v7056 = vadd.f32 0.0, %v7055
  %v7057 = vpop.f32.mrf.mxu0
  %v7058 = vadd.f32 0.0, %v7057
  %7059 = vmatprep.mubr.f32.mxu0 %v6655
  %7060 = vmatmul.mubr.f32.gmra.mxu0 %v6654
  %v7061 = vpop.f32.mrf.mxu0
  %v7062 = vadd.f32 0.0, %v7061
  %v7063 = vpop.f32.mrf.mxu0
  %v7064 = vadd.f32 0.0, %v7063
  %7065 = vmatprep.mubr.f32.mxu0 %v6659
  %7066 = vmatmul.mubr.f32.gmra.mxu0 %v6658
  %v7067 = vpop.f32.mrf.mxu0
  %v7068 = vadd.f32 0.0, %v7067
  %v7069 = vpop.f32.mrf.mxu0
  %v7070 = vadd.f32 0.0, %v7069
  %7071 = vmatprep.mubr.f32.mxu0 %v6663
  %7072 = vmatmul.mubr.f32.gmra.mxu0 %v6662
  %v7073 = vpop.f32.mrf.mxu0
  %v7074 = vadd.f32 0.0, %v7073
  %v7075 = vpop.f32.mrf.mxu0
  %v7076 = vadd.f32 0.0, %v7075
  %7077 = vmatprep.mubr.f32.mxu0 %v6667
  %7078 = vmatmul.mubr.f32.gmra.mxu0 %v6666
  %v7079 = vpop.f32.mrf.mxu0
  %v7080 = vadd.f32 0.0, %v7079
  %v7081 = vpop.f32.mrf.mxu0
  %v7082 = vadd.f32 0.0, %v7081
  %7083 = vmatprep.mubr.f32.mxu0 %v6671
  %7084 = vmatmul.mubr.f32.gmra.mxu0 %v6670
  %v7085 = vpop.f32.mrf.mxu0
  %v7086 = vadd.f32 0.0, %v7085
  %v7087 = vpop.f32.mrf.mxu0
  %v7088 = vadd.f32 0.0, %v7087
  %7089 = vmatprep.mubr.f32.mxu0 %v6675
  %7090 = vmatmul.mubr.f32.gmra.mxu0 %v6674
  %v7091 = vpop.f32.mrf.mxu0
  %v7092 = vadd.f32 0.0, %v7091
  %v7093 = vpop.f32.mrf.mxu0
  %v7094 = vadd.f32 0.0, %v7093
  %7095 = vdwg.mxu0
  %7096 = vmatprep.subr.mxu0 %v6868
  %7097 = vmatpush1.msra.mxu0 %v6867
  %7098 = vmatprep.subr.mxu0 %v6864
  %7099 = vmatpush1.msra.mxu0 %v6863
  %7100 = vmatprep.subr.mxu0 %v6860
  %7101 = vmatpush1.msra.mxu0 %v6859
  %7102 = vmatprep.subr.mxu0 %v6856
  %7103 = vmatpush1.msra.mxu0 %v6855
  %7104 = vmatprep.subr.mxu0 %v6852
  %7105 = vmatpush1.msra.mxu0 %v6851
  %7106 = vmatprep.subr.mxu0 %v6848
  %7107 = vmatpush1.msra.mxu0 %v6847
  %7108 = vmatprep.subr.mxu0 %v6844
  %7109 = vmatpush1.msra.mxu0 %v6843
  %7110 = vmatprep.subr.mxu0 %v6840
  %7111 = vmatpush1.msra.mxu0 %v6839
  %7112 = vmatprep.subr.mxu0 %v6836
  %7113 = vmatpush1.msra.mxu0 %v6835
  %7114 = vmatprep.subr.mxu0 %v6832
  %7115 = vmatpush1.msra.mxu0 %v6831
  %7116 = vmatprep.subr.mxu0 %v6828
  %7117 = vmatpush1.msra.mxu0 %v6827
  %7118 = vmatprep.subr.mxu0 %v6824
  %7119 = vmatpush1.msra.mxu0 %v6823
  %7120 = vmatprep.subr.mxu0 %v6820
  %7121 = vmatpush1.msra.mxu0 %v6819
  %7122 = vmatprep.subr.mxu0 %v6816
  %7123 = vmatpush1.msra.mxu0 %v6815
  %7124 = vmatprep.subr.mxu0 %v6812
  %7125 = vmatpush1.msra.mxu0 %v6811
  %7126 = vmatprep.subr.mxu0 %v6808
  %7127 = vmatpush1.msra.mxu0 %v6807
  %7128 = vmatprep.subr.mxu0 %v6932
  %7129 = vmatpush2.msra.mxu0 %v6931
  %7130 = vmatprep.subr.mxu0 %v6928
  %7131 = vmatpush2.msra.mxu0 %v6927
  %7132 = vmatprep.subr.mxu0 %v6924
  %7133 = vmatpush2.msra.mxu0 %v6923
  %7134 = vmatprep.subr.mxu0 %v6920
  %7135 = vmatpush2.msra.mxu0 %v6919
  %7136 = vmatprep.subr.mxu0 %v6916
  %7137 = vmatpush2.msra.mxu0 %v6915
  %7138 = vmatprep.subr.mxu0 %v6912
  %7139 = vmatpush2.msra.mxu0 %v6911
  %7140 = vmatprep.subr.mxu0 %v6908
  %7141 = vmatpush2.msra.mxu0 %v6907
  %7142 = vmatprep.subr.mxu0 %v6904
  %7143 = vmatpush2.msra.mxu0 %v6903
  %7144 = vmatprep.subr.mxu0 %v6900
  %7145 = vmatpush2.msra.mxu0 %v6899
  %7146 = vmatprep.subr.mxu0 %v6896
  %7147 = vmatpush2.msra.mxu0 %v6895
  %7148 = vmatprep.subr.mxu0 %v6892
  %7149 = vmatpush2.msra.mxu0 %v6891
  %7150 = vmatprep.subr.mxu0 %v6888
  %7151 = vmatpush2.msra.mxu0 %v6887
  %7152 = vmatprep.subr.mxu0 %v6884
  %7153 = vmatpush2.msra.mxu0 %v6883
  %7154 = vmatprep.subr.mxu0 %v6880
  %7155 = vmatpush2.msra.mxu0 %v6879
  %7156 = vmatprep.subr.mxu0 %v6876
  %7157 = vmatpush2.msra.mxu0 %v6875
  %7158 = vmatprep.subr.mxu0 %v6872
  %7159 = vmatpush2.msra.mxu0 %v6871
  %7160 = vmatprep.mubr.f32.mxu0 %v6617
  %7161 = vmatmul.mubr.f32.gmra.mxu0 %v6616
  %v7162 = vpop.f32.mrf.mxu0
  %v7163 = vadd.f32 %v7002, %v7162
  %v7164 = vpop.f32.mrf.mxu0
  %v7165 = vadd.f32 %v7004, %v7164
  %7166 = vmatprep.mubr.f32.mxu0 %v6621
  %7167 = vmatmul.mubr.f32.gmra.mxu0 %v6620
  %v7168 = vpop.f32.mrf.mxu0
  %v7169 = vadd.f32 %v7008, %v7168
  %v7170 = vpop.f32.mrf.mxu0
  %v7171 = vadd.f32 %v7010, %v7170
  %7172 = vmatprep.mubr.f32.mxu0 %v6625
  %7173 = vmatmul.mubr.f32.gmra.mxu0 %v6624
  %v7174 = vpop.f32.mrf.mxu0
  %v7175 = vadd.f32 %v7014, %v7174
  %v7176 = vpop.f32.mrf.mxu0
  %v7177 = vadd.f32 %v7016, %v7176
  %7178 = vmatprep.mubr.f32.mxu0 %v6629
  %7179 = vmatmul.mubr.f32.gmra.mxu0 %v6628
  %v7180 = vpop.f32.mrf.mxu0
  %v7181 = vadd.f32 %v7020, %v7180
  %v7182 = vpop.f32.mrf.mxu0
  %v7183 = vadd.f32 %v7022, %v7182
  %7184 = vmatprep.mubr.f32.mxu0 %v6633
  %7185 = vmatmul.mubr.f32.gmra.mxu0 %v6632
  %v7186 = vpop.f32.mrf.mxu0
  %v7187 = vadd.f32 %v7026, %v7186
  %v7188 = vpop.f32.mrf.mxu0
  %v7189 = vadd.f32 %v7028, %v7188
  %7190 = vmatprep.mubr.f32.mxu0 %v6637
  %7191 = vmatmul.mubr.f32.gmra.mxu0 %v6636
  %v7192 = vpop.f32.mrf.mxu0
  %v7193 = vadd.f32 %v7032, %v7192
  %v7194 = vpop.f32.mrf.mxu0
  %v7195 = vadd.f32 %v7034, %v7194
  %7196 = vmatprep.mubr.f32.mxu0 %v6641
  %7197 = vmatmul.mubr.f32.gmra.mxu0 %v6640
  %v7198 = vpop.f32.mrf.mxu0
  %v7199 = vadd.f32 %v7038, %v7198
  %v7200 = vpop.f32.mrf.mxu0
  %v7201 = vadd.f32 %v7040, %v7200
  %7202 = vmatprep.mubr.f32.mxu0 %v6645
  %7203 = vmatmul.mubr.f32.gmra.mxu0 %v6644
  %v7204 = vpop.f32.mrf.mxu0
  %v7205 = vadd.f32 %v7044, %v7204
  %v7206 = vpop.f32.mrf.mxu0
  %v7207 = vadd.f32 %v7046, %v7206
  %7208 = vmatprep.mubr.f32.mxu0 %v6649
  %7209 = vmatmul.mubr.f32.gmra.mxu0 %v6648
  %v7210 = vpop.f32.mrf.mxu0
  %v7211 = vadd.f32 %v7050, %v7210
  %v7212 = vpop.f32.mrf.mxu0
  %v7213 = vadd.f32 %v7052, %v7212
  %7214 = vmatprep.mubr.f32.mxu0 %v6653
  %7215 = vmatmul.mubr.f32.gmra.mxu0 %v6652
  %v7216 = vpop.f32.mrf.mxu0
  %v7217 = vadd.f32 %v7056, %v7216
  %v7218 = vpop.f32.mrf.mxu0
  %v7219 = vadd.f32 %v7058, %v7218
  %7220 = vmatprep.mubr.f32.mxu0 %v6657
  %7221 = vmatmul.mubr.f32.gmra.mxu0 %v6656
  %v7222 = vpop.f32.mrf.mxu0
  %v7223 = vadd.f32 %v7062, %v7222
  %v7224 = vpop.f32.mrf.mxu0
  %v7225 = vadd.f32 %v7064, %v7224
  %7226 = vmatprep.mubr.f32.mxu0 %v6661
  %7227 = vmatmul.mubr.f32.gmra.mxu0 %v6660
  %v7228 = vpop.f32.mrf.mxu0
  %v7229 = vadd.f32 %v7068, %v7228
  %v7230 = vpop.f32.mrf.mxu0
  %v7231 = vadd.f32 %v7070, %v7230
  %7232 = vmatprep.mubr.f32.mxu0 %v6665
  %7233 = vmatmul.mubr.f32.gmra.mxu0 %v6664
  %v7234 = vpop.f32.mrf.mxu0
  %v7235 = vadd.f32 %v7074, %v7234
  %v7236 = vpop.f32.mrf.mxu0
  %v7237 = vadd.f32 %v7076, %v7236
  %7238 = vmatprep.mubr.f32.mxu0 %v6669
  %7239 = vmatmul.mubr.f32.gmra.mxu0 %v6668
  %v7240 = vpop.f32.mrf.mxu0
  %v7241 = vadd.f32 %v7080, %v7240
  %v7242 = vpop.f32.mrf.mxu0
  %v7243 = vadd.f32 %v7082, %v7242
  %7244 = vmatprep.mubr.f32.mxu0 %v6673
  %7245 = vmatmul.mubr.f32.gmra.mxu0 %v6672
  %v7246 = vpop.f32.mrf.mxu0
  %v7247 = vadd.f32 %v7086, %v7246
  %v7248 = vpop.f32.mrf.mxu0
  %v7249 = vadd.f32 %v7088, %v7248
  %7250 = vmatprep.mubr.f32.mxu0 %v6677
  %7251 = vmatmul.mubr.f32.gmra.mxu0 %v6676
  %v7252 = vpop.f32.mrf.mxu0
  %v7253 = vadd.f32 %v7092, %v7252
  %v7254 = vpop.f32.mrf.mxu0
  %v7255 = vadd.f32 %v7094, %v7254
  %7256 = vdwg.mxu0
  %7257 = vmatprep.subr.mxu0 %v6742
  %7258 = vmatpush1.msra.mxu0 %v6741
  %7259 = vmatprep.subr.mxu0 %v6738
  %7260 = vmatpush1.msra.mxu0 %v6737
  %7261 = vmatprep.subr.mxu0 %v6734
  %7262 = vmatpush1.msra.mxu0 %v6733
  %7263 = vmatprep.subr.mxu0 %v6730
  %7264 = vmatpush1.msra.mxu0 %v6729
  %7265 = vmatprep.subr.mxu0 %v6726
  %7266 = vmatpush1.msra.mxu0 %v6725
  %7267 = vmatprep.subr.mxu0 %v6722
  %7268 = vmatpush1.msra.mxu0 %v6721
  %7269 = vmatprep.subr.mxu0 %v6718
  %7270 = vmatpush1.msra.mxu0 %v6717
  %7271 = vmatprep.subr.mxu0 %v6714
  %7272 = vmatpush1.msra.mxu0 %v6713
  %7273 = vmatprep.subr.mxu0 %v6710
  %7274 = vmatpush1.msra.mxu0 %v6709
  %7275 = vmatprep.subr.mxu0 %v6706
  %7276 = vmatpush1.msra.mxu0 %v6705
  %7277 = vmatprep.subr.mxu0 %v6702
  %7278 = vmatpush1.msra.mxu0 %v6701
  %7279 = vmatprep.subr.mxu0 %v6698
  %7280 = vmatpush1.msra.mxu0 %v6697
  %7281 = vmatprep.subr.mxu0 %v6694
  %7282 = vmatpush1.msra.mxu0 %v6693
  %7283 = vmatprep.subr.mxu0 %v6690
  %7284 = vmatpush1.msra.mxu0 %v6689
  %7285 = vmatprep.subr.mxu0 %v6686
  %7286 = vmatpush1.msra.mxu0 %v6685
  %7287 = vmatprep.subr.mxu0 %v6682
  %7288 = vmatpush1.msra.mxu0 %v6681
  %7289 = vmatprep.subr.mxu0 %v6806
  %7290 = vmatpush2.msra.mxu0 %v6805
  %7291 = vmatprep.subr.mxu0 %v6802
  %7292 = vmatpush2.msra.mxu0 %v6801
  %7293 = vmatprep.subr.mxu0 %v6798
  %7294 = vmatpush2.msra.mxu0 %v6797
  %7295 = vmatprep.subr.mxu0 %v6794
  %7296 = vmatpush2.msra.mxu0 %v6793
  %7297 = vmatprep.subr.mxu0 %v6790
  %7298 = vmatpush2.msra.mxu0 %v6789
  %7299 = vmatprep.subr.mxu0 %v6786
  %7300 = vmatpush2.msra.mxu0 %v6785
  %7301 = vmatprep.subr.mxu0 %v6782
  %7302 = vmatpush2.msra.mxu0 %v6781
  %7303 = vmatprep.subr.mxu0 %v6778
  %7304 = vmatpush2.msra.mxu0 %v6777
  %7305 = vmatprep.subr.mxu0 %v6774
  %7306 = vmatpush2.msra.mxu0 %v6773
  %7307 = vmatprep.subr.mxu0 %v6770
  %7308 = vmatpush2.msra.mxu0 %v6769
  %7309 = vmatprep.subr.mxu0 %v6766
  %7310 = vmatpush2.msra.mxu0 %v6765
  %7311 = vmatprep.subr.mxu0 %v6762
  %7312 = vmatpush2.msra.mxu0 %v6761
  %7313 = vmatprep.subr.mxu0 %v6758
  %7314 = vmatpush2.msra.mxu0 %v6757
  %7315 = vmatprep.subr.mxu0 %v6754
  %7316 = vmatpush2.msra.mxu0 %v6753
  %7317 = vmatprep.subr.mxu0 %v6750
  %7318 = vmatpush2.msra.mxu0 %v6749
  %7319 = vmatprep.subr.mxu0 %v6746
  %7320 = vmatpush2.msra.mxu0 %v6745
  %7321 = vmatprep.mubr.f32.mxu0 %v6615
  %7322 = vmatmul.mubr.f32.gmra.mxu0 %v6614
  %v7323 = vpop.f32.mrf.mxu0
  %v7324 = vadd.f32 0.0, %v7323
  %v7325 = vpop.f32.mrf.mxu0
  %v7326 = vadd.f32 0.0, %v7325
  %7327 = vmatprep.mubr.f32.mxu0 %v6619
  %7328 = vmatmul.mubr.f32.gmra.mxu0 %v6618
  %v7329 = vpop.f32.mrf.mxu0
  %v7330 = vadd.f32 0.0, %v7329
  %v7331 = vpop.f32.mrf.mxu0
  %v7332 = vadd.f32 0.0, %v7331
  %7333 = vmatprep.mubr.f32.mxu0 %v6623
  %7334 = vmatmul.mubr.f32.gmra.mxu0 %v6622
  %v7335 = vpop.f32.mrf.mxu0
  %v7336 = vadd.f32 0.0, %v7335
  %v7337 = vpop.f32.mrf.mxu0
  %v7338 = vadd.f32 0.0, %v7337
  %7339 = vmatprep.mubr.f32.mxu0 %v6627
  %7340 = vmatmul.mubr.f32.gmra.mxu0 %v6626
  %v7341 = vpop.f32.mrf.mxu0
  %v7342 = vadd.f32 0.0, %v7341
  %v7343 = vpop.f32.mrf.mxu0
  %v7344 = vadd.f32 0.0, %v7343
  %7345 = vmatprep.mubr.f32.mxu0 %v6631
  %7346 = vmatmul.mubr.f32.gmra.mxu0 %v6630
  %v7347 = vpop.f32.mrf.mxu0
  %v7348 = vadd.f32 0.0, %v7347
  %v7349 = vpop.f32.mrf.mxu0
  %v7350 = vadd.f32 0.0, %v7349
  %7351 = vmatprep.mubr.f32.mxu0 %v6635
  %7352 = vmatmul.mubr.f32.gmra.mxu0 %v6634
  %v7353 = vpop.f32.mrf.mxu0
  %v7354 = vadd.f32 0.0, %v7353
  %v7355 = vpop.f32.mrf.mxu0
  %v7356 = vadd.f32 0.0, %v7355
  %7357 = vmatprep.mubr.f32.mxu0 %v6639
  %7358 = vmatmul.mubr.f32.gmra.mxu0 %v6638
  %v7359 = vpop.f32.mrf.mxu0
  %v7360 = vadd.f32 0.0, %v7359
  %v7361 = vpop.f32.mrf.mxu0
  %v7362 = vadd.f32 0.0, %v7361
  %7363 = vmatprep.mubr.f32.mxu0 %v6643
  %7364 = vmatmul.mubr.f32.gmra.mxu0 %v6642
  %v7365 = vpop.f32.mrf.mxu0
  %v7366 = vadd.f32 0.0, %v7365
  %v7367 = vpop.f32.mrf.mxu0
  %v7368 = vadd.f32 0.0, %v7367
  %7369 = vmatprep.mubr.f32.mxu0 %v6647
  %7370 = vmatmul.mubr.f32.gmra.mxu0 %v6646
  %v7371 = vpop.f32.mrf.mxu0
  %v7372 = vadd.f32 0.0, %v7371
  %v7373 = vpop.f32.mrf.mxu0
  %v7374 = vadd.f32 0.0, %v7373
  %7375 = vmatprep.mubr.f32.mxu0 %v6651
  %7376 = vmatmul.mubr.f32.gmra.mxu0 %v6650
  %v7377 = vpop.f32.mrf.mxu0
  %v7378 = vadd.f32 0.0, %v7377
  %v7379 = vpop.f32.mrf.mxu0
  %v7380 = vadd.f32 0.0, %v7379
  %7381 = vmatprep.mubr.f32.mxu0 %v6655
  %7382 = vmatmul.mubr.f32.gmra.mxu0 %v6654
  %v7383 = vpop.f32.mrf.mxu0
  %v7384 = vadd.f32 0.0, %v7383
  %v7385 = vpop.f32.mrf.mxu0
  %v7386 = vadd.f32 0.0, %v7385
  %7387 = vmatprep.mubr.f32.mxu0 %v6659
  %7388 = vmatmul.mubr.f32.gmra.mxu0 %v6658
  %v7389 = vpop.f32.mrf.mxu0
  %v7390 = vadd.f32 0.0, %v7389
  %v7391 = vpop.f32.mrf.mxu0
  %v7392 = vadd.f32 0.0, %v7391
  %7393 = vmatprep.mubr.f32.mxu0 %v6663
  %7394 = vmatmul.mubr.f32.gmra.mxu0 %v6662
  %v7395 = vpop.f32.mrf.mxu0
  %v7396 = vadd.f32 0.0, %v7395
  %v7397 = vpop.f32.mrf.mxu0
  %v7398 = vadd.f32 0.0, %v7397
  %7399 = vmatprep.mubr.f32.mxu0 %v6667
  %7400 = vmatmul.mubr.f32.gmra.mxu0 %v6666
  %v7401 = vpop.f32.mrf.mxu0
  %v7402 = vadd.f32 0.0, %v7401
  %v7403 = vpop.f32.mrf.mxu0
  %v7404 = vadd.f32 0.0, %v7403
  %7405 = vmatprep.mubr.f32.mxu0 %v6671
  %7406 = vmatmul.mubr.f32.gmra.mxu0 %v6670
  %v7407 = vpop.f32.mrf.mxu0
  %v7408 = vadd.f32 0.0, %v7407
  %v7409 = vpop.f32.mrf.mxu0
  %v7410 = vadd.f32 0.0, %v7409
  %7411 = vmatprep.mubr.f32.mxu0 %v6675
  %7412 = vmatmul.mubr.f32.gmra.mxu0 %v6674
  %v7413 = vpop.f32.mrf.mxu0
  %v7414 = vadd.f32 0.0, %v7413
  %v7415 = vpop.f32.mrf.mxu0
  %v7416 = vadd.f32 0.0, %v7415
  %7417 = vdwg.mxu0
  %7418 = vmatprep.subr.mxu0 %v6870
  %7419 = vmatpush1.msra.mxu0 %v6869
  %7420 = vmatprep.subr.mxu0 %v6866
  %7421 = vmatpush1.msra.mxu0 %v6865
  %7422 = vmatprep.subr.mxu0 %v6862
  %7423 = vmatpush1.msra.mxu0 %v6861
  %7424 = vmatprep.subr.mxu0 %v6858
  %7425 = vmatpush1.msra.mxu0 %v6857
  %7426 = vmatprep.subr.mxu0 %v6854
  %7427 = vmatpush1.msra.mxu0 %v6853
  %7428 = vmatprep.subr.mxu0 %v6850
  %7429 = vmatpush1.msra.mxu0 %v6849
  %7430 = vmatprep.subr.mxu0 %v6846
  %7431 = vmatpush1.msra.mxu0 %v6845
  %7432 = vmatprep.subr.mxu0 %v6842
  %7433 = vmatpush1.msra.mxu0 %v6841
  %7434 = vmatprep.subr.mxu0 %v6838
  %7435 = vmatpush1.msra.mxu0 %v6837
  %7436 = vmatprep.subr.mxu0 %v6834
  %7437 = vmatpush1.msra.mxu0 %v6833
  %7438 = vmatprep.subr.mxu0 %v6830
  %7439 = vmatpush1.msra.mxu0 %v6829
  %7440 = vmatprep.subr.mxu0 %v6826
  %7441 = vmatpush1.msra.mxu0 %v6825
  %7442 = vmatprep.subr.mxu0 %v6822
  %7443 = vmatpush1.msra.mxu0 %v6821
  %7444 = vmatprep.subr.mxu0 %v6818
  %7445 = vmatpush1.msra.mxu0 %v6817
  %7446 = vmatprep.subr.mxu0 %v6814
  %7447 = vmatpush1.msra.mxu0 %v6813
  %7448 = vmatprep.subr.mxu0 %v6810
  %7449 = vmatpush1.msra.mxu0 %v6809
  %7450 = vmatprep.subr.mxu0 %v6934
  %7451 = vmatpush2.msra.mxu0 %v6933
  %7452 = vmatprep.subr.mxu0 %v6930
  %7453 = vmatpush2.msra.mxu0 %v6929
  %7454 = vmatprep.subr.mxu0 %v6926
  %7455 = vmatpush2.msra.mxu0 %v6925
  %7456 = vmatprep.subr.mxu0 %v6922
  %7457 = vmatpush2.msra.mxu0 %v6921
  %7458 = vmatprep.subr.mxu0 %v6918
  %7459 = vmatpush2.msra.mxu0 %v6917
  %7460 = vmatprep.subr.mxu0 %v6914
  %7461 = vmatpush2.msra.mxu0 %v6913
  %7462 = vmatprep.subr.mxu0 %v6910
  %7463 = vmatpush2.msra.mxu0 %v6909
  %7464 = vmatprep.subr.mxu0 %v6906
  %7465 = vmatpush2.msra.mxu0 %v6905
  %7466 = vmatprep.subr.mxu0 %v6902
  %7467 = vmatpush2.msra.mxu0 %v6901
  %7468 = vmatprep.subr.mxu0 %v6898
  %7469 = vmatpush2.msra.mxu0 %v6897
  %7470 = vmatprep.subr.mxu0 %v6894
  %7471 = vmatpush2.msra.mxu0 %v6893
  %7472 = vmatprep.subr.mxu0 %v6890
  %7473 = vmatpush2.msra.mxu0 %v6889
  %7474 = vmatprep.subr.mxu0 %v6886
  %7475 = vmatpush2.msra.mxu0 %v6885
  %7476 = vmatprep.subr.mxu0 %v6882
  %7477 = vmatpush2.msra.mxu0 %v6881
  %7478 = vmatprep.subr.mxu0 %v6878
  %7479 = vmatpush2.msra.mxu0 %v6877
  %7480 = vmatprep.subr.mxu0 %v6874
  %7481 = vmatpush2.msra.mxu0 %v6873
  %7482 = vmatprep.mubr.f32.mxu0 %v6617
  %7483 = vmatmul.mubr.f32.gmra.mxu0 %v6616
  %v7484 = vpop.f32.mrf.mxu0
  %v7485 = vadd.f32 %v7324, %v7484
  %v7486 = vpop.f32.mrf.mxu0
  %v7487 = vadd.f32 %v7326, %v7486
  %7488 = vmatprep.mubr.f32.mxu0 %v6621
  %7489 = vmatmul.mubr.f32.gmra.mxu0 %v6620
  %v7490 = vpop.f32.mrf.mxu0
  %v7491 = vadd.f32 %v7330, %v7490
  %v7492 = vpop.f32.mrf.mxu0
  %v7493 = vadd.f32 %v7332, %v7492
  %7494 = vmatprep.mubr.f32.mxu0 %v6625
  %7495 = vmatmul.mubr.f32.gmra.mxu0 %v6624
  %v7496 = vpop.f32.mrf.mxu0
  %v7497 = vadd.f32 %v7336, %v7496
  %v7498 = vpop.f32.mrf.mxu0
  %v7499 = vadd.f32 %v7338, %v7498
  %7500 = vmatprep.mubr.f32.mxu0 %v6629
  %7501 = vmatmul.mubr.f32.gmra.mxu0 %v6628
  %v7502 = vpop.f32.mrf.mxu0
  %v7503 = vadd.f32 %v7342, %v7502
  %v7504 = vpop.f32.mrf.mxu0
  %v7505 = vadd.f32 %v7344, %v7504
  %7506 = vmatprep.mubr.f32.mxu0 %v6633
  %7507 = vmatmul.mubr.f32.gmra.mxu0 %v6632
  %v7508 = vpop.f32.mrf.mxu0
  %v7509 = vadd.f32 %v7348, %v7508
  %v7510 = vpop.f32.mrf.mxu0
  %v7511 = vadd.f32 %v7350, %v7510
  %7512 = vmatprep.mubr.f32.mxu0 %v6637
  %7513 = vmatmul.mubr.f32.gmra.mxu0 %v6636
  %v7514 = vpop.f32.mrf.mxu0
  %v7515 = vadd.f32 %v7354, %v7514
  %v7516 = vpop.f32.mrf.mxu0
  %v7517 = vadd.f32 %v7356, %v7516
  %7518 = vmatprep.mubr.f32.mxu0 %v6641
  %7519 = vmatmul.mubr.f32.gmra.mxu0 %v6640
  %v7520 = vpop.f32.mrf.mxu0
  %v7521 = vadd.f32 %v7360, %v7520
  %v7522 = vpop.f32.mrf.mxu0
  %v7523 = vadd.f32 %v7362, %v7522
  %7524 = vmatprep.mubr.f32.mxu0 %v6645
  %7525 = vmatmul.mubr.f32.gmra.mxu0 %v6644
  %v7526 = vpop.f32.mrf.mxu0
  %v7527 = vadd.f32 %v7366, %v7526
  %v7528 = vpop.f32.mrf.mxu0
  %v7529 = vadd.f32 %v7368, %v7528
  %7530 = vmatprep.mubr.f32.mxu0 %v6649
  %7531 = vmatmul.mubr.f32.gmra.mxu0 %v6648
  %v7532 = vpop.f32.mrf.mxu0
  %v7533 = vadd.f32 %v7372, %v7532
  %v7534 = vpop.f32.mrf.mxu0
  %v7535 = vadd.f32 %v7374, %v7534
  %7536 = vmatprep.mubr.f32.mxu0 %v6653
  %7537 = vmatmul.mubr.f32.gmra.mxu0 %v6652
  %v7538 = vpop.f32.mrf.mxu0
  %v7539 = vadd.f32 %v7378, %v7538
  %v7540 = vpop.f32.mrf.mxu0
  %v7541 = vadd.f32 %v7380, %v7540
  %7542 = vmatprep.mubr.f32.mxu0 %v6657
  %7543 = vmatmul.mubr.f32.gmra.mxu0 %v6656
  %v7544 = vpop.f32.mrf.mxu0
  %v7545 = vadd.f32 %v7384, %v7544
  %v7546 = vpop.f32.mrf.mxu0
  %v7547 = vadd.f32 %v7386, %v7546
  %7548 = vmatprep.mubr.f32.mxu0 %v6661
  %7549 = vmatmul.mubr.f32.gmra.mxu0 %v6660
  %v7550 = vpop.f32.mrf.mxu0
  %v7551 = vadd.f32 %v7390, %v7550
  %v7552 = vpop.f32.mrf.mxu0
  %v7553 = vadd.f32 %v7392, %v7552
  %7554 = vmatprep.mubr.f32.mxu0 %v6665
  %7555 = vmatmul.mubr.f32.gmra.mxu0 %v6664
  %v7556 = vpop.f32.mrf.mxu0
  %v7557 = vadd.f32 %v7396, %v7556
  %v7558 = vpop.f32.mrf.mxu0
  %v7559 = vadd.f32 %v7398, %v7558
  %7560 = vmatprep.mubr.f32.mxu0 %v6669
  %7561 = vmatmul.mubr.f32.gmra.mxu0 %v6668
  %v7562 = vpop.f32.mrf.mxu0
  %v7563 = vadd.f32 %v7402, %v7562
  %v7564 = vpop.f32.mrf.mxu0
  %v7565 = vadd.f32 %v7404, %v7564
  %7566 = vmatprep.mubr.f32.mxu0 %v6673
  %7567 = vmatmul.mubr.f32.gmra.mxu0 %v6672
  %v7568 = vpop.f32.mrf.mxu0
  %v7569 = vadd.f32 %v7408, %v7568
  %v7570 = vpop.f32.mrf.mxu0
  %v7571 = vadd.f32 %v7410, %v7570
  %7572 = vmatprep.mubr.f32.mxu0 %v6677
  %7573 = vmatmul.mubr.f32.gmra.mxu0 %v6676
  %v7574 = vpop.f32.mrf.mxu0
  %v7575 = vadd.f32 %v7414, %v7574
  %v7576 = vpop.f32.mrf.mxu0
  %v7577 = vadd.f32 %v7416, %v7576
  %7578 = vdwg.mxu0
  %v7579 = vadd.f32 %v6197, %v7163
  %v7580 = vadd.f32 %v6199, %v7165
  %v7581 = vadd.f32 %v6519, %v7485
  %v7582 = vadd.f32 %v6521, %v7487
  %v7583 = vadd.f32 %v6203, %v7169
  %v7584 = vadd.f32 %v6205, %v7171
  %v7585 = vadd.f32 %v6525, %v7491
  %v7586 = vadd.f32 %v6527, %v7493
  %v7587 = vadd.f32 %v6209, %v7175
  %v7588 = vadd.f32 %v6211, %v7177
  %v7589 = vadd.f32 %v6531, %v7497
  %v7590 = vadd.f32 %v6533, %v7499
  %v7591 = vadd.f32 %v6215, %v7181
  %v7592 = vadd.f32 %v6217, %v7183
  %v7593 = vadd.f32 %v6537, %v7503
  %v7594 = vadd.f32 %v6539, %v7505
  %v7595 = vadd.f32 %v6221, %v7187
  %v7596 = vadd.f32 %v6223, %v7189
  %v7597 = vadd.f32 %v6543, %v7509
  %v7598 = vadd.f32 %v6545, %v7511
  %v7599 = vadd.f32 %v6227, %v7193
  %v7600 = vadd.f32 %v6229, %v7195
  %v7601 = vadd.f32 %v6549, %v7515
  %v7602 = vadd.f32 %v6551, %v7517
  %v7603 = vadd.f32 %v6233, %v7199
  %v7604 = vadd.f32 %v6235, %v7201
  %v7605 = vadd.f32 %v6555, %v7521
  %v7606 = vadd.f32 %v6557, %v7523
  %v7607 = vadd.f32 %v6239, %v7205
  %v7608 = vadd.f32 %v6241, %v7207
  %v7609 = vadd.f32 %v6561, %v7527
  %v7610 = vadd.f32 %v6563, %v7529
  %v7611 = vadd.f32 %v6245, %v7211
  %v7612 = vadd.f32 %v6247, %v7213
  %v7613 = vadd.f32 %v6567, %v7533
  %v7614 = vadd.f32 %v6569, %v7535
  %v7615 = vadd.f32 %v6251, %v7217
  %v7616 = vadd.f32 %v6253, %v7219
  %v7617 = vadd.f32 %v6573, %v7539
  %v7618 = vadd.f32 %v6575, %v7541
  %v7619 = vadd.f32 %v6257, %v7223
  %v7620 = vadd.f32 %v6259, %v7225
  %v7621 = vadd.f32 %v6579, %v7545
  %v7622 = vadd.f32 %v6581, %v7547
  %v7623 = vadd.f32 %v6263, %v7229
  %v7624 = vadd.f32 %v6265, %v7231
  %v7625 = vadd.f32 %v6585, %v7551
  %v7626 = vadd.f32 %v6587, %v7553
  %v7627 = vadd.f32 %v6269, %v7235
  %v7628 = vadd.f32 %v6271, %v7237
  %v7629 = vadd.f32 %v6591, %v7557
  %v7630 = vadd.f32 %v6593, %v7559
  %v7631 = vadd.f32 %v6275, %v7241
  %v7632 = vadd.f32 %v6277, %v7243
  %v7633 = vadd.f32 %v6597, %v7563
  %v7634 = vadd.f32 %v6599, %v7565
  %v7635 = vadd.f32 %v6281, %v7247
  %v7636 = vadd.f32 %v6283, %v7249
  %v7637 = vadd.f32 %v6603, %v7569
  %v7638 = vadd.f32 %v6605, %v7571
  %v7639 = vadd.f32 %v6287, %v7253
  %v7640 = vadd.f32 %v6289, %v7255
  %v7641 = vadd.f32 %v6609, %v7575
  %v7642 = vadd.f32 %v6611, %v7577
  %v7643 = vld [vmem:[%s6] sm:$0xf]
  %v7645 = vlaneseq
  %v7646 = vshrl.u32 %v7645, 7
  %v7647 = vsub.s32 0, %v7646
  %v7648 = vrot.slane %v7643, %v7647
  %v7649 = vlaneseq
  %v7650 = vshrl.u32 %v7649, 7
  %v7651 = vsub.s32 1, %v7650
  %v7652 = vrot.slane %v7643, %v7651
  %v7653 = vlaneseq
  %v7654 = vshrl.u32 %v7653, 7
  %v7655 = vsub.s32 2, %v7654
  %v7656 = vrot.slane %v7643, %v7655
  %v7657 = vlaneseq
  %v7658 = vshrl.u32 %v7657, 7
  %v7659 = vsub.s32 3, %v7658
  %v7660 = vrot.slane %v7643, %v7659
  %v7665 = vadd.f32 %v7579, %v7648
  %v7666 = vadd.f32 %v7580, %v7652
  %v7667 = vadd.f32 %v7581, %v7656
  %v7668 = vadd.f32 %v7582, %v7660
  %v7669 = vadd.f32 %v7583, %v7648
  %v7670 = vadd.f32 %v7584, %v7652
  %v7671 = vadd.f32 %v7585, %v7656
  %v7672 = vadd.f32 %v7586, %v7660
  %v7673 = vadd.f32 %v7587, %v7648
  %v7674 = vadd.f32 %v7588, %v7652
  %v7675 = vadd.f32 %v7589, %v7656
  %v7676 = vadd.f32 %v7590, %v7660
  %v7677 = vadd.f32 %v7591, %v7648
  %v7678 = vadd.f32 %v7592, %v7652
  %v7679 = vadd.f32 %v7593, %v7656
  %v7680 = vadd.f32 %v7594, %v7660
  %v7681 = vadd.f32 %v7595, %v7648
  %v7682 = vadd.f32 %v7596, %v7652
  %v7683 = vadd.f32 %v7597, %v7656
  %v7684 = vadd.f32 %v7598, %v7660
  %v7685 = vadd.f32 %v7599, %v7648
  %v7686 = vadd.f32 %v7600, %v7652
  %v7687 = vadd.f32 %v7601, %v7656
  %v7688 = vadd.f32 %v7602, %v7660
  %v7689 = vadd.f32 %v7603, %v7648
  %v7690 = vadd.f32 %v7604, %v7652
  %v7691 = vadd.f32 %v7605, %v7656
  %v7692 = vadd.f32 %v7606, %v7660
  %v7693 = vadd.f32 %v7607, %v7648
  %v7694 = vadd.f32 %v7608, %v7652
  %v7695 = vadd.f32 %v7609, %v7656
  %v7696 = vadd.f32 %v7610, %v7660
  %v7697 = vadd.f32 %v7611, %v7648
  %v7698 = vadd.f32 %v7612, %v7652
  %v7699 = vadd.f32 %v7613, %v7656
  %v7700 = vadd.f32 %v7614, %v7660
  %v7701 = vadd.f32 %v7615, %v7648
  %v7702 = vadd.f32 %v7616, %v7652
  %v7703 = vadd.f32 %v7617, %v7656
  %v7704 = vadd.f32 %v7618, %v7660
  %v7705 = vadd.f32 %v7619, %v7648
  %v7706 = vadd.f32 %v7620, %v7652
  %v7707 = vadd.f32 %v7621, %v7656
  %v7708 = vadd.f32 %v7622, %v7660
  %v7709 = vadd.f32 %v7623, %v7648
  %v7710 = vadd.f32 %v7624, %v7652
  %v7711 = vadd.f32 %v7625, %v7656
  %v7712 = vadd.f32 %v7626, %v7660
  %v7713 = vadd.f32 %v7627, %v7648
  %v7714 = vadd.f32 %v7628, %v7652
  %v7715 = vadd.f32 %v7629, %v7656
  %v7716 = vadd.f32 %v7630, %v7660
  %v7717 = vadd.f32 %v7631, %v7648
  %v7718 = vadd.f32 %v7632, %v7652
  %v7719 = vadd.f32 %v7633, %v7656
  %v7720 = vadd.f32 %v7634, %v7660
  %v7721 = vadd.f32 %v7635, %v7648
  %v7722 = vadd.f32 %v7636, %v7652
  %v7723 = vadd.f32 %v7637, %v7656
  %v7724 = vadd.f32 %v7638, %v7660
  %v7725 = vadd.f32 %v7639, %v7648
  %v7726 = vadd.f32 %v7640, %v7652
  %v7727 = vadd.f32 %v7641, %v7656
  %v7728 = vadd.f32 %v7642, %v7660
  %v7729 = vmax.f32 %v7665, 0.0
  %v7730 = vmax.f32 %v7666, 0.0
  %v7731 = vmax.f32 %v7667, 0.0
  %v7732 = vmax.f32 %v7668, 0.0
  %v7733 = vmax.f32 %v7669, 0.0
  %v7734 = vmax.f32 %v7670, 0.0
  %v7735 = vmax.f32 %v7671, 0.0
  %v7736 = vmax.f32 %v7672, 0.0
  %v7737 = vmax.f32 %v7673, 0.0
  %v7738 = vmax.f32 %v7674, 0.0
  %v7739 = vmax.f32 %v7675, 0.0
  %v7740 = vmax.f32 %v7676, 0.0
  %v7741 = vmax.f32 %v7677, 0.0
  %v7742 = vmax.f32 %v7678, 0.0
  %v7743 = vmax.f32 %v7679, 0.0
  %v7744 = vmax.f32 %v7680, 0.0
  %v7745 = vmax.f32 %v7681, 0.0
  %v7746 = vmax.f32 %v7682, 0.0
  %v7747 = vmax.f32 %v7683, 0.0
  %v7748 = vmax.f32 %v7684, 0.0
  %v7749 = vmax.f32 %v7685, 0.0
  %v7750 = vmax.f32 %v7686, 0.0
  %v7751 = vmax.f32 %v7687, 0.0
  %v7752 = vmax.f32 %v7688, 0.0
  %v7753 = vmax.f32 %v7689, 0.0
  %v7754 = vmax.f32 %v7690, 0.0
  %v7755 = vmax.f32 %v7691, 0.0
  %v7756 = vmax.f32 %v7692, 0.0
  %v7757 = vmax.f32 %v7693, 0.0
  %v7758 = vmax.f32 %v7694, 0.0
  %v7759 = vmax.f32 %v7695, 0.0
  %v7760 = vmax.f32 %v7696, 0.0
  %v7761 = vmax.f32 %v7697, 0.0
  %v7762 = vmax.f32 %v7698, 0.0
  %v7763 = vmax.f32 %v7699, 0.0
  %v7764 = vmax.f32 %v7700, 0.0
  %v7765 = vmax.f32 %v7701, 0.0
  %v7766 = vmax.f32 %v7702, 0.0
  %v7767 = vmax.f32 %v7703, 0.0
  %v7768 = vmax.f32 %v7704, 0.0
  %v7769 = vmax.f32 %v7705, 0.0
  %v7770 = vmax.f32 %v7706, 0.0
  %v7771 = vmax.f32 %v7707, 0.0
  %v7772 = vmax.f32 %v7708, 0.0
  %v7773 = vmax.f32 %v7709, 0.0
  %v7774 = vmax.f32 %v7710, 0.0
  %v7775 = vmax.f32 %v7711, 0.0
  %v7776 = vmax.f32 %v7712, 0.0
  %v7777 = vmax.f32 %v7713, 0.0
  %v7778 = vmax.f32 %v7714, 0.0
  %v7779 = vmax.f32 %v7715, 0.0
  %v7780 = vmax.f32 %v7716, 0.0
  %v7781 = vmax.f32 %v7717, 0.0
  %v7782 = vmax.f32 %v7718, 0.0
  %v7783 = vmax.f32 %v7719, 0.0
  %v7784 = vmax.f32 %v7720, 0.0
  %v7785 = vmax.f32 %v7721, 0.0
  %v7786 = vmax.f32 %v7722, 0.0
  %v7787 = vmax.f32 %v7723, 0.0
  %v7788 = vmax.f32 %v7724, 0.0
  %v7789 = vmax.f32 %v7725, 0.0
  %v7790 = vmax.f32 %v7726, 0.0
  %v7791 = vmax.f32 %v7727, 0.0
  %v7792 = vmax.f32 %v7728, 0.0
  %7793 = vst [vmem:[%s7] sm:$0xff] %v7729
  %7794 = vst [vmem:[%s7 + $0x8] sm:$0xff] %v7730
  %7795 = vst [vmem:[%s7 + $0x10] sm:$0xff] %v7731
  %7796 = vst [vmem:[%s7 + $0x18] sm:$0xff] %v7732
  %7797 = vst [vmem:[%s7 + $0x20] sm:$0xff] %v7733
  %7798 = vst [vmem:[%s7 + $0x28] sm:$0xff] %v7734
  %7799 = vst [vmem:[%s7 + $0x30] sm:$0xff] %v7735
  %7800 = vst [vmem:[%s7 + $0x38] sm:$0xff] %v7736
  %7801 = vst [vmem:[%s7 + $0x40] sm:$0xff] %v7737
  %7802 = vst [vmem:[%s7 + $0x48] sm:$0xff] %v7738
  %7803 = vst [vmem:[%s7 + $0x50] sm:$0xff] %v7739
  %7804 = vst [vmem:[%s7 + $0x58] sm:$0xff] %v7740
  %7805 = vst [vmem:[%s7 + $0x60] sm:$0xff] %v7741
  %7806 = vst [vmem:[%s7 + $0x68] sm:$0xff] %v7742
  %7807 = vst [vmem:[%s7 + $0x70] sm:$0xff] %v7743
  %7808 = vst [vmem:[%s7 + $0x78] sm:$0xff] %v7744
  %7809 = vst [vmem:[%s7 + $0x80] sm:$0xff] %v7745
  %7810 = vst [vmem:[%s7 + $0x88] sm:$0xff] %v7746
  %7811 = vst [vmem:[%s7 + $0x90] sm:$0xff] %v7747
  %7812 = vst [vmem:[%s7 + $0x98] sm:$0xff] %v7748
  %7813 = vst [vmem:[%s7 + $0xa0] sm:$0xff] %v7749
  %7814 = vst [vmem:[%s7 + $0xa8] sm:$0xff] %v7750
  %7815 = vst [vmem:[%s7 + $0xb0] sm:$0xff] %v7751
  %7816 = vst [vmem:[%s7 + $0xb8] sm:$0xff] %v7752
  %7817 = vst [vmem:[%s7 + $0xc0] sm:$0xff] %v7753
  %7818 = vst [vmem:[%s7 + $0xc8] sm:$0xff] %v7754
  %7819 = vst [vmem:[%s7 + $0xd0] sm:$0xff] %v7755
  %7820 = vst [vmem:[%s7 + $0xd8] sm:$0xff] %v7756
  %7821 = vst [vmem:[%s7 + $0xe0] sm:$0xff] %v7757
  %7822 = vst [vmem:[%s7 + $0xe8] sm:$0xff] %v7758
  %7823 = vst [vmem:[%s7 + $0xf0] sm:$0xff] %v7759
  %7824 = vst [vmem:[%s7 + $0xf8] sm:$0xff] %v7760
  %7825 = vst [vmem:[%s7 + $0x100] sm:$0xff] %v7761
  %7826 = vst [vmem:[%s7 + $0x108] sm:$0xff] %v7762
  %7827 = vst [vmem:[%s7 + $0x110] sm:$0xff] %v7763
  %7828 = vst [vmem:[%s7 + $0x118] sm:$0xff] %v7764
  %7829 = vst [vmem:[%s7 + $0x120] sm:$0xff] %v7765
  %7830 = vst [vmem:[%s7 + $0x128] sm:$0xff] %v7766
  %7831 = vst [vmem:[%s7 + $0x130] sm:$0xff] %v7767
  %7832 = vst [vmem:[%s7 + $0x138] sm:$0xff] %v7768
  %7833 = vst [vmem:[%s7 + $0x140] sm:$0xff] %v7769
  %7834 = vst [vmem:[%s7 + $0x148] sm:$0xff] %v7770
  %7835 = vst [vmem:[%s7 + $0x150] sm:$0xff] %v7771
  %7836 = vst [vmem:[%s7 + $0x158] sm:$0xff] %v7772
  %7837 = vst [vmem:[%s7 + $0x160] sm:$0xff] %v7773
  %7838 = vst [vmem:[%s7 + $0x168] sm:$0xff] %v7774
  %7839 = vst [vmem:[%s7 + $0x170] sm:$0xff] %v7775
  %7840 = vst [vmem:[%s7 + $0x178] sm:$0xff] %v7776
  %7841 = vst [vmem:[%s7 + $0x180] sm:$0xff] %v7777
  %7842 = vst [vmem:[%s7 + $0x188] sm:$0xff] %v7778
  %7843 = vst [vmem:[%s7 + $0x190] sm:$0xff] %v7779
  %7844 = vst [vmem:[%s7 + $0x198] sm:$0xff] %v7780
  %7845 = vst [vmem:[%s7 + $0x1a0] sm:$0xff] %v7781
  %7846 = vst [vmem:[%s7 + $0x1a8] sm:$0xff] %v7782
  %7847 = vst [vmem:[%s7 + $0x1b0] sm:$0xff] %v7783
  %7848 = vst [vmem:[%s7 + $0x1b8] sm:$0xff] %v7784
  %7849 = vst [vmem:[%s7 + $0x1c0] sm:$0xff] %v7785
  %7850 = vst [vmem:[%s7 + $0x1c8] sm:$0xff] %v7786
  %7851 = vst [vmem:[%s7 + $0x1d0] sm:$0xff] %v7787
  %7852 = vst [vmem:[%s7 + $0x1d8] sm:$0xff] %v7788
  %7853 = vst [vmem:[%s7 + $0x1e0] sm:$0xff] %v7789
  %7854 = vst [vmem:[%s7 + $0x1e8] sm:$0xff] %v7790
  %7855 = vst [vmem:[%s7 + $0x1f0] sm:$0xff] %v7791
  %7856 = vst [vmem:[%s7 + $0x1f8] sm:$0xff] %v7792
  // Predicated region
  $region30: #{video_encoder_sliding.1} parent=0 // pred_check
    _
  $region31: #{video_encoder_sliding.1} parent=0 // pred_check_branch
    %7858 = sbr.rel (0) target = $region33
  $region32: #{video_encoder_sliding.1} parent=0 // pred_region
    _
  $region33: #{video_encoder_sliding.1} parent=0 // pred_fallthru
    _
  // Predicated region
  $region34: #{video_encoder_sliding.1} parent=0 // pred_check
    _
  $region35: #{video_encoder_sliding.1} parent=0 // pred_check_branch
    %7860 = sbr.rel (0) target = $region37
  $region36: #{video_encoder_sliding.1} parent=0 // pred_region
    _
  $region37: #{video_encoder_sliding.1} parent=0 // pred_fallthru
    _

</llo_original>
